<compile_context>
chip_gen: v7x
topology: tpu7x:2x2x1
jax: 0.10.0
libtpu: 0.0.40
codegen_flags: <defaults>
</compile_context>

<pallas_src>
import jax
import jax.numpy as jnp
from jax.experimental import pallas as pl
from jax.experimental.pallas import tpu as pltpu


# ------------------------------ fused kernel -------------------------------

def _cnn_fused_kernel(x_ref, w1_ref, b1_ref, w2_ref, b2_ref, w3_ref, b3_ref,
                      w4_ref, b4_ref, fcw_ref, fcb_ref, out_ref,
                      apad_ref, apad2_ref, htmp_ref, col_ref):
    # x_ref    : (TB, H+2, W+2, 1)     spatially pre-padded input tile
    # w1_ref   : (9, 1, C)             conv1 weights, tap-major
    # w2..w4   : (9*C, C)              conv2-4 weights, K-stacked (tap, cin)
    # b*_ref   : (1, C)                biases
    # fcw_ref  : (C, num_classes)      fc weight (transposed)
    # fcb_ref  : (1, num_classes)
    # apad_ref : (TB, H+2, W+2, C)     zero-border padded activations (conv2 in)
    # apad2_ref: (TB, H/2+2, W/2+2, C) zero-border padded activations (conv3/4)
    # htmp_ref : (TB, H/2, W, C)       row-pair max staging for the fused pool
    # col_ref  : (TB*H*W, 9*C)         K-stacked im2col operand (shared)
    f32 = jnp.float32
    TB, Hp, Wp, _ = x_ref.shape
    H, W = Hp - 2, Wp - 2
    H2, W2 = H // 2, W // 2
    Hp2, Wp2 = H2 + 2, W2 + 2
    C = w1_ref.shape[-1]
    R1 = TB * H * W
    R2 = TB * H2 * W2

    # ---- zero ONLY the 1-px borders of the two padded scratches ------------
    # (interiors are fully overwritten below; every grid step stays
    #  self-contained so the batch axis can be megacore-parallel)
    apad_ref[:, 0, :, :] = jnp.zeros((TB, Wp, C), f32)
    apad_ref[:, H + 1, :, :] = jnp.zeros((TB, Wp, C), f32)
    apad_ref[:, :, 0, :] = jnp.zeros((TB, Hp, C), f32)
    apad_ref[:, :, W + 1, :] = jnp.zeros((TB, Hp, C), f32)
    apad2_ref[:, 0, :, :] = jnp.zeros((TB, Wp2, C), f32)
    apad2_ref[:, H2 + 1, :, :] = jnp.zeros((TB, Wp2, C), f32)
    apad2_ref[:, :, 0, :] = jnp.zeros((TB, Hp2, C), f32)
    apad2_ref[:, :, W2 + 1, :] = jnp.zeros((TB, Hp2, C), f32)

    # ---- conv1 (Cin=1): 9 VPU broadcast-FMA taps accumulated in a VALUE ----
    acc1 = None
    for t in range(9):
        dy, dx = divmod(t, 3)
        a = x_ref[:, dy:dy + H, dx:dx + W, :].reshape(R1, 1)
        term = a * w1_ref[t]                         # (R1,1)*(1,C) -> (R1,C)
        acc1 = term if acc1 is None else acc1 + term
    y = jnp.maximum(acc1 + b1_ref[...], 0.0)
    apad_ref[:, 1:H + 1, 1:W + 1, :] = y.reshape(TB, H, W, C)

    # ---- 3x3 'same' conv as ONE K-stacked MXU matmul (im2col in VMEM) ------
    def conv3x3(pad_ref, w_ref, b_ref, h, w, rows):
        for t in range(9):
            dy, dx = divmod(t, 3)
            col_ref[0:rows, t * C:(t + 1) * C] = (
                pad_ref[:, dy:dy + h, dx:dx + w, :].reshape(rows, C))
        acc = jnp.dot(col_ref[0:rows, :], w_ref[...],
                      preferred_element_type=f32)        # K = 9*C = 288
        return jnp.maximum(acc + b_ref[...], 0.0)

    # ---- conv2 + fused, vectorized 2x2 max-pool -----------------------------
    y = conv3x3(apad_ref, w2_ref, b2_ref, H, W, R1)      # (R1, C)
    v = y.reshape(TB, H2, 2, W, C)                        # split along major dims
    htmp_ref[...] = jnp.maximum(v[:, :, 0], v[:, :, 1])   # row-pair max (TB,H2,W,C)
    pooled = jnp.maximum(htmp_ref[:, :, pl.ds(0, W2, 2), :],
                         htmp_ref[:, :, pl.ds(1, W2, 2), :])   # column-pair max
    apad2_ref[:, 1:H2 + 1, 1:W2 + 1, :] = pooled          # (TB, H2, W2, C)

    # ---- conv3 / conv4 on the small padded scratch ---------------------------
    y = conv3x3(apad2_ref, w3_ref, b3_ref, H2, W2, R2)
    apad2_ref[:, 1:H2 + 1, 1:W2 + 1, :] = y.reshape(TB, H2, W2, C)
    y = conv3x3(apad2_ref, w4_ref, b4_ref, H2, W2, R2)

    # ---- head: MaxPool(2,2) + AdaptiveMaxPool((1,1)) collapse to one global
    #      spatial max; then Linear(C, classes) + log_softmax -----------------
    feat = jnp.max(y.reshape(TB, H2 * W2, C), axis=1)     # (TB, C)
    logits = jnp.dot(feat, fcw_ref[...],
                     preferred_element_type=f32) + fcb_ref[...]
    z = logits - jnp.max(logits, axis=-1, keepdims=True)
    out_ref[:, 0, :] = z - jnp.log(jnp.sum(jnp.exp(z), axis=-1, keepdims=True))


# ------------------------------ public wrapper ------------------------------

def _batch_tile(n: int) -> int:
    """Largest power-of-two divisor of n (<= 4), reduced so the grid has >= 2
    steps when possible (keeps both v7x TensorCores busy and bounds VMEM)."""
    tb = 1
    while tb * 2 <= min(4, n) and n % (tb * 2) == 0:
        tb *= 2
    while tb > 1 and n // tb < 2:
        tb //= 2
    return tb


@jax.jit
def cnn_net_forward(params, x_nchw):
    x = x_nchw.astype(jnp.float32)
    N, Cin, H, W = x.shape
    assert Cin == 1 and H % 2 == 0 and W % 2 == 0, "expects Cin=1, even H, W"
    C = params["w1"].shape[0]                       # 32
    num_classes = params["fc_w"].shape[0]           # 27
    H2, W2 = H // 2, W // 2
    TB = _batch_tile(N)
    n_blocks = N // TB

    # Tiny one-time layout glue: NCHW -> padded NHWC input, K-stacked weights.
    xp = jnp.pad(jnp.transpose(x, (0, 2, 3, 1)),
                 ((0, 0), (1, 1), (1, 1), (0, 0)))          # (N, H+2, W+2, 1)

    def stack_w(w):                       # (Cout,Cin,3,3) -> (9*Cin, Cout)
        cout, cin = w.shape[0], w.shape[1]
        return jnp.transpose(w, (2, 3, 1, 0)).reshape(9 * cin, cout)

    w1 = jnp.transpose(params["w1"], (2, 3, 1, 0)).reshape(9, 1, C)
    w2s, w3s, w4s = (stack_w(params["w2"]), stack_w(params["w3"]),
                     stack_w(params["w4"]))
    b1, b2 = params["b1"].reshape(1, C), params["b2"].reshape(1, C)
    b3, b4 = params["b3"].reshape(1, C), params["b4"].reshape(1, C)
    fcw = params["fc_w"].T                                      # (C, classes)
    fcb = params["fc_b"].reshape(1, num_classes)

    const2 = lambda b: (0, 0)
    const3 = lambda b: (0, 0, 0)

    out3d = pl.pallas_call(
        _cnn_fused_kernel,
        out_shape=jax.ShapeDtypeStruct((N, 1, num_classes), jnp.float32),
        grid_spec=pltpu.PrefetchScalarGridSpec(
            num_scalar_prefetch=0,
            grid=(n_blocks,),
            in_specs=[
                pl.BlockSpec((TB, H + 2, W + 2, 1), lambda b: (b, 0, 0, 0)),
                pl.BlockSpec((9, 1, C), const3),        # w1 (resident)
                pl.BlockSpec((1, C), const2),           # b1
                pl.BlockSpec((9 * C, C), const2),       # w2 stacked
                pl.BlockSpec((1, C), const2),           # b2
                pl.BlockSpec((9 * C, C), const2),       # w3 stacked
                pl.BlockSpec((1, C), const2),           # b3
                pl.BlockSpec((9 * C, C), const2),       # w4 stacked
                pl.BlockSpec((1, C), const2),           # b4
                pl.BlockSpec((C, num_classes), const2), # fc weight
                pl.BlockSpec((1, num_classes), const2), # fc bias
            ],
            out_specs=pl.BlockSpec((TB, 1, num_classes), lambda b: (b, 0, 0)),
            scratch_shapes=[
                pltpu.VMEM((TB, H + 2, W + 2, C), jnp.float32),      # conv2 pad
                pltpu.VMEM((TB, H2 + 2, W2 + 2, C), jnp.float32),    # conv3/4 pad
                pltpu.VMEM((TB, H2, W, C), jnp.float32),             # pool staging
                pltpu.VMEM((TB * H * W, 9 * C), jnp.float32),        # im2col (K-stack)
            ],
        ),
        compiler_params=pltpu.CompilerParams(
            dimension_semantics=("parallel",),
        ),
    )(xp, w1, b1, w2s, b2, w3s, b3, w4s, b4, fcw, fcb)

    # nn.Dropout(p=0.2) is defined in __init__ but never used in forward -> no-op.
    return out3d.reshape(N, num_classes)


# ------------------------------ params / reference --------------------------

def init_params(key):
    ks = jax.random.split(key, 10)

    def conv_w(k, cout, cin):
        return jax.random.uniform(k, (cout, cin, 3, 3), jnp.float32,
                                  -1.0, 1.0) / jnp.sqrt(cin * 9.0)

    return {
        "w1": conv_w(ks[0], 32, 1),
        "b1": jax.random.uniform(ks[1], (32,), jnp.float32, -0.1, 0.1),
        "w2": conv_w(ks[2], 32, 32),
        "b2": jax.random.uniform(ks[3], (32,), jnp.float32, -0.1, 0.1),
        "w3": conv_w(ks[4], 32, 32),
        "b3": jax.random.uniform(ks[5], (32,), jnp.float32, -0.1, 0.1),
        "w4": conv_w(ks[6], 32, 32),
        "b4": jax.random.uniform(ks[7], (32,), jnp.float32, -0.1, 0.1),
        "fc_w": jax.random.uniform(ks[8], (27, 32), jnp.float32,
                                   -1.0, 1.0) / jnp.sqrt(32.0),
        "fc_b": jax.random.uniform(ks[9], (27,), jnp.float32, -0.1, 0.1),
    }


def reference_forward(params, x_nchw):
    """Pure-JAX (XLA) reference matching the PyTorch forward semantics."""
    def conv(x, w, b):
        y = jax.lax.conv_general_dilated(
            x, w, window_strides=(1, 1), padding=((1, 1), (1, 1)),
            dimension_numbers=("NCHW", "OIHW", "NCHW"))
        return jax.nn.relu(y + b.reshape(1, -1, 1, 1))

    def pool(x):
        return jax.lax.reduce_window(x, -jnp.inf, jax.lax.max,
                                     (1, 1, 2, 2), (1, 1, 2, 2), "VALID")

    x = x_nchw.astype(jnp.float32)
    x = conv(x, params["w1"], params["b1"])
    x = conv(x, params["w2"], params["b2"])
    x = pool(x)
    x = conv(x, params["w3"], params["b3"])
    x = conv(x, params["w4"], params["b4"])
    x = pool(x)
    x = jnp.max(x, axis=(2, 3))                 # AdaptiveMaxPool2d((1,1)) + flatten
    logits = x @ params["fc_w"].T + params["fc_b"]
    return jax.nn.log_softmax(logits, axis=1)


if __name__ == "__main__":
    key = jax.random.PRNGKey(0)
    pkey, xkey = jax.random.split(key)
    params = init_params(pkey)
    x = jax.random.normal(xkey, (2, 1, 16, 16), jnp.float32)   # NCHW, like PyTorch

    out = jax.block_until_ready(cnn_net_forward(params, x))
    assert out.shape == (2, 27), out.shape

    ref = jax.block_until_ready(reference_forward(params, x))
    if not jnp.allclose(out, ref, atol=2e-3, rtol=2e-3):
        max_err = float(jnp.max(jnp.abs(out - ref)))
        raise AssertionError(f"Pallas output mismatch, max abs err = {max_err}")

    print("KERNEL_OK")
</pallas_src>

<mosaic_0001>
module attributes {stable_mosaic.version = 11 : i64} {
  func.func @_cnn_fused_kernel(%arg0: i32, %arg1: memref<1x18x18x1xf32, #tpu.memory_space<vmem>>, %arg2: memref<9x1x32xf32, #tpu.memory_space<vmem>>, %arg3: memref<1x32xf32, #tpu.memory_space<vmem>>, %arg4: memref<288x32xf32, #tpu.memory_space<vmem>>, %arg5: memref<1x32xf32, #tpu.memory_space<vmem>>, %arg6: memref<288x32xf32, #tpu.memory_space<vmem>>, %arg7: memref<1x32xf32, #tpu.memory_space<vmem>>, %arg8: memref<288x32xf32, #tpu.memory_space<vmem>>, %arg9: memref<1x32xf32, #tpu.memory_space<vmem>>, %arg10: memref<32x27xf32, #tpu.memory_space<vmem>>, %arg11: memref<1x27xf32, #tpu.memory_space<vmem>>, %arg12: memref<1x1x27xf32, #tpu.memory_space<vmem>>, %arg13: memref<1x18x18x32xf32, #tpu.memory_space<vmem>>, %arg14: memref<1x10x10x32xf32, #tpu.memory_space<vmem>>, %arg15: memref<1x8x16x32xf32, #tpu.memory_space<vmem>>, %arg16: memref<256x288xf32, #tpu.memory_space<vmem>>) attributes {dimension_semantics = [#tpu.dimension_semantics<parallel>], iteration_bounds = array<i64: 2>, scalar_prefetch = 0 : i64, scratch_operands = 4 : i64, tpu.core_type = #tpu.core_type<tc>, window_params = [{transform_indices = @transform_0, window_bounds = array<i64: 1, 18, 18, 1>}, {pipeline_mode = #tpu.pipeline_mode<synchronous>, transform_indices = @transform_1, window_bounds = array<i64: 9, 1, 32>}, {pipeline_mode = #tpu.pipeline_mode<synchronous>, transform_indices = @transform_2, window_bounds = array<i64: 1, 32>}, {pipeline_mode = #tpu.pipeline_mode<synchronous>, transform_indices = @transform_3, window_bounds = array<i64: 288, 32>}, {pipeline_mode = #tpu.pipeline_mode<synchronous>, transform_indices = @transform_4, window_bounds = array<i64: 1, 32>}, {pipeline_mode = #tpu.pipeline_mode<synchronous>, transform_indices = @transform_5, window_bounds = array<i64: 288, 32>}, {pipeline_mode = #tpu.pipeline_mode<synchronous>, transform_indices = @transform_6, window_bounds = array<i64: 1, 32>}, {pipeline_mode = #tpu.pipeline_mode<synchronous>, transform_indices = @transform_7, window_bounds = array<i64: 288, 32>}, {pipeline_mode = #tpu.pipeline_mode<synchronous>, transform_indices = @transform_8, window_bounds = array<i64: 1, 32>}, {pipeline_mode = #tpu.pipeline_mode<synchronous>, transform_indices = @transform_9, window_bounds = array<i64: 32, 27>}, {pipeline_mode = #tpu.pipeline_mode<synchronous>, transform_indices = @transform_10, window_bounds = array<i64: 1, 27>}, {transform_indices = @transform_11, window_bounds = array<i64: 1, 1, 27>}]} {
    %cst = arith.constant 0.000000e+00 : f32
    %0 = vector.broadcast %cst : f32 to vector<1x18x32xf32>
    %c0 = arith.constant 0 : index
    %c0_0 = arith.constant 0 : index
    %c0_1 = arith.constant 0 : index
    %c0_2 = arith.constant 0 : index
    %1 = vector.load %arg13[%c0, %c0_0, %c0_1, %c0_2] : memref<1x18x18x32xf32, #tpu.memory_space<vmem>>, vector<1x1x18x32xf32>
    %2 = vector.shape_cast %1 : vector<1x1x18x32xf32> to vector<1x18x32xf32>
    %3 = vector.shape_cast %0 : vector<1x18x32xf32> to vector<1x1x18x32xf32>
    tpu.vector_store %arg13[%c0, %c0_0, %c0_1, %c0_2], %3 {strides = array<i32>} : memref<1x18x18x32xf32, #tpu.memory_space<vmem>>, vector<1x1x18x32xf32>,
    %cst_3 = arith.constant 0.000000e+00 : f32
    %4 = vector.broadcast %cst_3 : f32 to vector<1x18x32xf32>
    %c0_4 = arith.constant 0 : index
    %c17 = arith.constant 17 : index
    %c0_5 = arith.constant 0 : index
    %c0_6 = arith.constant 0 : index
    %5 = vector.load %arg13[%c0_4, %c17, %c0_5, %c0_6] : memref<1x18x18x32xf32, #tpu.memory_space<vmem>>, vector<1x1x18x32xf32>
    %6 = vector.shape_cast %5 : vector<1x1x18x32xf32> to vector<1x18x32xf32>
    %7 = vector.shape_cast %4 : vector<1x18x32xf32> to vector<1x1x18x32xf32>
    tpu.vector_store %arg13[%c0_4, %c17, %c0_5, %c0_6], %7 {strides = array<i32>} : memref<1x18x18x32xf32, #tpu.memory_space<vmem>>, vector<1x1x18x32xf32>,
    %cst_7 = arith.constant 0.000000e+00 : f32
    %8 = vector.broadcast %cst_7 : f32 to vector<1x18x32xf32>
    %c0_8 = arith.constant 0 : index
    %c0_9 = arith.constant 0 : index
    %c0_10 = arith.constant 0 : index
    %c0_11 = arith.constant 0 : index
    %9 = vector.load %arg13[%c0_8, %c0_9, %c0_10, %c0_11] : memref<1x18x18x32xf32, #tpu.memory_space<vmem>>, vector<1x18x1x32xf32>
    %10 = vector.shape_cast %9 : vector<1x18x1x32xf32> to vector<1x18x32xf32>
    %11 = vector.shape_cast %8 : vector<1x18x32xf32> to vector<1x18x1x32xf32>
    tpu.vector_store %arg13[%c0_8, %c0_9, %c0_10, %c0_11], %11 {strides = array<i32>} : memref<1x18x18x32xf32, #tpu.memory_space<vmem>>, vector<1x18x1x32xf32>,
    %cst_12 = arith.constant 0.000000e+00 : f32
    %12 = vector.broadcast %cst_12 : f32 to vector<1x18x32xf32>
    %c0_13 = arith.constant 0 : index
    %c0_14 = arith.constant 0 : index
    %c17_15 = arith.constant 17 : index
    %c0_16 = arith.constant 0 : index
    %13 = vector.load %arg13[%c0_13, %c0_14, %c17_15, %c0_16] : memref<1x18x18x32xf32, #tpu.memory_space<vmem>>, vector<1x18x1x32xf32>
    %14 = vector.shape_cast %13 : vector<1x18x1x32xf32> to vector<1x18x32xf32>
    %15 = vector.shape_cast %12 : vector<1x18x32xf32> to vector<1x18x1x32xf32>
    tpu.vector_store %arg13[%c0_13, %c0_14, %c17_15, %c0_16], %15 {strides = array<i32>} : memref<1x18x18x32xf32, #tpu.memory_space<vmem>>, vector<1x18x1x32xf32>,
    %cst_17 = arith.constant 0.000000e+00 : f32
    %16 = vector.broadcast %cst_17 : f32 to vector<1x10x32xf32>
    %c0_18 = arith.constant 0 : index
    %c0_19 = arith.constant 0 : index
    %c0_20 = arith.constant 0 : index
    %c0_21 = arith.constant 0 : index
    %17 = vector.load %arg14[%c0_18, %c0_19, %c0_20, %c0_21] : memref<1x10x10x32xf32, #tpu.memory_space<vmem>>, vector<1x1x10x32xf32>
    %18 = vector.shape_cast %17 : vector<1x1x10x32xf32> to vector<1x10x32xf32>
    %19 = vector.shape_cast %16 : vector<1x10x32xf32> to vector<1x1x10x32xf32>
    tpu.vector_store %arg14[%c0_18, %c0_19, %c0_20, %c0_21], %19 {strides = array<i32>} : memref<1x10x10x32xf32, #tpu.memory_space<vmem>>, vector<1x1x10x32xf32>,
    %cst_22 = arith.constant 0.000000e+00 : f32
    %20 = vector.broadcast %cst_22 : f32 to vector<1x10x32xf32>
    %c0_23 = arith.constant 0 : index
    %c9 = arith.constant 9 : index
    %c0_24 = arith.constant 0 : index
    %c0_25 = arith.constant 0 : index
    %21 = vector.load %arg14[%c0_23, %c9, %c0_24, %c0_25] : memref<1x10x10x32xf32, #tpu.memory_space<vmem>>, vector<1x1x10x32xf32>
    %22 = vector.shape_cast %21 : vector<1x1x10x32xf32> to vector<1x10x32xf32>
    %23 = vector.shape_cast %20 : vector<1x10x32xf32> to vector<1x1x10x32xf32>
    tpu.vector_store %arg14[%c0_23, %c9, %c0_24, %c0_25], %23 {strides = array<i32>} : memref<1x10x10x32xf32, #tpu.memory_space<vmem>>, vector<1x1x10x32xf32>,
    %cst_26 = arith.constant 0.000000e+00 : f32
    %24 = vector.broadcast %cst_26 : f32 to vector<1x10x32xf32>
    %c0_27 = arith.constant 0 : index
    %c0_28 = arith.constant 0 : index
    %c0_29 = arith.constant 0 : index
    %c0_30 = arith.constant 0 : index
    %25 = vector.load %arg14[%c0_27, %c0_28, %c0_29, %c0_30] : memref<1x10x10x32xf32, #tpu.memory_space<vmem>>, vector<1x10x1x32xf32>
    %26 = vector.shape_cast %25 : vector<1x10x1x32xf32> to vector<1x10x32xf32>
    %27 = vector.shape_cast %24 : vector<1x10x32xf32> to vector<1x10x1x32xf32>
    tpu.vector_store %arg14[%c0_27, %c0_28, %c0_29, %c0_30], %27 {strides = array<i32>} : memref<1x10x10x32xf32, #tpu.memory_space<vmem>>, vector<1x10x1x32xf32>,
    %cst_31 = arith.constant 0.000000e+00 : f32
    %28 = vector.broadcast %cst_31 : f32 to vector<1x10x32xf32>
    %c0_32 = arith.constant 0 : index
    %c0_33 = arith.constant 0 : index
    %c9_34 = arith.constant 9 : index
    %c0_35 = arith.constant 0 : index
    %29 = vector.load %arg14[%c0_32, %c0_33, %c9_34, %c0_35] : memref<1x10x10x32xf32, #tpu.memory_space<vmem>>, vector<1x10x1x32xf32>
    %30 = vector.shape_cast %29 : vector<1x10x1x32xf32> to vector<1x10x32xf32>
    %31 = vector.shape_cast %28 : vector<1x10x32xf32> to vector<1x10x1x32xf32>
    tpu.vector_store %arg14[%c0_32, %c0_33, %c9_34, %c0_35], %31 {strides = array<i32>} : memref<1x10x10x32xf32, #tpu.memory_space<vmem>>, vector<1x10x1x32xf32>,
    %c0_36 = arith.constant 0 : index
    %c0_37 = arith.constant 0 : index
    %c0_38 = arith.constant 0 : index
    %c0_39 = arith.constant 0 : index
    %32 = vector.load %arg1[%c0_36, %c0_37, %c0_38, %c0_39] : memref<1x18x18x1xf32, #tpu.memory_space<vmem>>, vector<1x16x16x1xf32>
    %33 = vector.shape_cast %32 : vector<1x16x16x1xf32> to vector<256x1xf32>
    %c0_40 = arith.constant 0 : index
    %c0_41 = arith.constant 0 : index
    %c0_42 = arith.constant 0 : index
    %34 = vector.load %arg2[%c0_40, %c0_41, %c0_42] : memref<9x1x32xf32, #tpu.memory_space<vmem>>, vector<1x1x32xf32>
    %35 = vector.shape_cast %34 : vector<1x1x32xf32> to vector<1x32xf32>
    %36 = vector.broadcast %33 : vector<256x1xf32> to vector<256x32xf32>
    %37 = vector.broadcast %35 : vector<1x32xf32> to vector<256x32xf32>
    %38 = arith.mulf %36, %37 : vector<256x32xf32>
    %c0_43 = arith.constant 0 : index
    %c0_44 = arith.constant 0 : index
    %c1 = arith.constant 1 : index
    %c0_45 = arith.constant 0 : index
    %39 = vector.load %arg1[%c0_43, %c0_44, %c1, %c0_45] : memref<1x18x18x1xf32, #tpu.memory_space<vmem>>, vector<1x16x16x1xf32>
    %40 = vector.shape_cast %39 : vector<1x16x16x1xf32> to vector<256x1xf32>
    %c1_46 = arith.constant 1 : index
    %c0_47 = arith.constant 0 : index
    %c0_48 = arith.constant 0 : index
    %41 = vector.load %arg2[%c1_46, %c0_47, %c0_48] : memref<9x1x32xf32, #tpu.memory_space<vmem>>, vector<1x1x32xf32>
    %42 = vector.shape_cast %41 : vector<1x1x32xf32> to vector<1x32xf32>
    %43 = vector.broadcast %40 : vector<256x1xf32> to vector<256x32xf32>
    %44 = vector.broadcast %42 : vector<1x32xf32> to vector<256x32xf32>
    %45 = arith.mulf %43, %44 : vector<256x32xf32>
    %46 = arith.addf %38, %45 : vector<256x32xf32>
    %c0_49 = arith.constant 0 : index
    %c0_50 = arith.constant 0 : index
    %c2 = arith.constant 2 : index
    %c0_51 = arith.constant 0 : index
    %47 = vector.load %arg1[%c0_49, %c0_50, %c2, %c0_51] : memref<1x18x18x1xf32, #tpu.memory_space<vmem>>, vector<1x16x16x1xf32>
    %48 = vector.shape_cast %47 : vector<1x16x16x1xf32> to vector<256x1xf32>
    %c2_52 = arith.constant 2 : index
    %c0_53 = arith.constant 0 : index
    %c0_54 = arith.constant 0 : index
    %49 = vector.load %arg2[%c2_52, %c0_53, %c0_54] : memref<9x1x32xf32, #tpu.memory_space<vmem>>, vector<1x1x32xf32>
    %50 = vector.shape_cast %49 : vector<1x1x32xf32> to vector<1x32xf32>
    %51 = vector.broadcast %48 : vector<256x1xf32> to vector<256x32xf32>
    %52 = vector.broadcast %50 : vector<1x32xf32> to vector<256x32xf32>
    %53 = arith.mulf %51, %52 : vector<256x32xf32>
    %54 = arith.addf %46, %53 : vector<256x32xf32>
    %c0_55 = arith.constant 0 : index
    %c1_56 = arith.constant 1 : index
    %c0_57 = arith.constant 0 : index
    %c0_58 = arith.constant 0 : index
    %55 = vector.load %arg1[%c0_55, %c1_56, %c0_57, %c0_58] : memref<1x18x18x1xf32, #tpu.memory_space<vmem>>, vector<1x16x16x1xf32>
    %56 = vector.shape_cast %55 : vector<1x16x16x1xf32> to vector<256x1xf32>
    %c3 = arith.constant 3 : index
    %c0_59 = arith.constant 0 : index
    %c0_60 = arith.constant 0 : index
    %57 = vector.load %arg2[%c3, %c0_59, %c0_60] : memref<9x1x32xf32, #tpu.memory_space<vmem>>, vector<1x1x32xf32>
    %58 = vector.shape_cast %57 : vector<1x1x32xf32> to vector<1x32xf32>
    %59 = vector.broadcast %56 : vector<256x1xf32> to vector<256x32xf32>
    %60 = vector.broadcast %58 : vector<1x32xf32> to vector<256x32xf32>
    %61 = arith.mulf %59, %60 : vector<256x32xf32>
    %62 = arith.addf %54, %61 : vector<256x32xf32>
    %c0_61 = arith.constant 0 : index
    %c1_62 = arith.constant 1 : index
    %c1_63 = arith.constant 1 : index
    %c0_64 = arith.constant 0 : index
    %63 = vector.load %arg1[%c0_61, %c1_62, %c1_63, %c0_64] : memref<1x18x18x1xf32, #tpu.memory_space<vmem>>, vector<1x16x16x1xf32>
    %64 = vector.shape_cast %63 : vector<1x16x16x1xf32> to vector<256x1xf32>
    %c4 = arith.constant 4 : index
    %c0_65 = arith.constant 0 : index
    %c0_66 = arith.constant 0 : index
    %65 = vector.load %arg2[%c4, %c0_65, %c0_66] : memref<9x1x32xf32, #tpu.memory_space<vmem>>, vector<1x1x32xf32>
    %66 = vector.shape_cast %65 : vector<1x1x32xf32> to vector<1x32xf32>
    %67 = vector.broadcast %64 : vector<256x1xf32> to vector<256x32xf32>
    %68 = vector.broadcast %66 : vector<1x32xf32> to vector<256x32xf32>
    %69 = arith.mulf %67, %68 : vector<256x32xf32>
    %70 = arith.addf %62, %69 : vector<256x32xf32>
    %c0_67 = arith.constant 0 : index
    %c1_68 = arith.constant 1 : index
    %c2_69 = arith.constant 2 : index
    %c0_70 = arith.constant 0 : index
    %71 = vector.load %arg1[%c0_67, %c1_68, %c2_69, %c0_70] : memref<1x18x18x1xf32, #tpu.memory_space<vmem>>, vector<1x16x16x1xf32>
    %72 = vector.shape_cast %71 : vector<1x16x16x1xf32> to vector<256x1xf32>
    %c5 = arith.constant 5 : index
    %c0_71 = arith.constant 0 : index
    %c0_72 = arith.constant 0 : index
    %73 = vector.load %arg2[%c5, %c0_71, %c0_72] : memref<9x1x32xf32, #tpu.memory_space<vmem>>, vector<1x1x32xf32>
    %74 = vector.shape_cast %73 : vector<1x1x32xf32> to vector<1x32xf32>
    %75 = vector.broadcast %72 : vector<256x1xf32> to vector<256x32xf32>
    %76 = vector.broadcast %74 : vector<1x32xf32> to vector<256x32xf32>
    %77 = arith.mulf %75, %76 : vector<256x32xf32>
    %78 = arith.addf %70, %77 : vector<256x32xf32>
    %c0_73 = arith.constant 0 : index
    %c2_74 = arith.constant 2 : index
    %c0_75 = arith.constant 0 : index
    %c0_76 = arith.constant 0 : index
    %79 = vector.load %arg1[%c0_73, %c2_74, %c0_75, %c0_76] : memref<1x18x18x1xf32, #tpu.memory_space<vmem>>, vector<1x16x16x1xf32>
    %80 = vector.shape_cast %79 : vector<1x16x16x1xf32> to vector<256x1xf32>
    %c6 = arith.constant 6 : index
    %c0_77 = arith.constant 0 : index
    %c0_78 = arith.constant 0 : index
    %81 = vector.load %arg2[%c6, %c0_77, %c0_78] : memref<9x1x32xf32, #tpu.memory_space<vmem>>, vector<1x1x32xf32>
    %82 = vector.shape_cast %81 : vector<1x1x32xf32> to vector<1x32xf32>
    %83 = vector.broadcast %80 : vector<256x1xf32> to vector<256x32xf32>
    %84 = vector.broadcast %82 : vector<1x32xf32> to vector<256x32xf32>
    %85 = arith.mulf %83, %84 : vector<256x32xf32>
    %86 = arith.addf %78, %85 : vector<256x32xf32>
    %c0_79 = arith.constant 0 : index
    %c2_80 = arith.constant 2 : index
    %c1_81 = arith.constant 1 : index
    %c0_82 = arith.constant 0 : index
    %87 = vector.load %arg1[%c0_79, %c2_80, %c1_81, %c0_82] : memref<1x18x18x1xf32, #tpu.memory_space<vmem>>, vector<1x16x16x1xf32>
    %88 = vector.shape_cast %87 : vector<1x16x16x1xf32> to vector<256x1xf32>
    %c7 = arith.constant 7 : index
    %c0_83 = arith.constant 0 : index
    %c0_84 = arith.constant 0 : index
    %89 = vector.load %arg2[%c7, %c0_83, %c0_84] : memref<9x1x32xf32, #tpu.memory_space<vmem>>, vector<1x1x32xf32>
    %90 = vector.shape_cast %89 : vector<1x1x32xf32> to vector<1x32xf32>
    %91 = vector.broadcast %88 : vector<256x1xf32> to vector<256x32xf32>
    %92 = vector.broadcast %90 : vector<1x32xf32> to vector<256x32xf32>
    %93 = arith.mulf %91, %92 : vector<256x32xf32>
    %94 = arith.addf %86, %93 : vector<256x32xf32>
    %c0_85 = arith.constant 0 : index
    %c2_86 = arith.constant 2 : index
    %c2_87 = arith.constant 2 : index
    %c0_88 = arith.constant 0 : index
    %95 = vector.load %arg1[%c0_85, %c2_86, %c2_87, %c0_88] : memref<1x18x18x1xf32, #tpu.memory_space<vmem>>, vector<1x16x16x1xf32>
    %96 = vector.shape_cast %95 : vector<1x16x16x1xf32> to vector<256x1xf32>
    %c8 = arith.constant 8 : index
    %c0_89 = arith.constant 0 : index
    %c0_90 = arith.constant 0 : index
    %97 = vector.load %arg2[%c8, %c0_89, %c0_90] : memref<9x1x32xf32, #tpu.memory_space<vmem>>, vector<1x1x32xf32>
    %98 = vector.shape_cast %97 : vector<1x1x32xf32> to vector<1x32xf32>
    %99 = vector.broadcast %96 : vector<256x1xf32> to vector<256x32xf32>
    %100 = vector.broadcast %98 : vector<1x32xf32> to vector<256x32xf32>
    %101 = arith.mulf %99, %100 : vector<256x32xf32>
    %102 = arith.addf %94, %101 : vector<256x32xf32>
    %c0_91 = arith.constant 0 : index
    %c0_92 = arith.constant 0 : index
    %103 = vector.load %arg3[%c0_91, %c0_92] : memref<1x32xf32, #tpu.memory_space<vmem>>, vector<1x32xf32>
    %104 = vector.broadcast %103 : vector<1x32xf32> to vector<256x32xf32>
    %105 = arith.addf %102, %104 : vector<256x32xf32>
    %cst_93 = arith.constant 0.000000e+00 : f32
    %106 = vector.broadcast %cst_93 : f32 to vector<256x32xf32>
    %107 = arith.maximumf %105, %106 : vector<256x32xf32>
    %108 = vector.shape_cast %107 : vector<256x32xf32> to vector<1x16x16x32xf32>
    %c0_94 = arith.constant 0 : index
    %c1_95 = arith.constant 1 : index
    %c1_96 = arith.constant 1 : index
    %c0_97 = arith.constant 0 : index
    %109 = vector.load %arg13[%c0_94, %c1_95, %c1_96, %c0_97] : memref<1x18x18x32xf32, #tpu.memory_space<vmem>>, vector<1x16x16x32xf32>
    tpu.vector_store %arg13[%c0_94, %c1_95, %c1_96, %c0_97], %108 {strides = array<i32>} : memref<1x18x18x32xf32, #tpu.memory_space<vmem>>, vector<1x16x16x32xf32>,
    %c0_98 = arith.constant 0 : index
    %c0_99 = arith.constant 0 : index
    %c0_100 = arith.constant 0 : index
    %c0_101 = arith.constant 0 : index
    %110 = vector.load %arg13[%c0_98, %c0_99, %c0_100, %c0_101] : memref<1x18x18x32xf32, #tpu.memory_space<vmem>>, vector<1x16x16x32xf32>
    %111 = vector.shape_cast %110 : vector<1x16x16x32xf32> to vector<256x32xf32>
    %c0_102 = arith.constant 0 : index
    %c0_103 = arith.constant 0 : index
    %112 = vector.load %arg16[%c0_102, %c0_103] : memref<256x288xf32, #tpu.memory_space<vmem>>, vector<256x32xf32>
    tpu.vector_store %arg16[%c0_102, %c0_103], %111 {strides = array<i32>} : memref<256x288xf32, #tpu.memory_space<vmem>>, vector<256x32xf32>,
    %c0_104 = arith.constant 0 : index
    %c0_105 = arith.constant 0 : index
    %c1_106 = arith.constant 1 : index
    %c0_107 = arith.constant 0 : index
    %113 = vector.load %arg13[%c0_104, %c0_105, %c1_106, %c0_107] : memref<1x18x18x32xf32, #tpu.memory_space<vmem>>, vector<1x16x16x32xf32>
    %114 = vector.shape_cast %113 : vector<1x16x16x32xf32> to vector<256x32xf32>
    %c0_108 = arith.constant 0 : index
    %c32 = arith.constant 32 : index
    %115 = vector.load %arg16[%c0_108, %c32] : memref<256x288xf32, #tpu.memory_space<vmem>>, vector<256x32xf32>
    tpu.vector_store %arg16[%c0_108, %c32], %114 {strides = array<i32>} : memref<256x288xf32, #tpu.memory_space<vmem>>, vector<256x32xf32>,
    %c0_109 = arith.constant 0 : index
    %c0_110 = arith.constant 0 : index
    %c2_111 = arith.constant 2 : index
    %c0_112 = arith.constant 0 : index
    %116 = vector.load %arg13[%c0_109, %c0_110, %c2_111, %c0_112] : memref<1x18x18x32xf32, #tpu.memory_space<vmem>>, vector<1x16x16x32xf32>
    %117 = vector.shape_cast %116 : vector<1x16x16x32xf32> to vector<256x32xf32>
    %c0_113 = arith.constant 0 : index
    %c64 = arith.constant 64 : index
    %118 = vector.load %arg16[%c0_113, %c64] : memref<256x288xf32, #tpu.memory_space<vmem>>, vector<256x32xf32>
    tpu.vector_store %arg16[%c0_113, %c64], %117 {strides = array<i32>} : memref<256x288xf32, #tpu.memory_space<vmem>>, vector<256x32xf32>,
    %c0_114 = arith.constant 0 : index
    %c1_115 = arith.constant 1 : index
    %c0_116 = arith.constant 0 : index
    %c0_117 = arith.constant 0 : index
    %119 = vector.load %arg13[%c0_114, %c1_115, %c0_116, %c0_117] : memref<1x18x18x32xf32, #tpu.memory_space<vmem>>, vector<1x16x16x32xf32>
    %120 = vector.shape_cast %119 : vector<1x16x16x32xf32> to vector<256x32xf32>
    %c0_118 = arith.constant 0 : index
    %c96 = arith.constant 96 : index
    %121 = vector.load %arg16[%c0_118, %c96] : memref<256x288xf32, #tpu.memory_space<vmem>>, vector<256x32xf32>
    tpu.vector_store %arg16[%c0_118, %c96], %120 {strides = array<i32>} : memref<256x288xf32, #tpu.memory_space<vmem>>, vector<256x32xf32>,
    %c0_119 = arith.constant 0 : index
    %c1_120 = arith.constant 1 : index
    %c1_121 = arith.constant 1 : index
    %c0_122 = arith.constant 0 : index
    %122 = vector.load %arg13[%c0_119, %c1_120, %c1_121, %c0_122] : memref<1x18x18x32xf32, #tpu.memory_space<vmem>>, vector<1x16x16x32xf32>
    %123 = vector.shape_cast %122 : vector<1x16x16x32xf32> to vector<256x32xf32>
    %c0_123 = arith.constant 0 : index
    %c128 = arith.constant 128 : index
    %124 = vector.load %arg16[%c0_123, %c128] : memref<256x288xf32, #tpu.memory_space<vmem>>, vector<256x32xf32>
    tpu.vector_store %arg16[%c0_123, %c128], %123 {strides = array<i32>} : memref<256x288xf32, #tpu.memory_space<vmem>>, vector<256x32xf32>,
    %c0_124 = arith.constant 0 : index
    %c1_125 = arith.constant 1 : index
    %c2_126 = arith.constant 2 : index
    %c0_127 = arith.constant 0 : index
    %125 = vector.load %arg13[%c0_124, %c1_125, %c2_126, %c0_127] : memref<1x18x18x32xf32, #tpu.memory_space<vmem>>, vector<1x16x16x32xf32>
    %126 = vector.shape_cast %125 : vector<1x16x16x32xf32> to vector<256x32xf32>
    %c0_128 = arith.constant 0 : index
    %c160 = arith.constant 160 : index
    %127 = vector.load %arg16[%c0_128, %c160] : memref<256x288xf32, #tpu.memory_space<vmem>>, vector<256x32xf32>
    tpu.vector_store %arg16[%c0_128, %c160], %126 {strides = array<i32>} : memref<256x288xf32, #tpu.memory_space<vmem>>, vector<256x32xf32>,
    %c0_129 = arith.constant 0 : index
    %c2_130 = arith.constant 2 : index
    %c0_131 = arith.constant 0 : index
    %c0_132 = arith.constant 0 : index
    %128 = vector.load %arg13[%c0_129, %c2_130, %c0_131, %c0_132] : memref<1x18x18x32xf32, #tpu.memory_space<vmem>>, vector<1x16x16x32xf32>
    %129 = vector.shape_cast %128 : vector<1x16x16x32xf32> to vector<256x32xf32>
    %c0_133 = arith.constant 0 : index
    %c192 = arith.constant 192 : index
    %130 = vector.load %arg16[%c0_133, %c192] : memref<256x288xf32, #tpu.memory_space<vmem>>, vector<256x32xf32>
    tpu.vector_store %arg16[%c0_133, %c192], %129 {strides = array<i32>} : memref<256x288xf32, #tpu.memory_space<vmem>>, vector<256x32xf32>,
    %c0_134 = arith.constant 0 : index
    %c2_135 = arith.constant 2 : index
    %c1_136 = arith.constant 1 : index
    %c0_137 = arith.constant 0 : index
    %131 = vector.load %arg13[%c0_134, %c2_135, %c1_136, %c0_137] : memref<1x18x18x32xf32, #tpu.memory_space<vmem>>, vector<1x16x16x32xf32>
    %132 = vector.shape_cast %131 : vector<1x16x16x32xf32> to vector<256x32xf32>
    %c0_138 = arith.constant 0 : index
    %c224 = arith.constant 224 : index
    %133 = vector.load %arg16[%c0_138, %c224] : memref<256x288xf32, #tpu.memory_space<vmem>>, vector<256x32xf32>
    tpu.vector_store %arg16[%c0_138, %c224], %132 {strides = array<i32>} : memref<256x288xf32, #tpu.memory_space<vmem>>, vector<256x32xf32>,
    %c0_139 = arith.constant 0 : index
    %c2_140 = arith.constant 2 : index
    %c2_141 = arith.constant 2 : index
    %c0_142 = arith.constant 0 : index
    %134 = vector.load %arg13[%c0_139, %c2_140, %c2_141, %c0_142] : memref<1x18x18x32xf32, #tpu.memory_space<vmem>>, vector<1x16x16x32xf32>
    %135 = vector.shape_cast %134 : vector<1x16x16x32xf32> to vector<256x32xf32>
    %c0_143 = arith.constant 0 : index
    %c256 = arith.constant 256 : index
    %136 = vector.load %arg16[%c0_143, %c256] : memref<256x288xf32, #tpu.memory_space<vmem>>, vector<256x32xf32>
    tpu.vector_store %arg16[%c0_143, %c256], %135 {strides = array<i32>} : memref<256x288xf32, #tpu.memory_space<vmem>>, vector<256x32xf32>,
    %c0_144 = arith.constant 0 : index
    %c0_145 = arith.constant 0 : index
    %137 = vector.load %arg16[%c0_144, %c0_145] : memref<256x288xf32, #tpu.memory_space<vmem>>, vector<256x288xf32>
    %c0_146 = arith.constant 0 : index
    %c0_147 = arith.constant 0 : index
    %138 = vector.load %arg4[%c0_146, %c0_147] : memref<288x32xf32, #tpu.memory_space<vmem>>, vector<288x32xf32>
    %cst_148 = arith.constant dense<0.000000e+00> : vector<256x32xf32>
    %139 = tpu.matmul %137, %138, %cst_148 {dimension_numbers = #tpu.dot_dimension_numbers<[1], [0], [0], [1], [0, 0, 1, 1], [], []>} : vector<256x288xf32>, vector<288x32xf32>, vector<256x32xf32> -> vector<256x32xf32>
    %c0_149 = arith.constant 0 : index
    %c0_150 = arith.constant 0 : index
    %140 = vector.load %arg5[%c0_149, %c0_150] : memref<1x32xf32, #tpu.memory_space<vmem>>, vector<1x32xf32>
    %141 = vector.broadcast %140 : vector<1x32xf32> to vector<256x32xf32>
    %142 = arith.addf %139, %141 : vector<256x32xf32>
    %cst_151 = arith.constant 0.000000e+00 : f32
    %143 = vector.broadcast %cst_151 : f32 to vector<256x32xf32>
    %144 = arith.maximumf %142, %143 : vector<256x32xf32>
    %145 = vector.shape_cast %144 : vector<256x32xf32> to vector<1x8x2x16x32xf32>
    %146 = vector.extract_strided_slice %145 {offsets = [0, 0, 0, 0, 0], sizes = [1, 8, 1, 16, 32], strides = [1, 1, 1, 1, 1]} : vector<1x8x2x16x32xf32> to vector<1x8x1x16x32xf32>
    %147 = vector.shape_cast %146 : vector<1x8x1x16x32xf32> to vector<1x8x16x32xf32>
    %148 = vector.extract_strided_slice %145 {offsets = [0, 0, 1, 0, 0], sizes = [1, 8, 1, 16, 32], strides = [1, 1, 1, 1, 1]} : vector<1x8x2x16x32xf32> to vector<1x8x1x16x32xf32>
    %149 = vector.shape_cast %148 : vector<1x8x1x16x32xf32> to vector<1x8x16x32xf32>
    %150 = arith.maximumf %147, %149 : vector<1x8x16x32xf32>
    %c0_152 = arith.constant 0 : index
    %c0_153 = arith.constant 0 : index
    %c0_154 = arith.constant 0 : index
    %c0_155 = arith.constant 0 : index
    %151 = vector.load %arg15[%c0_152, %c0_153, %c0_154, %c0_155] : memref<1x8x16x32xf32, #tpu.memory_space<vmem>>, vector<1x8x16x32xf32>
    tpu.vector_store %arg15[%c0_152, %c0_153, %c0_154, %c0_155], %150 {strides = array<i32>} : memref<1x8x16x32xf32, #tpu.memory_space<vmem>>, vector<1x8x16x32xf32>,
    %c0_156 = arith.constant 0 : index
    %c0_157 = arith.constant 0 : index
    %c0_158 = arith.constant 0 : index
    %c0_159 = arith.constant 0 : index
    %152 = tpu.strided_load %arg15[%c0_156, %c0_157, %c0_158, %c0_159] {strides = array<i32: 1, 1, 2, 1>} : memref<1x8x16x32xf32, #tpu.memory_space<vmem>>, vector<1x8x8x32xf32>
    %c0_160 = arith.constant 0 : index
    %c0_161 = arith.constant 0 : index
    %c1_162 = arith.constant 1 : index
    %c0_163 = arith.constant 0 : index
    %153 = tpu.strided_load %arg15[%c0_160, %c0_161, %c1_162, %c0_163] {strides = array<i32: 1, 1, 2, 1>} : memref<1x8x16x32xf32, #tpu.memory_space<vmem>>, vector<1x8x8x32xf32>
    %154 = arith.maximumf %152, %153 : vector<1x8x8x32xf32>
    %c0_164 = arith.constant 0 : index
    %c1_165 = arith.constant 1 : index
    %c1_166 = arith.constant 1 : index
    %c0_167 = arith.constant 0 : index
    %155 = vector.load %arg14[%c0_164, %c1_165, %c1_166, %c0_167] : memref<1x10x10x32xf32, #tpu.memory_space<vmem>>, vector<1x8x8x32xf32>
    tpu.vector_store %arg14[%c0_164, %c1_165, %c1_166, %c0_167], %154 {strides = array<i32>} : memref<1x10x10x32xf32, #tpu.memory_space<vmem>>, vector<1x8x8x32xf32>,
    %c0_168 = arith.constant 0 : index
    %c0_169 = arith.constant 0 : index
    %c0_170 = arith.constant 0 : index
    %c0_171 = arith.constant 0 : index
    %156 = vector.load %arg14[%c0_168, %c0_169, %c0_170, %c0_171] : memref<1x10x10x32xf32, #tpu.memory_space<vmem>>, vector<1x8x8x32xf32>
    %157 = vector.shape_cast %156 : vector<1x8x8x32xf32> to vector<64x32xf32>
    %c0_172 = arith.constant 0 : index
    %c0_173 = arith.constant 0 : index
    %158 = vector.load %arg16[%c0_172, %c0_173] : memref<256x288xf32, #tpu.memory_space<vmem>>, vector<64x32xf32>
    tpu.vector_store %arg16[%c0_172, %c0_173], %157 {strides = array<i32>} : memref<256x288xf32, #tpu.memory_space<vmem>>, vector<64x32xf32>,
    %c0_174 = arith.constant 0 : index
    %c0_175 = arith.constant 0 : index
    %c1_176 = arith.constant 1 : index
    %c0_177 = arith.constant 0 : index
    %159 = vector.load %arg14[%c0_174, %c0_175, %c1_176, %c0_177] : memref<1x10x10x32xf32, #tpu.memory_space<vmem>>, vector<1x8x8x32xf32>
    %160 = vector.shape_cast %159 : vector<1x8x8x32xf32> to vector<64x32xf32>
    %c0_178 = arith.constant 0 : index
    %c32_179 = arith.constant 32 : index
    %161 = vector.load %arg16[%c0_178, %c32_179] : memref<256x288xf32, #tpu.memory_space<vmem>>, vector<64x32xf32>
    tpu.vector_store %arg16[%c0_178, %c32_179], %160 {strides = array<i32>} : memref<256x288xf32, #tpu.memory_space<vmem>>, vector<64x32xf32>,
    %c0_180 = arith.constant 0 : index
    %c0_181 = arith.constant 0 : index
    %c2_182 = arith.constant 2 : index
    %c0_183 = arith.constant 0 : index
    %162 = vector.load %arg14[%c0_180, %c0_181, %c2_182, %c0_183] : memref<1x10x10x32xf32, #tpu.memory_space<vmem>>, vector<1x8x8x32xf32>
    %163 = vector.shape_cast %162 : vector<1x8x8x32xf32> to vector<64x32xf32>
    %c0_184 = arith.constant 0 : index
    %c64_185 = arith.constant 64 : index
    %164 = vector.load %arg16[%c0_184, %c64_185] : memref<256x288xf32, #tpu.memory_space<vmem>>, vector<64x32xf32>
    tpu.vector_store %arg16[%c0_184, %c64_185], %163 {strides = array<i32>} : memref<256x288xf32, #tpu.memory_space<vmem>>, vector<64x32xf32>,
    %c0_186 = arith.constant 0 : index
    %c1_187 = arith.constant 1 : index
    %c0_188 = arith.constant 0 : index
    %c0_189 = arith.constant 0 : index
    %165 = vector.load %arg14[%c0_186, %c1_187, %c0_188, %c0_189] : memref<1x10x10x32xf32, #tpu.memory_space<vmem>>, vector<1x8x8x32xf32>
    %166 = vector.shape_cast %165 : vector<1x8x8x32xf32> to vector<64x32xf32>
    %c0_190 = arith.constant 0 : index
    %c96_191 = arith.constant 96 : index
    %167 = vector.load %arg16[%c0_190, %c96_191] : memref<256x288xf32, #tpu.memory_space<vmem>>, vector<64x32xf32>
    tpu.vector_store %arg16[%c0_190, %c96_191], %166 {strides = array<i32>} : memref<256x288xf32, #tpu.memory_space<vmem>>, vector<64x32xf32>,
    %c0_192 = arith.constant 0 : index
    %c1_193 = arith.constant 1 : index
    %c1_194 = arith.constant 1 : index
    %c0_195 = arith.constant 0 : index
    %168 = vector.load %arg14[%c0_192, %c1_193, %c1_194, %c0_195] : memref<1x10x10x32xf32, #tpu.memory_space<vmem>>, vector<1x8x8x32xf32>
    %169 = vector.shape_cast %168 : vector<1x8x8x32xf32> to vector<64x32xf32>
    %c0_196 = arith.constant 0 : index
    %c128_197 = arith.constant 128 : index
    %170 = vector.load %arg16[%c0_196, %c128_197] : memref<256x288xf32, #tpu.memory_space<vmem>>, vector<64x32xf32>
    tpu.vector_store %arg16[%c0_196, %c128_197], %169 {strides = array<i32>} : memref<256x288xf32, #tpu.memory_space<vmem>>, vector<64x32xf32>,
    %c0_198 = arith.constant 0 : index
    %c1_199 = arith.constant 1 : index
    %c2_200 = arith.constant 2 : index
    %c0_201 = arith.constant 0 : index
    %171 = vector.load %arg14[%c0_198, %c1_199, %c2_200, %c0_201] : memref<1x10x10x32xf32, #tpu.memory_space<vmem>>, vector<1x8x8x32xf32>
    %172 = vector.shape_cast %171 : vector<1x8x8x32xf32> to vector<64x32xf32>
    %c0_202 = arith.constant 0 : index
    %c160_203 = arith.constant 160 : index
    %173 = vector.load %arg16[%c0_202, %c160_203] : memref<256x288xf32, #tpu.memory_space<vmem>>, vector<64x32xf32>
    tpu.vector_store %arg16[%c0_202, %c160_203], %172 {strides = array<i32>} : memref<256x288xf32, #tpu.memory_space<vmem>>, vector<64x32xf32>,
    %c0_204 = arith.constant 0 : index
    %c2_205 = arith.constant 2 : index
    %c0_206 = arith.constant 0 : index
    %c0_207 = arith.constant 0 : index
    %174 = vector.load %arg14[%c0_204, %c2_205, %c0_206, %c0_207] : memref<1x10x10x32xf32, #tpu.memory_space<vmem>>, vector<1x8x8x32xf32>
    %175 = vector.shape_cast %174 : vector<1x8x8x32xf32> to vector<64x32xf32>
    %c0_208 = arith.constant 0 : index
    %c192_209 = arith.constant 192 : index
    %176 = vector.load %arg16[%c0_208, %c192_209] : memref<256x288xf32, #tpu.memory_space<vmem>>, vector<64x32xf32>
    tpu.vector_store %arg16[%c0_208, %c192_209], %175 {strides = array<i32>} : memref<256x288xf32, #tpu.memory_space<vmem>>, vector<64x32xf32>,
    %c0_210 = arith.constant 0 : index
    %c2_211 = arith.constant 2 : index
    %c1_212 = arith.constant 1 : index
    %c0_213 = arith.constant 0 : index
    %177 = vector.load %arg14[%c0_210, %c2_211, %c1_212, %c0_213] : memref<1x10x10x32xf32, #tpu.memory_space<vmem>>, vector<1x8x8x32xf32>
    %178 = vector.shape_cast %177 : vector<1x8x8x32xf32> to vector<64x32xf32>
    %c0_214 = arith.constant 0 : index
    %c224_215 = arith.constant 224 : index
    %179 = vector.load %arg16[%c0_214, %c224_215] : memref<256x288xf32, #tpu.memory_space<vmem>>, vector<64x32xf32>
    tpu.vector_store %arg16[%c0_214, %c224_215], %178 {strides = array<i32>} : memref<256x288xf32, #tpu.memory_space<vmem>>, vector<64x32xf32>,
    %c0_216 = arith.constant 0 : index
    %c2_217 = arith.constant 2 : index
    %c2_218 = arith.constant 2 : index
    %c0_219 = arith.constant 0 : index
    %180 = vector.load %arg14[%c0_216, %c2_217, %c2_218, %c0_219] : memref<1x10x10x32xf32, #tpu.memory_space<vmem>>, vector<1x8x8x32xf32>
    %181 = vector.shape_cast %180 : vector<1x8x8x32xf32> to vector<64x32xf32>
    %c0_220 = arith.constant 0 : index
    %c256_221 = arith.constant 256 : index
    %182 = vector.load %arg16[%c0_220, %c256_221] : memref<256x288xf32, #tpu.memory_space<vmem>>, vector<64x32xf32>
    tpu.vector_store %arg16[%c0_220, %c256_221], %181 {strides = array<i32>} : memref<256x288xf32, #tpu.memory_space<vmem>>, vector<64x32xf32>,
    %c0_222 = arith.constant 0 : index
    %c0_223 = arith.constant 0 : index
    %183 = vector.load %arg16[%c0_222, %c0_223] : memref<256x288xf32, #tpu.memory_space<vmem>>, vector<64x288xf32>
    %c0_224 = arith.constant 0 : index
    %c0_225 = arith.constant 0 : index
    %184 = vector.load %arg6[%c0_224, %c0_225] : memref<288x32xf32, #tpu.memory_space<vmem>>, vector<288x32xf32>
    %cst_226 = arith.constant dense<0.000000e+00> : vector<64x32xf32>
    %185 = tpu.matmul %183, %184, %cst_226 {dimension_numbers = #tpu.dot_dimension_numbers<[1], [0], [0], [1], [0, 0, 1, 1], [], []>} : vector<64x288xf32>, vector<288x32xf32>, vector<64x32xf32> -> vector<64x32xf32>
    %c0_227 = arith.constant 0 : index
    %c0_228 = arith.constant 0 : index
    %186 = vector.load %arg7[%c0_227, %c0_228] : memref<1x32xf32, #tpu.memory_space<vmem>>, vector<1x32xf32>
    %187 = vector.broadcast %186 : vector<1x32xf32> to vector<64x32xf32>
    %188 = arith.addf %185, %187 : vector<64x32xf32>
    %cst_229 = arith.constant 0.000000e+00 : f32
    %189 = vector.broadcast %cst_229 : f32 to vector<64x32xf32>
    %190 = arith.maximumf %188, %189 : vector<64x32xf32>
    %191 = vector.shape_cast %190 : vector<64x32xf32> to vector<1x8x8x32xf32>
    %c0_230 = arith.constant 0 : index
    %c1_231 = arith.constant 1 : index
    %c1_232 = arith.constant 1 : index
    %c0_233 = arith.constant 0 : index
    %192 = vector.load %arg14[%c0_230, %c1_231, %c1_232, %c0_233] : memref<1x10x10x32xf32, #tpu.memory_space<vmem>>, vector<1x8x8x32xf32>
    tpu.vector_store %arg14[%c0_230, %c1_231, %c1_232, %c0_233], %191 {strides = array<i32>} : memref<1x10x10x32xf32, #tpu.memory_space<vmem>>, vector<1x8x8x32xf32>,
    %c0_234 = arith.constant 0 : index
    %c0_235 = arith.constant 0 : index
    %c0_236 = arith.constant 0 : index
    %c0_237 = arith.constant 0 : index
    %193 = vector.load %arg14[%c0_234, %c0_235, %c0_236, %c0_237] : memref<1x10x10x32xf32, #tpu.memory_space<vmem>>, vector<1x8x8x32xf32>
    %194 = vector.shape_cast %193 : vector<1x8x8x32xf32> to vector<64x32xf32>
    %c0_238 = arith.constant 0 : index
    %c0_239 = arith.constant 0 : index
    %195 = vector.load %arg16[%c0_238, %c0_239] : memref<256x288xf32, #tpu.memory_space<vmem>>, vector<64x32xf32>
    tpu.vector_store %arg16[%c0_238, %c0_239], %194 {strides = array<i32>} : memref<256x288xf32, #tpu.memory_space<vmem>>, vector<64x32xf32>,
    %c0_240 = arith.constant 0 : index
    %c0_241 = arith.constant 0 : index
    %c1_242 = arith.constant 1 : index
    %c0_243 = arith.constant 0 : index
    %196 = vector.load %arg14[%c0_240, %c0_241, %c1_242, %c0_243] : memref<1x10x10x32xf32, #tpu.memory_space<vmem>>, vector<1x8x8x32xf32>
    %197 = vector.shape_cast %196 : vector<1x8x8x32xf32> to vector<64x32xf32>
    %c0_244 = arith.constant 0 : index
    %c32_245 = arith.constant 32 : index
    %198 = vector.load %arg16[%c0_244, %c32_245] : memref<256x288xf32, #tpu.memory_space<vmem>>, vector<64x32xf32>
    tpu.vector_store %arg16[%c0_244, %c32_245], %197 {strides = array<i32>} : memref<256x288xf32, #tpu.memory_space<vmem>>, vector<64x32xf32>,
    %c0_246 = arith.constant 0 : index
    %c0_247 = arith.constant 0 : index
    %c2_248 = arith.constant 2 : index
    %c0_249 = arith.constant 0 : index
    %199 = vector.load %arg14[%c0_246, %c0_247, %c2_248, %c0_249] : memref<1x10x10x32xf32, #tpu.memory_space<vmem>>, vector<1x8x8x32xf32>
    %200 = vector.shape_cast %199 : vector<1x8x8x32xf32> to vector<64x32xf32>
    %c0_250 = arith.constant 0 : index
    %c64_251 = arith.constant 64 : index
    %201 = vector.load %arg16[%c0_250, %c64_251] : memref<256x288xf32, #tpu.memory_space<vmem>>, vector<64x32xf32>
    tpu.vector_store %arg16[%c0_250, %c64_251], %200 {strides = array<i32>} : memref<256x288xf32, #tpu.memory_space<vmem>>, vector<64x32xf32>,
    %c0_252 = arith.constant 0 : index
    %c1_253 = arith.constant 1 : index
    %c0_254 = arith.constant 0 : index
    %c0_255 = arith.constant 0 : index
    %202 = vector.load %arg14[%c0_252, %c1_253, %c0_254, %c0_255] : memref<1x10x10x32xf32, #tpu.memory_space<vmem>>, vector<1x8x8x32xf32>
    %203 = vector.shape_cast %202 : vector<1x8x8x32xf32> to vector<64x32xf32>
    %c0_256 = arith.constant 0 : index
    %c96_257 = arith.constant 96 : index
    %204 = vector.load %arg16[%c0_256, %c96_257] : memref<256x288xf32, #tpu.memory_space<vmem>>, vector<64x32xf32>
    tpu.vector_store %arg16[%c0_256, %c96_257], %203 {strides = array<i32>} : memref<256x288xf32, #tpu.memory_space<vmem>>, vector<64x32xf32>,
    %c0_258 = arith.constant 0 : index
    %c1_259 = arith.constant 1 : index
    %c1_260 = arith.constant 1 : index
    %c0_261 = arith.constant 0 : index
    %205 = vector.load %arg14[%c0_258, %c1_259, %c1_260, %c0_261] : memref<1x10x10x32xf32, #tpu.memory_space<vmem>>, vector<1x8x8x32xf32>
    %206 = vector.shape_cast %205 : vector<1x8x8x32xf32> to vector<64x32xf32>
    %c0_262 = arith.constant 0 : index
    %c128_263 = arith.constant 128 : index
    %207 = vector.load %arg16[%c0_262, %c128_263] : memref<256x288xf32, #tpu.memory_space<vmem>>, vector<64x32xf32>
    tpu.vector_store %arg16[%c0_262, %c128_263], %206 {strides = array<i32>} : memref<256x288xf32, #tpu.memory_space<vmem>>, vector<64x32xf32>,
    %c0_264 = arith.constant 0 : index
    %c1_265 = arith.constant 1 : index
    %c2_266 = arith.constant 2 : index
    %c0_267 = arith.constant 0 : index
    %208 = vector.load %arg14[%c0_264, %c1_265, %c2_266, %c0_267] : memref<1x10x10x32xf32, #tpu.memory_space<vmem>>, vector<1x8x8x32xf32>
    %209 = vector.shape_cast %208 : vector<1x8x8x32xf32> to vector<64x32xf32>
    %c0_268 = arith.constant 0 : index
    %c160_269 = arith.constant 160 : index
    %210 = vector.load %arg16[%c0_268, %c160_269] : memref<256x288xf32, #tpu.memory_space<vmem>>, vector<64x32xf32>
    tpu.vector_store %arg16[%c0_268, %c160_269], %209 {strides = array<i32>} : memref<256x288xf32, #tpu.memory_space<vmem>>, vector<64x32xf32>,
    %c0_270 = arith.constant 0 : index
    %c2_271 = arith.constant 2 : index
    %c0_272 = arith.constant 0 : index
    %c0_273 = arith.constant 0 : index
    %211 = vector.load %arg14[%c0_270, %c2_271, %c0_272, %c0_273] : memref<1x10x10x32xf32, #tpu.memory_space<vmem>>, vector<1x8x8x32xf32>
    %212 = vector.shape_cast %211 : vector<1x8x8x32xf32> to vector<64x32xf32>
    %c0_274 = arith.constant 0 : index
    %c192_275 = arith.constant 192 : index
    %213 = vector.load %arg16[%c0_274, %c192_275] : memref<256x288xf32, #tpu.memory_space<vmem>>, vector<64x32xf32>
    tpu.vector_store %arg16[%c0_274, %c192_275], %212 {strides = array<i32>} : memref<256x288xf32, #tpu.memory_space<vmem>>, vector<64x32xf32>,
    %c0_276 = arith.constant 0 : index
    %c2_277 = arith.constant 2 : index
    %c1_278 = arith.constant 1 : index
    %c0_279 = arith.constant 0 : index
    %214 = vector.load %arg14[%c0_276, %c2_277, %c1_278, %c0_279] : memref<1x10x10x32xf32, #tpu.memory_space<vmem>>, vector<1x8x8x32xf32>
    %215 = vector.shape_cast %214 : vector<1x8x8x32xf32> to vector<64x32xf32>
    %c0_280 = arith.constant 0 : index
    %c224_281 = arith.constant 224 : index
    %216 = vector.load %arg16[%c0_280, %c224_281] : memref<256x288xf32, #tpu.memory_space<vmem>>, vector<64x32xf32>
    tpu.vector_store %arg16[%c0_280, %c224_281], %215 {strides = array<i32>} : memref<256x288xf32, #tpu.memory_space<vmem>>, vector<64x32xf32>,
    %c0_282 = arith.constant 0 : index
    %c2_283 = arith.constant 2 : index
    %c2_284 = arith.constant 2 : index
    %c0_285 = arith.constant 0 : index
    %217 = vector.load %arg14[%c0_282, %c2_283, %c2_284, %c0_285] : memref<1x10x10x32xf32, #tpu.memory_space<vmem>>, vector<1x8x8x32xf32>
    %218 = vector.shape_cast %217 : vector<1x8x8x32xf32> to vector<64x32xf32>
    %c0_286 = arith.constant 0 : index
    %c256_287 = arith.constant 256 : index
    %219 = vector.load %arg16[%c0_286, %c256_287] : memref<256x288xf32, #tpu.memory_space<vmem>>, vector<64x32xf32>
    tpu.vector_store %arg16[%c0_286, %c256_287], %218 {strides = array<i32>} : memref<256x288xf32, #tpu.memory_space<vmem>>, vector<64x32xf32>,
    %c0_288 = arith.constant 0 : index
    %c0_289 = arith.constant 0 : index
    %220 = vector.load %arg16[%c0_288, %c0_289] : memref<256x288xf32, #tpu.memory_space<vmem>>, vector<64x288xf32>
    %c0_290 = arith.constant 0 : index
    %c0_291 = arith.constant 0 : index
    %221 = vector.load %arg8[%c0_290, %c0_291] : memref<288x32xf32, #tpu.memory_space<vmem>>, vector<288x32xf32>
    %cst_292 = arith.constant dense<0.000000e+00> : vector<64x32xf32>
    %222 = tpu.matmul %220, %221, %cst_292 {dimension_numbers = #tpu.dot_dimension_numbers<[1], [0], [0], [1], [0, 0, 1, 1], [], []>} : vector<64x288xf32>, vector<288x32xf32>, vector<64x32xf32> -> vector<64x32xf32>
    %c0_293 = arith.constant 0 : index
    %c0_294 = arith.constant 0 : index
    %223 = vector.load %arg9[%c0_293, %c0_294] : memref<1x32xf32, #tpu.memory_space<vmem>>, vector<1x32xf32>
    %224 = vector.broadcast %223 : vector<1x32xf32> to vector<64x32xf32>
    %225 = arith.addf %222, %224 : vector<64x32xf32>
    %cst_295 = arith.constant 0.000000e+00 : f32
    %226 = vector.broadcast %cst_295 : f32 to vector<64x32xf32>
    %227 = arith.maximumf %225, %226 : vector<64x32xf32>
    %228 = vector.shape_cast %227 : vector<64x32xf32> to vector<1x64x32xf32>
    %cst_296 = arith.constant dense<0xFF800000> : vector<1x32xf32>
    %229 = vector.multi_reduction <maximumf>, %228, %cst_296 [1] : vector<1x64x32xf32> to vector<1x32xf32>
    %c0_297 = arith.constant 0 : index
    %c0_298 = arith.constant 0 : index
    %230 = vector.load %arg10[%c0_297, %c0_298] : memref<32x27xf32, #tpu.memory_space<vmem>>, vector<32x27xf32>
    %cst_299 = arith.constant dense<0.000000e+00> : vector<1x27xf32>
    %231 = tpu.matmul %229, %230, %cst_299 {dimension_numbers = #tpu.dot_dimension_numbers<[1], [0], [0], [1], [0, 0, 1, 1], [], []>} : vector<1x32xf32>, vector<32x27xf32>, vector<1x27xf32> -> vector<1x27xf32>
    %c0_300 = arith.constant 0 : index
    %c0_301 = arith.constant 0 : index
    %232 = vector.load %arg11[%c0_300, %c0_301] : memref<1x27xf32, #tpu.memory_space<vmem>>, vector<1x27xf32>
    %233 = arith.addf %231, %232 : vector<1x27xf32>
    %cst_302 = arith.constant dense<0xFF800000> : vector<1xf32>
    %234 = vector.multi_reduction <maximumf>, %233, %cst_302 [1] : vector<1x27xf32> to vector<1xf32>
    %235 = vector.shape_cast %234 : vector<1xf32> to vector<1x1xf32>
    %236 = vector.broadcast %235 : vector<1x1xf32> to vector<1x27xf32>
    %237 = arith.subf %233, %236 : vector<1x27xf32>
    %238 = math.exp %237 : vector<1x27xf32>
    %cst_303 = arith.constant dense<0.000000e+00> : vector<1xf32>
    %239 = vector.multi_reduction <add>, %238, %cst_303 [1] : vector<1x27xf32> to vector<1xf32>
    %240 = vector.shape_cast %239 : vector<1xf32> to vector<1x1xf32>
    %241 = math.log %240 : vector<1x1xf32>
    %242 = vector.broadcast %241 : vector<1x1xf32> to vector<1x27xf32>
    %243 = arith.subf %237, %242 : vector<1x27xf32>
    %c0_304 = arith.constant 0 : index
    %c0_305 = arith.constant 0 : index
    %c0_306 = arith.constant 0 : index
    %244 = vector.load %arg12[%c0_304, %c0_305, %c0_306] : memref<1x1x27xf32, #tpu.memory_space<vmem>>, vector<1x1x27xf32>
    %245 = vector.shape_cast %244 : vector<1x1x27xf32> to vector<1x27xf32>
    %246 = vector.shape_cast %243 : vector<1x27xf32> to vector<1x1x27xf32>
    tpu.vector_store %arg12[%c0_304, %c0_305, %c0_306], %246 {strides = array<i32>} : memref<1x1x27xf32, #tpu.memory_space<vmem>>, vector<1x1x27xf32>,
    return
  }
  func.func @transform_0(%arg0: i32) -> (i32, i32, i32, i32) {
    %c0_i32 = arith.constant 0 : i32
    %c0_i32_0 = arith.constant 0 : i32
    %c0_i32_1 = arith.constant 0 : i32
    %c0_i32_2 = arith.constant 0 : i32
    return %arg0, %c0_i32, %c0_i32_0, %c0_i32_1 : i32, i32, i32, i32
  }
  func.func @transform_1(%arg0: i32) -> (i32, i32, i32) {
    %c0_i32 = arith.constant 0 : i32
    %c0_i32_0 = arith.constant 0 : i32
    %c0_i32_1 = arith.constant 0 : i32
    %c0_i32_2 = arith.constant 0 : i32
    return %c0_i32, %c0_i32_0, %c0_i32_1 : i32, i32, i32
  }
  func.func @transform_2(%arg0: i32) -> (i32, i32) {
    %c0_i32 = arith.constant 0 : i32
    %c0_i32_0 = arith.constant 0 : i32
    %c0_i32_1 = arith.constant 0 : i32
    return %c0_i32, %c0_i32_0 : i32, i32
  }
  func.func @transform_3(%arg0: i32) -> (i32, i32) {
    %c0_i32 = arith.constant 0 : i32
    %c0_i32_0 = arith.constant 0 : i32
    %c0_i32_1 = arith.constant 0 : i32
    return %c0_i32, %c0_i32_0 : i32, i32
  }
  func.func @transform_4(%arg0: i32) -> (i32, i32) {
    %c0_i32 = arith.constant 0 : i32
    %c0_i32_0 = arith.constant 0 : i32
    %c0_i32_1 = arith.constant 0 : i32
    return %c0_i32, %c0_i32_0 : i32, i32
  }
  func.func @transform_5(%arg0: i32) -> (i32, i32) {
    %c0_i32 = arith.constant 0 : i32
    %c0_i32_0 = arith.constant 0 : i32
    %c0_i32_1 = arith.constant 0 : i32
    return %c0_i32, %c0_i32_0 : i32, i32
  }
  func.func @transform_6(%arg0: i32) -> (i32, i32) {
    %c0_i32 = arith.constant 0 : i32
    %c0_i32_0 = arith.constant 0 : i32
    %c0_i32_1 = arith.constant 0 : i32
    return %c0_i32, %c0_i32_0 : i32, i32
  }
  func.func @transform_7(%arg0: i32) -> (i32, i32) {
    %c0_i32 = arith.constant 0 : i32
    %c0_i32_0 = arith.constant 0 : i32
    %c0_i32_1 = arith.constant 0 : i32
    return %c0_i32, %c0_i32_0 : i32, i32
  }
  func.func @transform_8(%arg0: i32) -> (i32, i32) {
    %c0_i32 = arith.constant 0 : i32
    %c0_i32_0 = arith.constant 0 : i32
    %c0_i32_1 = arith.constant 0 : i32
    return %c0_i32, %c0_i32_0 : i32, i32
  }
  func.func @transform_9(%arg0: i32) -> (i32, i32) {
    %c0_i32 = arith.constant 0 : i32
    %c0_i32_0 = arith.constant 0 : i32
    %c0_i32_1 = arith.constant 0 : i32
    return %c0_i32, %c0_i32_0 : i32, i32
  }
  func.func @transform_10(%arg0: i32) -> (i32, i32) {
    %c0_i32 = arith.constant 0 : i32
    %c0_i32_0 = arith.constant 0 : i32
    %c0_i32_1 = arith.constant 0 : i32
    return %c0_i32, %c0_i32_0 : i32, i32
  }
  func.func @transform_11(%arg0: i32) -> (i32, i32, i32) {
    %c0_i32 = arith.constant 0 : i32
    %c0_i32_0 = arith.constant 0 : i32
    %c0_i32_1 = arith.constant 0 : i32
    return %arg0, %c0_i32, %c0_i32_0 : i32, i32, i32
  }
}

</mosaic_0001>

<llo_original>
// kernel: cnn_net_forward.1
$region0: #{cnn_net_forward.1}
  #allocation0 [shape = 'u32[]', space=smem, size = 0x4, offset = 0x4, fixed_abs, tag = 'smem constant byte address 0x4 - core index']
  #allocation1 [shape = 'u32[144,128]{1,0:T(1,128)}', space=vmem, size = 0x12000, scoped, tag = 'internal scratch']
  #allocation2 [shape = 'f32[1,18,18,32]{3,2,1,0:T(8,128)}', space=vmem, size = 0x36000, scoped, tag = 'scratch operand']
  #allocation3 [shape = 'f32[1,10,10,32]{3,2,1,0:T(8,128)}', space=vmem, size = 0x14000, scoped, tag = 'scratch operand']
  #allocation4 [shape = 'f32[1,8,16,32]{3,2,1,0:T(8,128)}', space=vmem, size = 0x10000, scoped, tag = 'scratch operand']
  #allocation5 [shape = 'f32[256,288]{1,0:T(8,128)}', space=vmem, size = 0x60000, scoped, tag = 'scratch operand']
  %s0 = inlined_call_operand.vmem [shape: f32[2,18,18,1], index: 0, kind: input, shape index: {}]
  %s1 = inlined_call_operand.vmem [shape: f32[9,1,32], index: 1, kind: input, shape index: {}]
  %s2 = inlined_call_operand.vmem [shape: f32[1,32], index: 2, kind: input, shape index: {}]
  %s3 = inlined_call_operand.vmem [shape: f32[288,32], index: 3, kind: input, shape index: {}]
  %s4 = inlined_call_operand.vmem [shape: f32[1,32], index: 4, kind: input, shape index: {}]
  %s5 = inlined_call_operand.vmem [shape: f32[288,32], index: 5, kind: input, shape index: {}]
  %s6 = inlined_call_operand.vmem [shape: f32[1,32], index: 6, kind: input, shape index: {}]
  %s7 = inlined_call_operand.vmem [shape: f32[288,32], index: 7, kind: input, shape index: {}]
  %s8 = inlined_call_operand.vmem [shape: f32[1,32], index: 8, kind: input, shape index: {}]
  %s9 = inlined_call_operand.vmem [shape: f32[32,27], index: 9, kind: input, shape index: {}]
  %s10 = inlined_call_operand.vmem [shape: f32[1,27], index: 10, kind: input, shape index: {}]
  %s11 = inlined_call_operand.hbm [shape: f32[2,1,27], index: 11, kind: output, shape index: {}]
  %s12 = sld [smem:[#allocation0]]
  $region77: #{cnn_net_forward.1} parent=0
    _
  %s14 = ssub.s32 1, %s12
  %s15 = scalar_select 0, %s14, %s12
  $region1: #{cnn_net_forward.1} parent=0
    #allocation6 [shape = 'u8[1024]{0}', space=vmem, size = 0x400, scoped, tag = 'output window, operand 0']
    #allocation7 [shape = 's32[2]{0}', space=sflag, size = 0x8, scoped, tag = 'scoped memory for cnn_net_forward.1']
    %16 = vsyncpa [#allocation7], 0
    %s17 = scalar_lea.sflag [#allocation7], 1
    %18 = vsyncpa %s17, 0
    loop: start=0, step=1, limit=4
    $region2: #{cnn_net_forward.1} parent=1 // loop_pre_header
      _
    $region3: #{cnn_net_forward.1} parent=1 // loop_header
      %s20 = sphi 0, %s24
      %p21 = scmp.ge.s32.totalorder %s20, 4
      %s30 = sphi 0, %s32
      %s33 = sphi 0, %s30
      %s34 = sphi 0, %s33
      %s50 = sphi 0, %s34
      %s54 = sphi 0, %s54
      %s56 = sphi 0, %s54
      %s57 = sphi 0, %s56
      %s71 = sphi 0, %s57
      %s75 = sphi 0, %s75
      %s77 = sphi 0, %s75
      %s78 = sphi 0, %s77
      %s92 = sphi 0, %s78
      %s96 = sphi 0, %s96
      %s98 = sphi 0, %s96
      %s99 = sphi 0, %s98
      %s113 = sphi 0, %s99
      %s117 = sphi 0, %s117
      %s119 = sphi 0, %s117
      %s120 = sphi 0, %s119
      %s134 = sphi 0, %s120
      %s138 = sphi 0, %s138
      %s140 = sphi 0, %s138
      %s141 = sphi 0, %s140
      %s155 = sphi 0, %s141
      %s159 = sphi 0, %s159
      %s161 = sphi 0, %s159
      %s162 = sphi 0, %s161
      %s176 = sphi 0, %s162
      %s180 = sphi 0, %s180
      %s182 = sphi 0, %s180
      %s183 = sphi 0, %s182
      %s197 = sphi 0, %s183
      %s201 = sphi 0, %s201
      %s203 = sphi 0, %s201
      %s204 = sphi 0, %s203
      %s218 = sphi 0, %s204
      %s222 = sphi 0, %s222
      %s224 = sphi 0, %s222
      %s225 = sphi 0, %s224
      %s239 = sphi 0, %s225
      %s243 = sphi 0, %s243
      %s245 = sphi 0, %s243
      %s246 = sphi 0, %s245
      %s260 = sphi 0, %s246
      %s266 = sphi 0, %s268
      %s269 = sphi 0, %s266
      %s270 = sphi 0, %s269
      %s286 = sphi 0, %s270
    $region4: #{cnn_net_forward.1} parent=1 // loop_header_branch
      %23 = sbr.rel (%p21) target = $region8
    $region5: #{cnn_net_forward.1} parent=1 // loop_body
      %s25 = ssub.s32 %s20, 1
      %s26 = ssub.s32 %s20, 2
      %s27 = sadd.s32 %s20, 1
      %s28 = ssub.s32 %s20, %s27
      %p29 = scmp.eq.s32.totalorder %s28, 0
      %s31 = sadd.s32 %s30, 1
      %s32 = scalar_select %p29, %s30, %s31
      %p35 = pneg %p29
      %p36 = scmp.eq.s32.totalorder %s20, 1
      %p37 = por %p35, %p36
      %p38 = scmp.ne.s32.totalorder %s30, %s33
      %p39 = scmp.eq.s32.totalorder %s20, 0
      %p40 = por %p38, %p39
      %p41 = scmp.ne.s32.totalorder %s30, %s33
      %p42 = scmp.eq.s32.totalorder %s25, 1
      %p43 = por %p41, %p42
      %p44 = scmp.ne.s32.totalorder %s33, %s34
      %p45 = scmp.eq.s32.totalorder %s25, 0
      %p46 = por %p44, %p45
      %p47 = scmp.ne.s32.totalorder %s33, %s34
      %p48 = scmp.eq.s32.totalorder %s26, 1
      %p49 = por %p47, %p48
      %p51 = scmp.ne.s32.totalorder %s34, %s50
      %p52 = scmp.eq.s32.totalorder %s26, 0
      %p53 = por %p51, %p52
      %s55 = sadd.s32 %s54, 1
      %p58 = scmp.eq.s32.totalorder %s20, 1
      %p59 = scmp.ne.s32.totalorder %s54, %s56
      %p60 = scmp.eq.s32.totalorder %s20, 0
      %p61 = por %p59, %p60
      %p62 = scmp.ne.s32.totalorder %s54, %s56
      %p63 = scmp.eq.s32.totalorder %s25, 1
      %p64 = por %p62, %p63
      %p65 = scmp.ne.s32.totalorder %s56, %s57
      %p66 = scmp.eq.s32.totalorder %s25, 0
      %p67 = por %p65, %p66
      %p68 = scmp.ne.s32.totalorder %s56, %s57
      %p69 = scmp.eq.s32.totalorder %s26, 1
      %p70 = por %p68, %p69
      %p72 = scmp.ne.s32.totalorder %s57, %s71
      %p73 = scmp.eq.s32.totalorder %s26, 0
      %p74 = por %p72, %p73
      %s76 = sadd.s32 %s75, 1
      %p79 = scmp.eq.s32.totalorder %s20, 1
      %p80 = scmp.ne.s32.totalorder %s75, %s77
      %p81 = scmp.eq.s32.totalorder %s20, 0
      %p82 = por %p80, %p81
      %p83 = scmp.ne.s32.totalorder %s75, %s77
      %p84 = scmp.eq.s32.totalorder %s25, 1
      %p85 = por %p83, %p84
      %p86 = scmp.ne.s32.totalorder %s77, %s78
      %p87 = scmp.eq.s32.totalorder %s25, 0
      %p88 = por %p86, %p87
      %p89 = scmp.ne.s32.totalorder %s77, %s78
      %p90 = scmp.eq.s32.totalorder %s26, 1
      %p91 = por %p89, %p90
      %p93 = scmp.ne.s32.totalorder %s78, %s92
      %p94 = scmp.eq.s32.totalorder %s26, 0
      %p95 = por %p93, %p94
      %s97 = sadd.s32 %s96, 1
      %p100 = scmp.eq.s32.totalorder %s20, 1
      %p101 = scmp.ne.s32.totalorder %s96, %s98
      %p102 = scmp.eq.s32.totalorder %s20, 0
      %p103 = por %p101, %p102
      %p104 = scmp.ne.s32.totalorder %s96, %s98
      %p105 = scmp.eq.s32.totalorder %s25, 1
      %p106 = por %p104, %p105
      %p107 = scmp.ne.s32.totalorder %s98, %s99
      %p108 = scmp.eq.s32.totalorder %s25, 0
      %p109 = por %p107, %p108
      %p110 = scmp.ne.s32.totalorder %s98, %s99
      %p111 = scmp.eq.s32.totalorder %s26, 1
      %p112 = por %p110, %p111
      %p114 = scmp.ne.s32.totalorder %s99, %s113
      %p115 = scmp.eq.s32.totalorder %s26, 0
      %p116 = por %p114, %p115
      %s118 = sadd.s32 %s117, 1
      %p121 = scmp.eq.s32.totalorder %s20, 1
      %p122 = scmp.ne.s32.totalorder %s117, %s119
      %p123 = scmp.eq.s32.totalorder %s20, 0
      %p124 = por %p122, %p123
      %p125 = scmp.ne.s32.totalorder %s117, %s119
      %p126 = scmp.eq.s32.totalorder %s25, 1
      %p127 = por %p125, %p126
      %p128 = scmp.ne.s32.totalorder %s119, %s120
      %p129 = scmp.eq.s32.totalorder %s25, 0
      %p130 = por %p128, %p129
      %p131 = scmp.ne.s32.totalorder %s119, %s120
      %p132 = scmp.eq.s32.totalorder %s26, 1
      %p133 = por %p131, %p132
      %p135 = scmp.ne.s32.totalorder %s120, %s134
      %p136 = scmp.eq.s32.totalorder %s26, 0
      %p137 = por %p135, %p136
      %s139 = sadd.s32 %s138, 1
      %p142 = scmp.eq.s32.totalorder %s20, 1
      %p143 = scmp.ne.s32.totalorder %s138, %s140
      %p144 = scmp.eq.s32.totalorder %s20, 0
      %p145 = por %p143, %p144
      %p146 = scmp.ne.s32.totalorder %s138, %s140
      %p147 = scmp.eq.s32.totalorder %s25, 1
      %p148 = por %p146, %p147
      %p149 = scmp.ne.s32.totalorder %s140, %s141
      %p150 = scmp.eq.s32.totalorder %s25, 0
      %p151 = por %p149, %p150
      %p152 = scmp.ne.s32.totalorder %s140, %s141
      %p153 = scmp.eq.s32.totalorder %s26, 1
      %p154 = por %p152, %p153
      %p156 = scmp.ne.s32.totalorder %s141, %s155
      %p157 = scmp.eq.s32.totalorder %s26, 0
      %p158 = por %p156, %p157
      %s160 = sadd.s32 %s159, 1
      %p163 = scmp.eq.s32.totalorder %s20, 1
      %p164 = scmp.ne.s32.totalorder %s159, %s161
      %p165 = scmp.eq.s32.totalorder %s20, 0
      %p166 = por %p164, %p165
      %p167 = scmp.ne.s32.totalorder %s159, %s161
      %p168 = scmp.eq.s32.totalorder %s25, 1
      %p169 = por %p167, %p168
      %p170 = scmp.ne.s32.totalorder %s161, %s162
      %p171 = scmp.eq.s32.totalorder %s25, 0
      %p172 = por %p170, %p171
      %p173 = scmp.ne.s32.totalorder %s161, %s162
      %p174 = scmp.eq.s32.totalorder %s26, 1
      %p175 = por %p173, %p174
      %p177 = scmp.ne.s32.totalorder %s162, %s176
      %p178 = scmp.eq.s32.totalorder %s26, 0
      %p179 = por %p177, %p178
      %s181 = sadd.s32 %s180, 1
      %p184 = scmp.eq.s32.totalorder %s20, 1
      %p185 = scmp.ne.s32.totalorder %s180, %s182
      %p186 = scmp.eq.s32.totalorder %s20, 0
      %p187 = por %p185, %p186
      %p188 = scmp.ne.s32.totalorder %s180, %s182
      %p189 = scmp.eq.s32.totalorder %s25, 1
      %p190 = por %p188, %p189
      %p191 = scmp.ne.s32.totalorder %s182, %s183
      %p192 = scmp.eq.s32.totalorder %s25, 0
      %p193 = por %p191, %p192
      %p194 = scmp.ne.s32.totalorder %s182, %s183
      %p195 = scmp.eq.s32.totalorder %s26, 1
      %p196 = por %p194, %p195
      %p198 = scmp.ne.s32.totalorder %s183, %s197
      %p199 = scmp.eq.s32.totalorder %s26, 0
      %p200 = por %p198, %p199
      %s202 = sadd.s32 %s201, 1
      %p205 = scmp.eq.s32.totalorder %s20, 1
      %p206 = scmp.ne.s32.totalorder %s201, %s203
      %p207 = scmp.eq.s32.totalorder %s20, 0
      %p208 = por %p206, %p207
      %p209 = scmp.ne.s32.totalorder %s201, %s203
      %p210 = scmp.eq.s32.totalorder %s25, 1
      %p211 = por %p209, %p210
      %p212 = scmp.ne.s32.totalorder %s203, %s204
      %p213 = scmp.eq.s32.totalorder %s25, 0
      %p214 = por %p212, %p213
      %p215 = scmp.ne.s32.totalorder %s203, %s204
      %p216 = scmp.eq.s32.totalorder %s26, 1
      %p217 = por %p215, %p216
      %p219 = scmp.ne.s32.totalorder %s204, %s218
      %p220 = scmp.eq.s32.totalorder %s26, 0
      %p221 = por %p219, %p220
      %s223 = sadd.s32 %s222, 1
      %p226 = scmp.eq.s32.totalorder %s20, 1
      %p227 = scmp.ne.s32.totalorder %s222, %s224
      %p228 = scmp.eq.s32.totalorder %s20, 0
      %p229 = por %p227, %p228
      %p230 = scmp.ne.s32.totalorder %s222, %s224
      %p231 = scmp.eq.s32.totalorder %s25, 1
      %p232 = por %p230, %p231
      %p233 = scmp.ne.s32.totalorder %s224, %s225
      %p234 = scmp.eq.s32.totalorder %s25, 0
      %p235 = por %p233, %p234
      %p236 = scmp.ne.s32.totalorder %s224, %s225
      %p237 = scmp.eq.s32.totalorder %s26, 1
      %p238 = por %p236, %p237
      %p240 = scmp.ne.s32.totalorder %s225, %s239
      %p241 = scmp.eq.s32.totalorder %s26, 0
      %p242 = por %p240, %p241
      %s244 = sadd.s32 %s243, 1
      %p247 = scmp.eq.s32.totalorder %s20, 1
      %p248 = scmp.ne.s32.totalorder %s243, %s245
      %p249 = scmp.eq.s32.totalorder %s20, 0
      %p250 = por %p248, %p249
      %p251 = scmp.ne.s32.totalorder %s243, %s245
      %p252 = scmp.eq.s32.totalorder %s25, 1
      %p253 = por %p251, %p252
      %p254 = scmp.ne.s32.totalorder %s245, %s246
      %p255 = scmp.eq.s32.totalorder %s25, 0
      %p256 = por %p254, %p255
      %p257 = scmp.ne.s32.totalorder %s245, %s246
      %p258 = scmp.eq.s32.totalorder %s26, 1
      %p259 = por %p257, %p258
      %p261 = scmp.ne.s32.totalorder %s246, %s260
      %p262 = scmp.eq.s32.totalorder %s26, 0
      %p263 = por %p261, %p262
      %s264 = ssub.s32 %s20, %s27
      %p265 = scmp.eq.s32.totalorder %s264, 0
      %s267 = sadd.s32 %s266, 1
      %s268 = scalar_select %p265, %s266, %s267
      %p271 = pneg %p265
      %p272 = scmp.eq.s32.totalorder %s20, 1
      %p273 = por %p271, %p272
      %p274 = scmp.ne.s32.totalorder %s266, %s269
      %p275 = scmp.eq.s32.totalorder %s20, 0
      %p276 = por %p274, %p275
      %p277 = scmp.ne.s32.totalorder %s266, %s269
      %p278 = scmp.eq.s32.totalorder %s25, 1
      %p279 = por %p277, %p278
      %p280 = scmp.ne.s32.totalorder %s269, %s270
      %p281 = scmp.eq.s32.totalorder %s25, 0
      %p282 = por %p280, %p281
      %p283 = scmp.ne.s32.totalorder %s269, %s270
      %p284 = scmp.eq.s32.totalorder %s26, 1
      %p285 = por %p283, %p284
      %p287 = scmp.ne.s32.totalorder %s270, %s286
      %p288 = scmp.eq.s32.totalorder %s26, 0
      %p289 = por %p287, %p288
      %p290 = scmp.le.s32.totalorder 1, %s20
      %p291 = scmp.lt.s32.totalorder %s20, 3
      %p292 = pnand %p290, %p291
      %p293 = pneg %p292
      // Predicated region
      $region9: #{cnn_net_forward.1} parent=5 // pred_check
        _
      $region10: #{cnn_net_forward.1} parent=5 // pred_check_branch
        %295 = sbr.rel (%p292) target = $region12
      $region11: #{cnn_net_forward.1} parent=5 // pred_region
        %s296 = ssub.s32 %s20, 1
        // Predicated region
        $region13: #{cnn_net_forward.1} parent=11 // pred_check
          %p297 = pneg %p67
        $region14: #{cnn_net_forward.1} parent=11 // pred_check_branch
          %299 = sbr.rel (%p297) target = $region16
        $region15: #{cnn_net_forward.1} parent=11 // pred_region
          _
        $region16: #{cnn_net_forward.1} parent=11 // pred_fallthru
          _
        // Predicated region
        $region17: #{cnn_net_forward.1} parent=11 // pred_check
          %p300 = pneg %p88
        $region18: #{cnn_net_forward.1} parent=11 // pred_check_branch
          %302 = sbr.rel (%p300) target = $region20
        $region19: #{cnn_net_forward.1} parent=11 // pred_region
          _
        $region20: #{cnn_net_forward.1} parent=11 // pred_fallthru
          _
        // Predicated region
        $region21: #{cnn_net_forward.1} parent=11 // pred_check
          %p303 = pneg %p109
        $region22: #{cnn_net_forward.1} parent=11 // pred_check_branch
          %305 = sbr.rel (%p303) target = $region24
        $region23: #{cnn_net_forward.1} parent=11 // pred_region
          _
        $region24: #{cnn_net_forward.1} parent=11 // pred_fallthru
          _
        // Predicated region
        $region25: #{cnn_net_forward.1} parent=11 // pred_check
          %p306 = pneg %p130
        $region26: #{cnn_net_forward.1} parent=11 // pred_check_branch
          %308 = sbr.rel (%p306) target = $region28
        $region27: #{cnn_net_forward.1} parent=11 // pred_region
          _
        $region28: #{cnn_net_forward.1} parent=11 // pred_fallthru
          _
        // Predicated region
        $region29: #{cnn_net_forward.1} parent=11 // pred_check
          %p309 = pneg %p151
        $region30: #{cnn_net_forward.1} parent=11 // pred_check_branch
          %311 = sbr.rel (%p309) target = $region32
        $region31: #{cnn_net_forward.1} parent=11 // pred_region
          _
        $region32: #{cnn_net_forward.1} parent=11 // pred_fallthru
          _
        // Predicated region
        $region33: #{cnn_net_forward.1} parent=11 // pred_check
          %p312 = pneg %p172
        $region34: #{cnn_net_forward.1} parent=11 // pred_check_branch
          %314 = sbr.rel (%p312) target = $region36
        $region35: #{cnn_net_forward.1} parent=11 // pred_region
          _
        $region36: #{cnn_net_forward.1} parent=11 // pred_fallthru
          _
        // Predicated region
        $region37: #{cnn_net_forward.1} parent=11 // pred_check
          %p315 = pneg %p193
        $region38: #{cnn_net_forward.1} parent=11 // pred_check_branch
          %317 = sbr.rel (%p315) target = $region40
        $region39: #{cnn_net_forward.1} parent=11 // pred_region
          _
        $region40: #{cnn_net_forward.1} parent=11 // pred_fallthru
          _
        // Predicated region
        $region41: #{cnn_net_forward.1} parent=11 // pred_check
          %p318 = pneg %p214
        $region42: #{cnn_net_forward.1} parent=11 // pred_check_branch
          %320 = sbr.rel (%p318) target = $region44
        $region43: #{cnn_net_forward.1} parent=11 // pred_region
          _
        $region44: #{cnn_net_forward.1} parent=11 // pred_fallthru
          _
        // Predicated region
        $region45: #{cnn_net_forward.1} parent=11 // pred_check
          %p321 = pneg %p235
        $region46: #{cnn_net_forward.1} parent=11 // pred_check_branch
          %323 = sbr.rel (%p321) target = $region48
        $region47: #{cnn_net_forward.1} parent=11 // pred_region
          _
        $region48: #{cnn_net_forward.1} parent=11 // pred_fallthru
          _
        // Predicated region
        $region49: #{cnn_net_forward.1} parent=11 // pred_check
          %p324 = pneg %p256
        $region50: #{cnn_net_forward.1} parent=11 // pred_check_branch
          %326 = sbr.rel (%p324) target = $region52
        $region51: #{cnn_net_forward.1} parent=11 // pred_region
          _
        $region52: #{cnn_net_forward.1} parent=11 // pred_fallthru
          _
      $region12: #{cnn_net_forward.1} parent=5 // pred_fallthru
        _
      %p327 = scmp.lt.s32.totalorder %s20, 2
      // Predicated region
      $region53: #{cnn_net_forward.1} parent=5 // pred_check
        %p328 = pneg %p327
      $region54: #{cnn_net_forward.1} parent=5 // pred_check_branch
        %330 = sbr.rel (%p328) target = $region56
      $region55: #{cnn_net_forward.1} parent=5 // pred_region
        // Predicated region
        $region57: #{cnn_net_forward.1} parent=55 // pred_check
          %p331 = pneg %p40
        $region58: #{cnn_net_forward.1} parent=55 // pred_check_branch
          %333 = sbr.rel (%p331) target = $region60
        $region59: #{cnn_net_forward.1} parent=55 // pred_region
          %p334 = scmp.lt.s32.totalorder %s20, 1
          %s335 = scalar_select %p334, %s20, 1
          %s336 = smul.addr %s335, 54
          %s337 = smul.addr %s336, 8
          %s338 = scalar_lea.vmem %s0, %s337
        $region60: #{cnn_net_forward.1} parent=55 // pred_fallthru
          _
      $region56: #{cnn_net_forward.1} parent=5 // pred_fallthru
        _
      %p339 = scmp.le.s32.totalorder 1, %s20
      %p340 = scmp.lt.s32.totalorder %s20, 3
      %p341 = pnand %p339, %p340
      %p342 = pneg %p341
      // Predicated region
      $region61: #{cnn_net_forward.1} parent=5 // pred_check
        _
      $region62: #{cnn_net_forward.1} parent=5 // pred_check_branch
        %344 = sbr.rel (%p341) target = $region64
      $region63: #{cnn_net_forward.1} parent=5 // pred_region
        %s345 = ssub.s32 %s20, 1
        %p346 = scmp.lt.s32.totalorder %s25, 1
        %s347 = scalar_select %p346, %s25, 1
        %s348 = smul.addr %s347, 54
        %s349 = smul.addr %s348, 8
        %s350 = scalar_lea.vmem %s0, %s349
        %p351 = pneg %p46
        %p352 = pneg %p43
        %p353 = pneg %p67
        %p354 = pneg %p64
        %p355 = pneg %p88
        %p356 = pneg %p85
        %p357 = pneg %p109
        %p358 = pneg %p106
        %p359 = pneg %p130
        %p360 = pneg %p127
        %p361 = pneg %p151
        %p362 = pneg %p148
        %p363 = pneg %p172
        %p364 = pneg %p169
        %p365 = pneg %p193
        %p366 = pneg %p190
        %p367 = pneg %p214
        %p368 = pneg %p211
        %p369 = pneg %p235
        %p370 = pneg %p232
        %p371 = pneg %p256
        %p372 = pneg %p253
        %p373 = pneg %p282
        %p374 = pneg %p279
        %s375 = sand.u32 %s269, 1
        %s376 = scalar_lea.sflag [#allocation7], %s375
        %s377 = sand.u32 %s269, 1
        %s378 = scalar_lea.vmem [#allocation6], %s377
        %p379 = scmp.lt.s32.totalorder %s25, 1
        %s380 = scalar_select %p379, %s25, 1
        %s381 = smul.addr %s380, 54
        %s382 = smul.addr %s381, 8
        %s383 = scalar_lea.vmem %s0, %s382
        %vm384 = vcmask 261120
        %385 = vst.msk [vmem:[#allocation2] sm:$0xff] %vm384, 0.0
        %386 = vst.msk [vmem:[#allocation2 + $0x8] sm:$0xff] %vm384, 0.0
        %vm387 = vcmask 254976
        %388 = vst.msk [vmem:[#allocation2 + $0x10] sm:$0x3] %vm387, 0.0
        %s389 = scalar_lea.vmem [#allocation2], 408
        %390 = vst.msk [vmem:[%s389] sm:$0xff] %vm384, 0.0
        %391 = vst.msk [vmem:[%s389 + $0x8] sm:$0xff] %vm384, 0.0
        %392 = vst.msk [vmem:[%s389 + $0x10] sm:$0x3] %vm387, 0.0
        %vm393 = vcmask 253952
        %394 = vst.msk [vmem:[#allocation2] sm:$0x1] %vm393, 0.0
        %395 = vst.msk [vmem:[#allocation2 + $0x18] sm:$0x1] %vm393, 0.0
        %396 = vst.msk [vmem:[#allocation2 + $0x30] sm:$0x1] %vm393, 0.0
        %397 = vst.msk [vmem:[#allocation2 + $0x48] sm:$0x1] %vm393, 0.0
        %398 = vst.msk [vmem:[#allocation2 + $0x60] sm:$0x1] %vm393, 0.0
        %399 = vst.msk [vmem:[#allocation2 + $0x78] sm:$0x1] %vm393, 0.0
        %400 = vst.msk [vmem:[#allocation2 + $0x90] sm:$0x1] %vm393, 0.0
        %401 = vst.msk [vmem:[#allocation2 + $0xa8] sm:$0x1] %vm393, 0.0
        %402 = vst.msk [vmem:[#allocation2 + $0xc0] sm:$0x1] %vm393, 0.0
        %403 = vst.msk [vmem:[#allocation2 + $0xd8] sm:$0x1] %vm393, 0.0
        %404 = vst.msk [vmem:[#allocation2 + $0xf0] sm:$0x1] %vm393, 0.0
        %405 = vst.msk [vmem:[#allocation2 + $0x108] sm:$0x1] %vm393, 0.0
        %406 = vst.msk [vmem:[#allocation2 + $0x120] sm:$0x1] %vm393, 0.0
        %407 = vst.msk [vmem:[#allocation2 + $0x138] sm:$0x1] %vm393, 0.0
        %408 = vst.msk [vmem:[#allocation2 + $0x150] sm:$0x1] %vm393, 0.0
        %409 = vst.msk [vmem:[#allocation2 + $0x168] sm:$0x1] %vm393, 0.0
        %410 = vst.msk [vmem:[#allocation2 + $0x180] sm:$0x1] %vm393, 0.0
        %411 = vst.msk [vmem:[#allocation2 + $0x198] sm:$0x1] %vm393, 0.0
        %412 = vst.msk [vmem:[#allocation2 + $0x11] sm:$0x1] %vm393, 0.0
        %413 = vst.msk [vmem:[#allocation2 + $0x29] sm:$0x1] %vm393, 0.0
        %414 = vst.msk [vmem:[#allocation2 + $0x41] sm:$0x1] %vm393, 0.0
        %415 = vst.msk [vmem:[#allocation2 + $0x59] sm:$0x1] %vm393, 0.0
        %416 = vst.msk [vmem:[#allocation2 + $0x71] sm:$0x1] %vm393, 0.0
        %417 = vst.msk [vmem:[#allocation2 + $0x89] sm:$0x1] %vm393, 0.0
        %418 = vst.msk [vmem:[#allocation2 + $0xa1] sm:$0x1] %vm393, 0.0
        %419 = vst.msk [vmem:[#allocation2 + $0xb9] sm:$0x1] %vm393, 0.0
        %420 = vst.msk [vmem:[#allocation2 + $0xd1] sm:$0x1] %vm393, 0.0
        %421 = vst.msk [vmem:[#allocation2 + $0xe9] sm:$0x1] %vm393, 0.0
        %422 = vst.msk [vmem:[#allocation2 + $0x101] sm:$0x1] %vm393, 0.0
        %423 = vst.msk [vmem:[#allocation2 + $0x119] sm:$0x1] %vm393, 0.0
        %424 = vst.msk [vmem:[#allocation2 + $0x131] sm:$0x1] %vm393, 0.0
        %425 = vst.msk [vmem:[#allocation2 + $0x149] sm:$0x1] %vm393, 0.0
        %426 = vst.msk [vmem:[#allocation2 + $0x161] sm:$0x1] %vm393, 0.0
        %427 = vst.msk [vmem:[#allocation2 + $0x179] sm:$0x1] %vm393, 0.0
        %428 = vst.msk [vmem:[#allocation2 + $0x191] sm:$0x1] %vm393, 0.0
        %429 = vst.msk [vmem:[#allocation2 + $0x1a9] sm:$0x1] %vm393, 0.0
        %430 = vst.msk [vmem:[#allocation3] sm:$0xff] %vm384, 0.0
        %431 = vst.msk [vmem:[#allocation3 + $0x8] sm:$0x3] %vm387, 0.0
        %s432 = scalar_lea.vmem [#allocation3], 144
        %433 = vst.msk [vmem:[%s432] sm:$0xff] %vm384, 0.0
        %434 = vst.msk [vmem:[%s432 + $0x8] sm:$0x3] %vm387, 0.0
        %435 = vst.msk [vmem:[#allocation3] sm:$0x1] %vm393, 0.0
        %436 = vst.msk [vmem:[#allocation3 + $0x10] sm:$0x1] %vm393, 0.0
        %437 = vst.msk [vmem:[#allocation3 + $0x20] sm:$0x1] %vm393, 0.0
        %438 = vst.msk [vmem:[#allocation3 + $0x30] sm:$0x1] %vm393, 0.0
        %439 = vst.msk [vmem:[#allocation3 + $0x40] sm:$0x1] %vm393, 0.0
        %440 = vst.msk [vmem:[#allocation3 + $0x50] sm:$0x1] %vm393, 0.0
        %441 = vst.msk [vmem:[#allocation3 + $0x60] sm:$0x1] %vm393, 0.0
        %442 = vst.msk [vmem:[#allocation3 + $0x70] sm:$0x1] %vm393, 0.0
        %443 = vst.msk [vmem:[#allocation3 + $0x80] sm:$0x1] %vm393, 0.0
        %444 = vst.msk [vmem:[#allocation3 + $0x90] sm:$0x1] %vm393, 0.0
        %445 = vst.msk [vmem:[#allocation3 + $0x9] sm:$0x1] %vm393, 0.0
        %446 = vst.msk [vmem:[#allocation3 + $0x19] sm:$0x1] %vm393, 0.0
        %447 = vst.msk [vmem:[#allocation3 + $0x29] sm:$0x1] %vm393, 0.0
        %448 = vst.msk [vmem:[#allocation3 + $0x39] sm:$0x1] %vm393, 0.0
        %449 = vst.msk [vmem:[#allocation3 + $0x49] sm:$0x1] %vm393, 0.0
        %450 = vst.msk [vmem:[#allocation3 + $0x59] sm:$0x1] %vm393, 0.0
        %451 = vst.msk [vmem:[#allocation3 + $0x69] sm:$0x1] %vm393, 0.0
        %452 = vst.msk [vmem:[#allocation3 + $0x79] sm:$0x1] %vm393, 0.0
        %453 = vst.msk [vmem:[#allocation3 + $0x89] sm:$0x1] %vm393, 0.0
        %454 = vst.msk [vmem:[#allocation3 + $0x99] sm:$0x1] %vm393, 0.0
        %v455 = vld [vmem:[%s383] sm:$0xff]
        %v456 = vld [vmem:[%s383 + $0x8] sm:$0xff]
        %v457 = vld [vmem:[%s383 + $0x18] sm:$0xff]
        %v458 = vld [vmem:[%s383 + $0x20] sm:$0xff]
        %v459 = vld [vmem:[%s383 + $0x30] sm:$0xff]
        %v460 = vld [vmem:[%s383 + $0x38] sm:$0xff]
        %v461 = vld [vmem:[%s383 + $0x48] sm:$0xff]
        %v462 = vld [vmem:[%s383 + $0x50] sm:$0xff]
        %v463 = vld [vmem:[%s383 + $0x60] sm:$0xff]
        %v464 = vld [vmem:[%s383 + $0x68] sm:$0xff]
        %v465 = vld [vmem:[%s383 + $0x78] sm:$0xff]
        %v466 = vld [vmem:[%s383 + $0x80] sm:$0xff]
        %v467 = vld [vmem:[%s383 + $0x90] sm:$0xff]
        %v468 = vld [vmem:[%s383 + $0x98] sm:$0xff]
        %v469 = vld [vmem:[%s383 + $0xa8] sm:$0xff]
        %v470 = vld [vmem:[%s383 + $0xb0] sm:$0xff]
        %v471 = vld [vmem:[%s383 + $0xc0] sm:$0xff]
        %v472 = vld [vmem:[%s383 + $0xc8] sm:$0xff]
        %v473 = vld [vmem:[%s383 + $0xd8] sm:$0xff]
        %v474 = vld [vmem:[%s383 + $0xe0] sm:$0xff]
        %v475 = vld [vmem:[%s383 + $0xf0] sm:$0xff]
        %v476 = vld [vmem:[%s383 + $0xf8] sm:$0xff]
        %v477 = vld [vmem:[%s383 + $0x108] sm:$0xff]
        %v478 = vld [vmem:[%s383 + $0x110] sm:$0xff]
        %v479 = vld [vmem:[%s383 + $0x120] sm:$0xff]
        %v480 = vld [vmem:[%s383 + $0x128] sm:$0xff]
        %v481 = vld [vmem:[%s383 + $0x138] sm:$0xff]
        %v482 = vld [vmem:[%s383 + $0x140] sm:$0xff]
        %v483 = vld [vmem:[%s383 + $0x150] sm:$0xff]
        %v484 = vld [vmem:[%s383 + $0x158] sm:$0xff]
        %v485 = vld [vmem:[%s383 + $0x168] sm:$0xff]
        %v486 = vld [vmem:[%s383 + $0x170] sm:$0xff]
        %v487 = vld [vmem:[%s1] sm:$0x1]
        %489 = vset.pattern.permute.xlu0 0
        %490 = vperm.xlu0 %489, %v455
        %v491 = vpop.permute.xlu0 %490
        %494 = vset.pattern.permute.xlu0 0
        %495 = vperm.xlu0 %494, %v456
        %v496 = vpop.permute.xlu0 %495
        %499 = vset.pattern.permute.xlu0 0
        %500 = vperm.xlu0 %499, %v457
        %v501 = vpop.permute.xlu0 %500
        %504 = vset.pattern.permute.xlu0 0
        %505 = vperm.xlu0 %504, %v458
        %v506 = vpop.permute.xlu0 %505
        %509 = vset.pattern.permute.xlu0 0
        %510 = vperm.xlu0 %509, %v459
        %v511 = vpop.permute.xlu0 %510
        %514 = vset.pattern.permute.xlu0 0
        %515 = vperm.xlu0 %514, %v460
        %v516 = vpop.permute.xlu0 %515
        %519 = vset.pattern.permute.xlu0 0
        %520 = vperm.xlu0 %519, %v461
        %v521 = vpop.permute.xlu0 %520
        %524 = vset.pattern.permute.xlu0 0
        %525 = vperm.xlu0 %524, %v462
        %v526 = vpop.permute.xlu0 %525
        %529 = vset.pattern.permute.xlu0 0
        %530 = vperm.xlu0 %529, %v463
        %v531 = vpop.permute.xlu0 %530
        %534 = vset.pattern.permute.xlu0 0
        %535 = vperm.xlu0 %534, %v464
        %v536 = vpop.permute.xlu0 %535
        %539 = vset.pattern.permute.xlu0 0
        %540 = vperm.xlu0 %539, %v465
        %v541 = vpop.permute.xlu0 %540
        %544 = vset.pattern.permute.xlu0 0
        %545 = vperm.xlu0 %544, %v466
        %v546 = vpop.permute.xlu0 %545
        %549 = vset.pattern.permute.xlu0 0
        %550 = vperm.xlu0 %549, %v467
        %v551 = vpop.permute.xlu0 %550
        %554 = vset.pattern.permute.xlu0 0
        %555 = vperm.xlu0 %554, %v468
        %v556 = vpop.permute.xlu0 %555
        %559 = vset.pattern.permute.xlu0 0
        %560 = vperm.xlu0 %559, %v469
        %v561 = vpop.permute.xlu0 %560
        %564 = vset.pattern.permute.xlu0 0
        %565 = vperm.xlu0 %564, %v470
        %v566 = vpop.permute.xlu0 %565
        %569 = vset.pattern.permute.xlu0 0
        %570 = vperm.xlu0 %569, %v471
        %v571 = vpop.permute.xlu0 %570
        %574 = vset.pattern.permute.xlu0 0
        %575 = vperm.xlu0 %574, %v472
        %v576 = vpop.permute.xlu0 %575
        %579 = vset.pattern.permute.xlu0 0
        %580 = vperm.xlu0 %579, %v473
        %v581 = vpop.permute.xlu0 %580
        %584 = vset.pattern.permute.xlu0 0
        %585 = vperm.xlu0 %584, %v474
        %v586 = vpop.permute.xlu0 %585
        %589 = vset.pattern.permute.xlu0 0
        %590 = vperm.xlu0 %589, %v475
        %v591 = vpop.permute.xlu0 %590
        %594 = vset.pattern.permute.xlu0 0
        %595 = vperm.xlu0 %594, %v476
        %v596 = vpop.permute.xlu0 %595
        %599 = vset.pattern.permute.xlu0 0
        %600 = vperm.xlu0 %599, %v477
        %v601 = vpop.permute.xlu0 %600
        %604 = vset.pattern.permute.xlu0 0
        %605 = vperm.xlu0 %604, %v478
        %v606 = vpop.permute.xlu0 %605
        %609 = vset.pattern.permute.xlu0 0
        %610 = vperm.xlu0 %609, %v479
        %v611 = vpop.permute.xlu0 %610
        %614 = vset.pattern.permute.xlu0 0
        %615 = vperm.xlu0 %614, %v480
        %v616 = vpop.permute.xlu0 %615
        %619 = vset.pattern.permute.xlu0 0
        %620 = vperm.xlu0 %619, %v481
        %v621 = vpop.permute.xlu0 %620
        %624 = vset.pattern.permute.xlu0 0
        %625 = vperm.xlu0 %624, %v482
        %v626 = vpop.permute.xlu0 %625
        %629 = vset.pattern.permute.xlu0 0
        %630 = vperm.xlu0 %629, %v483
        %v631 = vpop.permute.xlu0 %630
        %634 = vset.pattern.permute.xlu0 0
        %635 = vperm.xlu0 %634, %v484
        %v636 = vpop.permute.xlu0 %635
        %639 = vset.pattern.permute.xlu0 0
        %640 = vperm.xlu0 %639, %v485
        %v641 = vpop.permute.xlu0 %640
        %644 = vset.pattern.permute.xlu0 0
        %645 = vperm.xlu0 %644, %v486
        %v646 = vpop.permute.xlu0 %645
        %v649 = vlaneseq
        %v650 = vshrl.u32 %v649, 7
        %v651 = vsub.s32 0, %v650
        %v652 = vrot.slane %v487, %v651
        %v654 = vmul.f32 %v491, %v652
        %v655 = vmul.f32 %v496, %v652
        %v656 = vmul.f32 %v501, %v652
        %v657 = vmul.f32 %v506, %v652
        %v658 = vmul.f32 %v511, %v652
        %v659 = vmul.f32 %v516, %v652
        %v660 = vmul.f32 %v521, %v652
        %v661 = vmul.f32 %v526, %v652
        %v662 = vmul.f32 %v531, %v652
        %v663 = vmul.f32 %v536, %v652
        %v664 = vmul.f32 %v541, %v652
        %v665 = vmul.f32 %v546, %v652
        %v666 = vmul.f32 %v551, %v652
        %v667 = vmul.f32 %v556, %v652
        %v668 = vmul.f32 %v561, %v652
        %v669 = vmul.f32 %v566, %v652
        %v670 = vmul.f32 %v571, %v652
        %v671 = vmul.f32 %v576, %v652
        %v672 = vmul.f32 %v581, %v652
        %v673 = vmul.f32 %v586, %v652
        %v674 = vmul.f32 %v591, %v652
        %v675 = vmul.f32 %v596, %v652
        %v676 = vmul.f32 %v601, %v652
        %v677 = vmul.f32 %v606, %v652
        %v678 = vmul.f32 %v611, %v652
        %v679 = vmul.f32 %v616, %v652
        %v680 = vmul.f32 %v621, %v652
        %v681 = vmul.f32 %v626, %v652
        %v682 = vmul.f32 %v631, %v652
        %v683 = vmul.f32 %v636, %v652
        %v684 = vmul.f32 %v641, %v652
        %v685 = vmul.f32 %v646, %v652
        %v686 = vld [vmem:[%s383 + $0x1] sm:$0xff]
        %v687 = vld [vmem:[%s383 + $0x9] sm:$0xff]
        %v688 = vld [vmem:[%s383 + $0x19] sm:$0xff]
        %v689 = vld [vmem:[%s383 + $0x21] sm:$0xff]
        %v690 = vld [vmem:[%s383 + $0x31] sm:$0xff]
        %v691 = vld [vmem:[%s383 + $0x39] sm:$0xff]
        %v692 = vld [vmem:[%s383 + $0x49] sm:$0xff]
        %v693 = vld [vmem:[%s383 + $0x51] sm:$0xff]
        %v694 = vld [vmem:[%s383 + $0x61] sm:$0xff]
        %v695 = vld [vmem:[%s383 + $0x69] sm:$0xff]
        %v696 = vld [vmem:[%s383 + $0x79] sm:$0xff]
        %v697 = vld [vmem:[%s383 + $0x81] sm:$0xff]
        %v698 = vld [vmem:[%s383 + $0x91] sm:$0xff]
        %v699 = vld [vmem:[%s383 + $0x99] sm:$0xff]
        %v700 = vld [vmem:[%s383 + $0xa9] sm:$0xff]
        %v701 = vld [vmem:[%s383 + $0xb1] sm:$0xff]
        %v702 = vld [vmem:[%s383 + $0xc1] sm:$0xff]
        %v703 = vld [vmem:[%s383 + $0xc9] sm:$0xff]
        %v704 = vld [vmem:[%s383 + $0xd9] sm:$0xff]
        %v705 = vld [vmem:[%s383 + $0xe1] sm:$0xff]
        %v706 = vld [vmem:[%s383 + $0xf1] sm:$0xff]
        %v707 = vld [vmem:[%s383 + $0xf9] sm:$0xff]
        %v708 = vld [vmem:[%s383 + $0x109] sm:$0xff]
        %v709 = vld [vmem:[%s383 + $0x111] sm:$0xff]
        %v710 = vld [vmem:[%s383 + $0x121] sm:$0xff]
        %v711 = vld [vmem:[%s383 + $0x129] sm:$0xff]
        %v712 = vld [vmem:[%s383 + $0x139] sm:$0xff]
        %v713 = vld [vmem:[%s383 + $0x141] sm:$0xff]
        %v714 = vld [vmem:[%s383 + $0x151] sm:$0xff]
        %v715 = vld [vmem:[%s383 + $0x159] sm:$0xff]
        %v716 = vld [vmem:[%s383 + $0x169] sm:$0xff]
        %v717 = vld [vmem:[%s383 + $0x171] sm:$0xff]
        %s718 = scalar_lea.vmem %s1, 1
        %v719 = vld [vmem:[%s718] sm:$0x1]
        %721 = vset.pattern.permute.xlu0 0
        %722 = vperm.xlu0 %721, %v686
        %v723 = vpop.permute.xlu0 %722
        %726 = vset.pattern.permute.xlu0 0
        %727 = vperm.xlu0 %726, %v687
        %v728 = vpop.permute.xlu0 %727
        %731 = vset.pattern.permute.xlu0 0
        %732 = vperm.xlu0 %731, %v688
        %v733 = vpop.permute.xlu0 %732
        %736 = vset.pattern.permute.xlu0 0
        %737 = vperm.xlu0 %736, %v689
        %v738 = vpop.permute.xlu0 %737
        %741 = vset.pattern.permute.xlu0 0
        %742 = vperm.xlu0 %741, %v690
        %v743 = vpop.permute.xlu0 %742
        %746 = vset.pattern.permute.xlu0 0
        %747 = vperm.xlu0 %746, %v691
        %v748 = vpop.permute.xlu0 %747
        %751 = vset.pattern.permute.xlu0 0
        %752 = vperm.xlu0 %751, %v692
        %v753 = vpop.permute.xlu0 %752
        %756 = vset.pattern.permute.xlu0 0
        %757 = vperm.xlu0 %756, %v693
        %v758 = vpop.permute.xlu0 %757
        %761 = vset.pattern.permute.xlu0 0
        %762 = vperm.xlu0 %761, %v694
        %v763 = vpop.permute.xlu0 %762
        %766 = vset.pattern.permute.xlu0 0
        %767 = vperm.xlu0 %766, %v695
        %v768 = vpop.permute.xlu0 %767
        %771 = vset.pattern.permute.xlu0 0
        %772 = vperm.xlu0 %771, %v696
        %v773 = vpop.permute.xlu0 %772
        %776 = vset.pattern.permute.xlu0 0
        %777 = vperm.xlu0 %776, %v697
        %v778 = vpop.permute.xlu0 %777
        %781 = vset.pattern.permute.xlu0 0
        %782 = vperm.xlu0 %781, %v698
        %v783 = vpop.permute.xlu0 %782
        %786 = vset.pattern.permute.xlu0 0
        %787 = vperm.xlu0 %786, %v699
        %v788 = vpop.permute.xlu0 %787
        %791 = vset.pattern.permute.xlu0 0
        %792 = vperm.xlu0 %791, %v700
        %v793 = vpop.permute.xlu0 %792
        %796 = vset.pattern.permute.xlu0 0
        %797 = vperm.xlu0 %796, %v701
        %v798 = vpop.permute.xlu0 %797
        %801 = vset.pattern.permute.xlu0 0
        %802 = vperm.xlu0 %801, %v702
        %v803 = vpop.permute.xlu0 %802
        %806 = vset.pattern.permute.xlu0 0
        %807 = vperm.xlu0 %806, %v703
        %v808 = vpop.permute.xlu0 %807
        %811 = vset.pattern.permute.xlu0 0
        %812 = vperm.xlu0 %811, %v704
        %v813 = vpop.permute.xlu0 %812
        %816 = vset.pattern.permute.xlu0 0
        %817 = vperm.xlu0 %816, %v705
        %v818 = vpop.permute.xlu0 %817
        %821 = vset.pattern.permute.xlu0 0
        %822 = vperm.xlu0 %821, %v706
        %v823 = vpop.permute.xlu0 %822
        %826 = vset.pattern.permute.xlu0 0
        %827 = vperm.xlu0 %826, %v707
        %v828 = vpop.permute.xlu0 %827
        %831 = vset.pattern.permute.xlu0 0
        %832 = vperm.xlu0 %831, %v708
        %v833 = vpop.permute.xlu0 %832
        %836 = vset.pattern.permute.xlu0 0
        %837 = vperm.xlu0 %836, %v709
        %v838 = vpop.permute.xlu0 %837
        %841 = vset.pattern.permute.xlu0 0
        %842 = vperm.xlu0 %841, %v710
        %v843 = vpop.permute.xlu0 %842
        %846 = vset.pattern.permute.xlu0 0
        %847 = vperm.xlu0 %846, %v711
        %v848 = vpop.permute.xlu0 %847
        %851 = vset.pattern.permute.xlu0 0
        %852 = vperm.xlu0 %851, %v712
        %v853 = vpop.permute.xlu0 %852
        %856 = vset.pattern.permute.xlu0 0
        %857 = vperm.xlu0 %856, %v713
        %v858 = vpop.permute.xlu0 %857
        %861 = vset.pattern.permute.xlu0 0
        %862 = vperm.xlu0 %861, %v714
        %v863 = vpop.permute.xlu0 %862
        %866 = vset.pattern.permute.xlu0 0
        %867 = vperm.xlu0 %866, %v715
        %v868 = vpop.permute.xlu0 %867
        %871 = vset.pattern.permute.xlu0 0
        %872 = vperm.xlu0 %871, %v716
        %v873 = vpop.permute.xlu0 %872
        %876 = vset.pattern.permute.xlu0 0
        %877 = vperm.xlu0 %876, %v717
        %v878 = vpop.permute.xlu0 %877
        %v881 = vlaneseq
        %v882 = vshrl.u32 %v881, 7
        %v883 = vsub.s32 0, %v882
        %v884 = vrot.slane %v719, %v883
        %v886 = vmul.f32 %v723, %v884
        %v887 = vmul.f32 %v728, %v884
        %v888 = vmul.f32 %v733, %v884
        %v889 = vmul.f32 %v738, %v884
        %v890 = vmul.f32 %v743, %v884
        %v891 = vmul.f32 %v748, %v884
        %v892 = vmul.f32 %v753, %v884
        %v893 = vmul.f32 %v758, %v884
        %v894 = vmul.f32 %v763, %v884
        %v895 = vmul.f32 %v768, %v884
        %v896 = vmul.f32 %v773, %v884
        %v897 = vmul.f32 %v778, %v884
        %v898 = vmul.f32 %v783, %v884
        %v899 = vmul.f32 %v788, %v884
        %v900 = vmul.f32 %v793, %v884
        %v901 = vmul.f32 %v798, %v884
        %v902 = vmul.f32 %v803, %v884
        %v903 = vmul.f32 %v808, %v884
        %v904 = vmul.f32 %v813, %v884
        %v905 = vmul.f32 %v818, %v884
        %v906 = vmul.f32 %v823, %v884
        %v907 = vmul.f32 %v828, %v884
        %v908 = vmul.f32 %v833, %v884
        %v909 = vmul.f32 %v838, %v884
        %v910 = vmul.f32 %v843, %v884
        %v911 = vmul.f32 %v848, %v884
        %v912 = vmul.f32 %v853, %v884
        %v913 = vmul.f32 %v858, %v884
        %v914 = vmul.f32 %v863, %v884
        %v915 = vmul.f32 %v868, %v884
        %v916 = vmul.f32 %v873, %v884
        %v917 = vmul.f32 %v878, %v884
        %v918 = vadd.f32 %v654, %v886
        %v919 = vadd.f32 %v655, %v887
        %v920 = vadd.f32 %v656, %v888
        %v921 = vadd.f32 %v657, %v889
        %v922 = vadd.f32 %v658, %v890
        %v923 = vadd.f32 %v659, %v891
        %v924 = vadd.f32 %v660, %v892
        %v925 = vadd.f32 %v661, %v893
        %v926 = vadd.f32 %v662, %v894
        %v927 = vadd.f32 %v663, %v895
        %v928 = vadd.f32 %v664, %v896
        %v929 = vadd.f32 %v665, %v897
        %v930 = vadd.f32 %v666, %v898
        %v931 = vadd.f32 %v667, %v899
        %v932 = vadd.f32 %v668, %v900
        %v933 = vadd.f32 %v669, %v901
        %v934 = vadd.f32 %v670, %v902
        %v935 = vadd.f32 %v671, %v903
        %v936 = vadd.f32 %v672, %v904
        %v937 = vadd.f32 %v673, %v905
        %v938 = vadd.f32 %v674, %v906
        %v939 = vadd.f32 %v675, %v907
        %v940 = vadd.f32 %v676, %v908
        %v941 = vadd.f32 %v677, %v909
        %v942 = vadd.f32 %v678, %v910
        %v943 = vadd.f32 %v679, %v911
        %v944 = vadd.f32 %v680, %v912
        %v945 = vadd.f32 %v681, %v913
        %v946 = vadd.f32 %v682, %v914
        %v947 = vadd.f32 %v683, %v915
        %v948 = vadd.f32 %v684, %v916
        %v949 = vadd.f32 %v685, %v917
        %v950 = vld [vmem:[%s383 + $0x2] sm:$0xff]
        %v951 = vld [vmem:[%s383 + $0xa] sm:$0xff]
        %v952 = vld [vmem:[%s383 + $0x1a] sm:$0xff]
        %v953 = vld [vmem:[%s383 + $0x22] sm:$0xff]
        %v954 = vld [vmem:[%s383 + $0x32] sm:$0xff]
        %v955 = vld [vmem:[%s383 + $0x3a] sm:$0xff]
        %v956 = vld [vmem:[%s383 + $0x4a] sm:$0xff]
        %v957 = vld [vmem:[%s383 + $0x52] sm:$0xff]
        %v958 = vld [vmem:[%s383 + $0x62] sm:$0xff]
        %v959 = vld [vmem:[%s383 + $0x6a] sm:$0xff]
        %v960 = vld [vmem:[%s383 + $0x7a] sm:$0xff]
        %v961 = vld [vmem:[%s383 + $0x82] sm:$0xff]
        %v962 = vld [vmem:[%s383 + $0x92] sm:$0xff]
        %v963 = vld [vmem:[%s383 + $0x9a] sm:$0xff]
        %v964 = vld [vmem:[%s383 + $0xaa] sm:$0xff]
        %v965 = vld [vmem:[%s383 + $0xb2] sm:$0xff]
        %v966 = vld [vmem:[%s383 + $0xc2] sm:$0xff]
        %v967 = vld [vmem:[%s383 + $0xca] sm:$0xff]
        %v968 = vld [vmem:[%s383 + $0xda] sm:$0xff]
        %v969 = vld [vmem:[%s383 + $0xe2] sm:$0xff]
        %v970 = vld [vmem:[%s383 + $0xf2] sm:$0xff]
        %v971 = vld [vmem:[%s383 + $0xfa] sm:$0xff]
        %v972 = vld [vmem:[%s383 + $0x10a] sm:$0xff]
        %v973 = vld [vmem:[%s383 + $0x112] sm:$0xff]
        %v974 = vld [vmem:[%s383 + $0x122] sm:$0xff]
        %v975 = vld [vmem:[%s383 + $0x12a] sm:$0xff]
        %v976 = vld [vmem:[%s383 + $0x13a] sm:$0xff]
        %v977 = vld [vmem:[%s383 + $0x142] sm:$0xff]
        %v978 = vld [vmem:[%s383 + $0x152] sm:$0xff]
        %v979 = vld [vmem:[%s383 + $0x15a] sm:$0xff]
        %v980 = vld [vmem:[%s383 + $0x16a] sm:$0xff]
        %v981 = vld [vmem:[%s383 + $0x172] sm:$0xff]
        %s982 = scalar_lea.vmem %s1, 2
        %v983 = vld [vmem:[%s982] sm:$0x1]
        %985 = vset.pattern.permute.xlu0 0
        %986 = vperm.xlu0 %985, %v950
        %v987 = vpop.permute.xlu0 %986
        %990 = vset.pattern.permute.xlu0 0
        %991 = vperm.xlu0 %990, %v951
        %v992 = vpop.permute.xlu0 %991
        %995 = vset.pattern.permute.xlu0 0
        %996 = vperm.xlu0 %995, %v952
        %v997 = vpop.permute.xlu0 %996
        %1000 = vset.pattern.permute.xlu0 0
        %1001 = vperm.xlu0 %1000, %v953
        %v1002 = vpop.permute.xlu0 %1001
        %1005 = vset.pattern.permute.xlu0 0
        %1006 = vperm.xlu0 %1005, %v954
        %v1007 = vpop.permute.xlu0 %1006
        %1010 = vset.pattern.permute.xlu0 0
        %1011 = vperm.xlu0 %1010, %v955
        %v1012 = vpop.permute.xlu0 %1011
        %1015 = vset.pattern.permute.xlu0 0
        %1016 = vperm.xlu0 %1015, %v956
        %v1017 = vpop.permute.xlu0 %1016
        %1020 = vset.pattern.permute.xlu0 0
        %1021 = vperm.xlu0 %1020, %v957
        %v1022 = vpop.permute.xlu0 %1021
        %1025 = vset.pattern.permute.xlu0 0
        %1026 = vperm.xlu0 %1025, %v958
        %v1027 = vpop.permute.xlu0 %1026
        %1030 = vset.pattern.permute.xlu0 0
        %1031 = vperm.xlu0 %1030, %v959
        %v1032 = vpop.permute.xlu0 %1031
        %1035 = vset.pattern.permute.xlu0 0
        %1036 = vperm.xlu0 %1035, %v960
        %v1037 = vpop.permute.xlu0 %1036
        %1040 = vset.pattern.permute.xlu0 0
        %1041 = vperm.xlu0 %1040, %v961
        %v1042 = vpop.permute.xlu0 %1041
        %1045 = vset.pattern.permute.xlu0 0
        %1046 = vperm.xlu0 %1045, %v962
        %v1047 = vpop.permute.xlu0 %1046
        %1050 = vset.pattern.permute.xlu0 0
        %1051 = vperm.xlu0 %1050, %v963
        %v1052 = vpop.permute.xlu0 %1051
        %1055 = vset.pattern.permute.xlu0 0
        %1056 = vperm.xlu0 %1055, %v964
        %v1057 = vpop.permute.xlu0 %1056
        %1060 = vset.pattern.permute.xlu0 0
        %1061 = vperm.xlu0 %1060, %v965
        %v1062 = vpop.permute.xlu0 %1061
        %1065 = vset.pattern.permute.xlu0 0
        %1066 = vperm.xlu0 %1065, %v966
        %v1067 = vpop.permute.xlu0 %1066
        %1070 = vset.pattern.permute.xlu0 0
        %1071 = vperm.xlu0 %1070, %v967
        %v1072 = vpop.permute.xlu0 %1071
        %1075 = vset.pattern.permute.xlu0 0
        %1076 = vperm.xlu0 %1075, %v968
        %v1077 = vpop.permute.xlu0 %1076
        %1080 = vset.pattern.permute.xlu0 0
        %1081 = vperm.xlu0 %1080, %v969
        %v1082 = vpop.permute.xlu0 %1081
        %1085 = vset.pattern.permute.xlu0 0
        %1086 = vperm.xlu0 %1085, %v970
        %v1087 = vpop.permute.xlu0 %1086
        %1090 = vset.pattern.permute.xlu0 0
        %1091 = vperm.xlu0 %1090, %v971
        %v1092 = vpop.permute.xlu0 %1091
        %1095 = vset.pattern.permute.xlu0 0
        %1096 = vperm.xlu0 %1095, %v972
        %v1097 = vpop.permute.xlu0 %1096
        %1100 = vset.pattern.permute.xlu0 0
        %1101 = vperm.xlu0 %1100, %v973
        %v1102 = vpop.permute.xlu0 %1101
        %1105 = vset.pattern.permute.xlu0 0
        %1106 = vperm.xlu0 %1105, %v974
        %v1107 = vpop.permute.xlu0 %1106
        %1110 = vset.pattern.permute.xlu0 0
        %1111 = vperm.xlu0 %1110, %v975
        %v1112 = vpop.permute.xlu0 %1111
        %1115 = vset.pattern.permute.xlu0 0
        %1116 = vperm.xlu0 %1115, %v976
        %v1117 = vpop.permute.xlu0 %1116
        %1120 = vset.pattern.permute.xlu0 0
        %1121 = vperm.xlu0 %1120, %v977
        %v1122 = vpop.permute.xlu0 %1121
        %1125 = vset.pattern.permute.xlu0 0
        %1126 = vperm.xlu0 %1125, %v978
        %v1127 = vpop.permute.xlu0 %1126
        %1130 = vset.pattern.permute.xlu0 0
        %1131 = vperm.xlu0 %1130, %v979
        %v1132 = vpop.permute.xlu0 %1131
        %1135 = vset.pattern.permute.xlu0 0
        %1136 = vperm.xlu0 %1135, %v980
        %v1137 = vpop.permute.xlu0 %1136
        %1140 = vset.pattern.permute.xlu0 0
        %1141 = vperm.xlu0 %1140, %v981
        %v1142 = vpop.permute.xlu0 %1141
        %v1145 = vlaneseq
        %v1146 = vshrl.u32 %v1145, 7
        %v1147 = vsub.s32 0, %v1146
        %v1148 = vrot.slane %v983, %v1147
        %v1150 = vmul.f32 %v987, %v1148
        %v1151 = vmul.f32 %v992, %v1148
        %v1152 = vmul.f32 %v997, %v1148
        %v1153 = vmul.f32 %v1002, %v1148
        %v1154 = vmul.f32 %v1007, %v1148
        %v1155 = vmul.f32 %v1012, %v1148
        %v1156 = vmul.f32 %v1017, %v1148
        %v1157 = vmul.f32 %v1022, %v1148
        %v1158 = vmul.f32 %v1027, %v1148
        %v1159 = vmul.f32 %v1032, %v1148
        %v1160 = vmul.f32 %v1037, %v1148
        %v1161 = vmul.f32 %v1042, %v1148
        %v1162 = vmul.f32 %v1047, %v1148
        %v1163 = vmul.f32 %v1052, %v1148
        %v1164 = vmul.f32 %v1057, %v1148
        %v1165 = vmul.f32 %v1062, %v1148
        %v1166 = vmul.f32 %v1067, %v1148
        %v1167 = vmul.f32 %v1072, %v1148
        %v1168 = vmul.f32 %v1077, %v1148
        %v1169 = vmul.f32 %v1082, %v1148
        %v1170 = vmul.f32 %v1087, %v1148
        %v1171 = vmul.f32 %v1092, %v1148
        %v1172 = vmul.f32 %v1097, %v1148
        %v1173 = vmul.f32 %v1102, %v1148
        %v1174 = vmul.f32 %v1107, %v1148
        %v1175 = vmul.f32 %v1112, %v1148
        %v1176 = vmul.f32 %v1117, %v1148
        %v1177 = vmul.f32 %v1122, %v1148
        %v1178 = vmul.f32 %v1127, %v1148
        %v1179 = vmul.f32 %v1132, %v1148
        %v1180 = vmul.f32 %v1137, %v1148
        %v1181 = vmul.f32 %v1142, %v1148
        %v1182 = vadd.f32 %v918, %v1150
        %v1183 = vadd.f32 %v919, %v1151
        %v1184 = vadd.f32 %v920, %v1152
        %v1185 = vadd.f32 %v921, %v1153
        %v1186 = vadd.f32 %v922, %v1154
        %v1187 = vadd.f32 %v923, %v1155
        %v1188 = vadd.f32 %v924, %v1156
        %v1189 = vadd.f32 %v925, %v1157
        %v1190 = vadd.f32 %v926, %v1158
        %v1191 = vadd.f32 %v927, %v1159
        %v1192 = vadd.f32 %v928, %v1160
        %v1193 = vadd.f32 %v929, %v1161
        %v1194 = vadd.f32 %v930, %v1162
        %v1195 = vadd.f32 %v931, %v1163
        %v1196 = vadd.f32 %v932, %v1164
        %v1197 = vadd.f32 %v933, %v1165
        %v1198 = vadd.f32 %v934, %v1166
        %v1199 = vadd.f32 %v935, %v1167
        %v1200 = vadd.f32 %v936, %v1168
        %v1201 = vadd.f32 %v937, %v1169
        %v1202 = vadd.f32 %v938, %v1170
        %v1203 = vadd.f32 %v939, %v1171
        %v1204 = vadd.f32 %v940, %v1172
        %v1205 = vadd.f32 %v941, %v1173
        %v1206 = vadd.f32 %v942, %v1174
        %v1207 = vadd.f32 %v943, %v1175
        %v1208 = vadd.f32 %v944, %v1176
        %v1209 = vadd.f32 %v945, %v1177
        %v1210 = vadd.f32 %v946, %v1178
        %v1211 = vadd.f32 %v947, %v1179
        %v1212 = vadd.f32 %v948, %v1180
        %v1213 = vadd.f32 %v949, %v1181
        %s1214 = scalar_lea.vmem %s383, 24
        %v1215 = vld [vmem:[%s1214] sm:$0xff]
        %v1216 = vld [vmem:[%s1214 + $0x8] sm:$0xff]
        %v1217 = vld [vmem:[%s1214 + $0x18] sm:$0xff]
        %v1218 = vld [vmem:[%s1214 + $0x20] sm:$0xff]
        %v1219 = vld [vmem:[%s1214 + $0x30] sm:$0xff]
        %v1220 = vld [vmem:[%s1214 + $0x38] sm:$0xff]
        %v1221 = vld [vmem:[%s1214 + $0x48] sm:$0xff]
        %v1222 = vld [vmem:[%s1214 + $0x50] sm:$0xff]
        %v1223 = vld [vmem:[%s1214 + $0x60] sm:$0xff]
        %v1224 = vld [vmem:[%s1214 + $0x68] sm:$0xff]
        %v1225 = vld [vmem:[%s1214 + $0x78] sm:$0xff]
        %v1226 = vld [vmem:[%s1214 + $0x80] sm:$0xff]
        %v1227 = vld [vmem:[%s1214 + $0x90] sm:$0xff]
        %v1228 = vld [vmem:[%s1214 + $0x98] sm:$0xff]
        %v1229 = vld [vmem:[%s1214 + $0xa8] sm:$0xff]
        %v1230 = vld [vmem:[%s1214 + $0xb0] sm:$0xff]
        %v1231 = vld [vmem:[%s1214 + $0xc0] sm:$0xff]
        %v1232 = vld [vmem:[%s1214 + $0xc8] sm:$0xff]
        %v1233 = vld [vmem:[%s1214 + $0xd8] sm:$0xff]
        %v1234 = vld [vmem:[%s1214 + $0xe0] sm:$0xff]
        %v1235 = vld [vmem:[%s1214 + $0xf0] sm:$0xff]
        %v1236 = vld [vmem:[%s1214 + $0xf8] sm:$0xff]
        %v1237 = vld [vmem:[%s1214 + $0x108] sm:$0xff]
        %v1238 = vld [vmem:[%s1214 + $0x110] sm:$0xff]
        %v1239 = vld [vmem:[%s1214 + $0x120] sm:$0xff]
        %v1240 = vld [vmem:[%s1214 + $0x128] sm:$0xff]
        %v1241 = vld [vmem:[%s1214 + $0x138] sm:$0xff]
        %v1242 = vld [vmem:[%s1214 + $0x140] sm:$0xff]
        %v1243 = vld [vmem:[%s1214 + $0x150] sm:$0xff]
        %v1244 = vld [vmem:[%s1214 + $0x158] sm:$0xff]
        %v1245 = vld [vmem:[%s1214 + $0x168] sm:$0xff]
        %v1246 = vld [vmem:[%s1214 + $0x170] sm:$0xff]
        %s1247 = scalar_lea.vmem %s1, 3
        %v1248 = vld [vmem:[%s1247] sm:$0x1]
        %1250 = vset.pattern.permute.xlu0 0
        %1251 = vperm.xlu0 %1250, %v1215
        %v1252 = vpop.permute.xlu0 %1251
        %1255 = vset.pattern.permute.xlu0 0
        %1256 = vperm.xlu0 %1255, %v1216
        %v1257 = vpop.permute.xlu0 %1256
        %1260 = vset.pattern.permute.xlu0 0
        %1261 = vperm.xlu0 %1260, %v1217
        %v1262 = vpop.permute.xlu0 %1261
        %1265 = vset.pattern.permute.xlu0 0
        %1266 = vperm.xlu0 %1265, %v1218
        %v1267 = vpop.permute.xlu0 %1266
        %1270 = vset.pattern.permute.xlu0 0
        %1271 = vperm.xlu0 %1270, %v1219
        %v1272 = vpop.permute.xlu0 %1271
        %1275 = vset.pattern.permute.xlu0 0
        %1276 = vperm.xlu0 %1275, %v1220
        %v1277 = vpop.permute.xlu0 %1276
        %1280 = vset.pattern.permute.xlu0 0
        %1281 = vperm.xlu0 %1280, %v1221
        %v1282 = vpop.permute.xlu0 %1281
        %1285 = vset.pattern.permute.xlu0 0
        %1286 = vperm.xlu0 %1285, %v1222
        %v1287 = vpop.permute.xlu0 %1286
        %1290 = vset.pattern.permute.xlu0 0
        %1291 = vperm.xlu0 %1290, %v1223
        %v1292 = vpop.permute.xlu0 %1291
        %1295 = vset.pattern.permute.xlu0 0
        %1296 = vperm.xlu0 %1295, %v1224
        %v1297 = vpop.permute.xlu0 %1296
        %1300 = vset.pattern.permute.xlu0 0
        %1301 = vperm.xlu0 %1300, %v1225
        %v1302 = vpop.permute.xlu0 %1301
        %1305 = vset.pattern.permute.xlu0 0
        %1306 = vperm.xlu0 %1305, %v1226
        %v1307 = vpop.permute.xlu0 %1306
        %1310 = vset.pattern.permute.xlu0 0
        %1311 = vperm.xlu0 %1310, %v1227
        %v1312 = vpop.permute.xlu0 %1311
        %1315 = vset.pattern.permute.xlu0 0
        %1316 = vperm.xlu0 %1315, %v1228
        %v1317 = vpop.permute.xlu0 %1316
        %1320 = vset.pattern.permute.xlu0 0
        %1321 = vperm.xlu0 %1320, %v1229
        %v1322 = vpop.permute.xlu0 %1321
        %1325 = vset.pattern.permute.xlu0 0
        %1326 = vperm.xlu0 %1325, %v1230
        %v1327 = vpop.permute.xlu0 %1326
        %1330 = vset.pattern.permute.xlu0 0
        %1331 = vperm.xlu0 %1330, %v1231
        %v1332 = vpop.permute.xlu0 %1331
        %1335 = vset.pattern.permute.xlu0 0
        %1336 = vperm.xlu0 %1335, %v1232
        %v1337 = vpop.permute.xlu0 %1336
        %1340 = vset.pattern.permute.xlu0 0
        %1341 = vperm.xlu0 %1340, %v1233
        %v1342 = vpop.permute.xlu0 %1341
        %1345 = vset.pattern.permute.xlu0 0
        %1346 = vperm.xlu0 %1345, %v1234
        %v1347 = vpop.permute.xlu0 %1346
        %1350 = vset.pattern.permute.xlu0 0
        %1351 = vperm.xlu0 %1350, %v1235
        %v1352 = vpop.permute.xlu0 %1351
        %1355 = vset.pattern.permute.xlu0 0
        %1356 = vperm.xlu0 %1355, %v1236
        %v1357 = vpop.permute.xlu0 %1356
        %1360 = vset.pattern.permute.xlu0 0
        %1361 = vperm.xlu0 %1360, %v1237
        %v1362 = vpop.permute.xlu0 %1361
        %1365 = vset.pattern.permute.xlu0 0
        %1366 = vperm.xlu0 %1365, %v1238
        %v1367 = vpop.permute.xlu0 %1366
        %1370 = vset.pattern.permute.xlu0 0
        %1371 = vperm.xlu0 %1370, %v1239
        %v1372 = vpop.permute.xlu0 %1371
        %1375 = vset.pattern.permute.xlu0 0
        %1376 = vperm.xlu0 %1375, %v1240
        %v1377 = vpop.permute.xlu0 %1376
        %1380 = vset.pattern.permute.xlu0 0
        %1381 = vperm.xlu0 %1380, %v1241
        %v1382 = vpop.permute.xlu0 %1381
        %1385 = vset.pattern.permute.xlu0 0
        %1386 = vperm.xlu0 %1385, %v1242
        %v1387 = vpop.permute.xlu0 %1386
        %1390 = vset.pattern.permute.xlu0 0
        %1391 = vperm.xlu0 %1390, %v1243
        %v1392 = vpop.permute.xlu0 %1391
        %1395 = vset.pattern.permute.xlu0 0
        %1396 = vperm.xlu0 %1395, %v1244
        %v1397 = vpop.permute.xlu0 %1396
        %1400 = vset.pattern.permute.xlu0 0
        %1401 = vperm.xlu0 %1400, %v1245
        %v1402 = vpop.permute.xlu0 %1401
        %1405 = vset.pattern.permute.xlu0 0
        %1406 = vperm.xlu0 %1405, %v1246
        %v1407 = vpop.permute.xlu0 %1406
        %v1410 = vlaneseq
        %v1411 = vshrl.u32 %v1410, 7
        %v1412 = vsub.s32 0, %v1411
        %v1413 = vrot.slane %v1248, %v1412
        %v1415 = vmul.f32 %v1252, %v1413
        %v1416 = vmul.f32 %v1257, %v1413
        %v1417 = vmul.f32 %v1262, %v1413
        %v1418 = vmul.f32 %v1267, %v1413
        %v1419 = vmul.f32 %v1272, %v1413
        %v1420 = vmul.f32 %v1277, %v1413
        %v1421 = vmul.f32 %v1282, %v1413
        %v1422 = vmul.f32 %v1287, %v1413
        %v1423 = vmul.f32 %v1292, %v1413
        %v1424 = vmul.f32 %v1297, %v1413
        %v1425 = vmul.f32 %v1302, %v1413
        %v1426 = vmul.f32 %v1307, %v1413
        %v1427 = vmul.f32 %v1312, %v1413
        %v1428 = vmul.f32 %v1317, %v1413
        %v1429 = vmul.f32 %v1322, %v1413
        %v1430 = vmul.f32 %v1327, %v1413
        %v1431 = vmul.f32 %v1332, %v1413
        %v1432 = vmul.f32 %v1337, %v1413
        %v1433 = vmul.f32 %v1342, %v1413
        %v1434 = vmul.f32 %v1347, %v1413
        %v1435 = vmul.f32 %v1352, %v1413
        %v1436 = vmul.f32 %v1357, %v1413
        %v1437 = vmul.f32 %v1362, %v1413
        %v1438 = vmul.f32 %v1367, %v1413
        %v1439 = vmul.f32 %v1372, %v1413
        %v1440 = vmul.f32 %v1377, %v1413
        %v1441 = vmul.f32 %v1382, %v1413
        %v1442 = vmul.f32 %v1387, %v1413
        %v1443 = vmul.f32 %v1392, %v1413
        %v1444 = vmul.f32 %v1397, %v1413
        %v1445 = vmul.f32 %v1402, %v1413
        %v1446 = vmul.f32 %v1407, %v1413
        %v1447 = vadd.f32 %v1182, %v1415
        %v1448 = vadd.f32 %v1183, %v1416
        %v1449 = vadd.f32 %v1184, %v1417
        %v1450 = vadd.f32 %v1185, %v1418
        %v1451 = vadd.f32 %v1186, %v1419
        %v1452 = vadd.f32 %v1187, %v1420
        %v1453 = vadd.f32 %v1188, %v1421
        %v1454 = vadd.f32 %v1189, %v1422
        %v1455 = vadd.f32 %v1190, %v1423
        %v1456 = vadd.f32 %v1191, %v1424
        %v1457 = vadd.f32 %v1192, %v1425
        %v1458 = vadd.f32 %v1193, %v1426
        %v1459 = vadd.f32 %v1194, %v1427
        %v1460 = vadd.f32 %v1195, %v1428
        %v1461 = vadd.f32 %v1196, %v1429
        %v1462 = vadd.f32 %v1197, %v1430
        %v1463 = vadd.f32 %v1198, %v1431
        %v1464 = vadd.f32 %v1199, %v1432
        %v1465 = vadd.f32 %v1200, %v1433
        %v1466 = vadd.f32 %v1201, %v1434
        %v1467 = vadd.f32 %v1202, %v1435
        %v1468 = vadd.f32 %v1203, %v1436
        %v1469 = vadd.f32 %v1204, %v1437
        %v1470 = vadd.f32 %v1205, %v1438
        %v1471 = vadd.f32 %v1206, %v1439
        %v1472 = vadd.f32 %v1207, %v1440
        %v1473 = vadd.f32 %v1208, %v1441
        %v1474 = vadd.f32 %v1209, %v1442
        %v1475 = vadd.f32 %v1210, %v1443
        %v1476 = vadd.f32 %v1211, %v1444
        %v1477 = vadd.f32 %v1212, %v1445
        %v1478 = vadd.f32 %v1213, %v1446
        %v1479 = vld [vmem:[%s1214 + $0x1] sm:$0xff]
        %v1480 = vld [vmem:[%s1214 + $0x9] sm:$0xff]
        %v1481 = vld [vmem:[%s1214 + $0x19] sm:$0xff]
        %v1482 = vld [vmem:[%s1214 + $0x21] sm:$0xff]
        %v1483 = vld [vmem:[%s1214 + $0x31] sm:$0xff]
        %v1484 = vld [vmem:[%s1214 + $0x39] sm:$0xff]
        %v1485 = vld [vmem:[%s1214 + $0x49] sm:$0xff]
        %v1486 = vld [vmem:[%s1214 + $0x51] sm:$0xff]
        %v1487 = vld [vmem:[%s1214 + $0x61] sm:$0xff]
        %v1488 = vld [vmem:[%s1214 + $0x69] sm:$0xff]
        %v1489 = vld [vmem:[%s1214 + $0x79] sm:$0xff]
        %v1490 = vld [vmem:[%s1214 + $0x81] sm:$0xff]
        %v1491 = vld [vmem:[%s1214 + $0x91] sm:$0xff]
        %v1492 = vld [vmem:[%s1214 + $0x99] sm:$0xff]
        %v1493 = vld [vmem:[%s1214 + $0xa9] sm:$0xff]
        %v1494 = vld [vmem:[%s1214 + $0xb1] sm:$0xff]
        %v1495 = vld [vmem:[%s1214 + $0xc1] sm:$0xff]
        %v1496 = vld [vmem:[%s1214 + $0xc9] sm:$0xff]
        %v1497 = vld [vmem:[%s1214 + $0xd9] sm:$0xff]
        %v1498 = vld [vmem:[%s1214 + $0xe1] sm:$0xff]
        %v1499 = vld [vmem:[%s1214 + $0xf1] sm:$0xff]
        %v1500 = vld [vmem:[%s1214 + $0xf9] sm:$0xff]
        %v1501 = vld [vmem:[%s1214 + $0x109] sm:$0xff]
        %v1502 = vld [vmem:[%s1214 + $0x111] sm:$0xff]
        %v1503 = vld [vmem:[%s1214 + $0x121] sm:$0xff]
        %v1504 = vld [vmem:[%s1214 + $0x129] sm:$0xff]
        %v1505 = vld [vmem:[%s1214 + $0x139] sm:$0xff]
        %v1506 = vld [vmem:[%s1214 + $0x141] sm:$0xff]
        %v1507 = vld [vmem:[%s1214 + $0x151] sm:$0xff]
        %v1508 = vld [vmem:[%s1214 + $0x159] sm:$0xff]
        %v1509 = vld [vmem:[%s1214 + $0x169] sm:$0xff]
        %v1510 = vld [vmem:[%s1214 + $0x171] sm:$0xff]
        %s1511 = scalar_lea.vmem %s1, 4
        %v1512 = vld [vmem:[%s1511] sm:$0x1]
        %1514 = vset.pattern.permute.xlu0 0
        %1515 = vperm.xlu0 %1514, %v1479
        %v1516 = vpop.permute.xlu0 %1515
        %1519 = vset.pattern.permute.xlu0 0
        %1520 = vperm.xlu0 %1519, %v1480
        %v1521 = vpop.permute.xlu0 %1520
        %1524 = vset.pattern.permute.xlu0 0
        %1525 = vperm.xlu0 %1524, %v1481
        %v1526 = vpop.permute.xlu0 %1525
        %1529 = vset.pattern.permute.xlu0 0
        %1530 = vperm.xlu0 %1529, %v1482
        %v1531 = vpop.permute.xlu0 %1530
        %1534 = vset.pattern.permute.xlu0 0
        %1535 = vperm.xlu0 %1534, %v1483
        %v1536 = vpop.permute.xlu0 %1535
        %1539 = vset.pattern.permute.xlu0 0
        %1540 = vperm.xlu0 %1539, %v1484
        %v1541 = vpop.permute.xlu0 %1540
        %1544 = vset.pattern.permute.xlu0 0
        %1545 = vperm.xlu0 %1544, %v1485
        %v1546 = vpop.permute.xlu0 %1545
        %1549 = vset.pattern.permute.xlu0 0
        %1550 = vperm.xlu0 %1549, %v1486
        %v1551 = vpop.permute.xlu0 %1550
        %1554 = vset.pattern.permute.xlu0 0
        %1555 = vperm.xlu0 %1554, %v1487
        %v1556 = vpop.permute.xlu0 %1555
        %1559 = vset.pattern.permute.xlu0 0
        %1560 = vperm.xlu0 %1559, %v1488
        %v1561 = vpop.permute.xlu0 %1560
        %1564 = vset.pattern.permute.xlu0 0
        %1565 = vperm.xlu0 %1564, %v1489
        %v1566 = vpop.permute.xlu0 %1565
        %1569 = vset.pattern.permute.xlu0 0
        %1570 = vperm.xlu0 %1569, %v1490
        %v1571 = vpop.permute.xlu0 %1570
        %1574 = vset.pattern.permute.xlu0 0
        %1575 = vperm.xlu0 %1574, %v1491
        %v1576 = vpop.permute.xlu0 %1575
        %1579 = vset.pattern.permute.xlu0 0
        %1580 = vperm.xlu0 %1579, %v1492
        %v1581 = vpop.permute.xlu0 %1580
        %1584 = vset.pattern.permute.xlu0 0
        %1585 = vperm.xlu0 %1584, %v1493
        %v1586 = vpop.permute.xlu0 %1585
        %1589 = vset.pattern.permute.xlu0 0
        %1590 = vperm.xlu0 %1589, %v1494
        %v1591 = vpop.permute.xlu0 %1590
        %1594 = vset.pattern.permute.xlu0 0
        %1595 = vperm.xlu0 %1594, %v1495
        %v1596 = vpop.permute.xlu0 %1595
        %1599 = vset.pattern.permute.xlu0 0
        %1600 = vperm.xlu0 %1599, %v1496
        %v1601 = vpop.permute.xlu0 %1600
        %1604 = vset.pattern.permute.xlu0 0
        %1605 = vperm.xlu0 %1604, %v1497
        %v1606 = vpop.permute.xlu0 %1605
        %1609 = vset.pattern.permute.xlu0 0
        %1610 = vperm.xlu0 %1609, %v1498
        %v1611 = vpop.permute.xlu0 %1610
        %1614 = vset.pattern.permute.xlu0 0
        %1615 = vperm.xlu0 %1614, %v1499
        %v1616 = vpop.permute.xlu0 %1615
        %1619 = vset.pattern.permute.xlu0 0
        %1620 = vperm.xlu0 %1619, %v1500
        %v1621 = vpop.permute.xlu0 %1620
        %1624 = vset.pattern.permute.xlu0 0
        %1625 = vperm.xlu0 %1624, %v1501
        %v1626 = vpop.permute.xlu0 %1625
        %1629 = vset.pattern.permute.xlu0 0
        %1630 = vperm.xlu0 %1629, %v1502
        %v1631 = vpop.permute.xlu0 %1630
        %1634 = vset.pattern.permute.xlu0 0
        %1635 = vperm.xlu0 %1634, %v1503
        %v1636 = vpop.permute.xlu0 %1635
        %1639 = vset.pattern.permute.xlu0 0
        %1640 = vperm.xlu0 %1639, %v1504
        %v1641 = vpop.permute.xlu0 %1640
        %1644 = vset.pattern.permute.xlu0 0
        %1645 = vperm.xlu0 %1644, %v1505
        %v1646 = vpop.permute.xlu0 %1645
        %1649 = vset.pattern.permute.xlu0 0
        %1650 = vperm.xlu0 %1649, %v1506
        %v1651 = vpop.permute.xlu0 %1650
        %1654 = vset.pattern.permute.xlu0 0
        %1655 = vperm.xlu0 %1654, %v1507
        %v1656 = vpop.permute.xlu0 %1655
        %1659 = vset.pattern.permute.xlu0 0
        %1660 = vperm.xlu0 %1659, %v1508
        %v1661 = vpop.permute.xlu0 %1660
        %1664 = vset.pattern.permute.xlu0 0
        %1665 = vperm.xlu0 %1664, %v1509
        %v1666 = vpop.permute.xlu0 %1665
        %1669 = vset.pattern.permute.xlu0 0
        %1670 = vperm.xlu0 %1669, %v1510
        %v1671 = vpop.permute.xlu0 %1670
        %v1674 = vlaneseq
        %v1675 = vshrl.u32 %v1674, 7
        %v1676 = vsub.s32 0, %v1675
        %v1677 = vrot.slane %v1512, %v1676
        %v1679 = vmul.f32 %v1516, %v1677
        %v1680 = vmul.f32 %v1521, %v1677
        %v1681 = vmul.f32 %v1526, %v1677
        %v1682 = vmul.f32 %v1531, %v1677
        %v1683 = vmul.f32 %v1536, %v1677
        %v1684 = vmul.f32 %v1541, %v1677
        %v1685 = vmul.f32 %v1546, %v1677
        %v1686 = vmul.f32 %v1551, %v1677
        %v1687 = vmul.f32 %v1556, %v1677
        %v1688 = vmul.f32 %v1561, %v1677
        %v1689 = vmul.f32 %v1566, %v1677
        %v1690 = vmul.f32 %v1571, %v1677
        %v1691 = vmul.f32 %v1576, %v1677
        %v1692 = vmul.f32 %v1581, %v1677
        %v1693 = vmul.f32 %v1586, %v1677
        %v1694 = vmul.f32 %v1591, %v1677
        %v1695 = vmul.f32 %v1596, %v1677
        %v1696 = vmul.f32 %v1601, %v1677
        %v1697 = vmul.f32 %v1606, %v1677
        %v1698 = vmul.f32 %v1611, %v1677
        %v1699 = vmul.f32 %v1616, %v1677
        %v1700 = vmul.f32 %v1621, %v1677
        %v1701 = vmul.f32 %v1626, %v1677
        %v1702 = vmul.f32 %v1631, %v1677
        %v1703 = vmul.f32 %v1636, %v1677
        %v1704 = vmul.f32 %v1641, %v1677
        %v1705 = vmul.f32 %v1646, %v1677
        %v1706 = vmul.f32 %v1651, %v1677
        %v1707 = vmul.f32 %v1656, %v1677
        %v1708 = vmul.f32 %v1661, %v1677
        %v1709 = vmul.f32 %v1666, %v1677
        %v1710 = vmul.f32 %v1671, %v1677
        %v1711 = vadd.f32 %v1447, %v1679
        %v1712 = vadd.f32 %v1448, %v1680
        %v1713 = vadd.f32 %v1449, %v1681
        %v1714 = vadd.f32 %v1450, %v1682
        %v1715 = vadd.f32 %v1451, %v1683
        %v1716 = vadd.f32 %v1452, %v1684
        %v1717 = vadd.f32 %v1453, %v1685
        %v1718 = vadd.f32 %v1454, %v1686
        %v1719 = vadd.f32 %v1455, %v1687
        %v1720 = vadd.f32 %v1456, %v1688
        %v1721 = vadd.f32 %v1457, %v1689
        %v1722 = vadd.f32 %v1458, %v1690
        %v1723 = vadd.f32 %v1459, %v1691
        %v1724 = vadd.f32 %v1460, %v1692
        %v1725 = vadd.f32 %v1461, %v1693
        %v1726 = vadd.f32 %v1462, %v1694
        %v1727 = vadd.f32 %v1463, %v1695
        %v1728 = vadd.f32 %v1464, %v1696
        %v1729 = vadd.f32 %v1465, %v1697
        %v1730 = vadd.f32 %v1466, %v1698
        %v1731 = vadd.f32 %v1467, %v1699
        %v1732 = vadd.f32 %v1468, %v1700
        %v1733 = vadd.f32 %v1469, %v1701
        %v1734 = vadd.f32 %v1470, %v1702
        %v1735 = vadd.f32 %v1471, %v1703
        %v1736 = vadd.f32 %v1472, %v1704
        %v1737 = vadd.f32 %v1473, %v1705
        %v1738 = vadd.f32 %v1474, %v1706
        %v1739 = vadd.f32 %v1475, %v1707
        %v1740 = vadd.f32 %v1476, %v1708
        %v1741 = vadd.f32 %v1477, %v1709
        %v1742 = vadd.f32 %v1478, %v1710
        %v1743 = vld [vmem:[%s1214 + $0x2] sm:$0xff]
        %v1744 = vld [vmem:[%s1214 + $0xa] sm:$0xff]
        %v1745 = vld [vmem:[%s1214 + $0x1a] sm:$0xff]
        %v1746 = vld [vmem:[%s1214 + $0x22] sm:$0xff]
        %v1747 = vld [vmem:[%s1214 + $0x32] sm:$0xff]
        %v1748 = vld [vmem:[%s1214 + $0x3a] sm:$0xff]
        %v1749 = vld [vmem:[%s1214 + $0x4a] sm:$0xff]
        %v1750 = vld [vmem:[%s1214 + $0x52] sm:$0xff]
        %v1751 = vld [vmem:[%s1214 + $0x62] sm:$0xff]
        %v1752 = vld [vmem:[%s1214 + $0x6a] sm:$0xff]
        %v1753 = vld [vmem:[%s1214 + $0x7a] sm:$0xff]
        %v1754 = vld [vmem:[%s1214 + $0x82] sm:$0xff]
        %v1755 = vld [vmem:[%s1214 + $0x92] sm:$0xff]
        %v1756 = vld [vmem:[%s1214 + $0x9a] sm:$0xff]
        %v1757 = vld [vmem:[%s1214 + $0xaa] sm:$0xff]
        %v1758 = vld [vmem:[%s1214 + $0xb2] sm:$0xff]
        %v1759 = vld [vmem:[%s1214 + $0xc2] sm:$0xff]
        %v1760 = vld [vmem:[%s1214 + $0xca] sm:$0xff]
        %v1761 = vld [vmem:[%s1214 + $0xda] sm:$0xff]
        %v1762 = vld [vmem:[%s1214 + $0xe2] sm:$0xff]
        %v1763 = vld [vmem:[%s1214 + $0xf2] sm:$0xff]
        %v1764 = vld [vmem:[%s1214 + $0xfa] sm:$0xff]
        %v1765 = vld [vmem:[%s1214 + $0x10a] sm:$0xff]
        %v1766 = vld [vmem:[%s1214 + $0x112] sm:$0xff]
        %v1767 = vld [vmem:[%s1214 + $0x122] sm:$0xff]
        %v1768 = vld [vmem:[%s1214 + $0x12a] sm:$0xff]
        %v1769 = vld [vmem:[%s1214 + $0x13a] sm:$0xff]
        %v1770 = vld [vmem:[%s1214 + $0x142] sm:$0xff]
        %v1771 = vld [vmem:[%s1214 + $0x152] sm:$0xff]
        %v1772 = vld [vmem:[%s1214 + $0x15a] sm:$0xff]
        %v1773 = vld [vmem:[%s1214 + $0x16a] sm:$0xff]
        %v1774 = vld [vmem:[%s1214 + $0x172] sm:$0xff]
        %s1775 = scalar_lea.vmem %s1, 5
        %v1776 = vld [vmem:[%s1775] sm:$0x1]
        %1778 = vset.pattern.permute.xlu0 0
        %1779 = vperm.xlu0 %1778, %v1743
        %v1780 = vpop.permute.xlu0 %1779
        %1783 = vset.pattern.permute.xlu0 0
        %1784 = vperm.xlu0 %1783, %v1744
        %v1785 = vpop.permute.xlu0 %1784
        %1788 = vset.pattern.permute.xlu0 0
        %1789 = vperm.xlu0 %1788, %v1745
        %v1790 = vpop.permute.xlu0 %1789
        %1793 = vset.pattern.permute.xlu0 0
        %1794 = vperm.xlu0 %1793, %v1746
        %v1795 = vpop.permute.xlu0 %1794
        %1798 = vset.pattern.permute.xlu0 0
        %1799 = vperm.xlu0 %1798, %v1747
        %v1800 = vpop.permute.xlu0 %1799
        %1803 = vset.pattern.permute.xlu0 0
        %1804 = vperm.xlu0 %1803, %v1748
        %v1805 = vpop.permute.xlu0 %1804
        %1808 = vset.pattern.permute.xlu0 0
        %1809 = vperm.xlu0 %1808, %v1749
        %v1810 = vpop.permute.xlu0 %1809
        %1813 = vset.pattern.permute.xlu0 0
        %1814 = vperm.xlu0 %1813, %v1750
        %v1815 = vpop.permute.xlu0 %1814
        %1818 = vset.pattern.permute.xlu0 0
        %1819 = vperm.xlu0 %1818, %v1751
        %v1820 = vpop.permute.xlu0 %1819
        %1823 = vset.pattern.permute.xlu0 0
        %1824 = vperm.xlu0 %1823, %v1752
        %v1825 = vpop.permute.xlu0 %1824
        %1828 = vset.pattern.permute.xlu0 0
        %1829 = vperm.xlu0 %1828, %v1753
        %v1830 = vpop.permute.xlu0 %1829
        %1833 = vset.pattern.permute.xlu0 0
        %1834 = vperm.xlu0 %1833, %v1754
        %v1835 = vpop.permute.xlu0 %1834
        %1838 = vset.pattern.permute.xlu0 0
        %1839 = vperm.xlu0 %1838, %v1755
        %v1840 = vpop.permute.xlu0 %1839
        %1843 = vset.pattern.permute.xlu0 0
        %1844 = vperm.xlu0 %1843, %v1756
        %v1845 = vpop.permute.xlu0 %1844
        %1848 = vset.pattern.permute.xlu0 0
        %1849 = vperm.xlu0 %1848, %v1757
        %v1850 = vpop.permute.xlu0 %1849
        %1853 = vset.pattern.permute.xlu0 0
        %1854 = vperm.xlu0 %1853, %v1758
        %v1855 = vpop.permute.xlu0 %1854
        %1858 = vset.pattern.permute.xlu0 0
        %1859 = vperm.xlu0 %1858, %v1759
        %v1860 = vpop.permute.xlu0 %1859
        %1863 = vset.pattern.permute.xlu0 0
        %1864 = vperm.xlu0 %1863, %v1760
        %v1865 = vpop.permute.xlu0 %1864
        %1868 = vset.pattern.permute.xlu0 0
        %1869 = vperm.xlu0 %1868, %v1761
        %v1870 = vpop.permute.xlu0 %1869
        %1873 = vset.pattern.permute.xlu0 0
        %1874 = vperm.xlu0 %1873, %v1762
        %v1875 = vpop.permute.xlu0 %1874
        %1878 = vset.pattern.permute.xlu0 0
        %1879 = vperm.xlu0 %1878, %v1763
        %v1880 = vpop.permute.xlu0 %1879
        %1883 = vset.pattern.permute.xlu0 0
        %1884 = vperm.xlu0 %1883, %v1764
        %v1885 = vpop.permute.xlu0 %1884
        %1888 = vset.pattern.permute.xlu0 0
        %1889 = vperm.xlu0 %1888, %v1765
        %v1890 = vpop.permute.xlu0 %1889
        %1893 = vset.pattern.permute.xlu0 0
        %1894 = vperm.xlu0 %1893, %v1766
        %v1895 = vpop.permute.xlu0 %1894
        %1898 = vset.pattern.permute.xlu0 0
        %1899 = vperm.xlu0 %1898, %v1767
        %v1900 = vpop.permute.xlu0 %1899
        %1903 = vset.pattern.permute.xlu0 0
        %1904 = vperm.xlu0 %1903, %v1768
        %v1905 = vpop.permute.xlu0 %1904
        %1908 = vset.pattern.permute.xlu0 0
        %1909 = vperm.xlu0 %1908, %v1769
        %v1910 = vpop.permute.xlu0 %1909
        %1913 = vset.pattern.permute.xlu0 0
        %1914 = vperm.xlu0 %1913, %v1770
        %v1915 = vpop.permute.xlu0 %1914
        %1918 = vset.pattern.permute.xlu0 0
        %1919 = vperm.xlu0 %1918, %v1771
        %v1920 = vpop.permute.xlu0 %1919
        %1923 = vset.pattern.permute.xlu0 0
        %1924 = vperm.xlu0 %1923, %v1772
        %v1925 = vpop.permute.xlu0 %1924
        %1928 = vset.pattern.permute.xlu0 0
        %1929 = vperm.xlu0 %1928, %v1773
        %v1930 = vpop.permute.xlu0 %1929
        %1933 = vset.pattern.permute.xlu0 0
        %1934 = vperm.xlu0 %1933, %v1774
        %v1935 = vpop.permute.xlu0 %1934
        %v1938 = vlaneseq
        %v1939 = vshrl.u32 %v1938, 7
        %v1940 = vsub.s32 0, %v1939
        %v1941 = vrot.slane %v1776, %v1940
        %v1943 = vmul.f32 %v1780, %v1941
        %v1944 = vmul.f32 %v1785, %v1941
        %v1945 = vmul.f32 %v1790, %v1941
        %v1946 = vmul.f32 %v1795, %v1941
        %v1947 = vmul.f32 %v1800, %v1941
        %v1948 = vmul.f32 %v1805, %v1941
        %v1949 = vmul.f32 %v1810, %v1941
        %v1950 = vmul.f32 %v1815, %v1941
        %v1951 = vmul.f32 %v1820, %v1941
        %v1952 = vmul.f32 %v1825, %v1941
        %v1953 = vmul.f32 %v1830, %v1941
        %v1954 = vmul.f32 %v1835, %v1941
        %v1955 = vmul.f32 %v1840, %v1941
        %v1956 = vmul.f32 %v1845, %v1941
        %v1957 = vmul.f32 %v1850, %v1941
        %v1958 = vmul.f32 %v1855, %v1941
        %v1959 = vmul.f32 %v1860, %v1941
        %v1960 = vmul.f32 %v1865, %v1941
        %v1961 = vmul.f32 %v1870, %v1941
        %v1962 = vmul.f32 %v1875, %v1941
        %v1963 = vmul.f32 %v1880, %v1941
        %v1964 = vmul.f32 %v1885, %v1941
        %v1965 = vmul.f32 %v1890, %v1941
        %v1966 = vmul.f32 %v1895, %v1941
        %v1967 = vmul.f32 %v1900, %v1941
        %v1968 = vmul.f32 %v1905, %v1941
        %v1969 = vmul.f32 %v1910, %v1941
        %v1970 = vmul.f32 %v1915, %v1941
        %v1971 = vmul.f32 %v1920, %v1941
        %v1972 = vmul.f32 %v1925, %v1941
        %v1973 = vmul.f32 %v1930, %v1941
        %v1974 = vmul.f32 %v1935, %v1941
        %v1975 = vadd.f32 %v1711, %v1943
        %v1976 = vadd.f32 %v1712, %v1944
        %v1977 = vadd.f32 %v1713, %v1945
        %v1978 = vadd.f32 %v1714, %v1946
        %v1979 = vadd.f32 %v1715, %v1947
        %v1980 = vadd.f32 %v1716, %v1948
        %v1981 = vadd.f32 %v1717, %v1949
        %v1982 = vadd.f32 %v1718, %v1950
        %v1983 = vadd.f32 %v1719, %v1951
        %v1984 = vadd.f32 %v1720, %v1952
        %v1985 = vadd.f32 %v1721, %v1953
        %v1986 = vadd.f32 %v1722, %v1954
        %v1987 = vadd.f32 %v1723, %v1955
        %v1988 = vadd.f32 %v1724, %v1956
        %v1989 = vadd.f32 %v1725, %v1957
        %v1990 = vadd.f32 %v1726, %v1958
        %v1991 = vadd.f32 %v1727, %v1959
        %v1992 = vadd.f32 %v1728, %v1960
        %v1993 = vadd.f32 %v1729, %v1961
        %v1994 = vadd.f32 %v1730, %v1962
        %v1995 = vadd.f32 %v1731, %v1963
        %v1996 = vadd.f32 %v1732, %v1964
        %v1997 = vadd.f32 %v1733, %v1965
        %v1998 = vadd.f32 %v1734, %v1966
        %v1999 = vadd.f32 %v1735, %v1967
        %v2000 = vadd.f32 %v1736, %v1968
        %v2001 = vadd.f32 %v1737, %v1969
        %v2002 = vadd.f32 %v1738, %v1970
        %v2003 = vadd.f32 %v1739, %v1971
        %v2004 = vadd.f32 %v1740, %v1972
        %v2005 = vadd.f32 %v1741, %v1973
        %v2006 = vadd.f32 %v1742, %v1974
        %s2007 = scalar_lea.vmem %s383, 48
        %v2008 = vld [vmem:[%s2007] sm:$0xff]
        %v2009 = vld [vmem:[%s2007 + $0x8] sm:$0xff]
        %v2010 = vld [vmem:[%s2007 + $0x18] sm:$0xff]
        %v2011 = vld [vmem:[%s2007 + $0x20] sm:$0xff]
        %v2012 = vld [vmem:[%s2007 + $0x30] sm:$0xff]
        %v2013 = vld [vmem:[%s2007 + $0x38] sm:$0xff]
        %v2014 = vld [vmem:[%s2007 + $0x48] sm:$0xff]
        %v2015 = vld [vmem:[%s2007 + $0x50] sm:$0xff]
        %v2016 = vld [vmem:[%s2007 + $0x60] sm:$0xff]
        %v2017 = vld [vmem:[%s2007 + $0x68] sm:$0xff]
        %v2018 = vld [vmem:[%s2007 + $0x78] sm:$0xff]
        %v2019 = vld [vmem:[%s2007 + $0x80] sm:$0xff]
        %v2020 = vld [vmem:[%s2007 + $0x90] sm:$0xff]
        %v2021 = vld [vmem:[%s2007 + $0x98] sm:$0xff]
        %v2022 = vld [vmem:[%s2007 + $0xa8] sm:$0xff]
        %v2023 = vld [vmem:[%s2007 + $0xb0] sm:$0xff]
        %v2024 = vld [vmem:[%s2007 + $0xc0] sm:$0xff]
        %v2025 = vld [vmem:[%s2007 + $0xc8] sm:$0xff]
        %v2026 = vld [vmem:[%s2007 + $0xd8] sm:$0xff]
        %v2027 = vld [vmem:[%s2007 + $0xe0] sm:$0xff]
        %v2028 = vld [vmem:[%s2007 + $0xf0] sm:$0xff]
        %v2029 = vld [vmem:[%s2007 + $0xf8] sm:$0xff]
        %v2030 = vld [vmem:[%s2007 + $0x108] sm:$0xff]
        %v2031 = vld [vmem:[%s2007 + $0x110] sm:$0xff]
        %v2032 = vld [vmem:[%s2007 + $0x120] sm:$0xff]
        %v2033 = vld [vmem:[%s2007 + $0x128] sm:$0xff]
        %v2034 = vld [vmem:[%s2007 + $0x138] sm:$0xff]
        %v2035 = vld [vmem:[%s2007 + $0x140] sm:$0xff]
        %v2036 = vld [vmem:[%s2007 + $0x150] sm:$0xff]
        %v2037 = vld [vmem:[%s2007 + $0x158] sm:$0xff]
        %v2038 = vld [vmem:[%s2007 + $0x168] sm:$0xff]
        %v2039 = vld [vmem:[%s2007 + $0x170] sm:$0xff]
        %s2040 = scalar_lea.vmem %s1, 6
        %v2041 = vld [vmem:[%s2040] sm:$0x1]
        %2043 = vset.pattern.permute.xlu0 0
        %2044 = vperm.xlu0 %2043, %v2008
        %v2045 = vpop.permute.xlu0 %2044
        %2048 = vset.pattern.permute.xlu0 0
        %2049 = vperm.xlu0 %2048, %v2009
        %v2050 = vpop.permute.xlu0 %2049
        %2053 = vset.pattern.permute.xlu0 0
        %2054 = vperm.xlu0 %2053, %v2010
        %v2055 = vpop.permute.xlu0 %2054
        %2058 = vset.pattern.permute.xlu0 0
        %2059 = vperm.xlu0 %2058, %v2011
        %v2060 = vpop.permute.xlu0 %2059
        %2063 = vset.pattern.permute.xlu0 0
        %2064 = vperm.xlu0 %2063, %v2012
        %v2065 = vpop.permute.xlu0 %2064
        %2068 = vset.pattern.permute.xlu0 0
        %2069 = vperm.xlu0 %2068, %v2013
        %v2070 = vpop.permute.xlu0 %2069
        %2073 = vset.pattern.permute.xlu0 0
        %2074 = vperm.xlu0 %2073, %v2014
        %v2075 = vpop.permute.xlu0 %2074
        %2078 = vset.pattern.permute.xlu0 0
        %2079 = vperm.xlu0 %2078, %v2015
        %v2080 = vpop.permute.xlu0 %2079
        %2083 = vset.pattern.permute.xlu0 0
        %2084 = vperm.xlu0 %2083, %v2016
        %v2085 = vpop.permute.xlu0 %2084
        %2088 = vset.pattern.permute.xlu0 0
        %2089 = vperm.xlu0 %2088, %v2017
        %v2090 = vpop.permute.xlu0 %2089
        %2093 = vset.pattern.permute.xlu0 0
        %2094 = vperm.xlu0 %2093, %v2018
        %v2095 = vpop.permute.xlu0 %2094
        %2098 = vset.pattern.permute.xlu0 0
        %2099 = vperm.xlu0 %2098, %v2019
        %v2100 = vpop.permute.xlu0 %2099
        %2103 = vset.pattern.permute.xlu0 0
        %2104 = vperm.xlu0 %2103, %v2020
        %v2105 = vpop.permute.xlu0 %2104
        %2108 = vset.pattern.permute.xlu0 0
        %2109 = vperm.xlu0 %2108, %v2021
        %v2110 = vpop.permute.xlu0 %2109
        %2113 = vset.pattern.permute.xlu0 0
        %2114 = vperm.xlu0 %2113, %v2022
        %v2115 = vpop.permute.xlu0 %2114
        %2118 = vset.pattern.permute.xlu0 0
        %2119 = vperm.xlu0 %2118, %v2023
        %v2120 = vpop.permute.xlu0 %2119
        %2123 = vset.pattern.permute.xlu0 0
        %2124 = vperm.xlu0 %2123, %v2024
        %v2125 = vpop.permute.xlu0 %2124
        %2128 = vset.pattern.permute.xlu0 0
        %2129 = vperm.xlu0 %2128, %v2025
        %v2130 = vpop.permute.xlu0 %2129
        %2133 = vset.pattern.permute.xlu0 0
        %2134 = vperm.xlu0 %2133, %v2026
        %v2135 = vpop.permute.xlu0 %2134
        %2138 = vset.pattern.permute.xlu0 0
        %2139 = vperm.xlu0 %2138, %v2027
        %v2140 = vpop.permute.xlu0 %2139
        %2143 = vset.pattern.permute.xlu0 0
        %2144 = vperm.xlu0 %2143, %v2028
        %v2145 = vpop.permute.xlu0 %2144
        %2148 = vset.pattern.permute.xlu0 0
        %2149 = vperm.xlu0 %2148, %v2029
        %v2150 = vpop.permute.xlu0 %2149
        %2153 = vset.pattern.permute.xlu0 0
        %2154 = vperm.xlu0 %2153, %v2030
        %v2155 = vpop.permute.xlu0 %2154
        %2158 = vset.pattern.permute.xlu0 0
        %2159 = vperm.xlu0 %2158, %v2031
        %v2160 = vpop.permute.xlu0 %2159
        %2163 = vset.pattern.permute.xlu0 0
        %2164 = vperm.xlu0 %2163, %v2032
        %v2165 = vpop.permute.xlu0 %2164
        %2168 = vset.pattern.permute.xlu0 0
        %2169 = vperm.xlu0 %2168, %v2033
        %v2170 = vpop.permute.xlu0 %2169
        %2173 = vset.pattern.permute.xlu0 0
        %2174 = vperm.xlu0 %2173, %v2034
        %v2175 = vpop.permute.xlu0 %2174
        %2178 = vset.pattern.permute.xlu0 0
        %2179 = vperm.xlu0 %2178, %v2035
        %v2180 = vpop.permute.xlu0 %2179
        %2183 = vset.pattern.permute.xlu0 0
        %2184 = vperm.xlu0 %2183, %v2036
        %v2185 = vpop.permute.xlu0 %2184
        %2188 = vset.pattern.permute.xlu0 0
        %2189 = vperm.xlu0 %2188, %v2037
        %v2190 = vpop.permute.xlu0 %2189
        %2193 = vset.pattern.permute.xlu0 0
        %2194 = vperm.xlu0 %2193, %v2038
        %v2195 = vpop.permute.xlu0 %2194
        %2198 = vset.pattern.permute.xlu0 0
        %2199 = vperm.xlu0 %2198, %v2039
        %v2200 = vpop.permute.xlu0 %2199
        %v2203 = vlaneseq
        %v2204 = vshrl.u32 %v2203, 7
        %v2205 = vsub.s32 0, %v2204
        %v2206 = vrot.slane %v2041, %v2205
        %v2208 = vmul.f32 %v2045, %v2206
        %v2209 = vmul.f32 %v2050, %v2206
        %v2210 = vmul.f32 %v2055, %v2206
        %v2211 = vmul.f32 %v2060, %v2206
        %v2212 = vmul.f32 %v2065, %v2206
        %v2213 = vmul.f32 %v2070, %v2206
        %v2214 = vmul.f32 %v2075, %v2206
        %v2215 = vmul.f32 %v2080, %v2206
        %v2216 = vmul.f32 %v2085, %v2206
        %v2217 = vmul.f32 %v2090, %v2206
        %v2218 = vmul.f32 %v2095, %v2206
        %v2219 = vmul.f32 %v2100, %v2206
        %v2220 = vmul.f32 %v2105, %v2206
        %v2221 = vmul.f32 %v2110, %v2206
        %v2222 = vmul.f32 %v2115, %v2206
        %v2223 = vmul.f32 %v2120, %v2206
        %v2224 = vmul.f32 %v2125, %v2206
        %v2225 = vmul.f32 %v2130, %v2206
        %v2226 = vmul.f32 %v2135, %v2206
        %v2227 = vmul.f32 %v2140, %v2206
        %v2228 = vmul.f32 %v2145, %v2206
        %v2229 = vmul.f32 %v2150, %v2206
        %v2230 = vmul.f32 %v2155, %v2206
        %v2231 = vmul.f32 %v2160, %v2206
        %v2232 = vmul.f32 %v2165, %v2206
        %v2233 = vmul.f32 %v2170, %v2206
        %v2234 = vmul.f32 %v2175, %v2206
        %v2235 = vmul.f32 %v2180, %v2206
        %v2236 = vmul.f32 %v2185, %v2206
        %v2237 = vmul.f32 %v2190, %v2206
        %v2238 = vmul.f32 %v2195, %v2206
        %v2239 = vmul.f32 %v2200, %v2206
        %v2240 = vadd.f32 %v1975, %v2208
        %v2241 = vadd.f32 %v1976, %v2209
        %v2242 = vadd.f32 %v1977, %v2210
        %v2243 = vadd.f32 %v1978, %v2211
        %v2244 = vadd.f32 %v1979, %v2212
        %v2245 = vadd.f32 %v1980, %v2213
        %v2246 = vadd.f32 %v1981, %v2214
        %v2247 = vadd.f32 %v1982, %v2215
        %v2248 = vadd.f32 %v1983, %v2216
        %v2249 = vadd.f32 %v1984, %v2217
        %v2250 = vadd.f32 %v1985, %v2218
        %v2251 = vadd.f32 %v1986, %v2219
        %v2252 = vadd.f32 %v1987, %v2220
        %v2253 = vadd.f32 %v1988, %v2221
        %v2254 = vadd.f32 %v1989, %v2222
        %v2255 = vadd.f32 %v1990, %v2223
        %v2256 = vadd.f32 %v1991, %v2224
        %v2257 = vadd.f32 %v1992, %v2225
        %v2258 = vadd.f32 %v1993, %v2226
        %v2259 = vadd.f32 %v1994, %v2227
        %v2260 = vadd.f32 %v1995, %v2228
        %v2261 = vadd.f32 %v1996, %v2229
        %v2262 = vadd.f32 %v1997, %v2230
        %v2263 = vadd.f32 %v1998, %v2231
        %v2264 = vadd.f32 %v1999, %v2232
        %v2265 = vadd.f32 %v2000, %v2233
        %v2266 = vadd.f32 %v2001, %v2234
        %v2267 = vadd.f32 %v2002, %v2235
        %v2268 = vadd.f32 %v2003, %v2236
        %v2269 = vadd.f32 %v2004, %v2237
        %v2270 = vadd.f32 %v2005, %v2238
        %v2271 = vadd.f32 %v2006, %v2239
        %v2272 = vld [vmem:[%s2007 + $0x1] sm:$0xff]
        %v2273 = vld [vmem:[%s2007 + $0x9] sm:$0xff]
        %v2274 = vld [vmem:[%s2007 + $0x19] sm:$0xff]
        %v2275 = vld [vmem:[%s2007 + $0x21] sm:$0xff]
        %v2276 = vld [vmem:[%s2007 + $0x31] sm:$0xff]
        %v2277 = vld [vmem:[%s2007 + $0x39] sm:$0xff]
        %v2278 = vld [vmem:[%s2007 + $0x49] sm:$0xff]
        %v2279 = vld [vmem:[%s2007 + $0x51] sm:$0xff]
        %v2280 = vld [vmem:[%s2007 + $0x61] sm:$0xff]
        %v2281 = vld [vmem:[%s2007 + $0x69] sm:$0xff]
        %v2282 = vld [vmem:[%s2007 + $0x79] sm:$0xff]
        %v2283 = vld [vmem:[%s2007 + $0x81] sm:$0xff]
        %v2284 = vld [vmem:[%s2007 + $0x91] sm:$0xff]
        %v2285 = vld [vmem:[%s2007 + $0x99] sm:$0xff]
        %v2286 = vld [vmem:[%s2007 + $0xa9] sm:$0xff]
        %v2287 = vld [vmem:[%s2007 + $0xb1] sm:$0xff]
        %v2288 = vld [vmem:[%s2007 + $0xc1] sm:$0xff]
        %v2289 = vld [vmem:[%s2007 + $0xc9] sm:$0xff]
        %v2290 = vld [vmem:[%s2007 + $0xd9] sm:$0xff]
        %v2291 = vld [vmem:[%s2007 + $0xe1] sm:$0xff]
        %v2292 = vld [vmem:[%s2007 + $0xf1] sm:$0xff]
        %v2293 = vld [vmem:[%s2007 + $0xf9] sm:$0xff]
        %v2294 = vld [vmem:[%s2007 + $0x109] sm:$0xff]
        %v2295 = vld [vmem:[%s2007 + $0x111] sm:$0xff]
        %v2296 = vld [vmem:[%s2007 + $0x121] sm:$0xff]
        %v2297 = vld [vmem:[%s2007 + $0x129] sm:$0xff]
        %v2298 = vld [vmem:[%s2007 + $0x139] sm:$0xff]
        %v2299 = vld [vmem:[%s2007 + $0x141] sm:$0xff]
        %v2300 = vld [vmem:[%s2007 + $0x151] sm:$0xff]
        %v2301 = vld [vmem:[%s2007 + $0x159] sm:$0xff]
        %v2302 = vld [vmem:[%s2007 + $0x169] sm:$0xff]
        %v2303 = vld [vmem:[%s2007 + $0x171] sm:$0xff]
        %s2304 = scalar_lea.vmem %s1, 7
        %v2305 = vld [vmem:[%s2304] sm:$0x1]
        %2307 = vset.pattern.permute.xlu0 0
        %2308 = vperm.xlu0 %2307, %v2272
        %v2309 = vpop.permute.xlu0 %2308
        %2312 = vset.pattern.permute.xlu0 0
        %2313 = vperm.xlu0 %2312, %v2273
        %v2314 = vpop.permute.xlu0 %2313
        %2317 = vset.pattern.permute.xlu0 0
        %2318 = vperm.xlu0 %2317, %v2274
        %v2319 = vpop.permute.xlu0 %2318
        %2322 = vset.pattern.permute.xlu0 0
        %2323 = vperm.xlu0 %2322, %v2275
        %v2324 = vpop.permute.xlu0 %2323
        %2327 = vset.pattern.permute.xlu0 0
        %2328 = vperm.xlu0 %2327, %v2276
        %v2329 = vpop.permute.xlu0 %2328
        %2332 = vset.pattern.permute.xlu0 0
        %2333 = vperm.xlu0 %2332, %v2277
        %v2334 = vpop.permute.xlu0 %2333
        %2337 = vset.pattern.permute.xlu0 0
        %2338 = vperm.xlu0 %2337, %v2278
        %v2339 = vpop.permute.xlu0 %2338
        %2342 = vset.pattern.permute.xlu0 0
        %2343 = vperm.xlu0 %2342, %v2279
        %v2344 = vpop.permute.xlu0 %2343
        %2347 = vset.pattern.permute.xlu0 0
        %2348 = vperm.xlu0 %2347, %v2280
        %v2349 = vpop.permute.xlu0 %2348
        %2352 = vset.pattern.permute.xlu0 0
        %2353 = vperm.xlu0 %2352, %v2281
        %v2354 = vpop.permute.xlu0 %2353
        %2357 = vset.pattern.permute.xlu0 0
        %2358 = vperm.xlu0 %2357, %v2282
        %v2359 = vpop.permute.xlu0 %2358
        %2362 = vset.pattern.permute.xlu0 0
        %2363 = vperm.xlu0 %2362, %v2283
        %v2364 = vpop.permute.xlu0 %2363
        %2367 = vset.pattern.permute.xlu0 0
        %2368 = vperm.xlu0 %2367, %v2284
        %v2369 = vpop.permute.xlu0 %2368
        %2372 = vset.pattern.permute.xlu0 0
        %2373 = vperm.xlu0 %2372, %v2285
        %v2374 = vpop.permute.xlu0 %2373
        %2377 = vset.pattern.permute.xlu0 0
        %2378 = vperm.xlu0 %2377, %v2286
        %v2379 = vpop.permute.xlu0 %2378
        %2382 = vset.pattern.permute.xlu0 0
        %2383 = vperm.xlu0 %2382, %v2287
        %v2384 = vpop.permute.xlu0 %2383
        %2387 = vset.pattern.permute.xlu0 0
        %2388 = vperm.xlu0 %2387, %v2288
        %v2389 = vpop.permute.xlu0 %2388
        %2392 = vset.pattern.permute.xlu0 0
        %2393 = vperm.xlu0 %2392, %v2289
        %v2394 = vpop.permute.xlu0 %2393
        %2397 = vset.pattern.permute.xlu0 0
        %2398 = vperm.xlu0 %2397, %v2290
        %v2399 = vpop.permute.xlu0 %2398
        %2402 = vset.pattern.permute.xlu0 0
        %2403 = vperm.xlu0 %2402, %v2291
        %v2404 = vpop.permute.xlu0 %2403
        %2407 = vset.pattern.permute.xlu0 0
        %2408 = vperm.xlu0 %2407, %v2292
        %v2409 = vpop.permute.xlu0 %2408
        %2412 = vset.pattern.permute.xlu0 0
        %2413 = vperm.xlu0 %2412, %v2293
        %v2414 = vpop.permute.xlu0 %2413
        %2417 = vset.pattern.permute.xlu0 0
        %2418 = vperm.xlu0 %2417, %v2294
        %v2419 = vpop.permute.xlu0 %2418
        %2422 = vset.pattern.permute.xlu0 0
        %2423 = vperm.xlu0 %2422, %v2295
        %v2424 = vpop.permute.xlu0 %2423
        %2427 = vset.pattern.permute.xlu0 0
        %2428 = vperm.xlu0 %2427, %v2296
        %v2429 = vpop.permute.xlu0 %2428
        %2432 = vset.pattern.permute.xlu0 0
        %2433 = vperm.xlu0 %2432, %v2297
        %v2434 = vpop.permute.xlu0 %2433
        %2437 = vset.pattern.permute.xlu0 0
        %2438 = vperm.xlu0 %2437, %v2298
        %v2439 = vpop.permute.xlu0 %2438
        %2442 = vset.pattern.permute.xlu0 0
        %2443 = vperm.xlu0 %2442, %v2299
        %v2444 = vpop.permute.xlu0 %2443
        %2447 = vset.pattern.permute.xlu0 0
        %2448 = vperm.xlu0 %2447, %v2300
        %v2449 = vpop.permute.xlu0 %2448
        %2452 = vset.pattern.permute.xlu0 0
        %2453 = vperm.xlu0 %2452, %v2301
        %v2454 = vpop.permute.xlu0 %2453
        %2457 = vset.pattern.permute.xlu0 0
        %2458 = vperm.xlu0 %2457, %v2302
        %v2459 = vpop.permute.xlu0 %2458
        %2462 = vset.pattern.permute.xlu0 0
        %2463 = vperm.xlu0 %2462, %v2303
        %v2464 = vpop.permute.xlu0 %2463
        %v2467 = vlaneseq
        %v2468 = vshrl.u32 %v2467, 7
        %v2469 = vsub.s32 0, %v2468
        %v2470 = vrot.slane %v2305, %v2469
        %v2472 = vmul.f32 %v2309, %v2470
        %v2473 = vmul.f32 %v2314, %v2470
        %v2474 = vmul.f32 %v2319, %v2470
        %v2475 = vmul.f32 %v2324, %v2470
        %v2476 = vmul.f32 %v2329, %v2470
        %v2477 = vmul.f32 %v2334, %v2470
        %v2478 = vmul.f32 %v2339, %v2470
        %v2479 = vmul.f32 %v2344, %v2470
        %v2480 = vmul.f32 %v2349, %v2470
        %v2481 = vmul.f32 %v2354, %v2470
        %v2482 = vmul.f32 %v2359, %v2470
        %v2483 = vmul.f32 %v2364, %v2470
        %v2484 = vmul.f32 %v2369, %v2470
        %v2485 = vmul.f32 %v2374, %v2470
        %v2486 = vmul.f32 %v2379, %v2470
        %v2487 = vmul.f32 %v2384, %v2470
        %v2488 = vmul.f32 %v2389, %v2470
        %v2489 = vmul.f32 %v2394, %v2470
        %v2490 = vmul.f32 %v2399, %v2470
        %v2491 = vmul.f32 %v2404, %v2470
        %v2492 = vmul.f32 %v2409, %v2470
        %v2493 = vmul.f32 %v2414, %v2470
        %v2494 = vmul.f32 %v2419, %v2470
        %v2495 = vmul.f32 %v2424, %v2470
        %v2496 = vmul.f32 %v2429, %v2470
        %v2497 = vmul.f32 %v2434, %v2470
        %v2498 = vmul.f32 %v2439, %v2470
        %v2499 = vmul.f32 %v2444, %v2470
        %v2500 = vmul.f32 %v2449, %v2470
        %v2501 = vmul.f32 %v2454, %v2470
        %v2502 = vmul.f32 %v2459, %v2470
        %v2503 = vmul.f32 %v2464, %v2470
        %v2504 = vadd.f32 %v2240, %v2472
        %v2505 = vadd.f32 %v2241, %v2473
        %v2506 = vadd.f32 %v2242, %v2474
        %v2507 = vadd.f32 %v2243, %v2475
        %v2508 = vadd.f32 %v2244, %v2476
        %v2509 = vadd.f32 %v2245, %v2477
        %v2510 = vadd.f32 %v2246, %v2478
        %v2511 = vadd.f32 %v2247, %v2479
        %v2512 = vadd.f32 %v2248, %v2480
        %v2513 = vadd.f32 %v2249, %v2481
        %v2514 = vadd.f32 %v2250, %v2482
        %v2515 = vadd.f32 %v2251, %v2483
        %v2516 = vadd.f32 %v2252, %v2484
        %v2517 = vadd.f32 %v2253, %v2485
        %v2518 = vadd.f32 %v2254, %v2486
        %v2519 = vadd.f32 %v2255, %v2487
        %v2520 = vadd.f32 %v2256, %v2488
        %v2521 = vadd.f32 %v2257, %v2489
        %v2522 = vadd.f32 %v2258, %v2490
        %v2523 = vadd.f32 %v2259, %v2491
        %v2524 = vadd.f32 %v2260, %v2492
        %v2525 = vadd.f32 %v2261, %v2493
        %v2526 = vadd.f32 %v2262, %v2494
        %v2527 = vadd.f32 %v2263, %v2495
        %v2528 = vadd.f32 %v2264, %v2496
        %v2529 = vadd.f32 %v2265, %v2497
        %v2530 = vadd.f32 %v2266, %v2498
        %v2531 = vadd.f32 %v2267, %v2499
        %v2532 = vadd.f32 %v2268, %v2500
        %v2533 = vadd.f32 %v2269, %v2501
        %v2534 = vadd.f32 %v2270, %v2502
        %v2535 = vadd.f32 %v2271, %v2503
        %v2536 = vld [vmem:[%s2007 + $0x2] sm:$0xff]
        %v2537 = vld [vmem:[%s2007 + $0xa] sm:$0xff]
        %v2538 = vld [vmem:[%s2007 + $0x1a] sm:$0xff]
        %v2539 = vld [vmem:[%s2007 + $0x22] sm:$0xff]
        %v2540 = vld [vmem:[%s2007 + $0x32] sm:$0xff]
        %v2541 = vld [vmem:[%s2007 + $0x3a] sm:$0xff]
        %v2542 = vld [vmem:[%s2007 + $0x4a] sm:$0xff]
        %v2543 = vld [vmem:[%s2007 + $0x52] sm:$0xff]
        %v2544 = vld [vmem:[%s2007 + $0x62] sm:$0xff]
        %v2545 = vld [vmem:[%s2007 + $0x6a] sm:$0xff]
        %v2546 = vld [vmem:[%s2007 + $0x7a] sm:$0xff]
        %v2547 = vld [vmem:[%s2007 + $0x82] sm:$0xff]
        %v2548 = vld [vmem:[%s2007 + $0x92] sm:$0xff]
        %v2549 = vld [vmem:[%s2007 + $0x9a] sm:$0xff]
        %v2550 = vld [vmem:[%s2007 + $0xaa] sm:$0xff]
        %v2551 = vld [vmem:[%s2007 + $0xb2] sm:$0xff]
        %v2552 = vld [vmem:[%s2007 + $0xc2] sm:$0xff]
        %v2553 = vld [vmem:[%s2007 + $0xca] sm:$0xff]
        %v2554 = vld [vmem:[%s2007 + $0xda] sm:$0xff]
        %v2555 = vld [vmem:[%s2007 + $0xe2] sm:$0xff]
        %v2556 = vld [vmem:[%s2007 + $0xf2] sm:$0xff]
        %v2557 = vld [vmem:[%s2007 + $0xfa] sm:$0xff]
        %v2558 = vld [vmem:[%s2007 + $0x10a] sm:$0xff]
        %v2559 = vld [vmem:[%s2007 + $0x112] sm:$0xff]
        %v2560 = vld [vmem:[%s2007 + $0x122] sm:$0xff]
        %v2561 = vld [vmem:[%s2007 + $0x12a] sm:$0xff]
        %v2562 = vld [vmem:[%s2007 + $0x13a] sm:$0xff]
        %v2563 = vld [vmem:[%s2007 + $0x142] sm:$0xff]
        %v2564 = vld [vmem:[%s2007 + $0x152] sm:$0xff]
        %v2565 = vld [vmem:[%s2007 + $0x15a] sm:$0xff]
        %v2566 = vld [vmem:[%s2007 + $0x16a] sm:$0xff]
        %v2567 = vld [vmem:[%s2007 + $0x172] sm:$0xff]
        %s2568 = scalar_lea.vmem %s1, 8
        %v2569 = vld [vmem:[%s2568] sm:$0x1]
        %2571 = vset.pattern.permute.xlu0 0
        %2572 = vperm.xlu0 %2571, %v2536
        %v2573 = vpop.permute.xlu0 %2572
        %2576 = vset.pattern.permute.xlu0 0
        %2577 = vperm.xlu0 %2576, %v2537
        %v2578 = vpop.permute.xlu0 %2577
        %2581 = vset.pattern.permute.xlu0 0
        %2582 = vperm.xlu0 %2581, %v2538
        %v2583 = vpop.permute.xlu0 %2582
        %2586 = vset.pattern.permute.xlu0 0
        %2587 = vperm.xlu0 %2586, %v2539
        %v2588 = vpop.permute.xlu0 %2587
        %2591 = vset.pattern.permute.xlu0 0
        %2592 = vperm.xlu0 %2591, %v2540
        %v2593 = vpop.permute.xlu0 %2592
        %2596 = vset.pattern.permute.xlu0 0
        %2597 = vperm.xlu0 %2596, %v2541
        %v2598 = vpop.permute.xlu0 %2597
        %2601 = vset.pattern.permute.xlu0 0
        %2602 = vperm.xlu0 %2601, %v2542
        %v2603 = vpop.permute.xlu0 %2602
        %2606 = vset.pattern.permute.xlu0 0
        %2607 = vperm.xlu0 %2606, %v2543
        %v2608 = vpop.permute.xlu0 %2607
        %2611 = vset.pattern.permute.xlu0 0
        %2612 = vperm.xlu0 %2611, %v2544
        %v2613 = vpop.permute.xlu0 %2612
        %2616 = vset.pattern.permute.xlu0 0
        %2617 = vperm.xlu0 %2616, %v2545
        %v2618 = vpop.permute.xlu0 %2617
        %2621 = vset.pattern.permute.xlu0 0
        %2622 = vperm.xlu0 %2621, %v2546
        %v2623 = vpop.permute.xlu0 %2622
        %2626 = vset.pattern.permute.xlu0 0
        %2627 = vperm.xlu0 %2626, %v2547
        %v2628 = vpop.permute.xlu0 %2627
        %2631 = vset.pattern.permute.xlu0 0
        %2632 = vperm.xlu0 %2631, %v2548
        %v2633 = vpop.permute.xlu0 %2632
        %2636 = vset.pattern.permute.xlu0 0
        %2637 = vperm.xlu0 %2636, %v2549
        %v2638 = vpop.permute.xlu0 %2637
        %2641 = vset.pattern.permute.xlu0 0
        %2642 = vperm.xlu0 %2641, %v2550
        %v2643 = vpop.permute.xlu0 %2642
        %2646 = vset.pattern.permute.xlu0 0
        %2647 = vperm.xlu0 %2646, %v2551
        %v2648 = vpop.permute.xlu0 %2647
        %2651 = vset.pattern.permute.xlu0 0
        %2652 = vperm.xlu0 %2651, %v2552
        %v2653 = vpop.permute.xlu0 %2652
        %2656 = vset.pattern.permute.xlu0 0
        %2657 = vperm.xlu0 %2656, %v2553
        %v2658 = vpop.permute.xlu0 %2657
        %2661 = vset.pattern.permute.xlu0 0
        %2662 = vperm.xlu0 %2661, %v2554
        %v2663 = vpop.permute.xlu0 %2662
        %2666 = vset.pattern.permute.xlu0 0
        %2667 = vperm.xlu0 %2666, %v2555
        %v2668 = vpop.permute.xlu0 %2667
        %2671 = vset.pattern.permute.xlu0 0
        %2672 = vperm.xlu0 %2671, %v2556
        %v2673 = vpop.permute.xlu0 %2672
        %2676 = vset.pattern.permute.xlu0 0
        %2677 = vperm.xlu0 %2676, %v2557
        %v2678 = vpop.permute.xlu0 %2677
        %2681 = vset.pattern.permute.xlu0 0
        %2682 = vperm.xlu0 %2681, %v2558
        %v2683 = vpop.permute.xlu0 %2682
        %2686 = vset.pattern.permute.xlu0 0
        %2687 = vperm.xlu0 %2686, %v2559
        %v2688 = vpop.permute.xlu0 %2687
        %2691 = vset.pattern.permute.xlu0 0
        %2692 = vperm.xlu0 %2691, %v2560
        %v2693 = vpop.permute.xlu0 %2692
        %2696 = vset.pattern.permute.xlu0 0
        %2697 = vperm.xlu0 %2696, %v2561
        %v2698 = vpop.permute.xlu0 %2697
        %2701 = vset.pattern.permute.xlu0 0
        %2702 = vperm.xlu0 %2701, %v2562
        %v2703 = vpop.permute.xlu0 %2702
        %2706 = vset.pattern.permute.xlu0 0
        %2707 = vperm.xlu0 %2706, %v2563
        %v2708 = vpop.permute.xlu0 %2707
        %2711 = vset.pattern.permute.xlu0 0
        %2712 = vperm.xlu0 %2711, %v2564
        %v2713 = vpop.permute.xlu0 %2712
        %2716 = vset.pattern.permute.xlu0 0
        %2717 = vperm.xlu0 %2716, %v2565
        %v2718 = vpop.permute.xlu0 %2717
        %2721 = vset.pattern.permute.xlu0 0
        %2722 = vperm.xlu0 %2721, %v2566
        %v2723 = vpop.permute.xlu0 %2722
        %2726 = vset.pattern.permute.xlu0 0
        %2727 = vperm.xlu0 %2726, %v2567
        %v2728 = vpop.permute.xlu0 %2727
        %v2731 = vlaneseq
        %v2732 = vshrl.u32 %v2731, 7
        %v2733 = vsub.s32 0, %v2732
        %v2734 = vrot.slane %v2569, %v2733
        %v2736 = vmul.f32 %v2573, %v2734
        %v2737 = vmul.f32 %v2578, %v2734
        %v2738 = vmul.f32 %v2583, %v2734
        %v2739 = vmul.f32 %v2588, %v2734
        %v2740 = vmul.f32 %v2593, %v2734
        %v2741 = vmul.f32 %v2598, %v2734
        %v2742 = vmul.f32 %v2603, %v2734
        %v2743 = vmul.f32 %v2608, %v2734
        %v2744 = vmul.f32 %v2613, %v2734
        %v2745 = vmul.f32 %v2618, %v2734
        %v2746 = vmul.f32 %v2623, %v2734
        %v2747 = vmul.f32 %v2628, %v2734
        %v2748 = vmul.f32 %v2633, %v2734
        %v2749 = vmul.f32 %v2638, %v2734
        %v2750 = vmul.f32 %v2643, %v2734
        %v2751 = vmul.f32 %v2648, %v2734
        %v2752 = vmul.f32 %v2653, %v2734
        %v2753 = vmul.f32 %v2658, %v2734
        %v2754 = vmul.f32 %v2663, %v2734
        %v2755 = vmul.f32 %v2668, %v2734
        %v2756 = vmul.f32 %v2673, %v2734
        %v2757 = vmul.f32 %v2678, %v2734
        %v2758 = vmul.f32 %v2683, %v2734
        %v2759 = vmul.f32 %v2688, %v2734
        %v2760 = vmul.f32 %v2693, %v2734
        %v2761 = vmul.f32 %v2698, %v2734
        %v2762 = vmul.f32 %v2703, %v2734
        %v2763 = vmul.f32 %v2708, %v2734
        %v2764 = vmul.f32 %v2713, %v2734
        %v2765 = vmul.f32 %v2718, %v2734
        %v2766 = vmul.f32 %v2723, %v2734
        %v2767 = vmul.f32 %v2728, %v2734
        %v2768 = vadd.f32 %v2504, %v2736
        %v2769 = vadd.f32 %v2505, %v2737
        %v2770 = vadd.f32 %v2506, %v2738
        %v2771 = vadd.f32 %v2507, %v2739
        %v2772 = vadd.f32 %v2508, %v2740
        %v2773 = vadd.f32 %v2509, %v2741
        %v2774 = vadd.f32 %v2510, %v2742
        %v2775 = vadd.f32 %v2511, %v2743
        %v2776 = vadd.f32 %v2512, %v2744
        %v2777 = vadd.f32 %v2513, %v2745
        %v2778 = vadd.f32 %v2514, %v2746
        %v2779 = vadd.f32 %v2515, %v2747
        %v2780 = vadd.f32 %v2516, %v2748
        %v2781 = vadd.f32 %v2517, %v2749
        %v2782 = vadd.f32 %v2518, %v2750
        %v2783 = vadd.f32 %v2519, %v2751
        %v2784 = vadd.f32 %v2520, %v2752
        %v2785 = vadd.f32 %v2521, %v2753
        %v2786 = vadd.f32 %v2522, %v2754
        %v2787 = vadd.f32 %v2523, %v2755
        %v2788 = vadd.f32 %v2524, %v2756
        %v2789 = vadd.f32 %v2525, %v2757
        %v2790 = vadd.f32 %v2526, %v2758
        %v2791 = vadd.f32 %v2527, %v2759
        %v2792 = vadd.f32 %v2528, %v2760
        %v2793 = vadd.f32 %v2529, %v2761
        %v2794 = vadd.f32 %v2530, %v2762
        %v2795 = vadd.f32 %v2531, %v2763
        %v2796 = vadd.f32 %v2532, %v2764
        %v2797 = vadd.f32 %v2533, %v2765
        %v2798 = vadd.f32 %v2534, %v2766
        %v2799 = vadd.f32 %v2535, %v2767
        %v2800 = vld [vmem:[%s2] sm:$0x1]
        %v2802 = vlaneseq
        %v2803 = vshrl.u32 %v2802, 7
        %v2804 = vsub.s32 0, %v2803
        %v2805 = vrot.slane %v2800, %v2804
        %v2807 = vadd.f32 %v2768, %v2805
        %v2808 = vadd.f32 %v2769, %v2805
        %v2809 = vadd.f32 %v2770, %v2805
        %v2810 = vadd.f32 %v2771, %v2805
        %v2811 = vadd.f32 %v2772, %v2805
        %v2812 = vadd.f32 %v2773, %v2805
        %v2813 = vadd.f32 %v2774, %v2805
        %v2814 = vadd.f32 %v2775, %v2805
        %v2815 = vadd.f32 %v2776, %v2805
        %v2816 = vadd.f32 %v2777, %v2805
        %v2817 = vadd.f32 %v2778, %v2805
        %v2818 = vadd.f32 %v2779, %v2805
        %v2819 = vadd.f32 %v2780, %v2805
        %v2820 = vadd.f32 %v2781, %v2805
        %v2821 = vadd.f32 %v2782, %v2805
        %v2822 = vadd.f32 %v2783, %v2805
        %v2823 = vadd.f32 %v2784, %v2805
        %v2824 = vadd.f32 %v2785, %v2805
        %v2825 = vadd.f32 %v2786, %v2805
        %v2826 = vadd.f32 %v2787, %v2805
        %v2827 = vadd.f32 %v2788, %v2805
        %v2828 = vadd.f32 %v2789, %v2805
        %v2829 = vadd.f32 %v2790, %v2805
        %v2830 = vadd.f32 %v2791, %v2805
        %v2831 = vadd.f32 %v2792, %v2805
        %v2832 = vadd.f32 %v2793, %v2805
        %v2833 = vadd.f32 %v2794, %v2805
        %v2834 = vadd.f32 %v2795, %v2805
        %v2835 = vadd.f32 %v2796, %v2805
        %v2836 = vadd.f32 %v2797, %v2805
        %v2837 = vadd.f32 %v2798, %v2805
        %v2838 = vadd.f32 %v2799, %v2805
        %v2839 = vmax.f32 %v2807, 0.0
        %v2840 = vmax.f32 %v2808, 0.0
        %v2841 = vmax.f32 %v2809, 0.0
        %v2842 = vmax.f32 %v2810, 0.0
        %v2843 = vmax.f32 %v2811, 0.0
        %v2844 = vmax.f32 %v2812, 0.0
        %v2845 = vmax.f32 %v2813, 0.0
        %v2846 = vmax.f32 %v2814, 0.0
        %v2847 = vmax.f32 %v2815, 0.0
        %v2848 = vmax.f32 %v2816, 0.0
        %v2849 = vmax.f32 %v2817, 0.0
        %v2850 = vmax.f32 %v2818, 0.0
        %v2851 = vmax.f32 %v2819, 0.0
        %v2852 = vmax.f32 %v2820, 0.0
        %v2853 = vmax.f32 %v2821, 0.0
        %v2854 = vmax.f32 %v2822, 0.0
        %v2855 = vmax.f32 %v2823, 0.0
        %v2856 = vmax.f32 %v2824, 0.0
        %v2857 = vmax.f32 %v2825, 0.0
        %v2858 = vmax.f32 %v2826, 0.0
        %v2859 = vmax.f32 %v2827, 0.0
        %v2860 = vmax.f32 %v2828, 0.0
        %v2861 = vmax.f32 %v2829, 0.0
        %v2862 = vmax.f32 %v2830, 0.0
        %v2863 = vmax.f32 %v2831, 0.0
        %v2864 = vmax.f32 %v2832, 0.0
        %v2865 = vmax.f32 %v2833, 0.0
        %v2866 = vmax.f32 %v2834, 0.0
        %v2867 = vmax.f32 %v2835, 0.0
        %v2868 = vmax.f32 %v2836, 0.0
        %v2869 = vmax.f32 %v2837, 0.0
        %v2870 = vmax.f32 %v2838, 0.0
        %s2871 = scalar_lea.vmem [#allocation2], 24
        %2872 = vst.msk [vmem:[%s2871 + $0x1] sm:$0xff] %vm384, %v2839
        %2873 = vst.msk [vmem:[%s2871 + $0x9] sm:$0xff] %vm384, %v2840
        %2874 = vst.msk [vmem:[%s2871 + $0x19] sm:$0xff] %vm384, %v2841
        %2875 = vst.msk [vmem:[%s2871 + $0x21] sm:$0xff] %vm384, %v2842
        %2876 = vst.msk [vmem:[%s2871 + $0x31] sm:$0xff] %vm384, %v2843
        %2877 = vst.msk [vmem:[%s2871 + $0x39] sm:$0xff] %vm384, %v2844
        %2878 = vst.msk [vmem:[%s2871 + $0x49] sm:$0xff] %vm384, %v2845
        %2879 = vst.msk [vmem:[%s2871 + $0x51] sm:$0xff] %vm384, %v2846
        %2880 = vst.msk [vmem:[%s2871 + $0x61] sm:$0xff] %vm384, %v2847
        %2881 = vst.msk [vmem:[%s2871 + $0x69] sm:$0xff] %vm384, %v2848
        %2882 = vst.msk [vmem:[%s2871 + $0x79] sm:$0xff] %vm384, %v2849
        %2883 = vst.msk [vmem:[%s2871 + $0x81] sm:$0xff] %vm384, %v2850
        %2884 = vst.msk [vmem:[%s2871 + $0x91] sm:$0xff] %vm384, %v2851
        %2885 = vst.msk [vmem:[%s2871 + $0x99] sm:$0xff] %vm384, %v2852
        %2886 = vst.msk [vmem:[%s2871 + $0xa9] sm:$0xff] %vm384, %v2853
        %2887 = vst.msk [vmem:[%s2871 + $0xb1] sm:$0xff] %vm384, %v2854
        %2888 = vst.msk [vmem:[%s2871 + $0xc1] sm:$0xff] %vm384, %v2855
        %2889 = vst.msk [vmem:[%s2871 + $0xc9] sm:$0xff] %vm384, %v2856
        %2890 = vst.msk [vmem:[%s2871 + $0xd9] sm:$0xff] %vm384, %v2857
        %2891 = vst.msk [vmem:[%s2871 + $0xe1] sm:$0xff] %vm384, %v2858
        %2892 = vst.msk [vmem:[%s2871 + $0xf1] sm:$0xff] %vm384, %v2859
        %2893 = vst.msk [vmem:[%s2871 + $0xf9] sm:$0xff] %vm384, %v2860
        %2894 = vst.msk [vmem:[%s2871 + $0x109] sm:$0xff] %vm384, %v2861
        %2895 = vst.msk [vmem:[%s2871 + $0x111] sm:$0xff] %vm384, %v2862
        %2896 = vst.msk [vmem:[%s2871 + $0x121] sm:$0xff] %vm384, %v2863
        %2897 = vst.msk [vmem:[%s2871 + $0x129] sm:$0xff] %vm384, %v2864
        %2898 = vst.msk [vmem:[%s2871 + $0x139] sm:$0xff] %vm384, %v2865
        %2899 = vst.msk [vmem:[%s2871 + $0x141] sm:$0xff] %vm384, %v2866
        %2900 = vst.msk [vmem:[%s2871 + $0x151] sm:$0xff] %vm384, %v2867
        %2901 = vst.msk [vmem:[%s2871 + $0x159] sm:$0xff] %vm384, %v2868
        %2902 = vst.msk [vmem:[%s2871 + $0x169] sm:$0xff] %vm384, %v2869
        %2903 = vst.msk [vmem:[%s2871 + $0x171] sm:$0xff] %vm384, %v2870
        %v2904 = vld [vmem:[#allocation2] sm:$0xff]
        %v2905 = vld [vmem:[#allocation2 + $0x8] sm:$0xff]
        %v2906 = vld [vmem:[#allocation2 + $0x18] sm:$0xff]
        %v2907 = vld [vmem:[#allocation2 + $0x20] sm:$0xff]
        %v2908 = vld [vmem:[#allocation2 + $0x30] sm:$0xff]
        %v2909 = vld [vmem:[#allocation2 + $0x38] sm:$0xff]
        %v2910 = vld [vmem:[#allocation2 + $0x48] sm:$0xff]
        %v2911 = vld [vmem:[#allocation2 + $0x50] sm:$0xff]
        %v2912 = vld [vmem:[#allocation2 + $0x60] sm:$0xff]
        %v2913 = vld [vmem:[#allocation2 + $0x68] sm:$0xff]
        %v2914 = vld [vmem:[#allocation2 + $0x78] sm:$0xff]
        %v2915 = vld [vmem:[#allocation2 + $0x80] sm:$0xff]
        %v2916 = vld [vmem:[#allocation2 + $0x90] sm:$0xff]
        %v2917 = vld [vmem:[#allocation2 + $0x98] sm:$0xff]
        %v2918 = vld [vmem:[#allocation2 + $0xa8] sm:$0xff]
        %v2919 = vld [vmem:[#allocation2 + $0xb0] sm:$0xff]
        %v2920 = vld [vmem:[#allocation2 + $0xc0] sm:$0xff]
        %v2921 = vld [vmem:[#allocation2 + $0xc8] sm:$0xff]
        %v2922 = vld [vmem:[#allocation2 + $0xd8] sm:$0xff]
        %v2923 = vld [vmem:[#allocation2 + $0xe0] sm:$0xff]
        %v2924 = vld [vmem:[#allocation2 + $0xf0] sm:$0xff]
        %v2925 = vld [vmem:[#allocation2 + $0xf8] sm:$0xff]
        %v2926 = vld [vmem:[#allocation2 + $0x108] sm:$0xff]
        %v2927 = vld [vmem:[#allocation2 + $0x110] sm:$0xff]
        %v2928 = vld [vmem:[#allocation2 + $0x120] sm:$0xff]
        %v2929 = vld [vmem:[#allocation2 + $0x128] sm:$0xff]
        %v2930 = vld [vmem:[#allocation2 + $0x138] sm:$0xff]
        %v2931 = vld [vmem:[#allocation2 + $0x140] sm:$0xff]
        %v2932 = vld [vmem:[#allocation2 + $0x150] sm:$0xff]
        %v2933 = vld [vmem:[#allocation2 + $0x158] sm:$0xff]
        %v2934 = vld [vmem:[#allocation2 + $0x168] sm:$0xff]
        %v2935 = vld [vmem:[#allocation2 + $0x170] sm:$0xff]
        %2936 = vst.msk [vmem:[#allocation5] sm:$0xff] %vm384, %v2904
        %2937 = vst.msk [vmem:[#allocation5 + $0x18] sm:$0xff] %vm384, %v2905
        %2938 = vst.msk [vmem:[#allocation5 + $0x30] sm:$0xff] %vm384, %v2906
        %2939 = vst.msk [vmem:[#allocation5 + $0x48] sm:$0xff] %vm384, %v2907
        %2940 = vst.msk [vmem:[#allocation5 + $0x60] sm:$0xff] %vm384, %v2908
        %2941 = vst.msk [vmem:[#allocation5 + $0x78] sm:$0xff] %vm384, %v2909
        %2942 = vst.msk [vmem:[#allocation5 + $0x90] sm:$0xff] %vm384, %v2910
        %2943 = vst.msk [vmem:[#allocation5 + $0xa8] sm:$0xff] %vm384, %v2911
        %2944 = vst.msk [vmem:[#allocation5 + $0xc0] sm:$0xff] %vm384, %v2912
        %2945 = vst.msk [vmem:[#allocation5 + $0xd8] sm:$0xff] %vm384, %v2913
        %2946 = vst.msk [vmem:[#allocation5 + $0xf0] sm:$0xff] %vm384, %v2914
        %2947 = vst.msk [vmem:[#allocation5 + $0x108] sm:$0xff] %vm384, %v2915
        %2948 = vst.msk [vmem:[#allocation5 + $0x120] sm:$0xff] %vm384, %v2916
        %2949 = vst.msk [vmem:[#allocation5 + $0x138] sm:$0xff] %vm384, %v2917
        %2950 = vst.msk [vmem:[#allocation5 + $0x150] sm:$0xff] %vm384, %v2918
        %2951 = vst.msk [vmem:[#allocation5 + $0x168] sm:$0xff] %vm384, %v2919
        %2952 = vst.msk [vmem:[#allocation5 + $0x180] sm:$0xff] %vm384, %v2920
        %2953 = vst.msk [vmem:[#allocation5 + $0x198] sm:$0xff] %vm384, %v2921
        %2954 = vst.msk [vmem:[#allocation5 + $0x1b0] sm:$0xff] %vm384, %v2922
        %2955 = vst.msk [vmem:[#allocation5 + $0x1c8] sm:$0xff] %vm384, %v2923
        %2956 = vst.msk [vmem:[#allocation5 + $0x1e0] sm:$0xff] %vm384, %v2924
        %2957 = vst.msk [vmem:[#allocation5 + $0x1f8] sm:$0xff] %vm384, %v2925
        %2958 = vst.msk [vmem:[#allocation5 + $0x210] sm:$0xff] %vm384, %v2926
        %2959 = vst.msk [vmem:[#allocation5 + $0x228] sm:$0xff] %vm384, %v2927
        %2960 = vst.msk [vmem:[#allocation5 + $0x240] sm:$0xff] %vm384, %v2928
        %2961 = vst.msk [vmem:[#allocation5 + $0x258] sm:$0xff] %vm384, %v2929
        %2962 = vst.msk [vmem:[#allocation5 + $0x270] sm:$0xff] %vm384, %v2930
        %2963 = vst.msk [vmem:[#allocation5 + $0x288] sm:$0xff] %vm384, %v2931
        %2964 = vst.msk [vmem:[#allocation5 + $0x2a0] sm:$0xff] %vm384, %v2932
        %2965 = vst.msk [vmem:[#allocation5 + $0x2b8] sm:$0xff] %vm384, %v2933
        %2966 = vst.msk [vmem:[#allocation5 + $0x2d0] sm:$0xff] %vm384, %v2934
        %2967 = vst.msk [vmem:[#allocation5 + $0x2e8] sm:$0xff] %vm384, %v2935
        %v2968 = vld [vmem:[#allocation2 + $0x1] sm:$0xff]
        %v2969 = vld [vmem:[#allocation2 + $0x9] sm:$0xff]
        %v2970 = vld [vmem:[#allocation2 + $0x19] sm:$0xff]
        %v2971 = vld [vmem:[#allocation2 + $0x21] sm:$0xff]
        %v2972 = vld [vmem:[#allocation2 + $0x31] sm:$0xff]
        %v2973 = vld [vmem:[#allocation2 + $0x39] sm:$0xff]
        %v2974 = vld [vmem:[#allocation2 + $0x49] sm:$0xff]
        %v2975 = vld [vmem:[#allocation2 + $0x51] sm:$0xff]
        %v2976 = vld [vmem:[#allocation2 + $0x61] sm:$0xff]
        %v2977 = vld [vmem:[#allocation2 + $0x69] sm:$0xff]
        %v2978 = vld [vmem:[#allocation2 + $0x79] sm:$0xff]
        %v2979 = vld [vmem:[#allocation2 + $0x81] sm:$0xff]
        %v2980 = vld [vmem:[#allocation2 + $0x91] sm:$0xff]
        %v2981 = vld [vmem:[#allocation2 + $0x99] sm:$0xff]
        %v2982 = vld [vmem:[#allocation2 + $0xa9] sm:$0xff]
        %v2983 = vld [vmem:[#allocation2 + $0xb1] sm:$0xff]
        %v2984 = vld [vmem:[#allocation2 + $0xc1] sm:$0xff]
        %v2985 = vld [vmem:[#allocation2 + $0xc9] sm:$0xff]
        %v2986 = vld [vmem:[#allocation2 + $0xd9] sm:$0xff]
        %v2987 = vld [vmem:[#allocation2 + $0xe1] sm:$0xff]
        %v2988 = vld [vmem:[#allocation2 + $0xf1] sm:$0xff]
        %v2989 = vld [vmem:[#allocation2 + $0xf9] sm:$0xff]
        %v2990 = vld [vmem:[#allocation2 + $0x109] sm:$0xff]
        %v2991 = vld [vmem:[#allocation2 + $0x111] sm:$0xff]
        %v2992 = vld [vmem:[#allocation2 + $0x121] sm:$0xff]
        %v2993 = vld [vmem:[#allocation2 + $0x129] sm:$0xff]
        %v2994 = vld [vmem:[#allocation2 + $0x139] sm:$0xff]
        %v2995 = vld [vmem:[#allocation2 + $0x141] sm:$0xff]
        %v2996 = vld [vmem:[#allocation2 + $0x151] sm:$0xff]
        %v2997 = vld [vmem:[#allocation2 + $0x159] sm:$0xff]
        %v2998 = vld [vmem:[#allocation2 + $0x169] sm:$0xff]
        %v2999 = vld [vmem:[#allocation2 + $0x171] sm:$0xff]
        %3032 = vrot.lane.b32.xlu0 %v2968, 32
        %v3033 = vpop.permute.xlu0 %3032
        %3034 = vrot.lane.b32.xlu0 %v2969, 32
        %v3035 = vpop.permute.xlu0 %3034
        %3036 = vrot.lane.b32.xlu0 %v2970, 32
        %v3037 = vpop.permute.xlu0 %3036
        %3038 = vrot.lane.b32.xlu0 %v2971, 32
        %v3039 = vpop.permute.xlu0 %3038
        %3040 = vrot.lane.b32.xlu0 %v2972, 32
        %v3041 = vpop.permute.xlu0 %3040
        %3042 = vrot.lane.b32.xlu0 %v2973, 32
        %v3043 = vpop.permute.xlu0 %3042
        %3044 = vrot.lane.b32.xlu0 %v2974, 32
        %v3045 = vpop.permute.xlu0 %3044
        %3046 = vrot.lane.b32.xlu0 %v2975, 32
        %v3047 = vpop.permute.xlu0 %3046
        %3048 = vrot.lane.b32.xlu0 %v2976, 32
        %v3049 = vpop.permute.xlu0 %3048
        %3050 = vrot.lane.b32.xlu0 %v2977, 32
        %v3051 = vpop.permute.xlu0 %3050
        %3052 = vrot.lane.b32.xlu0 %v2978, 32
        %v3053 = vpop.permute.xlu0 %3052
        %3054 = vrot.lane.b32.xlu0 %v2979, 32
        %v3055 = vpop.permute.xlu0 %3054
        %3056 = vrot.lane.b32.xlu0 %v2980, 32
        %v3057 = vpop.permute.xlu0 %3056
        %3058 = vrot.lane.b32.xlu0 %v2981, 32
        %v3059 = vpop.permute.xlu0 %3058
        %3060 = vrot.lane.b32.xlu0 %v2982, 32
        %v3061 = vpop.permute.xlu0 %3060
        %3062 = vrot.lane.b32.xlu0 %v2983, 32
        %v3063 = vpop.permute.xlu0 %3062
        %3064 = vrot.lane.b32.xlu0 %v2984, 32
        %v3065 = vpop.permute.xlu0 %3064
        %3066 = vrot.lane.b32.xlu0 %v2985, 32
        %v3067 = vpop.permute.xlu0 %3066
        %3068 = vrot.lane.b32.xlu0 %v2986, 32
        %v3069 = vpop.permute.xlu0 %3068
        %3070 = vrot.lane.b32.xlu0 %v2987, 32
        %v3071 = vpop.permute.xlu0 %3070
        %3072 = vrot.lane.b32.xlu0 %v2988, 32
        %v3073 = vpop.permute.xlu0 %3072
        %3074 = vrot.lane.b32.xlu0 %v2989, 32
        %v3075 = vpop.permute.xlu0 %3074
        %3076 = vrot.lane.b32.xlu0 %v2990, 32
        %v3077 = vpop.permute.xlu0 %3076
        %3078 = vrot.lane.b32.xlu0 %v2991, 32
        %v3079 = vpop.permute.xlu0 %3078
        %3080 = vrot.lane.b32.xlu0 %v2992, 32
        %v3081 = vpop.permute.xlu0 %3080
        %3082 = vrot.lane.b32.xlu0 %v2993, 32
        %v3083 = vpop.permute.xlu0 %3082
        %3084 = vrot.lane.b32.xlu0 %v2994, 32
        %v3085 = vpop.permute.xlu0 %3084
        %3086 = vrot.lane.b32.xlu0 %v2995, 32
        %v3087 = vpop.permute.xlu0 %3086
        %3088 = vrot.lane.b32.xlu0 %v2996, 32
        %v3089 = vpop.permute.xlu0 %3088
        %3090 = vrot.lane.b32.xlu0 %v2997, 32
        %v3091 = vpop.permute.xlu0 %3090
        %3092 = vrot.lane.b32.xlu0 %v2998, 32
        %v3093 = vpop.permute.xlu0 %3092
        %3094 = vrot.lane.b32.xlu0 %v2999, 32
        %v3095 = vpop.permute.xlu0 %3094
        %vm3128 = vcmask 523520
        %3129 = vst.msk [vmem:[#allocation5] sm:$0xff] %vm3128, %v3033
        %3130 = vst.msk [vmem:[#allocation5 + $0x18] sm:$0xff] %vm3128, %v3035
        %3131 = vst.msk [vmem:[#allocation5 + $0x30] sm:$0xff] %vm3128, %v3037
        %3132 = vst.msk [vmem:[#allocation5 + $0x48] sm:$0xff] %vm3128, %v3039
        %3133 = vst.msk [vmem:[#allocation5 + $0x60] sm:$0xff] %vm3128, %v3041
        %3134 = vst.msk [vmem:[#allocation5 + $0x78] sm:$0xff] %vm3128, %v3043
        %3135 = vst.msk [vmem:[#allocation5 + $0x90] sm:$0xff] %vm3128, %v3045
        %3136 = vst.msk [vmem:[#allocation5 + $0xa8] sm:$0xff] %vm3128, %v3047
        %3137 = vst.msk [vmem:[#allocation5 + $0xc0] sm:$0xff] %vm3128, %v3049
        %3138 = vst.msk [vmem:[#allocation5 + $0xd8] sm:$0xff] %vm3128, %v3051
        %3139 = vst.msk [vmem:[#allocation5 + $0xf0] sm:$0xff] %vm3128, %v3053
        %3140 = vst.msk [vmem:[#allocation5 + $0x108] sm:$0xff] %vm3128, %v3055
        %3141 = vst.msk [vmem:[#allocation5 + $0x120] sm:$0xff] %vm3128, %v3057
        %3142 = vst.msk [vmem:[#allocation5 + $0x138] sm:$0xff] %vm3128, %v3059
        %3143 = vst.msk [vmem:[#allocation5 + $0x150] sm:$0xff] %vm3128, %v3061
        %3144 = vst.msk [vmem:[#allocation5 + $0x168] sm:$0xff] %vm3128, %v3063
        %3145 = vst.msk [vmem:[#allocation5 + $0x180] sm:$0xff] %vm3128, %v3065
        %3146 = vst.msk [vmem:[#allocation5 + $0x198] sm:$0xff] %vm3128, %v3067
        %3147 = vst.msk [vmem:[#allocation5 + $0x1b0] sm:$0xff] %vm3128, %v3069
        %3148 = vst.msk [vmem:[#allocation5 + $0x1c8] sm:$0xff] %vm3128, %v3071
        %3149 = vst.msk [vmem:[#allocation5 + $0x1e0] sm:$0xff] %vm3128, %v3073
        %3150 = vst.msk [vmem:[#allocation5 + $0x1f8] sm:$0xff] %vm3128, %v3075
        %3151 = vst.msk [vmem:[#allocation5 + $0x210] sm:$0xff] %vm3128, %v3077
        %3152 = vst.msk [vmem:[#allocation5 + $0x228] sm:$0xff] %vm3128, %v3079
        %3153 = vst.msk [vmem:[#allocation5 + $0x240] sm:$0xff] %vm3128, %v3081
        %3154 = vst.msk [vmem:[#allocation5 + $0x258] sm:$0xff] %vm3128, %v3083
        %3155 = vst.msk [vmem:[#allocation5 + $0x270] sm:$0xff] %vm3128, %v3085
        %3156 = vst.msk [vmem:[#allocation5 + $0x288] sm:$0xff] %vm3128, %v3087
        %3157 = vst.msk [vmem:[#allocation5 + $0x2a0] sm:$0xff] %vm3128, %v3089
        %3158 = vst.msk [vmem:[#allocation5 + $0x2b8] sm:$0xff] %vm3128, %v3091
        %3159 = vst.msk [vmem:[#allocation5 + $0x2d0] sm:$0xff] %vm3128, %v3093
        %3160 = vst.msk [vmem:[#allocation5 + $0x2e8] sm:$0xff] %vm3128, %v3095
        %v3161 = vld [vmem:[#allocation2 + $0x2] sm:$0xff]
        %v3162 = vld [vmem:[#allocation2 + $0xa] sm:$0xff]
        %v3163 = vld [vmem:[#allocation2 + $0x1a] sm:$0xff]
        %v3164 = vld [vmem:[#allocation2 + $0x22] sm:$0xff]
        %v3165 = vld [vmem:[#allocation2 + $0x32] sm:$0xff]
        %v3166 = vld [vmem:[#allocation2 + $0x3a] sm:$0xff]
        %v3167 = vld [vmem:[#allocation2 + $0x4a] sm:$0xff]
        %v3168 = vld [vmem:[#allocation2 + $0x52] sm:$0xff]
        %v3169 = vld [vmem:[#allocation2 + $0x62] sm:$0xff]
        %v3170 = vld [vmem:[#allocation2 + $0x6a] sm:$0xff]
        %v3171 = vld [vmem:[#allocation2 + $0x7a] sm:$0xff]
        %v3172 = vld [vmem:[#allocation2 + $0x82] sm:$0xff]
        %v3173 = vld [vmem:[#allocation2 + $0x92] sm:$0xff]
        %v3174 = vld [vmem:[#allocation2 + $0x9a] sm:$0xff]
        %v3175 = vld [vmem:[#allocation2 + $0xaa] sm:$0xff]
        %v3176 = vld [vmem:[#allocation2 + $0xb2] sm:$0xff]
        %v3177 = vld [vmem:[#allocation2 + $0xc2] sm:$0xff]
        %v3178 = vld [vmem:[#allocation2 + $0xca] sm:$0xff]
        %v3179 = vld [vmem:[#allocation2 + $0xda] sm:$0xff]
        %v3180 = vld [vmem:[#allocation2 + $0xe2] sm:$0xff]
        %v3181 = vld [vmem:[#allocation2 + $0xf2] sm:$0xff]
        %v3182 = vld [vmem:[#allocation2 + $0xfa] sm:$0xff]
        %v3183 = vld [vmem:[#allocation2 + $0x10a] sm:$0xff]
        %v3184 = vld [vmem:[#allocation2 + $0x112] sm:$0xff]
        %v3185 = vld [vmem:[#allocation2 + $0x122] sm:$0xff]
        %v3186 = vld [vmem:[#allocation2 + $0x12a] sm:$0xff]
        %v3187 = vld [vmem:[#allocation2 + $0x13a] sm:$0xff]
        %v3188 = vld [vmem:[#allocation2 + $0x142] sm:$0xff]
        %v3189 = vld [vmem:[#allocation2 + $0x152] sm:$0xff]
        %v3190 = vld [vmem:[#allocation2 + $0x15a] sm:$0xff]
        %v3191 = vld [vmem:[#allocation2 + $0x16a] sm:$0xff]
        %v3192 = vld [vmem:[#allocation2 + $0x172] sm:$0xff]
        %3225 = vrot.lane.b32.xlu0 %v3161, 64
        %v3226 = vpop.permute.xlu0 %3225
        %3227 = vrot.lane.b32.xlu0 %v3162, 64
        %v3228 = vpop.permute.xlu0 %3227
        %3229 = vrot.lane.b32.xlu0 %v3163, 64
        %v3230 = vpop.permute.xlu0 %3229
        %3231 = vrot.lane.b32.xlu0 %v3164, 64
        %v3232 = vpop.permute.xlu0 %3231
        %3233 = vrot.lane.b32.xlu0 %v3165, 64
        %v3234 = vpop.permute.xlu0 %3233
        %3235 = vrot.lane.b32.xlu0 %v3166, 64
        %v3236 = vpop.permute.xlu0 %3235
        %3237 = vrot.lane.b32.xlu0 %v3167, 64
        %v3238 = vpop.permute.xlu0 %3237
        %3239 = vrot.lane.b32.xlu0 %v3168, 64
        %v3240 = vpop.permute.xlu0 %3239
        %3241 = vrot.lane.b32.xlu0 %v3169, 64
        %v3242 = vpop.permute.xlu0 %3241
        %3243 = vrot.lane.b32.xlu0 %v3170, 64
        %v3244 = vpop.permute.xlu0 %3243
        %3245 = vrot.lane.b32.xlu0 %v3171, 64
        %v3246 = vpop.permute.xlu0 %3245
        %3247 = vrot.lane.b32.xlu0 %v3172, 64
        %v3248 = vpop.permute.xlu0 %3247
        %3249 = vrot.lane.b32.xlu0 %v3173, 64
        %v3250 = vpop.permute.xlu0 %3249
        %3251 = vrot.lane.b32.xlu0 %v3174, 64
        %v3252 = vpop.permute.xlu0 %3251
        %3253 = vrot.lane.b32.xlu0 %v3175, 64
        %v3254 = vpop.permute.xlu0 %3253
        %3255 = vrot.lane.b32.xlu0 %v3176, 64
        %v3256 = vpop.permute.xlu0 %3255
        %3257 = vrot.lane.b32.xlu0 %v3177, 64
        %v3258 = vpop.permute.xlu0 %3257
        %3259 = vrot.lane.b32.xlu0 %v3178, 64
        %v3260 = vpop.permute.xlu0 %3259
        %3261 = vrot.lane.b32.xlu0 %v3179, 64
        %v3262 = vpop.permute.xlu0 %3261
        %3263 = vrot.lane.b32.xlu0 %v3180, 64
        %v3264 = vpop.permute.xlu0 %3263
        %3265 = vrot.lane.b32.xlu0 %v3181, 64
        %v3266 = vpop.permute.xlu0 %3265
        %3267 = vrot.lane.b32.xlu0 %v3182, 64
        %v3268 = vpop.permute.xlu0 %3267
        %3269 = vrot.lane.b32.xlu0 %v3183, 64
        %v3270 = vpop.permute.xlu0 %3269
        %3271 = vrot.lane.b32.xlu0 %v3184, 64
        %v3272 = vpop.permute.xlu0 %3271
        %3273 = vrot.lane.b32.xlu0 %v3185, 64
        %v3274 = vpop.permute.xlu0 %3273
        %3275 = vrot.lane.b32.xlu0 %v3186, 64
        %v3276 = vpop.permute.xlu0 %3275
        %3277 = vrot.lane.b32.xlu0 %v3187, 64
        %v3278 = vpop.permute.xlu0 %3277
        %3279 = vrot.lane.b32.xlu0 %v3188, 64
        %v3280 = vpop.permute.xlu0 %3279
        %3281 = vrot.lane.b32.xlu0 %v3189, 64
        %v3282 = vpop.permute.xlu0 %3281
        %3283 = vrot.lane.b32.xlu0 %v3190, 64
        %v3284 = vpop.permute.xlu0 %3283
        %3285 = vrot.lane.b32.xlu0 %v3191, 64
        %v3286 = vpop.permute.xlu0 %3285
        %3287 = vrot.lane.b32.xlu0 %v3192, 64
        %v3288 = vpop.permute.xlu0 %3287
        %vm3321 = vcmask 785920
        %3322 = vst.msk [vmem:[#allocation5] sm:$0xff] %vm3321, %v3226
        %3323 = vst.msk [vmem:[#allocation5 + $0x18] sm:$0xff] %vm3321, %v3228
        %3324 = vst.msk [vmem:[#allocation5 + $0x30] sm:$0xff] %vm3321, %v3230
        %3325 = vst.msk [vmem:[#allocation5 + $0x48] sm:$0xff] %vm3321, %v3232
        %3326 = vst.msk [vmem:[#allocation5 + $0x60] sm:$0xff] %vm3321, %v3234
        %3327 = vst.msk [vmem:[#allocation5 + $0x78] sm:$0xff] %vm3321, %v3236
        %3328 = vst.msk [vmem:[#allocation5 + $0x90] sm:$0xff] %vm3321, %v3238
        %3329 = vst.msk [vmem:[#allocation5 + $0xa8] sm:$0xff] %vm3321, %v3240
        %3330 = vst.msk [vmem:[#allocation5 + $0xc0] sm:$0xff] %vm3321, %v3242
        %3331 = vst.msk [vmem:[#allocation5 + $0xd8] sm:$0xff] %vm3321, %v3244
        %3332 = vst.msk [vmem:[#allocation5 + $0xf0] sm:$0xff] %vm3321, %v3246
        %3333 = vst.msk [vmem:[#allocation5 + $0x108] sm:$0xff] %vm3321, %v3248
        %3334 = vst.msk [vmem:[#allocation5 + $0x120] sm:$0xff] %vm3321, %v3250
        %3335 = vst.msk [vmem:[#allocation5 + $0x138] sm:$0xff] %vm3321, %v3252
        %3336 = vst.msk [vmem:[#allocation5 + $0x150] sm:$0xff] %vm3321, %v3254
        %3337 = vst.msk [vmem:[#allocation5 + $0x168] sm:$0xff] %vm3321, %v3256
        %3338 = vst.msk [vmem:[#allocation5 + $0x180] sm:$0xff] %vm3321, %v3258
        %3339 = vst.msk [vmem:[#allocation5 + $0x198] sm:$0xff] %vm3321, %v3260
        %3340 = vst.msk [vmem:[#allocation5 + $0x1b0] sm:$0xff] %vm3321, %v3262
        %3341 = vst.msk [vmem:[#allocation5 + $0x1c8] sm:$0xff] %vm3321, %v3264
        %3342 = vst.msk [vmem:[#allocation5 + $0x1e0] sm:$0xff] %vm3321, %v3266
        %3343 = vst.msk [vmem:[#allocation5 + $0x1f8] sm:$0xff] %vm3321, %v3268
        %3344 = vst.msk [vmem:[#allocation5 + $0x210] sm:$0xff] %vm3321, %v3270
        %3345 = vst.msk [vmem:[#allocation5 + $0x228] sm:$0xff] %vm3321, %v3272
        %3346 = vst.msk [vmem:[#allocation5 + $0x240] sm:$0xff] %vm3321, %v3274
        %3347 = vst.msk [vmem:[#allocation5 + $0x258] sm:$0xff] %vm3321, %v3276
        %3348 = vst.msk [vmem:[#allocation5 + $0x270] sm:$0xff] %vm3321, %v3278
        %3349 = vst.msk [vmem:[#allocation5 + $0x288] sm:$0xff] %vm3321, %v3280
        %3350 = vst.msk [vmem:[#allocation5 + $0x2a0] sm:$0xff] %vm3321, %v3282
        %3351 = vst.msk [vmem:[#allocation5 + $0x2b8] sm:$0xff] %vm3321, %v3284
        %3352 = vst.msk [vmem:[#allocation5 + $0x2d0] sm:$0xff] %vm3321, %v3286
        %3353 = vst.msk [vmem:[#allocation5 + $0x2e8] sm:$0xff] %vm3321, %v3288
        %v3354 = vld [vmem:[%s2871] sm:$0xff]
        %v3355 = vld [vmem:[%s2871 + $0x8] sm:$0xff]
        %v3356 = vld [vmem:[%s2871 + $0x18] sm:$0xff]
        %v3357 = vld [vmem:[%s2871 + $0x20] sm:$0xff]
        %v3358 = vld [vmem:[%s2871 + $0x30] sm:$0xff]
        %v3359 = vld [vmem:[%s2871 + $0x38] sm:$0xff]
        %v3360 = vld [vmem:[%s2871 + $0x48] sm:$0xff]
        %v3361 = vld [vmem:[%s2871 + $0x50] sm:$0xff]
        %v3362 = vld [vmem:[%s2871 + $0x60] sm:$0xff]
        %v3363 = vld [vmem:[%s2871 + $0x68] sm:$0xff]
        %v3364 = vld [vmem:[%s2871 + $0x78] sm:$0xff]
        %v3365 = vld [vmem:[%s2871 + $0x80] sm:$0xff]
        %v3366 = vld [vmem:[%s2871 + $0x90] sm:$0xff]
        %v3367 = vld [vmem:[%s2871 + $0x98] sm:$0xff]
        %v3368 = vld [vmem:[%s2871 + $0xa8] sm:$0xff]
        %v3369 = vld [vmem:[%s2871 + $0xb0] sm:$0xff]
        %v3370 = vld [vmem:[%s2871 + $0xc0] sm:$0xff]
        %v3371 = vld [vmem:[%s2871 + $0xc8] sm:$0xff]
        %v3372 = vld [vmem:[%s2871 + $0xd8] sm:$0xff]
        %v3373 = vld [vmem:[%s2871 + $0xe0] sm:$0xff]
        %v3374 = vld [vmem:[%s2871 + $0xf0] sm:$0xff]
        %v3375 = vld [vmem:[%s2871 + $0xf8] sm:$0xff]
        %v3376 = vld [vmem:[%s2871 + $0x108] sm:$0xff]
        %v3377 = vld [vmem:[%s2871 + $0x110] sm:$0xff]
        %v3378 = vld [vmem:[%s2871 + $0x120] sm:$0xff]
        %v3379 = vld [vmem:[%s2871 + $0x128] sm:$0xff]
        %v3380 = vld [vmem:[%s2871 + $0x138] sm:$0xff]
        %v3381 = vld [vmem:[%s2871 + $0x140] sm:$0xff]
        %v3382 = vld [vmem:[%s2871 + $0x150] sm:$0xff]
        %v3383 = vld [vmem:[%s2871 + $0x158] sm:$0xff]
        %v3384 = vld [vmem:[%s2871 + $0x168] sm:$0xff]
        %v3385 = vld [vmem:[%s2871 + $0x170] sm:$0xff]
        %3418 = vrot.lane.b32.xlu0 %v3354, 96
        %v3419 = vpop.permute.xlu0 %3418
        %3420 = vrot.lane.b32.xlu0 %v3355, 96
        %v3421 = vpop.permute.xlu0 %3420
        %3422 = vrot.lane.b32.xlu0 %v3356, 96
        %v3423 = vpop.permute.xlu0 %3422
        %3424 = vrot.lane.b32.xlu0 %v3357, 96
        %v3425 = vpop.permute.xlu0 %3424
        %3426 = vrot.lane.b32.xlu0 %v3358, 96
        %v3427 = vpop.permute.xlu0 %3426
        %3428 = vrot.lane.b32.xlu0 %v3359, 96
        %v3429 = vpop.permute.xlu0 %3428
        %3430 = vrot.lane.b32.xlu0 %v3360, 96
        %v3431 = vpop.permute.xlu0 %3430
        %3432 = vrot.lane.b32.xlu0 %v3361, 96
        %v3433 = vpop.permute.xlu0 %3432
        %3434 = vrot.lane.b32.xlu0 %v3362, 96
        %v3435 = vpop.permute.xlu0 %3434
        %3436 = vrot.lane.b32.xlu0 %v3363, 96
        %v3437 = vpop.permute.xlu0 %3436
        %3438 = vrot.lane.b32.xlu0 %v3364, 96
        %v3439 = vpop.permute.xlu0 %3438
        %3440 = vrot.lane.b32.xlu0 %v3365, 96
        %v3441 = vpop.permute.xlu0 %3440
        %3442 = vrot.lane.b32.xlu0 %v3366, 96
        %v3443 = vpop.permute.xlu0 %3442
        %3444 = vrot.lane.b32.xlu0 %v3367, 96
        %v3445 = vpop.permute.xlu0 %3444
        %3446 = vrot.lane.b32.xlu0 %v3368, 96
        %v3447 = vpop.permute.xlu0 %3446
        %3448 = vrot.lane.b32.xlu0 %v3369, 96
        %v3449 = vpop.permute.xlu0 %3448
        %3450 = vrot.lane.b32.xlu0 %v3370, 96
        %v3451 = vpop.permute.xlu0 %3450
        %3452 = vrot.lane.b32.xlu0 %v3371, 96
        %v3453 = vpop.permute.xlu0 %3452
        %3454 = vrot.lane.b32.xlu0 %v3372, 96
        %v3455 = vpop.permute.xlu0 %3454
        %3456 = vrot.lane.b32.xlu0 %v3373, 96
        %v3457 = vpop.permute.xlu0 %3456
        %3458 = vrot.lane.b32.xlu0 %v3374, 96
        %v3459 = vpop.permute.xlu0 %3458
        %3460 = vrot.lane.b32.xlu0 %v3375, 96
        %v3461 = vpop.permute.xlu0 %3460
        %3462 = vrot.lane.b32.xlu0 %v3376, 96
        %v3463 = vpop.permute.xlu0 %3462
        %3464 = vrot.lane.b32.xlu0 %v3377, 96
        %v3465 = vpop.permute.xlu0 %3464
        %3466 = vrot.lane.b32.xlu0 %v3378, 96
        %v3467 = vpop.permute.xlu0 %3466
        %3468 = vrot.lane.b32.xlu0 %v3379, 96
        %v3469 = vpop.permute.xlu0 %3468
        %3470 = vrot.lane.b32.xlu0 %v3380, 96
        %v3471 = vpop.permute.xlu0 %3470
        %3472 = vrot.lane.b32.xlu0 %v3381, 96
        %v3473 = vpop.permute.xlu0 %3472
        %3474 = vrot.lane.b32.xlu0 %v3382, 96
        %v3475 = vpop.permute.xlu0 %3474
        %3476 = vrot.lane.b32.xlu0 %v3383, 96
        %v3477 = vpop.permute.xlu0 %3476
        %3478 = vrot.lane.b32.xlu0 %v3384, 96
        %v3479 = vpop.permute.xlu0 %3478
        %3480 = vrot.lane.b32.xlu0 %v3385, 96
        %v3481 = vpop.permute.xlu0 %3480
        %vm3514 = vcmask 1048320
        %3515 = vst.msk [vmem:[#allocation5] sm:$0xff] %vm3514, %v3419
        %3516 = vst.msk [vmem:[#allocation5 + $0x18] sm:$0xff] %vm3514, %v3421
        %3517 = vst.msk [vmem:[#allocation5 + $0x30] sm:$0xff] %vm3514, %v3423
        %3518 = vst.msk [vmem:[#allocation5 + $0x48] sm:$0xff] %vm3514, %v3425
        %3519 = vst.msk [vmem:[#allocation5 + $0x60] sm:$0xff] %vm3514, %v3427
        %3520 = vst.msk [vmem:[#allocation5 + $0x78] sm:$0xff] %vm3514, %v3429
        %3521 = vst.msk [vmem:[#allocation5 + $0x90] sm:$0xff] %vm3514, %v3431
        %3522 = vst.msk [vmem:[#allocation5 + $0xa8] sm:$0xff] %vm3514, %v3433
        %3523 = vst.msk [vmem:[#allocation5 + $0xc0] sm:$0xff] %vm3514, %v3435
        %3524 = vst.msk [vmem:[#allocation5 + $0xd8] sm:$0xff] %vm3514, %v3437
        %3525 = vst.msk [vmem:[#allocation5 + $0xf0] sm:$0xff] %vm3514, %v3439
        %3526 = vst.msk [vmem:[#allocation5 + $0x108] sm:$0xff] %vm3514, %v3441
        %3527 = vst.msk [vmem:[#allocation5 + $0x120] sm:$0xff] %vm3514, %v3443
        %3528 = vst.msk [vmem:[#allocation5 + $0x138] sm:$0xff] %vm3514, %v3445
        %3529 = vst.msk [vmem:[#allocation5 + $0x150] sm:$0xff] %vm3514, %v3447
        %3530 = vst.msk [vmem:[#allocation5 + $0x168] sm:$0xff] %vm3514, %v3449
        %3531 = vst.msk [vmem:[#allocation5 + $0x180] sm:$0xff] %vm3514, %v3451
        %3532 = vst.msk [vmem:[#allocation5 + $0x198] sm:$0xff] %vm3514, %v3453
        %3533 = vst.msk [vmem:[#allocation5 + $0x1b0] sm:$0xff] %vm3514, %v3455
        %3534 = vst.msk [vmem:[#allocation5 + $0x1c8] sm:$0xff] %vm3514, %v3457
        %3535 = vst.msk [vmem:[#allocation5 + $0x1e0] sm:$0xff] %vm3514, %v3459
        %3536 = vst.msk [vmem:[#allocation5 + $0x1f8] sm:$0xff] %vm3514, %v3461
        %3537 = vst.msk [vmem:[#allocation5 + $0x210] sm:$0xff] %vm3514, %v3463
        %3538 = vst.msk [vmem:[#allocation5 + $0x228] sm:$0xff] %vm3514, %v3465
        %3539 = vst.msk [vmem:[#allocation5 + $0x240] sm:$0xff] %vm3514, %v3467
        %3540 = vst.msk [vmem:[#allocation5 + $0x258] sm:$0xff] %vm3514, %v3469
        %3541 = vst.msk [vmem:[#allocation5 + $0x270] sm:$0xff] %vm3514, %v3471
        %3542 = vst.msk [vmem:[#allocation5 + $0x288] sm:$0xff] %vm3514, %v3473
        %3543 = vst.msk [vmem:[#allocation5 + $0x2a0] sm:$0xff] %vm3514, %v3475
        %3544 = vst.msk [vmem:[#allocation5 + $0x2b8] sm:$0xff] %vm3514, %v3477
        %3545 = vst.msk [vmem:[#allocation5 + $0x2d0] sm:$0xff] %vm3514, %v3479
        %3546 = vst.msk [vmem:[#allocation5 + $0x2e8] sm:$0xff] %vm3514, %v3481
        %v3547 = vld [vmem:[%s2871 + $0x1] sm:$0xff]
        %v3548 = vld [vmem:[%s2871 + $0x9] sm:$0xff]
        %v3549 = vld [vmem:[%s2871 + $0x19] sm:$0xff]
        %v3550 = vld [vmem:[%s2871 + $0x21] sm:$0xff]
        %v3551 = vld [vmem:[%s2871 + $0x31] sm:$0xff]
        %v3552 = vld [vmem:[%s2871 + $0x39] sm:$0xff]
        %v3553 = vld [vmem:[%s2871 + $0x49] sm:$0xff]
        %v3554 = vld [vmem:[%s2871 + $0x51] sm:$0xff]
        %v3555 = vld [vmem:[%s2871 + $0x61] sm:$0xff]
        %v3556 = vld [vmem:[%s2871 + $0x69] sm:$0xff]
        %v3557 = vld [vmem:[%s2871 + $0x79] sm:$0xff]
        %v3558 = vld [vmem:[%s2871 + $0x81] sm:$0xff]
        %v3559 = vld [vmem:[%s2871 + $0x91] sm:$0xff]
        %v3560 = vld [vmem:[%s2871 + $0x99] sm:$0xff]
        %v3561 = vld [vmem:[%s2871 + $0xa9] sm:$0xff]
        %v3562 = vld [vmem:[%s2871 + $0xb1] sm:$0xff]
        %v3563 = vld [vmem:[%s2871 + $0xc1] sm:$0xff]
        %v3564 = vld [vmem:[%s2871 + $0xc9] sm:$0xff]
        %v3565 = vld [vmem:[%s2871 + $0xd9] sm:$0xff]
        %v3566 = vld [vmem:[%s2871 + $0xe1] sm:$0xff]
        %v3567 = vld [vmem:[%s2871 + $0xf1] sm:$0xff]
        %v3568 = vld [vmem:[%s2871 + $0xf9] sm:$0xff]
        %v3569 = vld [vmem:[%s2871 + $0x109] sm:$0xff]
        %v3570 = vld [vmem:[%s2871 + $0x111] sm:$0xff]
        %v3571 = vld [vmem:[%s2871 + $0x121] sm:$0xff]
        %v3572 = vld [vmem:[%s2871 + $0x129] sm:$0xff]
        %v3573 = vld [vmem:[%s2871 + $0x139] sm:$0xff]
        %v3574 = vld [vmem:[%s2871 + $0x141] sm:$0xff]
        %v3575 = vld [vmem:[%s2871 + $0x151] sm:$0xff]
        %v3576 = vld [vmem:[%s2871 + $0x159] sm:$0xff]
        %v3577 = vld [vmem:[%s2871 + $0x169] sm:$0xff]
        %v3578 = vld [vmem:[%s2871 + $0x171] sm:$0xff]
        %3579 = vst.msk [vmem:[#allocation5 + $0x8] sm:$0xff] %vm384, %v3547
        %3580 = vst.msk [vmem:[#allocation5 + $0x20] sm:$0xff] %vm384, %v3548
        %3581 = vst.msk [vmem:[#allocation5 + $0x38] sm:$0xff] %vm384, %v3549
        %3582 = vst.msk [vmem:[#allocation5 + $0x50] sm:$0xff] %vm384, %v3550
        %3583 = vst.msk [vmem:[#allocation5 + $0x68] sm:$0xff] %vm384, %v3551
        %3584 = vst.msk [vmem:[#allocation5 + $0x80] sm:$0xff] %vm384, %v3552
        %3585 = vst.msk [vmem:[#allocation5 + $0x98] sm:$0xff] %vm384, %v3553
        %3586 = vst.msk [vmem:[#allocation5 + $0xb0] sm:$0xff] %vm384, %v3554
        %3587 = vst.msk [vmem:[#allocation5 + $0xc8] sm:$0xff] %vm384, %v3555
        %3588 = vst.msk [vmem:[#allocation5 + $0xe0] sm:$0xff] %vm384, %v3556
        %3589 = vst.msk [vmem:[#allocation5 + $0xf8] sm:$0xff] %vm384, %v3557
        %3590 = vst.msk [vmem:[#allocation5 + $0x110] sm:$0xff] %vm384, %v3558
        %3591 = vst.msk [vmem:[#allocation5 + $0x128] sm:$0xff] %vm384, %v3559
        %3592 = vst.msk [vmem:[#allocation5 + $0x140] sm:$0xff] %vm384, %v3560
        %3593 = vst.msk [vmem:[#allocation5 + $0x158] sm:$0xff] %vm384, %v3561
        %3594 = vst.msk [vmem:[#allocation5 + $0x170] sm:$0xff] %vm384, %v3562
        %3595 = vst.msk [vmem:[#allocation5 + $0x188] sm:$0xff] %vm384, %v3563
        %3596 = vst.msk [vmem:[#allocation5 + $0x1a0] sm:$0xff] %vm384, %v3564
        %3597 = vst.msk [vmem:[#allocation5 + $0x1b8] sm:$0xff] %vm384, %v3565
        %3598 = vst.msk [vmem:[#allocation5 + $0x1d0] sm:$0xff] %vm384, %v3566
        %3599 = vst.msk [vmem:[#allocation5 + $0x1e8] sm:$0xff] %vm384, %v3567
        %3600 = vst.msk [vmem:[#allocation5 + $0x200] sm:$0xff] %vm384, %v3568
        %3601 = vst.msk [vmem:[#allocation5 + $0x218] sm:$0xff] %vm384, %v3569
        %3602 = vst.msk [vmem:[#allocation5 + $0x230] sm:$0xff] %vm384, %v3570
        %3603 = vst.msk [vmem:[#allocation5 + $0x248] sm:$0xff] %vm384, %v3571
        %3604 = vst.msk [vmem:[#allocation5 + $0x260] sm:$0xff] %vm384, %v3572
        %3605 = vst.msk [vmem:[#allocation5 + $0x278] sm:$0xff] %vm384, %v3573
        %3606 = vst.msk [vmem:[#allocation5 + $0x290] sm:$0xff] %vm384, %v3574
        %3607 = vst.msk [vmem:[#allocation5 + $0x2a8] sm:$0xff] %vm384, %v3575
        %3608 = vst.msk [vmem:[#allocation5 + $0x2c0] sm:$0xff] %vm384, %v3576
        %3609 = vst.msk [vmem:[#allocation5 + $0x2d8] sm:$0xff] %vm384, %v3577
        %3610 = vst.msk [vmem:[#allocation5 + $0x2f0] sm:$0xff] %vm384, %v3578
        %v3611 = vld [vmem:[%s2871 + $0x2] sm:$0xff]
        %v3612 = vld [vmem:[%s2871 + $0xa] sm:$0xff]
        %v3613 = vld [vmem:[%s2871 + $0x1a] sm:$0xff]
        %v3614 = vld [vmem:[%s2871 + $0x22] sm:$0xff]
        %v3615 = vld [vmem:[%s2871 + $0x32] sm:$0xff]
        %v3616 = vld [vmem:[%s2871 + $0x3a] sm:$0xff]
        %v3617 = vld [vmem:[%s2871 + $0x4a] sm:$0xff]
        %v3618 = vld [vmem:[%s2871 + $0x52] sm:$0xff]
        %v3619 = vld [vmem:[%s2871 + $0x62] sm:$0xff]
        %v3620 = vld [vmem:[%s2871 + $0x6a] sm:$0xff]
        %v3621 = vld [vmem:[%s2871 + $0x7a] sm:$0xff]
        %v3622 = vld [vmem:[%s2871 + $0x82] sm:$0xff]
        %v3623 = vld [vmem:[%s2871 + $0x92] sm:$0xff]
        %v3624 = vld [vmem:[%s2871 + $0x9a] sm:$0xff]
        %v3625 = vld [vmem:[%s2871 + $0xaa] sm:$0xff]
        %v3626 = vld [vmem:[%s2871 + $0xb2] sm:$0xff]
        %v3627 = vld [vmem:[%s2871 + $0xc2] sm:$0xff]
        %v3628 = vld [vmem:[%s2871 + $0xca] sm:$0xff]
        %v3629 = vld [vmem:[%s2871 + $0xda] sm:$0xff]
        %v3630 = vld [vmem:[%s2871 + $0xe2] sm:$0xff]
        %v3631 = vld [vmem:[%s2871 + $0xf2] sm:$0xff]
        %v3632 = vld [vmem:[%s2871 + $0xfa] sm:$0xff]
        %v3633 = vld [vmem:[%s2871 + $0x10a] sm:$0xff]
        %v3634 = vld [vmem:[%s2871 + $0x112] sm:$0xff]
        %v3635 = vld [vmem:[%s2871 + $0x122] sm:$0xff]
        %v3636 = vld [vmem:[%s2871 + $0x12a] sm:$0xff]
        %v3637 = vld [vmem:[%s2871 + $0x13a] sm:$0xff]
        %v3638 = vld [vmem:[%s2871 + $0x142] sm:$0xff]
        %v3639 = vld [vmem:[%s2871 + $0x152] sm:$0xff]
        %v3640 = vld [vmem:[%s2871 + $0x15a] sm:$0xff]
        %v3641 = vld [vmem:[%s2871 + $0x16a] sm:$0xff]
        %v3642 = vld [vmem:[%s2871 + $0x172] sm:$0xff]
        %3675 = vrot.lane.b32.xlu0 %v3611, 32
        %v3676 = vpop.permute.xlu0 %3675
        %3677 = vrot.lane.b32.xlu0 %v3612, 32
        %v3678 = vpop.permute.xlu0 %3677
        %3679 = vrot.lane.b32.xlu0 %v3613, 32
        %v3680 = vpop.permute.xlu0 %3679
        %3681 = vrot.lane.b32.xlu0 %v3614, 32
        %v3682 = vpop.permute.xlu0 %3681
        %3683 = vrot.lane.b32.xlu0 %v3615, 32
        %v3684 = vpop.permute.xlu0 %3683
        %3685 = vrot.lane.b32.xlu0 %v3616, 32
        %v3686 = vpop.permute.xlu0 %3685
        %3687 = vrot.lane.b32.xlu0 %v3617, 32
        %v3688 = vpop.permute.xlu0 %3687
        %3689 = vrot.lane.b32.xlu0 %v3618, 32
        %v3690 = vpop.permute.xlu0 %3689
        %3691 = vrot.lane.b32.xlu0 %v3619, 32
        %v3692 = vpop.permute.xlu0 %3691
        %3693 = vrot.lane.b32.xlu0 %v3620, 32
        %v3694 = vpop.permute.xlu0 %3693
        %3695 = vrot.lane.b32.xlu0 %v3621, 32
        %v3696 = vpop.permute.xlu0 %3695
        %3697 = vrot.lane.b32.xlu0 %v3622, 32
        %v3698 = vpop.permute.xlu0 %3697
        %3699 = vrot.lane.b32.xlu0 %v3623, 32
        %v3700 = vpop.permute.xlu0 %3699
        %3701 = vrot.lane.b32.xlu0 %v3624, 32
        %v3702 = vpop.permute.xlu0 %3701
        %3703 = vrot.lane.b32.xlu0 %v3625, 32
        %v3704 = vpop.permute.xlu0 %3703
        %3705 = vrot.lane.b32.xlu0 %v3626, 32
        %v3706 = vpop.permute.xlu0 %3705
        %3707 = vrot.lane.b32.xlu0 %v3627, 32
        %v3708 = vpop.permute.xlu0 %3707
        %3709 = vrot.lane.b32.xlu0 %v3628, 32
        %v3710 = vpop.permute.xlu0 %3709
        %3711 = vrot.lane.b32.xlu0 %v3629, 32
        %v3712 = vpop.permute.xlu0 %3711
        %3713 = vrot.lane.b32.xlu0 %v3630, 32
        %v3714 = vpop.permute.xlu0 %3713
        %3715 = vrot.lane.b32.xlu0 %v3631, 32
        %v3716 = vpop.permute.xlu0 %3715
        %3717 = vrot.lane.b32.xlu0 %v3632, 32
        %v3718 = vpop.permute.xlu0 %3717
        %3719 = vrot.lane.b32.xlu0 %v3633, 32
        %v3720 = vpop.permute.xlu0 %3719
        %3721 = vrot.lane.b32.xlu0 %v3634, 32
        %v3722 = vpop.permute.xlu0 %3721
        %3723 = vrot.lane.b32.xlu0 %v3635, 32
        %v3724 = vpop.permute.xlu0 %3723
        %3725 = vrot.lane.b32.xlu0 %v3636, 32
        %v3726 = vpop.permute.xlu0 %3725
        %3727 = vrot.lane.b32.xlu0 %v3637, 32
        %v3728 = vpop.permute.xlu0 %3727
        %3729 = vrot.lane.b32.xlu0 %v3638, 32
        %v3730 = vpop.permute.xlu0 %3729
        %3731 = vrot.lane.b32.xlu0 %v3639, 32
        %v3732 = vpop.permute.xlu0 %3731
        %3733 = vrot.lane.b32.xlu0 %v3640, 32
        %v3734 = vpop.permute.xlu0 %3733
        %3735 = vrot.lane.b32.xlu0 %v3641, 32
        %v3736 = vpop.permute.xlu0 %3735
        %3737 = vrot.lane.b32.xlu0 %v3642, 32
        %v3738 = vpop.permute.xlu0 %3737
        %3771 = vst.msk [vmem:[#allocation5 + $0x8] sm:$0xff] %vm3128, %v3676
        %3772 = vst.msk [vmem:[#allocation5 + $0x20] sm:$0xff] %vm3128, %v3678
        %3773 = vst.msk [vmem:[#allocation5 + $0x38] sm:$0xff] %vm3128, %v3680
        %3774 = vst.msk [vmem:[#allocation5 + $0x50] sm:$0xff] %vm3128, %v3682
        %3775 = vst.msk [vmem:[#allocation5 + $0x68] sm:$0xff] %vm3128, %v3684
        %3776 = vst.msk [vmem:[#allocation5 + $0x80] sm:$0xff] %vm3128, %v3686
        %3777 = vst.msk [vmem:[#allocation5 + $0x98] sm:$0xff] %vm3128, %v3688
        %3778 = vst.msk [vmem:[#allocation5 + $0xb0] sm:$0xff] %vm3128, %v3690
        %3779 = vst.msk [vmem:[#allocation5 + $0xc8] sm:$0xff] %vm3128, %v3692
        %3780 = vst.msk [vmem:[#allocation5 + $0xe0] sm:$0xff] %vm3128, %v3694
        %3781 = vst.msk [vmem:[#allocation5 + $0xf8] sm:$0xff] %vm3128, %v3696
        %3782 = vst.msk [vmem:[#allocation5 + $0x110] sm:$0xff] %vm3128, %v3698
        %3783 = vst.msk [vmem:[#allocation5 + $0x128] sm:$0xff] %vm3128, %v3700
        %3784 = vst.msk [vmem:[#allocation5 + $0x140] sm:$0xff] %vm3128, %v3702
        %3785 = vst.msk [vmem:[#allocation5 + $0x158] sm:$0xff] %vm3128, %v3704
        %3786 = vst.msk [vmem:[#allocation5 + $0x170] sm:$0xff] %vm3128, %v3706
        %3787 = vst.msk [vmem:[#allocation5 + $0x188] sm:$0xff] %vm3128, %v3708
        %3788 = vst.msk [vmem:[#allocation5 + $0x1a0] sm:$0xff] %vm3128, %v3710
        %3789 = vst.msk [vmem:[#allocation5 + $0x1b8] sm:$0xff] %vm3128, %v3712
        %3790 = vst.msk [vmem:[#allocation5 + $0x1d0] sm:$0xff] %vm3128, %v3714
        %3791 = vst.msk [vmem:[#allocation5 + $0x1e8] sm:$0xff] %vm3128, %v3716
        %3792 = vst.msk [vmem:[#allocation5 + $0x200] sm:$0xff] %vm3128, %v3718
        %3793 = vst.msk [vmem:[#allocation5 + $0x218] sm:$0xff] %vm3128, %v3720
        %3794 = vst.msk [vmem:[#allocation5 + $0x230] sm:$0xff] %vm3128, %v3722
        %3795 = vst.msk [vmem:[#allocation5 + $0x248] sm:$0xff] %vm3128, %v3724
        %3796 = vst.msk [vmem:[#allocation5 + $0x260] sm:$0xff] %vm3128, %v3726
        %3797 = vst.msk [vmem:[#allocation5 + $0x278] sm:$0xff] %vm3128, %v3728
        %3798 = vst.msk [vmem:[#allocation5 + $0x290] sm:$0xff] %vm3128, %v3730
        %3799 = vst.msk [vmem:[#allocation5 + $0x2a8] sm:$0xff] %vm3128, %v3732
        %3800 = vst.msk [vmem:[#allocation5 + $0x2c0] sm:$0xff] %vm3128, %v3734
        %3801 = vst.msk [vmem:[#allocation5 + $0x2d8] sm:$0xff] %vm3128, %v3736
        %3802 = vst.msk [vmem:[#allocation5 + $0x2f0] sm:$0xff] %vm3128, %v3738
        %s3803 = scalar_lea.vmem [#allocation2], 48
        %v3804 = vld [vmem:[%s3803] sm:$0xff]
        %v3805 = vld [vmem:[%s3803 + $0x8] sm:$0xff]
        %v3806 = vld [vmem:[%s3803 + $0x18] sm:$0xff]
        %v3807 = vld [vmem:[%s3803 + $0x20] sm:$0xff]
        %v3808 = vld [vmem:[%s3803 + $0x30] sm:$0xff]
        %v3809 = vld [vmem:[%s3803 + $0x38] sm:$0xff]
        %v3810 = vld [vmem:[%s3803 + $0x48] sm:$0xff]
        %v3811 = vld [vmem:[%s3803 + $0x50] sm:$0xff]
        %v3812 = vld [vmem:[%s3803 + $0x60] sm:$0xff]
        %v3813 = vld [vmem:[%s3803 + $0x68] sm:$0xff]
        %v3814 = vld [vmem:[%s3803 + $0x78] sm:$0xff]
        %v3815 = vld [vmem:[%s3803 + $0x80] sm:$0xff]
        %v3816 = vld [vmem:[%s3803 + $0x90] sm:$0xff]
        %v3817 = vld [vmem:[%s3803 + $0x98] sm:$0xff]
        %v3818 = vld [vmem:[%s3803 + $0xa8] sm:$0xff]
        %v3819 = vld [vmem:[%s3803 + $0xb0] sm:$0xff]
        %v3820 = vld [vmem:[%s3803 + $0xc0] sm:$0xff]
        %v3821 = vld [vmem:[%s3803 + $0xc8] sm:$0xff]
        %v3822 = vld [vmem:[%s3803 + $0xd8] sm:$0xff]
        %v3823 = vld [vmem:[%s3803 + $0xe0] sm:$0xff]
        %v3824 = vld [vmem:[%s3803 + $0xf0] sm:$0xff]
        %v3825 = vld [vmem:[%s3803 + $0xf8] sm:$0xff]
        %v3826 = vld [vmem:[%s3803 + $0x108] sm:$0xff]
        %v3827 = vld [vmem:[%s3803 + $0x110] sm:$0xff]
        %v3828 = vld [vmem:[%s3803 + $0x120] sm:$0xff]
        %v3829 = vld [vmem:[%s3803 + $0x128] sm:$0xff]
        %v3830 = vld [vmem:[%s3803 + $0x138] sm:$0xff]
        %v3831 = vld [vmem:[%s3803 + $0x140] sm:$0xff]
        %v3832 = vld [vmem:[%s3803 + $0x150] sm:$0xff]
        %v3833 = vld [vmem:[%s3803 + $0x158] sm:$0xff]
        %v3834 = vld [vmem:[%s3803 + $0x168] sm:$0xff]
        %v3835 = vld [vmem:[%s3803 + $0x170] sm:$0xff]
        %3868 = vrot.lane.b32.xlu0 %v3804, 64
        %v3869 = vpop.permute.xlu0 %3868
        %3870 = vrot.lane.b32.xlu0 %v3805, 64
        %v3871 = vpop.permute.xlu0 %3870
        %3872 = vrot.lane.b32.xlu0 %v3806, 64
        %v3873 = vpop.permute.xlu0 %3872
        %3874 = vrot.lane.b32.xlu0 %v3807, 64
        %v3875 = vpop.permute.xlu0 %3874
        %3876 = vrot.lane.b32.xlu0 %v3808, 64
        %v3877 = vpop.permute.xlu0 %3876
        %3878 = vrot.lane.b32.xlu0 %v3809, 64
        %v3879 = vpop.permute.xlu0 %3878
        %3880 = vrot.lane.b32.xlu0 %v3810, 64
        %v3881 = vpop.permute.xlu0 %3880
        %3882 = vrot.lane.b32.xlu0 %v3811, 64
        %v3883 = vpop.permute.xlu0 %3882
        %3884 = vrot.lane.b32.xlu0 %v3812, 64
        %v3885 = vpop.permute.xlu0 %3884
        %3886 = vrot.lane.b32.xlu0 %v3813, 64
        %v3887 = vpop.permute.xlu0 %3886
        %3888 = vrot.lane.b32.xlu0 %v3814, 64
        %v3889 = vpop.permute.xlu0 %3888
        %3890 = vrot.lane.b32.xlu0 %v3815, 64
        %v3891 = vpop.permute.xlu0 %3890
        %3892 = vrot.lane.b32.xlu0 %v3816, 64
        %v3893 = vpop.permute.xlu0 %3892
        %3894 = vrot.lane.b32.xlu0 %v3817, 64
        %v3895 = vpop.permute.xlu0 %3894
        %3896 = vrot.lane.b32.xlu0 %v3818, 64
        %v3897 = vpop.permute.xlu0 %3896
        %3898 = vrot.lane.b32.xlu0 %v3819, 64
        %v3899 = vpop.permute.xlu0 %3898
        %3900 = vrot.lane.b32.xlu0 %v3820, 64
        %v3901 = vpop.permute.xlu0 %3900
        %3902 = vrot.lane.b32.xlu0 %v3821, 64
        %v3903 = vpop.permute.xlu0 %3902
        %3904 = vrot.lane.b32.xlu0 %v3822, 64
        %v3905 = vpop.permute.xlu0 %3904
        %3906 = vrot.lane.b32.xlu0 %v3823, 64
        %v3907 = vpop.permute.xlu0 %3906
        %3908 = vrot.lane.b32.xlu0 %v3824, 64
        %v3909 = vpop.permute.xlu0 %3908
        %3910 = vrot.lane.b32.xlu0 %v3825, 64
        %v3911 = vpop.permute.xlu0 %3910
        %3912 = vrot.lane.b32.xlu0 %v3826, 64
        %v3913 = vpop.permute.xlu0 %3912
        %3914 = vrot.lane.b32.xlu0 %v3827, 64
        %v3915 = vpop.permute.xlu0 %3914
        %3916 = vrot.lane.b32.xlu0 %v3828, 64
        %v3917 = vpop.permute.xlu0 %3916
        %3918 = vrot.lane.b32.xlu0 %v3829, 64
        %v3919 = vpop.permute.xlu0 %3918
        %3920 = vrot.lane.b32.xlu0 %v3830, 64
        %v3921 = vpop.permute.xlu0 %3920
        %3922 = vrot.lane.b32.xlu0 %v3831, 64
        %v3923 = vpop.permute.xlu0 %3922
        %3924 = vrot.lane.b32.xlu0 %v3832, 64
        %v3925 = vpop.permute.xlu0 %3924
        %3926 = vrot.lane.b32.xlu0 %v3833, 64
        %v3927 = vpop.permute.xlu0 %3926
        %3928 = vrot.lane.b32.xlu0 %v3834, 64
        %v3929 = vpop.permute.xlu0 %3928
        %3930 = vrot.lane.b32.xlu0 %v3835, 64
        %v3931 = vpop.permute.xlu0 %3930
        %3964 = vst.msk [vmem:[#allocation5 + $0x8] sm:$0xff] %vm3321, %v3869
        %3965 = vst.msk [vmem:[#allocation5 + $0x20] sm:$0xff] %vm3321, %v3871
        %3966 = vst.msk [vmem:[#allocation5 + $0x38] sm:$0xff] %vm3321, %v3873
        %3967 = vst.msk [vmem:[#allocation5 + $0x50] sm:$0xff] %vm3321, %v3875
        %3968 = vst.msk [vmem:[#allocation5 + $0x68] sm:$0xff] %vm3321, %v3877
        %3969 = vst.msk [vmem:[#allocation5 + $0x80] sm:$0xff] %vm3321, %v3879
        %3970 = vst.msk [vmem:[#allocation5 + $0x98] sm:$0xff] %vm3321, %v3881
        %3971 = vst.msk [vmem:[#allocation5 + $0xb0] sm:$0xff] %vm3321, %v3883
        %3972 = vst.msk [vmem:[#allocation5 + $0xc8] sm:$0xff] %vm3321, %v3885
        %3973 = vst.msk [vmem:[#allocation5 + $0xe0] sm:$0xff] %vm3321, %v3887
        %3974 = vst.msk [vmem:[#allocation5 + $0xf8] sm:$0xff] %vm3321, %v3889
        %3975 = vst.msk [vmem:[#allocation5 + $0x110] sm:$0xff] %vm3321, %v3891
        %3976 = vst.msk [vmem:[#allocation5 + $0x128] sm:$0xff] %vm3321, %v3893
        %3977 = vst.msk [vmem:[#allocation5 + $0x140] sm:$0xff] %vm3321, %v3895
        %3978 = vst.msk [vmem:[#allocation5 + $0x158] sm:$0xff] %vm3321, %v3897
        %3979 = vst.msk [vmem:[#allocation5 + $0x170] sm:$0xff] %vm3321, %v3899
        %3980 = vst.msk [vmem:[#allocation5 + $0x188] sm:$0xff] %vm3321, %v3901
        %3981 = vst.msk [vmem:[#allocation5 + $0x1a0] sm:$0xff] %vm3321, %v3903
        %3982 = vst.msk [vmem:[#allocation5 + $0x1b8] sm:$0xff] %vm3321, %v3905
        %3983 = vst.msk [vmem:[#allocation5 + $0x1d0] sm:$0xff] %vm3321, %v3907
        %3984 = vst.msk [vmem:[#allocation5 + $0x1e8] sm:$0xff] %vm3321, %v3909
        %3985 = vst.msk [vmem:[#allocation5 + $0x200] sm:$0xff] %vm3321, %v3911
        %3986 = vst.msk [vmem:[#allocation5 + $0x218] sm:$0xff] %vm3321, %v3913
        %3987 = vst.msk [vmem:[#allocation5 + $0x230] sm:$0xff] %vm3321, %v3915
        %3988 = vst.msk [vmem:[#allocation5 + $0x248] sm:$0xff] %vm3321, %v3917
        %3989 = vst.msk [vmem:[#allocation5 + $0x260] sm:$0xff] %vm3321, %v3919
        %3990 = vst.msk [vmem:[#allocation5 + $0x278] sm:$0xff] %vm3321, %v3921
        %3991 = vst.msk [vmem:[#allocation5 + $0x290] sm:$0xff] %vm3321, %v3923
        %3992 = vst.msk [vmem:[#allocation5 + $0x2a8] sm:$0xff] %vm3321, %v3925
        %3993 = vst.msk [vmem:[#allocation5 + $0x2c0] sm:$0xff] %vm3321, %v3927
        %3994 = vst.msk [vmem:[#allocation5 + $0x2d8] sm:$0xff] %vm3321, %v3929
        %3995 = vst.msk [vmem:[#allocation5 + $0x2f0] sm:$0xff] %vm3321, %v3931
        %v3996 = vld [vmem:[%s3803 + $0x1] sm:$0xff]
        %v3997 = vld [vmem:[%s3803 + $0x9] sm:$0xff]
        %v3998 = vld [vmem:[%s3803 + $0x19] sm:$0xff]
        %v3999 = vld [vmem:[%s3803 + $0x21] sm:$0xff]
        %v4000 = vld [vmem:[%s3803 + $0x31] sm:$0xff]
        %v4001 = vld [vmem:[%s3803 + $0x39] sm:$0xff]
        %v4002 = vld [vmem:[%s3803 + $0x49] sm:$0xff]
        %v4003 = vld [vmem:[%s3803 + $0x51] sm:$0xff]
        %v4004 = vld [vmem:[%s3803 + $0x61] sm:$0xff]
        %v4005 = vld [vmem:[%s3803 + $0x69] sm:$0xff]
        %v4006 = vld [vmem:[%s3803 + $0x79] sm:$0xff]
        %v4007 = vld [vmem:[%s3803 + $0x81] sm:$0xff]
        %v4008 = vld [vmem:[%s3803 + $0x91] sm:$0xff]
        %v4009 = vld [vmem:[%s3803 + $0x99] sm:$0xff]
        %v4010 = vld [vmem:[%s3803 + $0xa9] sm:$0xff]
        %v4011 = vld [vmem:[%s3803 + $0xb1] sm:$0xff]
        %v4012 = vld [vmem:[%s3803 + $0xc1] sm:$0xff]
        %v4013 = vld [vmem:[%s3803 + $0xc9] sm:$0xff]
        %v4014 = vld [vmem:[%s3803 + $0xd9] sm:$0xff]
        %v4015 = vld [vmem:[%s3803 + $0xe1] sm:$0xff]
        %v4016 = vld [vmem:[%s3803 + $0xf1] sm:$0xff]
        %v4017 = vld [vmem:[%s3803 + $0xf9] sm:$0xff]
        %v4018 = vld [vmem:[%s3803 + $0x109] sm:$0xff]
        %v4019 = vld [vmem:[%s3803 + $0x111] sm:$0xff]
        %v4020 = vld [vmem:[%s3803 + $0x121] sm:$0xff]
        %v4021 = vld [vmem:[%s3803 + $0x129] sm:$0xff]
        %v4022 = vld [vmem:[%s3803 + $0x139] sm:$0xff]
        %v4023 = vld [vmem:[%s3803 + $0x141] sm:$0xff]
        %v4024 = vld [vmem:[%s3803 + $0x151] sm:$0xff]
        %v4025 = vld [vmem:[%s3803 + $0x159] sm:$0xff]
        %v4026 = vld [vmem:[%s3803 + $0x169] sm:$0xff]
        %v4027 = vld [vmem:[%s3803 + $0x171] sm:$0xff]
        %4060 = vrot.lane.b32.xlu0 %v3996, 96
        %v4061 = vpop.permute.xlu0 %4060
        %4062 = vrot.lane.b32.xlu0 %v3997, 96
        %v4063 = vpop.permute.xlu0 %4062
        %4064 = vrot.lane.b32.xlu0 %v3998, 96
        %v4065 = vpop.permute.xlu0 %4064
        %4066 = vrot.lane.b32.xlu0 %v3999, 96
        %v4067 = vpop.permute.xlu0 %4066
        %4068 = vrot.lane.b32.xlu0 %v4000, 96
        %v4069 = vpop.permute.xlu0 %4068
        %4070 = vrot.lane.b32.xlu0 %v4001, 96
        %v4071 = vpop.permute.xlu0 %4070
        %4072 = vrot.lane.b32.xlu0 %v4002, 96
        %v4073 = vpop.permute.xlu0 %4072
        %4074 = vrot.lane.b32.xlu0 %v4003, 96
        %v4075 = vpop.permute.xlu0 %4074
        %4076 = vrot.lane.b32.xlu0 %v4004, 96
        %v4077 = vpop.permute.xlu0 %4076
        %4078 = vrot.lane.b32.xlu0 %v4005, 96
        %v4079 = vpop.permute.xlu0 %4078
        %4080 = vrot.lane.b32.xlu0 %v4006, 96
        %v4081 = vpop.permute.xlu0 %4080
        %4082 = vrot.lane.b32.xlu0 %v4007, 96
        %v4083 = vpop.permute.xlu0 %4082
        %4084 = vrot.lane.b32.xlu0 %v4008, 96
        %v4085 = vpop.permute.xlu0 %4084
        %4086 = vrot.lane.b32.xlu0 %v4009, 96
        %v4087 = vpop.permute.xlu0 %4086
        %4088 = vrot.lane.b32.xlu0 %v4010, 96
        %v4089 = vpop.permute.xlu0 %4088
        %4090 = vrot.lane.b32.xlu0 %v4011, 96
        %v4091 = vpop.permute.xlu0 %4090
        %4092 = vrot.lane.b32.xlu0 %v4012, 96
        %v4093 = vpop.permute.xlu0 %4092
        %4094 = vrot.lane.b32.xlu0 %v4013, 96
        %v4095 = vpop.permute.xlu0 %4094
        %4096 = vrot.lane.b32.xlu0 %v4014, 96
        %v4097 = vpop.permute.xlu0 %4096
        %4098 = vrot.lane.b32.xlu0 %v4015, 96
        %v4099 = vpop.permute.xlu0 %4098
        %4100 = vrot.lane.b32.xlu0 %v4016, 96
        %v4101 = vpop.permute.xlu0 %4100
        %4102 = vrot.lane.b32.xlu0 %v4017, 96
        %v4103 = vpop.permute.xlu0 %4102
        %4104 = vrot.lane.b32.xlu0 %v4018, 96
        %v4105 = vpop.permute.xlu0 %4104
        %4106 = vrot.lane.b32.xlu0 %v4019, 96
        %v4107 = vpop.permute.xlu0 %4106
        %4108 = vrot.lane.b32.xlu0 %v4020, 96
        %v4109 = vpop.permute.xlu0 %4108
        %4110 = vrot.lane.b32.xlu0 %v4021, 96
        %v4111 = vpop.permute.xlu0 %4110
        %4112 = vrot.lane.b32.xlu0 %v4022, 96
        %v4113 = vpop.permute.xlu0 %4112
        %4114 = vrot.lane.b32.xlu0 %v4023, 96
        %v4115 = vpop.permute.xlu0 %4114
        %4116 = vrot.lane.b32.xlu0 %v4024, 96
        %v4117 = vpop.permute.xlu0 %4116
        %4118 = vrot.lane.b32.xlu0 %v4025, 96
        %v4119 = vpop.permute.xlu0 %4118
        %4120 = vrot.lane.b32.xlu0 %v4026, 96
        %v4121 = vpop.permute.xlu0 %4120
        %4122 = vrot.lane.b32.xlu0 %v4027, 96
        %v4123 = vpop.permute.xlu0 %4122
        %4156 = vst.msk [vmem:[#allocation5 + $0x8] sm:$0xff] %vm3514, %v4061
        %4157 = vst.msk [vmem:[#allocation5 + $0x20] sm:$0xff] %vm3514, %v4063
        %4158 = vst.msk [vmem:[#allocation5 + $0x38] sm:$0xff] %vm3514, %v4065
        %4159 = vst.msk [vmem:[#allocation5 + $0x50] sm:$0xff] %vm3514, %v4067
        %4160 = vst.msk [vmem:[#allocation5 + $0x68] sm:$0xff] %vm3514, %v4069
        %4161 = vst.msk [vmem:[#allocation5 + $0x80] sm:$0xff] %vm3514, %v4071
        %4162 = vst.msk [vmem:[#allocation5 + $0x98] sm:$0xff] %vm3514, %v4073
        %4163 = vst.msk [vmem:[#allocation5 + $0xb0] sm:$0xff] %vm3514, %v4075
        %4164 = vst.msk [vmem:[#allocation5 + $0xc8] sm:$0xff] %vm3514, %v4077
        %4165 = vst.msk [vmem:[#allocation5 + $0xe0] sm:$0xff] %vm3514, %v4079
        %4166 = vst.msk [vmem:[#allocation5 + $0xf8] sm:$0xff] %vm3514, %v4081
        %4167 = vst.msk [vmem:[#allocation5 + $0x110] sm:$0xff] %vm3514, %v4083
        %4168 = vst.msk [vmem:[#allocation5 + $0x128] sm:$0xff] %vm3514, %v4085
        %4169 = vst.msk [vmem:[#allocation5 + $0x140] sm:$0xff] %vm3514, %v4087
        %4170 = vst.msk [vmem:[#allocation5 + $0x158] sm:$0xff] %vm3514, %v4089
        %4171 = vst.msk [vmem:[#allocation5 + $0x170] sm:$0xff] %vm3514, %v4091
        %4172 = vst.msk [vmem:[#allocation5 + $0x188] sm:$0xff] %vm3514, %v4093
        %4173 = vst.msk [vmem:[#allocation5 + $0x1a0] sm:$0xff] %vm3514, %v4095
        %4174 = vst.msk [vmem:[#allocation5 + $0x1b8] sm:$0xff] %vm3514, %v4097
        %4175 = vst.msk [vmem:[#allocation5 + $0x1d0] sm:$0xff] %vm3514, %v4099
        %4176 = vst.msk [vmem:[#allocation5 + $0x1e8] sm:$0xff] %vm3514, %v4101
        %4177 = vst.msk [vmem:[#allocation5 + $0x200] sm:$0xff] %vm3514, %v4103
        %4178 = vst.msk [vmem:[#allocation5 + $0x218] sm:$0xff] %vm3514, %v4105
        %4179 = vst.msk [vmem:[#allocation5 + $0x230] sm:$0xff] %vm3514, %v4107
        %4180 = vst.msk [vmem:[#allocation5 + $0x248] sm:$0xff] %vm3514, %v4109
        %4181 = vst.msk [vmem:[#allocation5 + $0x260] sm:$0xff] %vm3514, %v4111
        %4182 = vst.msk [vmem:[#allocation5 + $0x278] sm:$0xff] %vm3514, %v4113
        %4183 = vst.msk [vmem:[#allocation5 + $0x290] sm:$0xff] %vm3514, %v4115
        %4184 = vst.msk [vmem:[#allocation5 + $0x2a8] sm:$0xff] %vm3514, %v4117
        %4185 = vst.msk [vmem:[#allocation5 + $0x2c0] sm:$0xff] %vm3514, %v4119
        %4186 = vst.msk [vmem:[#allocation5 + $0x2d8] sm:$0xff] %vm3514, %v4121
        %4187 = vst.msk [vmem:[#allocation5 + $0x2f0] sm:$0xff] %vm3514, %v4123
        %v4188 = vld [vmem:[%s3803 + $0x2] sm:$0xff]
        %v4189 = vld [vmem:[%s3803 + $0xa] sm:$0xff]
        %v4190 = vld [vmem:[%s3803 + $0x1a] sm:$0xff]
        %v4191 = vld [vmem:[%s3803 + $0x22] sm:$0xff]
        %v4192 = vld [vmem:[%s3803 + $0x32] sm:$0xff]
        %v4193 = vld [vmem:[%s3803 + $0x3a] sm:$0xff]
        %v4194 = vld [vmem:[%s3803 + $0x4a] sm:$0xff]
        %v4195 = vld [vmem:[%s3803 + $0x52] sm:$0xff]
        %v4196 = vld [vmem:[%s3803 + $0x62] sm:$0xff]
        %v4197 = vld [vmem:[%s3803 + $0x6a] sm:$0xff]
        %v4198 = vld [vmem:[%s3803 + $0x7a] sm:$0xff]
        %v4199 = vld [vmem:[%s3803 + $0x82] sm:$0xff]
        %v4200 = vld [vmem:[%s3803 + $0x92] sm:$0xff]
        %v4201 = vld [vmem:[%s3803 + $0x9a] sm:$0xff]
        %v4202 = vld [vmem:[%s3803 + $0xaa] sm:$0xff]
        %v4203 = vld [vmem:[%s3803 + $0xb2] sm:$0xff]
        %v4204 = vld [vmem:[%s3803 + $0xc2] sm:$0xff]
        %v4205 = vld [vmem:[%s3803 + $0xca] sm:$0xff]
        %v4206 = vld [vmem:[%s3803 + $0xda] sm:$0xff]
        %v4207 = vld [vmem:[%s3803 + $0xe2] sm:$0xff]
        %v4208 = vld [vmem:[%s3803 + $0xf2] sm:$0xff]
        %v4209 = vld [vmem:[%s3803 + $0xfa] sm:$0xff]
        %v4210 = vld [vmem:[%s3803 + $0x10a] sm:$0xff]
        %v4211 = vld [vmem:[%s3803 + $0x112] sm:$0xff]
        %v4212 = vld [vmem:[%s3803 + $0x122] sm:$0xff]
        %v4213 = vld [vmem:[%s3803 + $0x12a] sm:$0xff]
        %v4214 = vld [vmem:[%s3803 + $0x13a] sm:$0xff]
        %v4215 = vld [vmem:[%s3803 + $0x142] sm:$0xff]
        %v4216 = vld [vmem:[%s3803 + $0x152] sm:$0xff]
        %v4217 = vld [vmem:[%s3803 + $0x15a] sm:$0xff]
        %v4218 = vld [vmem:[%s3803 + $0x16a] sm:$0xff]
        %v4219 = vld [vmem:[%s3803 + $0x172] sm:$0xff]
        %4220 = vst.msk [vmem:[#allocation5 + $0x10] sm:$0xff] %vm384, %v4188
        %4221 = vst.msk [vmem:[#allocation5 + $0x28] sm:$0xff] %vm384, %v4189
        %4222 = vst.msk [vmem:[#allocation5 + $0x40] sm:$0xff] %vm384, %v4190
        %4223 = vst.msk [vmem:[#allocation5 + $0x58] sm:$0xff] %vm384, %v4191
        %4224 = vst.msk [vmem:[#allocation5 + $0x70] sm:$0xff] %vm384, %v4192
        %4225 = vst.msk [vmem:[#allocation5 + $0x88] sm:$0xff] %vm384, %v4193
        %4226 = vst.msk [vmem:[#allocation5 + $0xa0] sm:$0xff] %vm384, %v4194
        %4227 = vst.msk [vmem:[#allocation5 + $0xb8] sm:$0xff] %vm384, %v4195
        %4228 = vst.msk [vmem:[#allocation5 + $0xd0] sm:$0xff] %vm384, %v4196
        %4229 = vst.msk [vmem:[#allocation5 + $0xe8] sm:$0xff] %vm384, %v4197
        %4230 = vst.msk [vmem:[#allocation5 + $0x100] sm:$0xff] %vm384, %v4198
        %4231 = vst.msk [vmem:[#allocation5 + $0x118] sm:$0xff] %vm384, %v4199
        %4232 = vst.msk [vmem:[#allocation5 + $0x130] sm:$0xff] %vm384, %v4200
        %4233 = vst.msk [vmem:[#allocation5 + $0x148] sm:$0xff] %vm384, %v4201
        %4234 = vst.msk [vmem:[#allocation5 + $0x160] sm:$0xff] %vm384, %v4202
        %4235 = vst.msk [vmem:[#allocation5 + $0x178] sm:$0xff] %vm384, %v4203
        %4236 = vst.msk [vmem:[#allocation5 + $0x190] sm:$0xff] %vm384, %v4204
        %4237 = vst.msk [vmem:[#allocation5 + $0x1a8] sm:$0xff] %vm384, %v4205
        %4238 = vst.msk [vmem:[#allocation5 + $0x1c0] sm:$0xff] %vm384, %v4206
        %4239 = vst.msk [vmem:[#allocation5 + $0x1d8] sm:$0xff] %vm384, %v4207
        %4240 = vst.msk [vmem:[#allocation5 + $0x1f0] sm:$0xff] %vm384, %v4208
        %4241 = vst.msk [vmem:[#allocation5 + $0x208] sm:$0xff] %vm384, %v4209
        %4242 = vst.msk [vmem:[#allocation5 + $0x220] sm:$0xff] %vm384, %v4210
        %4243 = vst.msk [vmem:[#allocation5 + $0x238] sm:$0xff] %vm384, %v4211
        %4244 = vst.msk [vmem:[#allocation5 + $0x250] sm:$0xff] %vm384, %v4212
        %4245 = vst.msk [vmem:[#allocation5 + $0x268] sm:$0xff] %vm384, %v4213
        %4246 = vst.msk [vmem:[#allocation5 + $0x280] sm:$0xff] %vm384, %v4214
        %4247 = vst.msk [vmem:[#allocation5 + $0x298] sm:$0xff] %vm384, %v4215
        %4248 = vst.msk [vmem:[#allocation5 + $0x2b0] sm:$0xff] %vm384, %v4216
        %4249 = vst.msk [vmem:[#allocation5 + $0x2c8] sm:$0xff] %vm384, %v4217
        %4250 = vst.msk [vmem:[#allocation5 + $0x2e0] sm:$0xff] %vm384, %v4218
        %4251 = vst.msk [vmem:[#allocation5 + $0x2f8] sm:$0xff] %vm384, %v4219
        %v4252 = vld [vmem:[#allocation5] sm:$0xff]
        %v4253 = vld [vmem:[#allocation5 + $0x8] sm:$0xff]
        %v4254 = vld [vmem:[#allocation5 + $0x10] sm:$0xff]
        %v4255 = vld [vmem:[#allocation5 + $0x18] sm:$0xff]
        %v4256 = vld [vmem:[#allocation5 + $0x20] sm:$0xff]
        %v4257 = vld [vmem:[#allocation5 + $0x28] sm:$0xff]
        %v4258 = vld [vmem:[#allocation5 + $0x30] sm:$0xff]
        %v4259 = vld [vmem:[#allocation5 + $0x38] sm:$0xff]
        %v4260 = vld [vmem:[#allocation5 + $0x40] sm:$0xff]
        %v4261 = vld [vmem:[#allocation5 + $0x48] sm:$0xff]
        %v4262 = vld [vmem:[#allocation5 + $0x50] sm:$0xff]
        %v4263 = vld [vmem:[#allocation5 + $0x58] sm:$0xff]
        %v4264 = vld [vmem:[#allocation5 + $0x60] sm:$0xff]
        %v4265 = vld [vmem:[#allocation5 + $0x68] sm:$0xff]
        %v4266 = vld [vmem:[#allocation5 + $0x70] sm:$0xff]
        %v4267 = vld [vmem:[#allocation5 + $0x78] sm:$0xff]
        %v4268 = vld [vmem:[#allocation5 + $0x80] sm:$0xff]
        %v4269 = vld [vmem:[#allocation5 + $0x88] sm:$0xff]
        %v4270 = vld [vmem:[#allocation5 + $0x90] sm:$0xff]
        %v4271 = vld [vmem:[#allocation5 + $0x98] sm:$0xff]
        %v4272 = vld [vmem:[#allocation5 + $0xa0] sm:$0xff]
        %v4273 = vld [vmem:[#allocation5 + $0xa8] sm:$0xff]
        %v4274 = vld [vmem:[#allocation5 + $0xb0] sm:$0xff]
        %v4275 = vld [vmem:[#allocation5 + $0xb8] sm:$0xff]
        %v4276 = vld [vmem:[#allocation5 + $0xc0] sm:$0xff]
        %v4277 = vld [vmem:[#allocation5 + $0xc8] sm:$0xff]
        %v4278 = vld [vmem:[#allocation5 + $0xd0] sm:$0xff]
        %v4279 = vld [vmem:[#allocation5 + $0xd8] sm:$0xff]
        %v4280 = vld [vmem:[#allocation5 + $0xe0] sm:$0xff]
        %v4281 = vld [vmem:[#allocation5 + $0xe8] sm:$0xff]
        %v4282 = vld [vmem:[#allocation5 + $0xf0] sm:$0xff]
        %v4283 = vld [vmem:[#allocation5 + $0xf8] sm:$0xff]
        %v4284 = vld [vmem:[#allocation5 + $0x100] sm:$0xff]
        %v4285 = vld [vmem:[#allocation5 + $0x108] sm:$0xff]
        %v4286 = vld [vmem:[#allocation5 + $0x110] sm:$0xff]
        %v4287 = vld [vmem:[#allocation5 + $0x118] sm:$0xff]
        %v4288 = vld [vmem:[#allocation5 + $0x120] sm:$0xff]
        %v4289 = vld [vmem:[#allocation5 + $0x128] sm:$0xff]
        %v4290 = vld [vmem:[#allocation5 + $0x130] sm:$0xff]
        %v4291 = vld [vmem:[#allocation5 + $0x138] sm:$0xff]
        %v4292 = vld [vmem:[#allocation5 + $0x140] sm:$0xff]
        %v4293 = vld [vmem:[#allocation5 + $0x148] sm:$0xff]
        %v4294 = vld [vmem:[#allocation5 + $0x150] sm:$0xff]
        %v4295 = vld [vmem:[#allocation5 + $0x158] sm:$0xff]
        %v4296 = vld [vmem:[#allocation5 + $0x160] sm:$0xff]
        %v4297 = vld [vmem:[#allocation5 + $0x168] sm:$0xff]
        %v4298 = vld [vmem:[#allocation5 + $0x170] sm:$0xff]
        %v4299 = vld [vmem:[#allocation5 + $0x178] sm:$0xff]
        %v4300 = vld [vmem:[#allocation5 + $0x180] sm:$0xff]
        %v4301 = vld [vmem:[#allocation5 + $0x188] sm:$0xff]
        %v4302 = vld [vmem:[#allocation5 + $0x190] sm:$0xff]
        %v4303 = vld [vmem:[#allocation5 + $0x198] sm:$0xff]
        %v4304 = vld [vmem:[#allocation5 + $0x1a0] sm:$0xff]
        %v4305 = vld [vmem:[#allocation5 + $0x1a8] sm:$0xff]
        %v4306 = vld [vmem:[#allocation5 + $0x1b0] sm:$0xff]
        %v4307 = vld [vmem:[#allocation5 + $0x1b8] sm:$0xff]
        %v4308 = vld [vmem:[#allocation5 + $0x1c0] sm:$0xff]
        %v4309 = vld [vmem:[#allocation5 + $0x1c8] sm:$0xff]
        %v4310 = vld [vmem:[#allocation5 + $0x1d0] sm:$0xff]
        %v4311 = vld [vmem:[#allocation5 + $0x1d8] sm:$0xff]
        %v4312 = vld [vmem:[#allocation5 + $0x1e0] sm:$0xff]
        %v4313 = vld [vmem:[#allocation5 + $0x1e8] sm:$0xff]
        %v4314 = vld [vmem:[#allocation5 + $0x1f0] sm:$0xff]
        %v4315 = vld [vmem:[#allocation5 + $0x1f8] sm:$0xff]
        %v4316 = vld [vmem:[#allocation5 + $0x200] sm:$0xff]
        %v4317 = vld [vmem:[#allocation5 + $0x208] sm:$0xff]
        %v4318 = vld [vmem:[#allocation5 + $0x210] sm:$0xff]
        %v4319 = vld [vmem:[#allocation5 + $0x218] sm:$0xff]
        %v4320 = vld [vmem:[#allocation5 + $0x220] sm:$0xff]
        %v4321 = vld [vmem:[#allocation5 + $0x228] sm:$0xff]
        %v4322 = vld [vmem:[#allocation5 + $0x230] sm:$0xff]
        %v4323 = vld [vmem:[#allocation5 + $0x238] sm:$0xff]
        %v4324 = vld [vmem:[#allocation5 + $0x240] sm:$0xff]
        %v4325 = vld [vmem:[#allocation5 + $0x248] sm:$0xff]
        %v4326 = vld [vmem:[#allocation5 + $0x250] sm:$0xff]
        %v4327 = vld [vmem:[#allocation5 + $0x258] sm:$0xff]
        %v4328 = vld [vmem:[#allocation5 + $0x260] sm:$0xff]
        %v4329 = vld [vmem:[#allocation5 + $0x268] sm:$0xff]
        %v4330 = vld [vmem:[#allocation5 + $0x270] sm:$0xff]
        %v4331 = vld [vmem:[#allocation5 + $0x278] sm:$0xff]
        %v4332 = vld [vmem:[#allocation5 + $0x280] sm:$0xff]
        %v4333 = vld [vmem:[#allocation5 + $0x288] sm:$0xff]
        %v4334 = vld [vmem:[#allocation5 + $0x290] sm:$0xff]
        %v4335 = vld [vmem:[#allocation5 + $0x298] sm:$0xff]
        %v4336 = vld [vmem:[#allocation5 + $0x2a0] sm:$0xff]
        %v4337 = vld [vmem:[#allocation5 + $0x2a8] sm:$0xff]
        %v4338 = vld [vmem:[#allocation5 + $0x2b0] sm:$0xff]
        %v4339 = vld [vmem:[#allocation5 + $0x2b8] sm:$0xff]
        %v4340 = vld [vmem:[#allocation5 + $0x2c0] sm:$0xff]
        %v4341 = vld [vmem:[#allocation5 + $0x2c8] sm:$0xff]
        %v4342 = vld [vmem:[#allocation5 + $0x2d0] sm:$0xff]
        %v4343 = vld [vmem:[#allocation5 + $0x2d8] sm:$0xff]
        %v4344 = vld [vmem:[#allocation5 + $0x2e0] sm:$0xff]
        %v4345 = vld [vmem:[#allocation5 + $0x2e8] sm:$0xff]
        %v4346 = vld [vmem:[#allocation5 + $0x2f0] sm:$0xff]
        %v4347 = vld [vmem:[#allocation5 + $0x2f8] sm:$0xff]
        %v4348 = vld [vmem:[%s3] sm:$0xff]
        %v4349 = vld [vmem:[%s3 + $0x8] sm:$0xff]
        %v4350 = vld [vmem:[%s3 + $0x10] sm:$0xff]
        %v4351 = vld [vmem:[%s3 + $0x18] sm:$0xff]
        %v4352 = vld [vmem:[%s3 + $0x20] sm:$0xff]
        %v4353 = vld [vmem:[%s3 + $0x28] sm:$0xff]
        %v4354 = vld [vmem:[%s3 + $0x30] sm:$0xff]
        %v4355 = vld [vmem:[%s3 + $0x38] sm:$0xff]
        %v4356 = vld [vmem:[%s3 + $0x40] sm:$0xff]
        %v4357 = vld [vmem:[%s3 + $0x48] sm:$0xff]
        %v4358 = vld [vmem:[%s3 + $0x50] sm:$0xff]
        %v4359 = vld [vmem:[%s3 + $0x58] sm:$0xff]
        %v4360 = vld [vmem:[%s3 + $0x60] sm:$0xff]
        %v4361 = vld [vmem:[%s3 + $0x68] sm:$0xff]
        %v4362 = vld [vmem:[%s3 + $0x70] sm:$0xff]
        %v4363 = vld [vmem:[%s3 + $0x78] sm:$0xff]
        %v4364 = vld [vmem:[%s3 + $0x80] sm:$0xff]
        %v4365 = vld [vmem:[%s3 + $0x88] sm:$0xff]
        %v4366 = vld [vmem:[%s3 + $0x90] sm:$0xff]
        %v4367 = vld [vmem:[%s3 + $0x98] sm:$0xff]
        %v4368 = vld [vmem:[%s3 + $0xa0] sm:$0xff]
        %v4369 = vld [vmem:[%s3 + $0xa8] sm:$0xff]
        %v4370 = vld [vmem:[%s3 + $0xb0] sm:$0xff]
        %v4371 = vld [vmem:[%s3 + $0xb8] sm:$0xff]
        %v4372 = vld [vmem:[%s3 + $0xc0] sm:$0xff]
        %v4373 = vld [vmem:[%s3 + $0xc8] sm:$0xff]
        %v4374 = vld [vmem:[%s3 + $0xd0] sm:$0xff]
        %v4375 = vld [vmem:[%s3 + $0xd8] sm:$0xff]
        %v4376 = vld [vmem:[%s3 + $0xe0] sm:$0xff]
        %v4377 = vld [vmem:[%s3 + $0xe8] sm:$0xff]
        %v4378 = vld [vmem:[%s3 + $0xf0] sm:$0xff]
        %v4379 = vld [vmem:[%s3 + $0xf8] sm:$0xff]
        %v4380 = vld [vmem:[%s3 + $0x100] sm:$0xff]
        %v4381 = vld [vmem:[%s3 + $0x108] sm:$0xff]
        %v4382 = vld [vmem:[%s3 + $0x110] sm:$0xff]
        %v4383 = vld [vmem:[%s3 + $0x118] sm:$0xff]
        %v4384 = vld [vmem:[%s4] sm:$0x1]
        %v4386 = vlaneseq
        %v4387 = vshrl.u32 %v4386, 7
        %v4388 = vsub.s32 0, %v4387
        %v4389 = vrot.slane %v4384, %v4388
        %v4392 = vsel %vm384, %v4254, 0
        %v4395 = vsel %vm384, %v4257, 0
        %v4398 = vsel %vm384, %v4260, 0
        %v4401 = vsel %vm384, %v4263, 0
        %v4404 = vsel %vm384, %v4266, 0
        %v4407 = vsel %vm384, %v4269, 0
        %v4410 = vsel %vm384, %v4272, 0
        %v4413 = vsel %vm384, %v4275, 0
        %v4416 = vsel %vm384, %v4278, 0
        %v4419 = vsel %vm384, %v4281, 0
        %v4422 = vsel %vm384, %v4284, 0
        %v4425 = vsel %vm384, %v4287, 0
        %v4428 = vsel %vm384, %v4290, 0
        %v4431 = vsel %vm384, %v4293, 0
        %v4434 = vsel %vm384, %v4296, 0
        %v4437 = vsel %vm384, %v4299, 0
        %v4440 = vsel %vm384, %v4302, 0
        %v4443 = vsel %vm384, %v4305, 0
        %v4446 = vsel %vm384, %v4308, 0
        %v4449 = vsel %vm384, %v4311, 0
        %v4452 = vsel %vm384, %v4314, 0
        %v4455 = vsel %vm384, %v4317, 0
        %v4458 = vsel %vm384, %v4320, 0
        %v4461 = vsel %vm384, %v4323, 0
        %v4464 = vsel %vm384, %v4326, 0
        %v4467 = vsel %vm384, %v4329, 0
        %v4470 = vsel %vm384, %v4332, 0
        %v4473 = vsel %vm384, %v4335, 0
        %v4476 = vsel %vm384, %v4338, 0
        %v4479 = vsel %vm384, %v4341, 0
        %v4482 = vsel %vm384, %v4344, 0
        %v4485 = vsel %vm384, %v4347, 0
        %4487 = vmatprep.subr.mxu0 0.0
        %4488 = vmatpush1.msra.mxu0 %v4348
        %4489 = vmatprep.subr.mxu0 0.0
        %4490 = vmatpush1.msra.mxu0 %v4349
        %4491 = vmatprep.subr.mxu0 0.0
        %4492 = vmatpush1.msra.mxu0 %v4350
        %4493 = vmatprep.subr.mxu0 0.0
        %4494 = vmatpush1.msra.mxu0 %v4351
        %4495 = vmatprep.subr.mxu0 0.0
        %4496 = vmatpush1.msra.mxu0 %v4352
        %4497 = vmatprep.subr.mxu0 0.0
        %4498 = vmatpush1.msra.mxu0 %v4353
        %4499 = vmatprep.subr.mxu0 0.0
        %4500 = vmatpush1.msra.mxu0 %v4354
        %4501 = vmatprep.subr.mxu0 0.0
        %4502 = vmatpush1.msra.mxu0 %v4355
        %4503 = vmatprep.subr.mxu0 0.0
        %4504 = vmatpush1.msra.mxu0 %v4356
        %4505 = vmatprep.subr.mxu0 0.0
        %4506 = vmatpush1.msra.mxu0 %v4357
        %4507 = vmatprep.subr.mxu0 0.0
        %4508 = vmatpush1.msra.mxu0 %v4358
        %4509 = vmatprep.subr.mxu0 0.0
        %4510 = vmatpush1.msra.mxu0 %v4359
        %4511 = vmatprep.subr.mxu0 0.0
        %4512 = vmatpush1.msra.mxu0 %v4360
        %4513 = vmatprep.subr.mxu0 0.0
        %4514 = vmatpush1.msra.mxu0 %v4361
        %4515 = vmatprep.subr.mxu0 0.0
        %4516 = vmatpush1.msra.mxu0 %v4362
        %4517 = vmatprep.subr.mxu0 0.0
        %4518 = vmatpush1.msra.mxu0 %v4363
        %4519 = vmatprep.subr.mxu0 0.0
        %4520 = vmatpush1.msra.mxu0 %v4364
        %4521 = vmatprep.subr.mxu0 0.0
        %4522 = vmatpush1.msra.mxu0 %v4365
        %4523 = vmatprep.subr.mxu0 0.0
        %4524 = vmatpush1.msra.mxu0 %v4366
        %4525 = vmatprep.subr.mxu0 0.0
        %4526 = vmatpush1.msra.mxu0 %v4367
        %4527 = vmatprep.subr.mxu0 0.0
        %4528 = vmatpush1.msra.mxu0 %v4368
        %4529 = vmatprep.subr.mxu0 0.0
        %4530 = vmatpush1.msra.mxu0 %v4369
        %4531 = vmatprep.subr.mxu0 0.0
        %4532 = vmatpush1.msra.mxu0 %v4370
        %4533 = vmatprep.subr.mxu0 0.0
        %4534 = vmatpush1.msra.mxu0 %v4371
        %4535 = vmatprep.subr.mxu0 0.0
        %4536 = vmatpush1.msra.mxu0 %v4372
        %4537 = vmatprep.subr.mxu0 0.0
        %4538 = vmatpush1.msra.mxu0 %v4373
        %4539 = vmatprep.subr.mxu0 0.0
        %4540 = vmatpush1.msra.mxu0 %v4374
        %4541 = vmatprep.subr.mxu0 0.0
        %4542 = vmatpush1.msra.mxu0 %v4375
        %4543 = vmatprep.subr.mxu0 0.0
        %4544 = vmatpush1.msra.mxu0 %v4376
        %4545 = vmatprep.subr.mxu0 0.0
        %4546 = vmatpush1.msra.mxu0 %v4377
        %4547 = vmatprep.subr.mxu0 0.0
        %4548 = vmatpush1.msra.mxu0 %v4378
        %4549 = vmatprep.subr.mxu0 0.0
        %4550 = vmatpush1.msra.mxu0 %v4379
        %4551 = vmatprep.mubr.f32.mxu0 %v4253
        %4552 = vmatmul.mubr.f32.gmra.mrb[0].mxu0 %v4252
        %v4553 = vpop.f32.mrb[0].mxu0
        %v4554 = vadd.f32 %v4389, %v4553
        %v4555 = vpop.f32.mrb[0].mxu0
        %4556 = vmatprep.mubr.f32.mxu0 %v4256
        %4557 = vmatmul.mubr.f32.gmra.mrb[0].mxu0 %v4255
        %v4558 = vpop.f32.mrb[0].mxu0
        %v4559 = vadd.f32 %v4389, %v4558
        %v4560 = vpop.f32.mrb[0].mxu0
        %4561 = vmatprep.mubr.f32.mxu0 %v4259
        %4562 = vmatmul.mubr.f32.gmra.mrb[0].mxu0 %v4258
        %v4563 = vpop.f32.mrb[0].mxu0
        %v4564 = vadd.f32 %v4389, %v4563
        %v4565 = vpop.f32.mrb[0].mxu0
        %4566 = vmatprep.mubr.f32.mxu0 %v4262
        %4567 = vmatmul.mubr.f32.gmra.mrb[0].mxu0 %v4261
        %v4568 = vpop.f32.mrb[0].mxu0
        %v4569 = vadd.f32 %v4389, %v4568
        %v4570 = vpop.f32.mrb[0].mxu0
        %4571 = vmatprep.mubr.f32.mxu0 %v4265
        %4572 = vmatmul.mubr.f32.gmra.mrb[0].mxu0 %v4264
        %v4573 = vpop.f32.mrb[0].mxu0
        %v4574 = vadd.f32 %v4389, %v4573
        %v4575 = vpop.f32.mrb[0].mxu0
        %4576 = vmatprep.mubr.f32.mxu0 %v4268
        %4577 = vmatmul.mubr.f32.gmra.mrb[0].mxu0 %v4267
        %v4578 = vpop.f32.mrb[0].mxu0
        %v4579 = vadd.f32 %v4389, %v4578
        %v4580 = vpop.f32.mrb[0].mxu0
        %4581 = vmatprep.mubr.f32.mxu0 %v4271
        %4582 = vmatmul.mubr.f32.gmra.mrb[0].mxu0 %v4270
        %v4583 = vpop.f32.mrb[0].mxu0
        %v4584 = vadd.f32 %v4389, %v4583
        %v4585 = vpop.f32.mrb[0].mxu0
        %4586 = vmatprep.mubr.f32.mxu0 %v4274
        %4587 = vmatmul.mubr.f32.gmra.mrb[0].mxu0 %v4273
        %v4588 = vpop.f32.mrb[0].mxu0
        %v4589 = vadd.f32 %v4389, %v4588
        %v4590 = vpop.f32.mrb[0].mxu0
        %4591 = vmatprep.mubr.f32.mxu0 %v4277
        %4592 = vmatmul.mubr.f32.gmra.mrb[0].mxu0 %v4276
        %v4593 = vpop.f32.mrb[0].mxu0
        %v4594 = vadd.f32 %v4389, %v4593
        %v4595 = vpop.f32.mrb[0].mxu0
        %4596 = vmatprep.mubr.f32.mxu0 %v4280
        %4597 = vmatmul.mubr.f32.gmra.mrb[0].mxu0 %v4279
        %v4598 = vpop.f32.mrb[0].mxu0
        %v4599 = vadd.f32 %v4389, %v4598
        %v4600 = vpop.f32.mrb[0].mxu0
        %4601 = vmatprep.mubr.f32.mxu0 %v4283
        %4602 = vmatmul.mubr.f32.gmra.mrb[0].mxu0 %v4282
        %v4603 = vpop.f32.mrb[0].mxu0
        %v4604 = vadd.f32 %v4389, %v4603
        %v4605 = vpop.f32.mrb[0].mxu0
        %4606 = vmatprep.mubr.f32.mxu0 %v4286
        %4607 = vmatmul.mubr.f32.gmra.mrb[0].mxu0 %v4285
        %v4608 = vpop.f32.mrb[0].mxu0
        %v4609 = vadd.f32 %v4389, %v4608
        %v4610 = vpop.f32.mrb[0].mxu0
        %4611 = vmatprep.mubr.f32.mxu0 %v4289
        %4612 = vmatmul.mubr.f32.gmra.mrb[0].mxu0 %v4288
        %v4613 = vpop.f32.mrb[0].mxu0
        %v4614 = vadd.f32 %v4389, %v4613
        %v4615 = vpop.f32.mrb[0].mxu0
        %4616 = vmatprep.mubr.f32.mxu0 %v4292
        %4617 = vmatmul.mubr.f32.gmra.mrb[0].mxu0 %v4291
        %v4618 = vpop.f32.mrb[0].mxu0
        %v4619 = vadd.f32 %v4389, %v4618
        %v4620 = vpop.f32.mrb[0].mxu0
        %4621 = vmatprep.mubr.f32.mxu0 %v4295
        %4622 = vmatmul.mubr.f32.gmra.mrb[0].mxu0 %v4294
        %v4623 = vpop.f32.mrb[0].mxu0
        %v4624 = vadd.f32 %v4389, %v4623
        %v4625 = vpop.f32.mrb[0].mxu0
        %4626 = vmatprep.mubr.f32.mxu0 %v4298
        %4627 = vmatmul.mubr.f32.gmra.mrb[0].mxu0 %v4297
        %v4628 = vpop.f32.mrb[0].mxu0
        %v4629 = vadd.f32 %v4389, %v4628
        %v4630 = vpop.f32.mrb[0].mxu0
        %4631 = vmatprep.mubr.f32.mxu0 %v4301
        %4632 = vmatmul.mubr.f32.gmra.mrb[0].mxu0 %v4300
        %v4633 = vpop.f32.mrb[0].mxu0
        %v4634 = vadd.f32 %v4389, %v4633
        %v4635 = vpop.f32.mrb[0].mxu0
        %4636 = vmatprep.mubr.f32.mxu0 %v4304
        %4637 = vmatmul.mubr.f32.gmra.mrb[0].mxu0 %v4303
        %v4638 = vpop.f32.mrb[0].mxu0
        %v4639 = vadd.f32 %v4389, %v4638
        %v4640 = vpop.f32.mrb[0].mxu0
        %4641 = vmatprep.mubr.f32.mxu0 %v4307
        %4642 = vmatmul.mubr.f32.gmra.mrb[0].mxu0 %v4306
        %v4643 = vpop.f32.mrb[0].mxu0
        %v4644 = vadd.f32 %v4389, %v4643
        %v4645 = vpop.f32.mrb[0].mxu0
        %4646 = vmatprep.mubr.f32.mxu0 %v4310
        %4647 = vmatmul.mubr.f32.gmra.mrb[0].mxu0 %v4309
        %v4648 = vpop.f32.mrb[0].mxu0
        %v4649 = vadd.f32 %v4389, %v4648
        %v4650 = vpop.f32.mrb[0].mxu0
        %4651 = vmatprep.mubr.f32.mxu0 %v4313
        %4652 = vmatmul.mubr.f32.gmra.mrb[0].mxu0 %v4312
        %v4653 = vpop.f32.mrb[0].mxu0
        %v4654 = vadd.f32 %v4389, %v4653
        %v4655 = vpop.f32.mrb[0].mxu0
        %4656 = vmatprep.mubr.f32.mxu0 %v4316
        %4657 = vmatmul.mubr.f32.gmra.mrb[0].mxu0 %v4315
        %v4658 = vpop.f32.mrb[0].mxu0
        %v4659 = vadd.f32 %v4389, %v4658
        %v4660 = vpop.f32.mrb[0].mxu0
        %4661 = vmatprep.mubr.f32.mxu0 %v4319
        %4662 = vmatmul.mubr.f32.gmra.mrb[0].mxu0 %v4318
        %v4663 = vpop.f32.mrb[0].mxu0
        %v4664 = vadd.f32 %v4389, %v4663
        %v4665 = vpop.f32.mrb[0].mxu0
        %4666 = vmatprep.mubr.f32.mxu0 %v4322
        %4667 = vmatmul.mubr.f32.gmra.mrb[0].mxu0 %v4321
        %v4668 = vpop.f32.mrb[0].mxu0
        %v4669 = vadd.f32 %v4389, %v4668
        %v4670 = vpop.f32.mrb[0].mxu0
        %4671 = vmatprep.mubr.f32.mxu0 %v4325
        %4672 = vmatmul.mubr.f32.gmra.mrb[0].mxu0 %v4324
        %v4673 = vpop.f32.mrb[0].mxu0
        %v4674 = vadd.f32 %v4389, %v4673
        %v4675 = vpop.f32.mrb[0].mxu0
        %4676 = vmatprep.mubr.f32.mxu0 %v4328
        %4677 = vmatmul.mubr.f32.gmra.mrb[0].mxu0 %v4327
        %v4678 = vpop.f32.mrb[0].mxu0
        %v4679 = vadd.f32 %v4389, %v4678
        %v4680 = vpop.f32.mrb[0].mxu0
        %4681 = vmatprep.mubr.f32.mxu0 %v4331
        %4682 = vmatmul.mubr.f32.gmra.mrb[0].mxu0 %v4330
        %v4683 = vpop.f32.mrb[0].mxu0
        %v4684 = vadd.f32 %v4389, %v4683
        %v4685 = vpop.f32.mrb[0].mxu0
        %4686 = vmatprep.mubr.f32.mxu0 %v4334
        %4687 = vmatmul.mubr.f32.gmra.mrb[0].mxu0 %v4333
        %v4688 = vpop.f32.mrb[0].mxu0
        %v4689 = vadd.f32 %v4389, %v4688
        %v4690 = vpop.f32.mrb[0].mxu0
        %4691 = vmatprep.mubr.f32.mxu0 %v4337
        %4692 = vmatmul.mubr.f32.gmra.mrb[0].mxu0 %v4336
        %v4693 = vpop.f32.mrb[0].mxu0
        %v4694 = vadd.f32 %v4389, %v4693
        %v4695 = vpop.f32.mrb[0].mxu0
        %4696 = vmatprep.mubr.f32.mxu0 %v4340
        %4697 = vmatmul.mubr.f32.gmra.mrb[0].mxu0 %v4339
        %v4698 = vpop.f32.mrb[0].mxu0
        %v4699 = vadd.f32 %v4389, %v4698
        %v4700 = vpop.f32.mrb[0].mxu0
        %4701 = vmatprep.mubr.f32.mxu0 %v4343
        %4702 = vmatmul.mubr.f32.gmra.mrb[0].mxu0 %v4342
        %v4703 = vpop.f32.mrb[0].mxu0
        %v4704 = vadd.f32 %v4389, %v4703
        %v4705 = vpop.f32.mrb[0].mxu0
        %4706 = vmatprep.mubr.f32.mxu0 %v4346
        %4707 = vmatmul.mubr.f32.gmra.mrb[0].mxu0 %v4345
        %v4708 = vpop.f32.mrb[0].mxu0
        %v4709 = vadd.f32 %v4389, %v4708
        %v4710 = vpop.f32.mrb[0].mxu0
        %4711 = vdwg.mxu0
        %4712 = vmatprep.subr.mxu0 0.0
        %4713 = vmatpush1.msra.mxu0 %v4380
        %4714 = vmatprep.subr.mxu0 0.0
        %4715 = vmatpush1.msra.mxu0 %v4381
        %4716 = vmatprep.subr.mxu0 0.0
        %4717 = vmatpush1.msra.mxu0 %v4382
        %4718 = vmatprep.subr.mxu0 0.0
        %4719 = vmatpush1.msra.mxu0 %v4383
        %4720 = vmatprep.subr.mxu0 0.0
        %4721 = vmatpush1.msra.mxu0 0.0
        %4722 = vmatprep.subr.mxu0 0.0
        %4723 = vmatpush1.msra.mxu0 0.0
        %4724 = vmatprep.subr.mxu0 0.0
        %4725 = vmatpush1.msra.mxu0 0.0
        %4726 = vmatprep.subr.mxu0 0.0
        %4727 = vmatpush1.msra.mxu0 0.0
        %4728 = vmatprep.subr.mxu0 0.0
        %4729 = vmatpush1.msra.mxu0 0.0
        %4730 = vmatprep.subr.mxu0 0.0
        %4731 = vmatpush1.msra.mxu0 0.0
        %4732 = vmatprep.subr.mxu0 0.0
        %4733 = vmatpush1.msra.mxu0 0.0
        %4734 = vmatprep.subr.mxu0 0.0
        %4735 = vmatpush1.msra.mxu0 0.0
        %4736 = vmatprep.subr.mxu0 0.0
        %4737 = vmatpush1.msra.mxu0 0.0
        %4738 = vmatprep.subr.mxu0 0.0
        %4739 = vmatpush1.msra.mxu0 0.0
        %4740 = vmatprep.subr.mxu0 0.0
        %4741 = vmatpush1.msra.mxu0 0.0
        %4742 = vmatprep.subr.mxu0 0.0
        %4743 = vmatpush1.msra.mxu0 0.0
        %4744 = vmatprep.subr.mxu0 0.0
        %4745 = vmatpush1.msra.mxu0 0.0
        %4746 = vmatprep.subr.mxu0 0.0
        %4747 = vmatpush1.msra.mxu0 0.0
        %4748 = vmatprep.subr.mxu0 0.0
        %4749 = vmatpush1.msra.mxu0 0.0
        %4750 = vmatprep.subr.mxu0 0.0
        %4751 = vmatpush1.msra.mxu0 0.0
        %4752 = vmatprep.subr.mxu0 0.0
        %4753 = vmatpush1.msra.mxu0 0.0
        %4754 = vmatprep.subr.mxu0 0.0
        %4755 = vmatpush1.msra.mxu0 0.0
        %4756 = vmatprep.subr.mxu0 0.0
        %4757 = vmatpush1.msra.mxu0 0.0
        %4758 = vmatprep.subr.mxu0 0.0
        %4759 = vmatpush1.msra.mxu0 0.0
        %4760 = vmatprep.subr.mxu0 0.0
        %4761 = vmatpush1.msra.mxu0 0.0
        %4762 = vmatprep.subr.mxu0 0.0
        %4763 = vmatpush1.msra.mxu0 0.0
        %4764 = vmatprep.subr.mxu0 0.0
        %4765 = vmatpush1.msra.mxu0 0.0
        %4766 = vmatprep.subr.mxu0 0.0
        %4767 = vmatpush1.msra.mxu0 0.0
        %4768 = vmatprep.subr.mxu0 0.0
        %4769 = vmatpush1.msra.mxu0 0.0
        %4770 = vmatprep.subr.mxu0 0.0
        %4771 = vmatpush1.msra.mxu0 0.0
        %4772 = vmatprep.subr.mxu0 0.0
        %4773 = vmatpush1.msra.mxu0 0.0
        %4774 = vmatprep.subr.mxu0 0.0
        %4775 = vmatpush1.msra.mxu0 0.0
        %4776 = vmatprep.mubr.f32.mxu0 0.0
        %4777 = vmatmul.mubr.f32.gmra.mrb[0].mxu0 %v4392
        %v4778 = vpop.f32.mrb[0].mxu0
        %v4779 = vadd.f32 %v4554, %v4778
        %v4780 = vpop.f32.mrb[0].mxu0
        %4781 = vmatprep.mubr.f32.mxu0 0.0
        %4782 = vmatmul.mubr.f32.gmra.mrb[0].mxu0 %v4395
        %v4783 = vpop.f32.mrb[0].mxu0
        %v4784 = vadd.f32 %v4559, %v4783
        %v4785 = vpop.f32.mrb[0].mxu0
        %4786 = vmatprep.mubr.f32.mxu0 0.0
        %4787 = vmatmul.mubr.f32.gmra.mrb[0].mxu0 %v4398
        %v4788 = vpop.f32.mrb[0].mxu0
        %v4789 = vadd.f32 %v4564, %v4788
        %v4790 = vpop.f32.mrb[0].mxu0
        %4791 = vmatprep.mubr.f32.mxu0 0.0
        %4792 = vmatmul.mubr.f32.gmra.mrb[0].mxu0 %v4401
        %v4793 = vpop.f32.mrb[0].mxu0
        %v4794 = vadd.f32 %v4569, %v4793
        %v4795 = vpop.f32.mrb[0].mxu0
        %4796 = vmatprep.mubr.f32.mxu0 0.0
        %4797 = vmatmul.mubr.f32.gmra.mrb[0].mxu0 %v4404
        %v4798 = vpop.f32.mrb[0].mxu0
        %v4799 = vadd.f32 %v4574, %v4798
        %v4800 = vpop.f32.mrb[0].mxu0
        %4801 = vmatprep.mubr.f32.mxu0 0.0
        %4802 = vmatmul.mubr.f32.gmra.mrb[0].mxu0 %v4407
        %v4803 = vpop.f32.mrb[0].mxu0
        %v4804 = vadd.f32 %v4579, %v4803
        %v4805 = vpop.f32.mrb[0].mxu0
        %4806 = vmatprep.mubr.f32.mxu0 0.0
        %4807 = vmatmul.mubr.f32.gmra.mrb[0].mxu0 %v4410
        %v4808 = vpop.f32.mrb[0].mxu0
        %v4809 = vadd.f32 %v4584, %v4808
        %v4810 = vpop.f32.mrb[0].mxu0
        %4811 = vmatprep.mubr.f32.mxu0 0.0
        %4812 = vmatmul.mubr.f32.gmra.mrb[0].mxu0 %v4413
        %v4813 = vpop.f32.mrb[0].mxu0
        %v4814 = vadd.f32 %v4589, %v4813
        %v4815 = vpop.f32.mrb[0].mxu0
        %4816 = vmatprep.mubr.f32.mxu0 0.0
        %4817 = vmatmul.mubr.f32.gmra.mrb[0].mxu0 %v4416
        %v4818 = vpop.f32.mrb[0].mxu0
        %v4819 = vadd.f32 %v4594, %v4818
        %v4820 = vpop.f32.mrb[0].mxu0
        %4821 = vmatprep.mubr.f32.mxu0 0.0
        %4822 = vmatmul.mubr.f32.gmra.mrb[0].mxu0 %v4419
        %v4823 = vpop.f32.mrb[0].mxu0
        %v4824 = vadd.f32 %v4599, %v4823
        %v4825 = vpop.f32.mrb[0].mxu0
        %4826 = vmatprep.mubr.f32.mxu0 0.0
        %4827 = vmatmul.mubr.f32.gmra.mrb[0].mxu0 %v4422
        %v4828 = vpop.f32.mrb[0].mxu0
        %v4829 = vadd.f32 %v4604, %v4828
        %v4830 = vpop.f32.mrb[0].mxu0
        %4831 = vmatprep.mubr.f32.mxu0 0.0
        %4832 = vmatmul.mubr.f32.gmra.mrb[0].mxu0 %v4425
        %v4833 = vpop.f32.mrb[0].mxu0
        %v4834 = vadd.f32 %v4609, %v4833
        %v4835 = vpop.f32.mrb[0].mxu0
        %4836 = vmatprep.mubr.f32.mxu0 0.0
        %4837 = vmatmul.mubr.f32.gmra.mrb[0].mxu0 %v4428
        %v4838 = vpop.f32.mrb[0].mxu0
        %v4839 = vadd.f32 %v4614, %v4838
        %v4840 = vpop.f32.mrb[0].mxu0
        %4841 = vmatprep.mubr.f32.mxu0 0.0
        %4842 = vmatmul.mubr.f32.gmra.mrb[0].mxu0 %v4431
        %v4843 = vpop.f32.mrb[0].mxu0
        %v4844 = vadd.f32 %v4619, %v4843
        %v4845 = vpop.f32.mrb[0].mxu0
        %4846 = vmatprep.mubr.f32.mxu0 0.0
        %4847 = vmatmul.mubr.f32.gmra.mrb[0].mxu0 %v4434
        %v4848 = vpop.f32.mrb[0].mxu0
        %v4849 = vadd.f32 %v4624, %v4848
        %v4850 = vpop.f32.mrb[0].mxu0
        %4851 = vmatprep.mubr.f32.mxu0 0.0
        %4852 = vmatmul.mubr.f32.gmra.mrb[0].mxu0 %v4437
        %v4853 = vpop.f32.mrb[0].mxu0
        %v4854 = vadd.f32 %v4629, %v4853
        %v4855 = vpop.f32.mrb[0].mxu0
        %4856 = vmatprep.mubr.f32.mxu0 0.0
        %4857 = vmatmul.mubr.f32.gmra.mrb[0].mxu0 %v4440
        %v4858 = vpop.f32.mrb[0].mxu0
        %v4859 = vadd.f32 %v4634, %v4858
        %v4860 = vpop.f32.mrb[0].mxu0
        %4861 = vmatprep.mubr.f32.mxu0 0.0
        %4862 = vmatmul.mubr.f32.gmra.mrb[0].mxu0 %v4443
        %v4863 = vpop.f32.mrb[0].mxu0
        %v4864 = vadd.f32 %v4639, %v4863
        %v4865 = vpop.f32.mrb[0].mxu0
        %4866 = vmatprep.mubr.f32.mxu0 0.0
        %4867 = vmatmul.mubr.f32.gmra.mrb[0].mxu0 %v4446
        %v4868 = vpop.f32.mrb[0].mxu0
        %v4869 = vadd.f32 %v4644, %v4868
        %v4870 = vpop.f32.mrb[0].mxu0
        %4871 = vmatprep.mubr.f32.mxu0 0.0
        %4872 = vmatmul.mubr.f32.gmra.mrb[0].mxu0 %v4449
        %v4873 = vpop.f32.mrb[0].mxu0
        %v4874 = vadd.f32 %v4649, %v4873
        %v4875 = vpop.f32.mrb[0].mxu0
        %4876 = vmatprep.mubr.f32.mxu0 0.0
        %4877 = vmatmul.mubr.f32.gmra.mrb[0].mxu0 %v4452
        %v4878 = vpop.f32.mrb[0].mxu0
        %v4879 = vadd.f32 %v4654, %v4878
        %v4880 = vpop.f32.mrb[0].mxu0
        %4881 = vmatprep.mubr.f32.mxu0 0.0
        %4882 = vmatmul.mubr.f32.gmra.mrb[0].mxu0 %v4455
        %v4883 = vpop.f32.mrb[0].mxu0
        %v4884 = vadd.f32 %v4659, %v4883
        %v4885 = vpop.f32.mrb[0].mxu0
        %4886 = vmatprep.mubr.f32.mxu0 0.0
        %4887 = vmatmul.mubr.f32.gmra.mrb[0].mxu0 %v4458
        %v4888 = vpop.f32.mrb[0].mxu0
        %v4889 = vadd.f32 %v4664, %v4888
        %v4890 = vpop.f32.mrb[0].mxu0
        %4891 = vmatprep.mubr.f32.mxu0 0.0
        %4892 = vmatmul.mubr.f32.gmra.mrb[0].mxu0 %v4461
        %v4893 = vpop.f32.mrb[0].mxu0
        %v4894 = vadd.f32 %v4669, %v4893
        %v4895 = vpop.f32.mrb[0].mxu0
        %4896 = vmatprep.mubr.f32.mxu0 0.0
        %4897 = vmatmul.mubr.f32.gmra.mrb[0].mxu0 %v4464
        %v4898 = vpop.f32.mrb[0].mxu0
        %v4899 = vadd.f32 %v4674, %v4898
        %v4900 = vpop.f32.mrb[0].mxu0
        %4901 = vmatprep.mubr.f32.mxu0 0.0
        %4902 = vmatmul.mubr.f32.gmra.mrb[0].mxu0 %v4467
        %v4903 = vpop.f32.mrb[0].mxu0
        %v4904 = vadd.f32 %v4679, %v4903
        %v4905 = vpop.f32.mrb[0].mxu0
        %4906 = vmatprep.mubr.f32.mxu0 0.0
        %4907 = vmatmul.mubr.f32.gmra.mrb[0].mxu0 %v4470
        %v4908 = vpop.f32.mrb[0].mxu0
        %v4909 = vadd.f32 %v4684, %v4908
        %v4910 = vpop.f32.mrb[0].mxu0
        %4911 = vmatprep.mubr.f32.mxu0 0.0
        %4912 = vmatmul.mubr.f32.gmra.mrb[0].mxu0 %v4473
        %v4913 = vpop.f32.mrb[0].mxu0
        %v4914 = vadd.f32 %v4689, %v4913
        %v4915 = vpop.f32.mrb[0].mxu0
        %4916 = vmatprep.mubr.f32.mxu0 0.0
        %4917 = vmatmul.mubr.f32.gmra.mrb[0].mxu0 %v4476
        %v4918 = vpop.f32.mrb[0].mxu0
        %v4919 = vadd.f32 %v4694, %v4918
        %v4920 = vpop.f32.mrb[0].mxu0
        %4921 = vmatprep.mubr.f32.mxu0 0.0
        %4922 = vmatmul.mubr.f32.gmra.mrb[0].mxu0 %v4479
        %v4923 = vpop.f32.mrb[0].mxu0
        %v4924 = vadd.f32 %v4699, %v4923
        %v4925 = vpop.f32.mrb[0].mxu0
        %4926 = vmatprep.mubr.f32.mxu0 0.0
        %4927 = vmatmul.mubr.f32.gmra.mrb[0].mxu0 %v4482
        %v4928 = vpop.f32.mrb[0].mxu0
        %v4929 = vadd.f32 %v4704, %v4928
        %v4930 = vpop.f32.mrb[0].mxu0
        %4931 = vmatprep.mubr.f32.mxu0 0.0
        %4932 = vmatmul.mubr.f32.gmra.mrb[0].mxu0 %v4485
        %v4933 = vpop.f32.mrb[0].mxu0
        %v4934 = vadd.f32 %v4709, %v4933
        %v4935 = vpop.f32.mrb[0].mxu0
        %4936 = vdwg.mxu0
        %v4937 = vmax.f32 %v4779, 0.0
        %v4938 = vmax.f32 %v4784, 0.0
        %v4939 = vmax.f32 %v4789, 0.0
        %v4940 = vmax.f32 %v4794, 0.0
        %v4941 = vmax.f32 %v4799, 0.0
        %v4942 = vmax.f32 %v4804, 0.0
        %v4943 = vmax.f32 %v4809, 0.0
        %v4944 = vmax.f32 %v4814, 0.0
        %v4945 = vmax.f32 %v4819, 0.0
        %v4946 = vmax.f32 %v4824, 0.0
        %v4947 = vmax.f32 %v4829, 0.0
        %v4948 = vmax.f32 %v4834, 0.0
        %v4949 = vmax.f32 %v4839, 0.0
        %v4950 = vmax.f32 %v4844, 0.0
        %v4951 = vmax.f32 %v4849, 0.0
        %v4952 = vmax.f32 %v4854, 0.0
        %v4953 = vmax.f32 %v4859, 0.0
        %v4954 = vmax.f32 %v4864, 0.0
        %v4955 = vmax.f32 %v4869, 0.0
        %v4956 = vmax.f32 %v4874, 0.0
        %v4957 = vmax.f32 %v4879, 0.0
        %v4958 = vmax.f32 %v4884, 0.0
        %v4959 = vmax.f32 %v4889, 0.0
        %v4960 = vmax.f32 %v4894, 0.0
        %v4961 = vmax.f32 %v4899, 0.0
        %v4962 = vmax.f32 %v4904, 0.0
        %v4963 = vmax.f32 %v4909, 0.0
        %v4964 = vmax.f32 %v4914, 0.0
        %v4965 = vmax.f32 %v4919, 0.0
        %v4966 = vmax.f32 %v4924, 0.0
        %v4967 = vmax.f32 %v4929, 0.0
        %v4968 = vmax.f32 %v4934, 0.0
        %v4969 = vmax.f32 %v4937, %v4939
        %v4970 = vmax.f32 %v4938, %v4940
        %v4971 = vmax.f32 %v4941, %v4943
        %v4972 = vmax.f32 %v4942, %v4944
        %v4973 = vmax.f32 %v4945, %v4947
        %v4974 = vmax.f32 %v4946, %v4948
        %v4975 = vmax.f32 %v4949, %v4951
        %v4976 = vmax.f32 %v4950, %v4952
        %v4977 = vmax.f32 %v4953, %v4955
        %v4978 = vmax.f32 %v4954, %v4956
        %v4979 = vmax.f32 %v4957, %v4959
        %v4980 = vmax.f32 %v4958, %v4960
        %v4981 = vmax.f32 %v4961, %v4963
        %v4982 = vmax.f32 %v4962, %v4964
        %v4983 = vmax.f32 %v4965, %v4967
        %v4984 = vmax.f32 %v4966, %v4968
        %4985 = vst.msk [vmem:[#allocation4] sm:$0xff] %vm384, %v4969
        %4986 = vst.msk [vmem:[#allocation4 + $0x8] sm:$0xff] %vm384, %v4970
        %4987 = vst.msk [vmem:[#allocation4 + $0x10] sm:$0xff] %vm384, %v4971
        %4988 = vst.msk [vmem:[#allocation4 + $0x18] sm:$0xff] %vm384, %v4972
        %4989 = vst.msk [vmem:[#allocation4 + $0x20] sm:$0xff] %vm384, %v4973
        %4990 = vst.msk [vmem:[#allocation4 + $0x28] sm:$0xff] %vm384, %v4974
        %4991 = vst.msk [vmem:[#allocation4 + $0x30] sm:$0xff] %vm384, %v4975
        %4992 = vst.msk [vmem:[#allocation4 + $0x38] sm:$0xff] %vm384, %v4976
        %4993 = vst.msk [vmem:[#allocation4 + $0x40] sm:$0xff] %vm384, %v4977
        %4994 = vst.msk [vmem:[#allocation4 + $0x48] sm:$0xff] %vm384, %v4978
        %4995 = vst.msk [vmem:[#allocation4 + $0x50] sm:$0xff] %vm384, %v4979
        %4996 = vst.msk [vmem:[#allocation4 + $0x58] sm:$0xff] %vm384, %v4980
        %4997 = vst.msk [vmem:[#allocation4 + $0x60] sm:$0xff] %vm384, %v4981
        %4998 = vst.msk [vmem:[#allocation4 + $0x68] sm:$0xff] %vm384, %v4982
        %4999 = vst.msk [vmem:[#allocation4 + $0x70] sm:$0xff] %vm384, %v4983
        %5000 = vst.msk [vmem:[#allocation4 + $0x78] sm:$0xff] %vm384, %v4984
        %v5001 = vld [vmem:[#allocation4] ss:$2 sm:$0xff]
        %s5002 = scalar_lea.vmem [#allocation4], 16
        %v5003 = vld [vmem:[%s5002] ss:$2 sm:$0xff]
        %s5004 = scalar_lea.vmem [#allocation4], 32
        %v5005 = vld [vmem:[%s5004] ss:$2 sm:$0xff]
        %s5006 = scalar_lea.vmem [#allocation4], 48
        %v5007 = vld [vmem:[%s5006] ss:$2 sm:$0xff]
        %s5008 = scalar_lea.vmem [#allocation4], 64
        %v5009 = vld [vmem:[%s5008] ss:$2 sm:$0xff]
        %s5010 = scalar_lea.vmem [#allocation4], 80
        %v5011 = vld [vmem:[%s5010] ss:$2 sm:$0xff]
        %s5012 = scalar_lea.vmem [#allocation4], 96
        %v5013 = vld [vmem:[%s5012] ss:$2 sm:$0xff]
        %s5014 = scalar_lea.vmem [#allocation4], 112
        %v5015 = vld [vmem:[%s5014] ss:$2 sm:$0xff]
        %s5016 = scalar_lea.vmem [#allocation4], 1
        %v5017 = vld [vmem:[%s5016] ss:$2 sm:$0xff]
        %s5018 = scalar_lea.vmem [#allocation4], 17
        %v5019 = vld [vmem:[%s5018] ss:$2 sm:$0xff]
        %s5020 = scalar_lea.vmem [#allocation4], 33
        %v5021 = vld [vmem:[%s5020] ss:$2 sm:$0xff]
        %s5022 = scalar_lea.vmem [#allocation4], 49
        %v5023 = vld [vmem:[%s5022] ss:$2 sm:$0xff]
        %s5024 = scalar_lea.vmem [#allocation4], 65
        %v5025 = vld [vmem:[%s5024] ss:$2 sm:$0xff]
        %s5026 = scalar_lea.vmem [#allocation4], 81
        %v5027 = vld [vmem:[%s5026] ss:$2 sm:$0xff]
        %s5028 = scalar_lea.vmem [#allocation4], 97
        %v5029 = vld [vmem:[%s5028] ss:$2 sm:$0xff]
        %s5030 = scalar_lea.vmem [#allocation4], 113
        %v5031 = vld [vmem:[%s5030] ss:$2 sm:$0xff]
        %v5032 = vmax.f32 %v5001, %v5017
        %v5033 = vmax.f32 %v5003, %v5019
        %v5034 = vmax.f32 %v5005, %v5021
        %v5035 = vmax.f32 %v5007, %v5023
        %v5036 = vmax.f32 %v5009, %v5025
        %v5037 = vmax.f32 %v5011, %v5027
        %v5038 = vmax.f32 %v5013, %v5029
        %v5039 = vmax.f32 %v5015, %v5031
        %s5040 = scalar_lea.vmem [#allocation3], 16
        %5041 = vst.msk [vmem:[%s5040 + $0x1] sm:$0xff] %vm384, %v5032
        %5042 = vst.msk [vmem:[%s5040 + $0x11] sm:$0xff] %vm384, %v5033
        %5043 = vst.msk [vmem:[%s5040 + $0x21] sm:$0xff] %vm384, %v5034
        %5044 = vst.msk [vmem:[%s5040 + $0x31] sm:$0xff] %vm384, %v5035
        %5045 = vst.msk [vmem:[%s5040 + $0x41] sm:$0xff] %vm384, %v5036
        %5046 = vst.msk [vmem:[%s5040 + $0x51] sm:$0xff] %vm384, %v5037
        %5047 = vst.msk [vmem:[%s5040 + $0x61] sm:$0xff] %vm384, %v5038
        %5048 = vst.msk [vmem:[%s5040 + $0x71] sm:$0xff] %vm384, %v5039
        %v5049 = vld [vmem:[#allocation3] sm:$0xff]
        %v5050 = vld [vmem:[#allocation3 + $0x10] sm:$0xff]
        %v5051 = vld [vmem:[#allocation3 + $0x20] sm:$0xff]
        %v5052 = vld [vmem:[#allocation3 + $0x30] sm:$0xff]
        %v5053 = vld [vmem:[#allocation3 + $0x40] sm:$0xff]
        %v5054 = vld [vmem:[#allocation3 + $0x50] sm:$0xff]
        %v5055 = vld [vmem:[#allocation3 + $0x60] sm:$0xff]
        %v5056 = vld [vmem:[#allocation3 + $0x70] sm:$0xff]
        %5057 = vst.msk [vmem:[#allocation5] sm:$0xff] %vm384, %v5049
        %5058 = vst.msk [vmem:[#allocation5 + $0x18] sm:$0xff] %vm384, %v5050
        %5059 = vst.msk [vmem:[#allocation5 + $0x30] sm:$0xff] %vm384, %v5051
        %5060 = vst.msk [vmem:[#allocation5 + $0x48] sm:$0xff] %vm384, %v5052
        %5061 = vst.msk [vmem:[#allocation5 + $0x60] sm:$0xff] %vm384, %v5053
        %5062 = vst.msk [vmem:[#allocation5 + $0x78] sm:$0xff] %vm384, %v5054
        %5063 = vst.msk [vmem:[#allocation5 + $0x90] sm:$0xff] %vm384, %v5055
        %5064 = vst.msk [vmem:[#allocation5 + $0xa8] sm:$0xff] %vm384, %v5056
        %v5065 = vld [vmem:[#allocation3 + $0x1] sm:$0xff]
        %v5066 = vld [vmem:[#allocation3 + $0x11] sm:$0xff]
        %v5067 = vld [vmem:[#allocation3 + $0x21] sm:$0xff]
        %v5068 = vld [vmem:[#allocation3 + $0x31] sm:$0xff]
        %v5069 = vld [vmem:[#allocation3 + $0x41] sm:$0xff]
        %v5070 = vld [vmem:[#allocation3 + $0x51] sm:$0xff]
        %v5071 = vld [vmem:[#allocation3 + $0x61] sm:$0xff]
        %v5072 = vld [vmem:[#allocation3 + $0x71] sm:$0xff]
        %5081 = vrot.lane.b32.xlu0 %v5065, 32
        %v5082 = vpop.permute.xlu0 %5081
        %5083 = vrot.lane.b32.xlu0 %v5066, 32
        %v5084 = vpop.permute.xlu0 %5083
        %5085 = vrot.lane.b32.xlu0 %v5067, 32
        %v5086 = vpop.permute.xlu0 %5085
        %5087 = vrot.lane.b32.xlu0 %v5068, 32
        %v5088 = vpop.permute.xlu0 %5087
        %5089 = vrot.lane.b32.xlu0 %v5069, 32
        %v5090 = vpop.permute.xlu0 %5089
        %5091 = vrot.lane.b32.xlu0 %v5070, 32
        %v5092 = vpop.permute.xlu0 %5091
        %5093 = vrot.lane.b32.xlu0 %v5071, 32
        %v5094 = vpop.permute.xlu0 %5093
        %5095 = vrot.lane.b32.xlu0 %v5072, 32
        %v5096 = vpop.permute.xlu0 %5095
        %5105 = vst.msk [vmem:[#allocation5] sm:$0xff] %vm3128, %v5082
        %5106 = vst.msk [vmem:[#allocation5 + $0x18] sm:$0xff] %vm3128, %v5084
        %5107 = vst.msk [vmem:[#allocation5 + $0x30] sm:$0xff] %vm3128, %v5086
        %5108 = vst.msk [vmem:[#allocation5 + $0x48] sm:$0xff] %vm3128, %v5088
        %5109 = vst.msk [vmem:[#allocation5 + $0x60] sm:$0xff] %vm3128, %v5090
        %5110 = vst.msk [vmem:[#allocation5 + $0x78] sm:$0xff] %vm3128, %v5092
        %5111 = vst.msk [vmem:[#allocation5 + $0x90] sm:$0xff] %vm3128, %v5094
        %5112 = vst.msk [vmem:[#allocation5 + $0xa8] sm:$0xff] %vm3128, %v5096
        %v5113 = vld [vmem:[#allocation3 + $0x2] sm:$0xff]
        %v5114 = vld [vmem:[#allocation3 + $0x12] sm:$0xff]
        %v5115 = vld [vmem:[#allocation3 + $0x22] sm:$0xff]
        %v5116 = vld [vmem:[#allocation3 + $0x32] sm:$0xff]
        %v5117 = vld [vmem:[#allocation3 + $0x42] sm:$0xff]
        %v5118 = vld [vmem:[#allocation3 + $0x52] sm:$0xff]
        %v5119 = vld [vmem:[#allocation3 + $0x62] sm:$0xff]
        %v5120 = vld [vmem:[#allocation3 + $0x72] sm:$0xff]
        %5129 = vrot.lane.b32.xlu0 %v5113, 64
        %v5130 = vpop.permute.xlu0 %5129
        %5131 = vrot.lane.b32.xlu0 %v5114, 64
        %v5132 = vpop.permute.xlu0 %5131
        %5133 = vrot.lane.b32.xlu0 %v5115, 64
        %v5134 = vpop.permute.xlu0 %5133
        %5135 = vrot.lane.b32.xlu0 %v5116, 64
        %v5136 = vpop.permute.xlu0 %5135
        %5137 = vrot.lane.b32.xlu0 %v5117, 64
        %v5138 = vpop.permute.xlu0 %5137
        %5139 = vrot.lane.b32.xlu0 %v5118, 64
        %v5140 = vpop.permute.xlu0 %5139
        %5141 = vrot.lane.b32.xlu0 %v5119, 64
        %v5142 = vpop.permute.xlu0 %5141
        %5143 = vrot.lane.b32.xlu0 %v5120, 64
        %v5144 = vpop.permute.xlu0 %5143
        %5153 = vst.msk [vmem:[#allocation5] sm:$0xff] %vm3321, %v5130
        %5154 = vst.msk [vmem:[#allocation5 + $0x18] sm:$0xff] %vm3321, %v5132
        %5155 = vst.msk [vmem:[#allocation5 + $0x30] sm:$0xff] %vm3321, %v5134
        %5156 = vst.msk [vmem:[#allocation5 + $0x48] sm:$0xff] %vm3321, %v5136
        %5157 = vst.msk [vmem:[#allocation5 + $0x60] sm:$0xff] %vm3321, %v5138
        %5158 = vst.msk [vmem:[#allocation5 + $0x78] sm:$0xff] %vm3321, %v5140
        %5159 = vst.msk [vmem:[#allocation5 + $0x90] sm:$0xff] %vm3321, %v5142
        %5160 = vst.msk [vmem:[#allocation5 + $0xa8] sm:$0xff] %vm3321, %v5144
        %v5161 = vld [vmem:[%s5040] sm:$0xff]
        %v5162 = vld [vmem:[%s5040 + $0x10] sm:$0xff]
        %v5163 = vld [vmem:[%s5040 + $0x20] sm:$0xff]
        %v5164 = vld [vmem:[%s5040 + $0x30] sm:$0xff]
        %v5165 = vld [vmem:[%s5040 + $0x40] sm:$0xff]
        %v5166 = vld [vmem:[%s5040 + $0x50] sm:$0xff]
        %v5167 = vld [vmem:[%s5040 + $0x60] sm:$0xff]
        %v5168 = vld [vmem:[%s5040 + $0x70] sm:$0xff]
        %5177 = vrot.lane.b32.xlu0 %v5161, 96
        %v5178 = vpop.permute.xlu0 %5177
        %5179 = vrot.lane.b32.xlu0 %v5162, 96
        %v5180 = vpop.permute.xlu0 %5179
        %5181 = vrot.lane.b32.xlu0 %v5163, 96
        %v5182 = vpop.permute.xlu0 %5181
        %5183 = vrot.lane.b32.xlu0 %v5164, 96
        %v5184 = vpop.permute.xlu0 %5183
        %5185 = vrot.lane.b32.xlu0 %v5165, 96
        %v5186 = vpop.permute.xlu0 %5185
        %5187 = vrot.lane.b32.xlu0 %v5166, 96
        %v5188 = vpop.permute.xlu0 %5187
        %5189 = vrot.lane.b32.xlu0 %v5167, 96
        %v5190 = vpop.permute.xlu0 %5189
        %5191 = vrot.lane.b32.xlu0 %v5168, 96
        %v5192 = vpop.permute.xlu0 %5191
        %5201 = vst.msk [vmem:[#allocation5] sm:$0xff] %vm3514, %v5178
        %5202 = vst.msk [vmem:[#allocation5 + $0x18] sm:$0xff] %vm3514, %v5180
        %5203 = vst.msk [vmem:[#allocation5 + $0x30] sm:$0xff] %vm3514, %v5182
        %5204 = vst.msk [vmem:[#allocation5 + $0x48] sm:$0xff] %vm3514, %v5184
        %5205 = vst.msk [vmem:[#allocation5 + $0x60] sm:$0xff] %vm3514, %v5186
        %5206 = vst.msk [vmem:[#allocation5 + $0x78] sm:$0xff] %vm3514, %v5188
        %5207 = vst.msk [vmem:[#allocation5 + $0x90] sm:$0xff] %vm3514, %v5190
        %5208 = vst.msk [vmem:[#allocation5 + $0xa8] sm:$0xff] %vm3514, %v5192
        %v5209 = vld [vmem:[%s5040 + $0x1] sm:$0xff]
        %v5210 = vld [vmem:[%s5040 + $0x11] sm:$0xff]
        %v5211 = vld [vmem:[%s5040 + $0x21] sm:$0xff]
        %v5212 = vld [vmem:[%s5040 + $0x31] sm:$0xff]
        %v5213 = vld [vmem:[%s5040 + $0x41] sm:$0xff]
        %v5214 = vld [vmem:[%s5040 + $0x51] sm:$0xff]
        %v5215 = vld [vmem:[%s5040 + $0x61] sm:$0xff]
        %v5216 = vld [vmem:[%s5040 + $0x71] sm:$0xff]
        %5217 = vst.msk [vmem:[#allocation5 + $0x8] sm:$0xff] %vm384, %v5209
        %5218 = vst.msk [vmem:[#allocation5 + $0x20] sm:$0xff] %vm384, %v5210
        %5219 = vst.msk [vmem:[#allocation5 + $0x38] sm:$0xff] %vm384, %v5211
        %5220 = vst.msk [vmem:[#allocation5 + $0x50] sm:$0xff] %vm384, %v5212
        %5221 = vst.msk [vmem:[#allocation5 + $0x68] sm:$0xff] %vm384, %v5213
        %5222 = vst.msk [vmem:[#allocation5 + $0x80] sm:$0xff] %vm384, %v5214
        %5223 = vst.msk [vmem:[#allocation5 + $0x98] sm:$0xff] %vm384, %v5215
        %5224 = vst.msk [vmem:[#allocation5 + $0xb0] sm:$0xff] %vm384, %v5216
        %v5225 = vld [vmem:[%s5040 + $0x2] sm:$0xff]
        %v5226 = vld [vmem:[%s5040 + $0x12] sm:$0xff]
        %v5227 = vld [vmem:[%s5040 + $0x22] sm:$0xff]
        %v5228 = vld [vmem:[%s5040 + $0x32] sm:$0xff]
        %v5229 = vld [vmem:[%s5040 + $0x42] sm:$0xff]
        %v5230 = vld [vmem:[%s5040 + $0x52] sm:$0xff]
        %v5231 = vld [vmem:[%s5040 + $0x62] sm:$0xff]
        %v5232 = vld [vmem:[%s5040 + $0x72] sm:$0xff]
        %5241 = vrot.lane.b32.xlu0 %v5225, 32
        %v5242 = vpop.permute.xlu0 %5241
        %5243 = vrot.lane.b32.xlu0 %v5226, 32
        %v5244 = vpop.permute.xlu0 %5243
        %5245 = vrot.lane.b32.xlu0 %v5227, 32
        %v5246 = vpop.permute.xlu0 %5245
        %5247 = vrot.lane.b32.xlu0 %v5228, 32
        %v5248 = vpop.permute.xlu0 %5247
        %5249 = vrot.lane.b32.xlu0 %v5229, 32
        %v5250 = vpop.permute.xlu0 %5249
        %5251 = vrot.lane.b32.xlu0 %v5230, 32
        %v5252 = vpop.permute.xlu0 %5251
        %5253 = vrot.lane.b32.xlu0 %v5231, 32
        %v5254 = vpop.permute.xlu0 %5253
        %5255 = vrot.lane.b32.xlu0 %v5232, 32
        %v5256 = vpop.permute.xlu0 %5255
        %5265 = vst.msk [vmem:[#allocation5 + $0x8] sm:$0xff] %vm3128, %v5242
        %5266 = vst.msk [vmem:[#allocation5 + $0x20] sm:$0xff] %vm3128, %v5244
        %5267 = vst.msk [vmem:[#allocation5 + $0x38] sm:$0xff] %vm3128, %v5246
        %5268 = vst.msk [vmem:[#allocation5 + $0x50] sm:$0xff] %vm3128, %v5248
        %5269 = vst.msk [vmem:[#allocation5 + $0x68] sm:$0xff] %vm3128, %v5250
        %5270 = vst.msk [vmem:[#allocation5 + $0x80] sm:$0xff] %vm3128, %v5252
        %5271 = vst.msk [vmem:[#allocation5 + $0x98] sm:$0xff] %vm3128, %v5254
        %5272 = vst.msk [vmem:[#allocation5 + $0xb0] sm:$0xff] %vm3128, %v5256
        %s5273 = scalar_lea.vmem [#allocation3], 32
        %v5274 = vld [vmem:[%s5273] sm:$0xff]
        %v5275 = vld [vmem:[%s5273 + $0x10] sm:$0xff]
        %v5276 = vld [vmem:[%s5273 + $0x20] sm:$0xff]
        %v5277 = vld [vmem:[%s5273 + $0x30] sm:$0xff]
        %v5278 = vld [vmem:[%s5273 + $0x40] sm:$0xff]
        %v5279 = vld [vmem:[%s5273 + $0x50] sm:$0xff]
        %v5280 = vld [vmem:[%s5273 + $0x60] sm:$0xff]
        %v5281 = vld [vmem:[%s5273 + $0x70] sm:$0xff]
        %5290 = vrot.lane.b32.xlu0 %v5274, 64
        %v5291 = vpop.permute.xlu0 %5290
        %5292 = vrot.lane.b32.xlu0 %v5275, 64
        %v5293 = vpop.permute.xlu0 %5292
        %5294 = vrot.lane.b32.xlu0 %v5276, 64
        %v5295 = vpop.permute.xlu0 %5294
        %5296 = vrot.lane.b32.xlu0 %v5277, 64
        %v5297 = vpop.permute.xlu0 %5296
        %5298 = vrot.lane.b32.xlu0 %v5278, 64
        %v5299 = vpop.permute.xlu0 %5298
        %5300 = vrot.lane.b32.xlu0 %v5279, 64
        %v5301 = vpop.permute.xlu0 %5300
        %5302 = vrot.lane.b32.xlu0 %v5280, 64
        %v5303 = vpop.permute.xlu0 %5302
        %5304 = vrot.lane.b32.xlu0 %v5281, 64
        %v5305 = vpop.permute.xlu0 %5304
        %5314 = vst.msk [vmem:[#allocation5 + $0x8] sm:$0xff] %vm3321, %v5291
        %5315 = vst.msk [vmem:[#allocation5 + $0x20] sm:$0xff] %vm3321, %v5293
        %5316 = vst.msk [vmem:[#allocation5 + $0x38] sm:$0xff] %vm3321, %v5295
        %5317 = vst.msk [vmem:[#allocation5 + $0x50] sm:$0xff] %vm3321, %v5297
        %5318 = vst.msk [vmem:[#allocation5 + $0x68] sm:$0xff] %vm3321, %v5299
        %5319 = vst.msk [vmem:[#allocation5 + $0x80] sm:$0xff] %vm3321, %v5301
        %5320 = vst.msk [vmem:[#allocation5 + $0x98] sm:$0xff] %vm3321, %v5303
        %5321 = vst.msk [vmem:[#allocation5 + $0xb0] sm:$0xff] %vm3321, %v5305
        %v5322 = vld [vmem:[%s5273 + $0x1] sm:$0xff]
        %v5323 = vld [vmem:[%s5273 + $0x11] sm:$0xff]
        %v5324 = vld [vmem:[%s5273 + $0x21] sm:$0xff]
        %v5325 = vld [vmem:[%s5273 + $0x31] sm:$0xff]
        %v5326 = vld [vmem:[%s5273 + $0x41] sm:$0xff]
        %v5327 = vld [vmem:[%s5273 + $0x51] sm:$0xff]
        %v5328 = vld [vmem:[%s5273 + $0x61] sm:$0xff]
        %v5329 = vld [vmem:[%s5273 + $0x71] sm:$0xff]
        %5338 = vrot.lane.b32.xlu0 %v5322, 96
        %v5339 = vpop.permute.xlu0 %5338
        %5340 = vrot.lane.b32.xlu0 %v5323, 96
        %v5341 = vpop.permute.xlu0 %5340
        %5342 = vrot.lane.b32.xlu0 %v5324, 96
        %v5343 = vpop.permute.xlu0 %5342
        %5344 = vrot.lane.b32.xlu0 %v5325, 96
        %v5345 = vpop.permute.xlu0 %5344
        %5346 = vrot.lane.b32.xlu0 %v5326, 96
        %v5347 = vpop.permute.xlu0 %5346
        %5348 = vrot.lane.b32.xlu0 %v5327, 96
        %v5349 = vpop.permute.xlu0 %5348
        %5350 = vrot.lane.b32.xlu0 %v5328, 96
        %v5351 = vpop.permute.xlu0 %5350
        %5352 = vrot.lane.b32.xlu0 %v5329, 96
        %v5353 = vpop.permute.xlu0 %5352
        %5362 = vst.msk [vmem:[#allocation5 + $0x8] sm:$0xff] %vm3514, %v5339
        %5363 = vst.msk [vmem:[#allocation5 + $0x20] sm:$0xff] %vm3514, %v5341
        %5364 = vst.msk [vmem:[#allocation5 + $0x38] sm:$0xff] %vm3514, %v5343
        %5365 = vst.msk [vmem:[#allocation5 + $0x50] sm:$0xff] %vm3514, %v5345
        %5366 = vst.msk [vmem:[#allocation5 + $0x68] sm:$0xff] %vm3514, %v5347
        %5367 = vst.msk [vmem:[#allocation5 + $0x80] sm:$0xff] %vm3514, %v5349
        %5368 = vst.msk [vmem:[#allocation5 + $0x98] sm:$0xff] %vm3514, %v5351
        %5369 = vst.msk [vmem:[#allocation5 + $0xb0] sm:$0xff] %vm3514, %v5353
        %v5370 = vld [vmem:[%s5273 + $0x2] sm:$0xff]
        %v5371 = vld [vmem:[%s5273 + $0x12] sm:$0xff]
        %v5372 = vld [vmem:[%s5273 + $0x22] sm:$0xff]
        %v5373 = vld [vmem:[%s5273 + $0x32] sm:$0xff]
        %v5374 = vld [vmem:[%s5273 + $0x42] sm:$0xff]
        %v5375 = vld [vmem:[%s5273 + $0x52] sm:$0xff]
        %v5376 = vld [vmem:[%s5273 + $0x62] sm:$0xff]
        %v5377 = vld [vmem:[%s5273 + $0x72] sm:$0xff]
        %5378 = vst.msk [vmem:[#allocation5 + $0x10] sm:$0xff] %vm384, %v5370
        %5379 = vst.msk [vmem:[#allocation5 + $0x28] sm:$0xff] %vm384, %v5371
        %5380 = vst.msk [vmem:[#allocation5 + $0x40] sm:$0xff] %vm384, %v5372
        %5381 = vst.msk [vmem:[#allocation5 + $0x58] sm:$0xff] %vm384, %v5373
        %5382 = vst.msk [vmem:[#allocation5 + $0x70] sm:$0xff] %vm384, %v5374
        %5383 = vst.msk [vmem:[#allocation5 + $0x88] sm:$0xff] %vm384, %v5375
        %5384 = vst.msk [vmem:[#allocation5 + $0xa0] sm:$0xff] %vm384, %v5376
        %5385 = vst.msk [vmem:[#allocation5 + $0xb8] sm:$0xff] %vm384, %v5377
        %v5386 = vld [vmem:[#allocation5] sm:$0xff]
        %v5387 = vld [vmem:[#allocation5 + $0x8] sm:$0xff]
        %v5388 = vld [vmem:[#allocation5 + $0x10] sm:$0xff]
        %v5389 = vld [vmem:[#allocation5 + $0x18] sm:$0xff]
        %v5390 = vld [vmem:[#allocation5 + $0x20] sm:$0xff]
        %v5391 = vld [vmem:[#allocation5 + $0x28] sm:$0xff]
        %v5392 = vld [vmem:[#allocation5 + $0x30] sm:$0xff]
        %v5393 = vld [vmem:[#allocation5 + $0x38] sm:$0xff]
        %v5394 = vld [vmem:[#allocation5 + $0x40] sm:$0xff]
        %v5395 = vld [vmem:[#allocation5 + $0x48] sm:$0xff]
        %v5396 = vld [vmem:[#allocation5 + $0x50] sm:$0xff]
        %v5397 = vld [vmem:[#allocation5 + $0x58] sm:$0xff]
        %v5398 = vld [vmem:[#allocation5 + $0x60] sm:$0xff]
        %v5399 = vld [vmem:[#allocation5 + $0x68] sm:$0xff]
        %v5400 = vld [vmem:[#allocation5 + $0x70] sm:$0xff]
        %v5401 = vld [vmem:[#allocation5 + $0x78] sm:$0xff]
        %v5402 = vld [vmem:[#allocation5 + $0x80] sm:$0xff]
        %v5403 = vld [vmem:[#allocation5 + $0x88] sm:$0xff]
        %v5404 = vld [vmem:[#allocation5 + $0x90] sm:$0xff]
        %v5405 = vld [vmem:[#allocation5 + $0x98] sm:$0xff]
        %v5406 = vld [vmem:[#allocation5 + $0xa0] sm:$0xff]
        %v5407 = vld [vmem:[#allocation5 + $0xa8] sm:$0xff]
        %v5408 = vld [vmem:[#allocation5 + $0xb0] sm:$0xff]
        %v5409 = vld [vmem:[#allocation5 + $0xb8] sm:$0xff]
        %v5410 = vld [vmem:[%s5] sm:$0xff]
        %v5411 = vld [vmem:[%s5 + $0x8] sm:$0xff]
        %v5412 = vld [vmem:[%s5 + $0x10] sm:$0xff]
        %v5413 = vld [vmem:[%s5 + $0x18] sm:$0xff]
        %v5414 = vld [vmem:[%s5 + $0x20] sm:$0xff]
        %v5415 = vld [vmem:[%s5 + $0x28] sm:$0xff]
        %v5416 = vld [vmem:[%s5 + $0x30] sm:$0xff]
        %v5417 = vld [vmem:[%s5 + $0x38] sm:$0xff]
        %v5418 = vld [vmem:[%s5 + $0x40] sm:$0xff]
        %v5419 = vld [vmem:[%s5 + $0x48] sm:$0xff]
        %v5420 = vld [vmem:[%s5 + $0x50] sm:$0xff]
        %v5421 = vld [vmem:[%s5 + $0x58] sm:$0xff]
        %v5422 = vld [vmem:[%s5 + $0x60] sm:$0xff]
        %v5423 = vld [vmem:[%s5 + $0x68] sm:$0xff]
        %v5424 = vld [vmem:[%s5 + $0x70] sm:$0xff]
        %v5425 = vld [vmem:[%s5 + $0x78] sm:$0xff]
        %v5426 = vld [vmem:[%s5 + $0x80] sm:$0xff]
        %v5427 = vld [vmem:[%s5 + $0x88] sm:$0xff]
        %v5428 = vld [vmem:[%s5 + $0x90] sm:$0xff]
        %v5429 = vld [vmem:[%s5 + $0x98] sm:$0xff]
        %v5430 = vld [vmem:[%s5 + $0xa0] sm:$0xff]
        %v5431 = vld [vmem:[%s5 + $0xa8] sm:$0xff]
        %v5432 = vld [vmem:[%s5 + $0xb0] sm:$0xff]
        %v5433 = vld [vmem:[%s5 + $0xb8] sm:$0xff]
        %v5434 = vld [vmem:[%s5 + $0xc0] sm:$0xff]
        %v5435 = vld [vmem:[%s5 + $0xc8] sm:$0xff]
        %v5436 = vld [vmem:[%s5 + $0xd0] sm:$0xff]
        %v5437 = vld [vmem:[%s5 + $0xd8] sm:$0xff]
        %v5438 = vld [vmem:[%s5 + $0xe0] sm:$0xff]
        %v5439 = vld [vmem:[%s5 + $0xe8] sm:$0xff]
        %v5440 = vld [vmem:[%s5 + $0xf0] sm:$0xff]
        %v5441 = vld [vmem:[%s5 + $0xf8] sm:$0xff]
        %v5442 = vld [vmem:[%s5 + $0x100] sm:$0xff]
        %v5443 = vld [vmem:[%s5 + $0x108] sm:$0xff]
        %v5444 = vld [vmem:[%s5 + $0x110] sm:$0xff]
        %v5445 = vld [vmem:[%s5 + $0x118] sm:$0xff]
        %v5446 = vld [vmem:[%s6] sm:$0x1]
        %v5448 = vlaneseq
        %v5449 = vshrl.u32 %v5448, 7
        %v5450 = vsub.s32 0, %v5449
        %v5451 = vrot.slane %v5446, %v5450
        %v5454 = vsel %vm384, %v5388, 0
        %v5457 = vsel %vm384, %v5391, 0
        %v5460 = vsel %vm384, %v5394, 0
        %v5463 = vsel %vm384, %v5397, 0
        %v5466 = vsel %vm384, %v5400, 0
        %v5469 = vsel %vm384, %v5403, 0
        %v5472 = vsel %vm384, %v5406, 0
        %v5475 = vsel %vm384, %v5409, 0
        %5477 = vmatprep.subr.mxu0 0.0
        %5478 = vmatpush1.msra.mxu0 %v5410
        %5479 = vmatprep.subr.mxu0 0.0
        %5480 = vmatpush1.msra.mxu0 %v5411
        %5481 = vmatprep.subr.mxu0 0.0
        %5482 = vmatpush1.msra.mxu0 %v5412
        %5483 = vmatprep.subr.mxu0 0.0
        %5484 = vmatpush1.msra.mxu0 %v5413
        %5485 = vmatprep.subr.mxu0 0.0
        %5486 = vmatpush1.msra.mxu0 %v5414
        %5487 = vmatprep.subr.mxu0 0.0
        %5488 = vmatpush1.msra.mxu0 %v5415
        %5489 = vmatprep.subr.mxu0 0.0
        %5490 = vmatpush1.msra.mxu0 %v5416
        %5491 = vmatprep.subr.mxu0 0.0
        %5492 = vmatpush1.msra.mxu0 %v5417
        %5493 = vmatprep.subr.mxu0 0.0
        %5494 = vmatpush1.msra.mxu0 %v5418
        %5495 = vmatprep.subr.mxu0 0.0
        %5496 = vmatpush1.msra.mxu0 %v5419
        %5497 = vmatprep.subr.mxu0 0.0
        %5498 = vmatpush1.msra.mxu0 %v5420
        %5499 = vmatprep.subr.mxu0 0.0
        %5500 = vmatpush1.msra.mxu0 %v5421
        %5501 = vmatprep.subr.mxu0 0.0
        %5502 = vmatpush1.msra.mxu0 %v5422
        %5503 = vmatprep.subr.mxu0 0.0
        %5504 = vmatpush1.msra.mxu0 %v5423
        %5505 = vmatprep.subr.mxu0 0.0
        %5506 = vmatpush1.msra.mxu0 %v5424
        %5507 = vmatprep.subr.mxu0 0.0
        %5508 = vmatpush1.msra.mxu0 %v5425
        %5509 = vmatprep.subr.mxu0 0.0
        %5510 = vmatpush1.msra.mxu0 %v5426
        %5511 = vmatprep.subr.mxu0 0.0
        %5512 = vmatpush1.msra.mxu0 %v5427
        %5513 = vmatprep.subr.mxu0 0.0
        %5514 = vmatpush1.msra.mxu0 %v5428
        %5515 = vmatprep.subr.mxu0 0.0
        %5516 = vmatpush1.msra.mxu0 %v5429
        %5517 = vmatprep.subr.mxu0 0.0
        %5518 = vmatpush1.msra.mxu0 %v5430
        %5519 = vmatprep.subr.mxu0 0.0
        %5520 = vmatpush1.msra.mxu0 %v5431
        %5521 = vmatprep.subr.mxu0 0.0
        %5522 = vmatpush1.msra.mxu0 %v5432
        %5523 = vmatprep.subr.mxu0 0.0
        %5524 = vmatpush1.msra.mxu0 %v5433
        %5525 = vmatprep.subr.mxu0 0.0
        %5526 = vmatpush1.msra.mxu0 %v5434
        %5527 = vmatprep.subr.mxu0 0.0
        %5528 = vmatpush1.msra.mxu0 %v5435
        %5529 = vmatprep.subr.mxu0 0.0
        %5530 = vmatpush1.msra.mxu0 %v5436
        %5531 = vmatprep.subr.mxu0 0.0
        %5532 = vmatpush1.msra.mxu0 %v5437
        %5533 = vmatprep.subr.mxu0 0.0
        %5534 = vmatpush1.msra.mxu0 %v5438
        %5535 = vmatprep.subr.mxu0 0.0
        %5536 = vmatpush1.msra.mxu0 %v5439
        %5537 = vmatprep.subr.mxu0 0.0
        %5538 = vmatpush1.msra.mxu0 %v5440
        %5539 = vmatprep.subr.mxu0 0.0
        %5540 = vmatpush1.msra.mxu0 %v5441
        %5541 = vmatprep.mubr.f32.mxu0 %v5387
        %5542 = vmatmul.mubr.f32.gmra.mrb[0].mxu0 %v5386
        %v5543 = vpop.f32.mrb[0].mxu0
        %v5544 = vadd.f32 %v5451, %v5543
        %v5545 = vpop.f32.mrb[0].mxu0
        %5546 = vmatprep.mubr.f32.mxu0 %v5390
        %5547 = vmatmul.mubr.f32.gmra.mrb[0].mxu0 %v5389
        %v5548 = vpop.f32.mrb[0].mxu0
        %v5549 = vadd.f32 %v5451, %v5548
        %v5550 = vpop.f32.mrb[0].mxu0
        %5551 = vmatprep.mubr.f32.mxu0 %v5393
        %5552 = vmatmul.mubr.f32.gmra.mrb[0].mxu0 %v5392
        %v5553 = vpop.f32.mrb[0].mxu0
        %v5554 = vadd.f32 %v5451, %v5553
        %v5555 = vpop.f32.mrb[0].mxu0
        %5556 = vmatprep.mubr.f32.mxu0 %v5396
        %5557 = vmatmul.mubr.f32.gmra.mrb[0].mxu0 %v5395
        %v5558 = vpop.f32.mrb[0].mxu0
        %v5559 = vadd.f32 %v5451, %v5558
        %v5560 = vpop.f32.mrb[0].mxu0
        %5561 = vmatprep.mubr.f32.mxu0 %v5399
        %5562 = vmatmul.mubr.f32.gmra.mrb[0].mxu0 %v5398
        %v5563 = vpop.f32.mrb[0].mxu0
        %v5564 = vadd.f32 %v5451, %v5563
        %v5565 = vpop.f32.mrb[0].mxu0
        %5566 = vmatprep.mubr.f32.mxu0 %v5402
        %5567 = vmatmul.mubr.f32.gmra.mrb[0].mxu0 %v5401
        %v5568 = vpop.f32.mrb[0].mxu0
        %v5569 = vadd.f32 %v5451, %v5568
        %v5570 = vpop.f32.mrb[0].mxu0
        %5571 = vmatprep.mubr.f32.mxu0 %v5405
        %5572 = vmatmul.mubr.f32.gmra.mrb[0].mxu0 %v5404
        %v5573 = vpop.f32.mrb[0].mxu0
        %v5574 = vadd.f32 %v5451, %v5573
        %v5575 = vpop.f32.mrb[0].mxu0
        %5576 = vmatprep.mubr.f32.mxu0 %v5408
        %5577 = vmatmul.mubr.f32.gmra.mrb[0].mxu0 %v5407
        %v5578 = vpop.f32.mrb[0].mxu0
        %v5579 = vadd.f32 %v5451, %v5578
        %v5580 = vpop.f32.mrb[0].mxu0
        %5581 = vdwg.mxu0
        %5582 = vmatprep.subr.mxu0 0.0
        %5583 = vmatpush1.msra.mxu0 %v5442
        %5584 = vmatprep.subr.mxu0 0.0
        %5585 = vmatpush1.msra.mxu0 %v5443
        %5586 = vmatprep.subr.mxu0 0.0
        %5587 = vmatpush1.msra.mxu0 %v5444
        %5588 = vmatprep.subr.mxu0 0.0
        %5589 = vmatpush1.msra.mxu0 %v5445
        %5590 = vmatprep.subr.mxu0 0.0
        %5591 = vmatpush1.msra.mxu0 0.0
        %5592 = vmatprep.subr.mxu0 0.0
        %5593 = vmatpush1.msra.mxu0 0.0
        %5594 = vmatprep.subr.mxu0 0.0
        %5595 = vmatpush1.msra.mxu0 0.0
        %5596 = vmatprep.subr.mxu0 0.0
        %5597 = vmatpush1.msra.mxu0 0.0
        %5598 = vmatprep.subr.mxu0 0.0
        %5599 = vmatpush1.msra.mxu0 0.0
        %5600 = vmatprep.subr.mxu0 0.0
        %5601 = vmatpush1.msra.mxu0 0.0
        %5602 = vmatprep.subr.mxu0 0.0
        %5603 = vmatpush1.msra.mxu0 0.0
        %5604 = vmatprep.subr.mxu0 0.0
        %5605 = vmatpush1.msra.mxu0 0.0
        %5606 = vmatprep.subr.mxu0 0.0
        %5607 = vmatpush1.msra.mxu0 0.0
        %5608 = vmatprep.subr.mxu0 0.0
        %5609 = vmatpush1.msra.mxu0 0.0
        %5610 = vmatprep.subr.mxu0 0.0
        %5611 = vmatpush1.msra.mxu0 0.0
        %5612 = vmatprep.subr.mxu0 0.0
        %5613 = vmatpush1.msra.mxu0 0.0
        %5614 = vmatprep.subr.mxu0 0.0
        %5615 = vmatpush1.msra.mxu0 0.0
        %5616 = vmatprep.subr.mxu0 0.0
        %5617 = vmatpush1.msra.mxu0 0.0
        %5618 = vmatprep.subr.mxu0 0.0
        %5619 = vmatpush1.msra.mxu0 0.0
        %5620 = vmatprep.subr.mxu0 0.0
        %5621 = vmatpush1.msra.mxu0 0.0
        %5622 = vmatprep.subr.mxu0 0.0
        %5623 = vmatpush1.msra.mxu0 0.0
        %5624 = vmatprep.subr.mxu0 0.0
        %5625 = vmatpush1.msra.mxu0 0.0
        %5626 = vmatprep.subr.mxu0 0.0
        %5627 = vmatpush1.msra.mxu0 0.0
        %5628 = vmatprep.subr.mxu0 0.0
        %5629 = vmatpush1.msra.mxu0 0.0
        %5630 = vmatprep.subr.mxu0 0.0
        %5631 = vmatpush1.msra.mxu0 0.0
        %5632 = vmatprep.subr.mxu0 0.0
        %5633 = vmatpush1.msra.mxu0 0.0
        %5634 = vmatprep.subr.mxu0 0.0
        %5635 = vmatpush1.msra.mxu0 0.0
        %5636 = vmatprep.subr.mxu0 0.0
        %5637 = vmatpush1.msra.mxu0 0.0
        %5638 = vmatprep.subr.mxu0 0.0
        %5639 = vmatpush1.msra.mxu0 0.0
        %5640 = vmatprep.subr.mxu0 0.0
        %5641 = vmatpush1.msra.mxu0 0.0
        %5642 = vmatprep.subr.mxu0 0.0
        %5643 = vmatpush1.msra.mxu0 0.0
        %5644 = vmatprep.subr.mxu0 0.0
        %5645 = vmatpush1.msra.mxu0 0.0
        %5646 = vmatprep.mubr.f32.mxu0 0.0
        %5647 = vmatmul.mubr.f32.gmra.mrb[0].mxu0 %v5454
        %v5648 = vpop.f32.mrb[0].mxu0
        %v5649 = vadd.f32 %v5544, %v5648
        %v5650 = vpop.f32.mrb[0].mxu0
        %5651 = vmatprep.mubr.f32.mxu0 0.0
        %5652 = vmatmul.mubr.f32.gmra.mrb[0].mxu0 %v5457
        %v5653 = vpop.f32.mrb[0].mxu0
        %v5654 = vadd.f32 %v5549, %v5653
        %v5655 = vpop.f32.mrb[0].mxu0
        %5656 = vmatprep.mubr.f32.mxu0 0.0
        %5657 = vmatmul.mubr.f32.gmra.mrb[0].mxu0 %v5460
        %v5658 = vpop.f32.mrb[0].mxu0
        %v5659 = vadd.f32 %v5554, %v5658
        %v5660 = vpop.f32.mrb[0].mxu0
        %5661 = vmatprep.mubr.f32.mxu0 0.0
        %5662 = vmatmul.mubr.f32.gmra.mrb[0].mxu0 %v5463
        %v5663 = vpop.f32.mrb[0].mxu0
        %v5664 = vadd.f32 %v5559, %v5663
        %v5665 = vpop.f32.mrb[0].mxu0
        %5666 = vmatprep.mubr.f32.mxu0 0.0
        %5667 = vmatmul.mubr.f32.gmra.mrb[0].mxu0 %v5466
        %v5668 = vpop.f32.mrb[0].mxu0
        %v5669 = vadd.f32 %v5564, %v5668
        %v5670 = vpop.f32.mrb[0].mxu0
        %5671 = vmatprep.mubr.f32.mxu0 0.0
        %5672 = vmatmul.mubr.f32.gmra.mrb[0].mxu0 %v5469
        %v5673 = vpop.f32.mrb[0].mxu0
        %v5674 = vadd.f32 %v5569, %v5673
        %v5675 = vpop.f32.mrb[0].mxu0
        %5676 = vmatprep.mubr.f32.mxu0 0.0
        %5677 = vmatmul.mubr.f32.gmra.mrb[0].mxu0 %v5472
        %v5678 = vpop.f32.mrb[0].mxu0
        %v5679 = vadd.f32 %v5574, %v5678
        %v5680 = vpop.f32.mrb[0].mxu0
        %5681 = vmatprep.mubr.f32.mxu0 0.0
        %5682 = vmatmul.mubr.f32.gmra.mrb[0].mxu0 %v5475
        %v5683 = vpop.f32.mrb[0].mxu0
        %v5684 = vadd.f32 %v5579, %v5683
        %v5685 = vpop.f32.mrb[0].mxu0
        %5686 = vdwg.mxu0
        %v5687 = vmax.f32 %v5649, 0.0
        %v5688 = vmax.f32 %v5654, 0.0
        %v5689 = vmax.f32 %v5659, 0.0
        %v5690 = vmax.f32 %v5664, 0.0
        %v5691 = vmax.f32 %v5669, 0.0
        %v5692 = vmax.f32 %v5674, 0.0
        %v5693 = vmax.f32 %v5679, 0.0
        %v5694 = vmax.f32 %v5684, 0.0
        %5695 = vst.msk [vmem:[%s5040 + $0x1] sm:$0xff] %vm384, %v5687
        %5696 = vst.msk [vmem:[%s5040 + $0x11] sm:$0xff] %vm384, %v5688
        %5697 = vst.msk [vmem:[%s5040 + $0x21] sm:$0xff] %vm384, %v5689
        %5698 = vst.msk [vmem:[%s5040 + $0x31] sm:$0xff] %vm384, %v5690
        %5699 = vst.msk [vmem:[%s5040 + $0x41] sm:$0xff] %vm384, %v5691
        %5700 = vst.msk [vmem:[%s5040 + $0x51] sm:$0xff] %vm384, %v5692
        %5701 = vst.msk [vmem:[%s5040 + $0x61] sm:$0xff] %vm384, %v5693
        %5702 = vst.msk [vmem:[%s5040 + $0x71] sm:$0xff] %vm384, %v5694
        %v5703 = vld [vmem:[#allocation3] sm:$0xff]
        %v5704 = vld [vmem:[#allocation3 + $0x10] sm:$0xff]
        %v5705 = vld [vmem:[#allocation3 + $0x20] sm:$0xff]
        %v5706 = vld [vmem:[#allocation3 + $0x30] sm:$0xff]
        %v5707 = vld [vmem:[#allocation3 + $0x40] sm:$0xff]
        %v5708 = vld [vmem:[#allocation3 + $0x50] sm:$0xff]
        %v5709 = vld [vmem:[#allocation3 + $0x60] sm:$0xff]
        %v5710 = vld [vmem:[#allocation3 + $0x70] sm:$0xff]
        %5711 = vst.msk [vmem:[#allocation5] sm:$0xff] %vm384, %v5703
        %5712 = vst.msk [vmem:[#allocation5 + $0x18] sm:$0xff] %vm384, %v5704
        %5713 = vst.msk [vmem:[#allocation5 + $0x30] sm:$0xff] %vm384, %v5705
        %5714 = vst.msk [vmem:[#allocation5 + $0x48] sm:$0xff] %vm384, %v5706
        %5715 = vst.msk [vmem:[#allocation5 + $0x60] sm:$0xff] %vm384, %v5707
        %5716 = vst.msk [vmem:[#allocation5 + $0x78] sm:$0xff] %vm384, %v5708
        %5717 = vst.msk [vmem:[#allocation5 + $0x90] sm:$0xff] %vm384, %v5709
        %5718 = vst.msk [vmem:[#allocation5 + $0xa8] sm:$0xff] %vm384, %v5710
        %v5719 = vld [vmem:[#allocation3 + $0x1] sm:$0xff]
        %v5720 = vld [vmem:[#allocation3 + $0x11] sm:$0xff]
        %v5721 = vld [vmem:[#allocation3 + $0x21] sm:$0xff]
        %v5722 = vld [vmem:[#allocation3 + $0x31] sm:$0xff]
        %v5723 = vld [vmem:[#allocation3 + $0x41] sm:$0xff]
        %v5724 = vld [vmem:[#allocation3 + $0x51] sm:$0xff]
        %v5725 = vld [vmem:[#allocation3 + $0x61] sm:$0xff]
        %v5726 = vld [vmem:[#allocation3 + $0x71] sm:$0xff]
        %5735 = vrot.lane.b32.xlu0 %v5719, 32
        %v5736 = vpop.permute.xlu0 %5735
        %5737 = vrot.lane.b32.xlu0 %v5720, 32
        %v5738 = vpop.permute.xlu0 %5737
        %5739 = vrot.lane.b32.xlu0 %v5721, 32
        %v5740 = vpop.permute.xlu0 %5739
        %5741 = vrot.lane.b32.xlu0 %v5722, 32
        %v5742 = vpop.permute.xlu0 %5741
        %5743 = vrot.lane.b32.xlu0 %v5723, 32
        %v5744 = vpop.permute.xlu0 %5743
        %5745 = vrot.lane.b32.xlu0 %v5724, 32
        %v5746 = vpop.permute.xlu0 %5745
        %5747 = vrot.lane.b32.xlu0 %v5725, 32
        %v5748 = vpop.permute.xlu0 %5747
        %5749 = vrot.lane.b32.xlu0 %v5726, 32
        %v5750 = vpop.permute.xlu0 %5749
        %5759 = vst.msk [vmem:[#allocation5] sm:$0xff] %vm3128, %v5736
        %5760 = vst.msk [vmem:[#allocation5 + $0x18] sm:$0xff] %vm3128, %v5738
        %5761 = vst.msk [vmem:[#allocation5 + $0x30] sm:$0xff] %vm3128, %v5740
        %5762 = vst.msk [vmem:[#allocation5 + $0x48] sm:$0xff] %vm3128, %v5742
        %5763 = vst.msk [vmem:[#allocation5 + $0x60] sm:$0xff] %vm3128, %v5744
        %5764 = vst.msk [vmem:[#allocation5 + $0x78] sm:$0xff] %vm3128, %v5746
        %5765 = vst.msk [vmem:[#allocation5 + $0x90] sm:$0xff] %vm3128, %v5748
        %5766 = vst.msk [vmem:[#allocation5 + $0xa8] sm:$0xff] %vm3128, %v5750
        %v5767 = vld [vmem:[#allocation3 + $0x2] sm:$0xff]
        %v5768 = vld [vmem:[#allocation3 + $0x12] sm:$0xff]
        %v5769 = vld [vmem:[#allocation3 + $0x22] sm:$0xff]
        %v5770 = vld [vmem:[#allocation3 + $0x32] sm:$0xff]
        %v5771 = vld [vmem:[#allocation3 + $0x42] sm:$0xff]
        %v5772 = vld [vmem:[#allocation3 + $0x52] sm:$0xff]
        %v5773 = vld [vmem:[#allocation3 + $0x62] sm:$0xff]
        %v5774 = vld [vmem:[#allocation3 + $0x72] sm:$0xff]
        %5783 = vrot.lane.b32.xlu0 %v5767, 64
        %v5784 = vpop.permute.xlu0 %5783
        %5785 = vrot.lane.b32.xlu0 %v5768, 64
        %v5786 = vpop.permute.xlu0 %5785
        %5787 = vrot.lane.b32.xlu0 %v5769, 64
        %v5788 = vpop.permute.xlu0 %5787
        %5789 = vrot.lane.b32.xlu0 %v5770, 64
        %v5790 = vpop.permute.xlu0 %5789
        %5791 = vrot.lane.b32.xlu0 %v5771, 64
        %v5792 = vpop.permute.xlu0 %5791
        %5793 = vrot.lane.b32.xlu0 %v5772, 64
        %v5794 = vpop.permute.xlu0 %5793
        %5795 = vrot.lane.b32.xlu0 %v5773, 64
        %v5796 = vpop.permute.xlu0 %5795
        %5797 = vrot.lane.b32.xlu0 %v5774, 64
        %v5798 = vpop.permute.xlu0 %5797
        %5807 = vst.msk [vmem:[#allocation5] sm:$0xff] %vm3321, %v5784
        %5808 = vst.msk [vmem:[#allocation5 + $0x18] sm:$0xff] %vm3321, %v5786
        %5809 = vst.msk [vmem:[#allocation5 + $0x30] sm:$0xff] %vm3321, %v5788
        %5810 = vst.msk [vmem:[#allocation5 + $0x48] sm:$0xff] %vm3321, %v5790
        %5811 = vst.msk [vmem:[#allocation5 + $0x60] sm:$0xff] %vm3321, %v5792
        %5812 = vst.msk [vmem:[#allocation5 + $0x78] sm:$0xff] %vm3321, %v5794
        %5813 = vst.msk [vmem:[#allocation5 + $0x90] sm:$0xff] %vm3321, %v5796
        %5814 = vst.msk [vmem:[#allocation5 + $0xa8] sm:$0xff] %vm3321, %v5798
        %v5815 = vld [vmem:[%s5040] sm:$0xff]
        %v5816 = vld [vmem:[%s5040 + $0x10] sm:$0xff]
        %v5817 = vld [vmem:[%s5040 + $0x20] sm:$0xff]
        %v5818 = vld [vmem:[%s5040 + $0x30] sm:$0xff]
        %v5819 = vld [vmem:[%s5040 + $0x40] sm:$0xff]
        %v5820 = vld [vmem:[%s5040 + $0x50] sm:$0xff]
        %v5821 = vld [vmem:[%s5040 + $0x60] sm:$0xff]
        %v5822 = vld [vmem:[%s5040 + $0x70] sm:$0xff]
        %5831 = vrot.lane.b32.xlu0 %v5815, 96
        %v5832 = vpop.permute.xlu0 %5831
        %5833 = vrot.lane.b32.xlu0 %v5816, 96
        %v5834 = vpop.permute.xlu0 %5833
        %5835 = vrot.lane.b32.xlu0 %v5817, 96
        %v5836 = vpop.permute.xlu0 %5835
        %5837 = vrot.lane.b32.xlu0 %v5818, 96
        %v5838 = vpop.permute.xlu0 %5837
        %5839 = vrot.lane.b32.xlu0 %v5819, 96
        %v5840 = vpop.permute.xlu0 %5839
        %5841 = vrot.lane.b32.xlu0 %v5820, 96
        %v5842 = vpop.permute.xlu0 %5841
        %5843 = vrot.lane.b32.xlu0 %v5821, 96
        %v5844 = vpop.permute.xlu0 %5843
        %5845 = vrot.lane.b32.xlu0 %v5822, 96
        %v5846 = vpop.permute.xlu0 %5845
        %5855 = vst.msk [vmem:[#allocation5] sm:$0xff] %vm3514, %v5832
        %5856 = vst.msk [vmem:[#allocation5 + $0x18] sm:$0xff] %vm3514, %v5834
        %5857 = vst.msk [vmem:[#allocation5 + $0x30] sm:$0xff] %vm3514, %v5836
        %5858 = vst.msk [vmem:[#allocation5 + $0x48] sm:$0xff] %vm3514, %v5838
        %5859 = vst.msk [vmem:[#allocation5 + $0x60] sm:$0xff] %vm3514, %v5840
        %5860 = vst.msk [vmem:[#allocation5 + $0x78] sm:$0xff] %vm3514, %v5842
        %5861 = vst.msk [vmem:[#allocation5 + $0x90] sm:$0xff] %vm3514, %v5844
        %5862 = vst.msk [vmem:[#allocation5 + $0xa8] sm:$0xff] %vm3514, %v5846
        %v5863 = vld [vmem:[%s5040 + $0x1] sm:$0xff]
        %v5864 = vld [vmem:[%s5040 + $0x11] sm:$0xff]
        %v5865 = vld [vmem:[%s5040 + $0x21] sm:$0xff]
        %v5866 = vld [vmem:[%s5040 + $0x31] sm:$0xff]
        %v5867 = vld [vmem:[%s5040 + $0x41] sm:$0xff]
        %v5868 = vld [vmem:[%s5040 + $0x51] sm:$0xff]
        %v5869 = vld [vmem:[%s5040 + $0x61] sm:$0xff]
        %v5870 = vld [vmem:[%s5040 + $0x71] sm:$0xff]
        %5871 = vst.msk [vmem:[#allocation5 + $0x8] sm:$0xff] %vm384, %v5863
        %5872 = vst.msk [vmem:[#allocation5 + $0x20] sm:$0xff] %vm384, %v5864
        %5873 = vst.msk [vmem:[#allocation5 + $0x38] sm:$0xff] %vm384, %v5865
        %5874 = vst.msk [vmem:[#allocation5 + $0x50] sm:$0xff] %vm384, %v5866
        %5875 = vst.msk [vmem:[#allocation5 + $0x68] sm:$0xff] %vm384, %v5867
        %5876 = vst.msk [vmem:[#allocation5 + $0x80] sm:$0xff] %vm384, %v5868
        %5877 = vst.msk [vmem:[#allocation5 + $0x98] sm:$0xff] %vm384, %v5869
        %5878 = vst.msk [vmem:[#allocation5 + $0xb0] sm:$0xff] %vm384, %v5870
        %v5879 = vld [vmem:[%s5040 + $0x2] sm:$0xff]
        %v5880 = vld [vmem:[%s5040 + $0x12] sm:$0xff]
        %v5881 = vld [vmem:[%s5040 + $0x22] sm:$0xff]
        %v5882 = vld [vmem:[%s5040 + $0x32] sm:$0xff]
        %v5883 = vld [vmem:[%s5040 + $0x42] sm:$0xff]
        %v5884 = vld [vmem:[%s5040 + $0x52] sm:$0xff]
        %v5885 = vld [vmem:[%s5040 + $0x62] sm:$0xff]
        %v5886 = vld [vmem:[%s5040 + $0x72] sm:$0xff]
        %5895 = vrot.lane.b32.xlu0 %v5879, 32
        %v5896 = vpop.permute.xlu0 %5895
        %5897 = vrot.lane.b32.xlu0 %v5880, 32
        %v5898 = vpop.permute.xlu0 %5897
        %5899 = vrot.lane.b32.xlu0 %v5881, 32
        %v5900 = vpop.permute.xlu0 %5899
        %5901 = vrot.lane.b32.xlu0 %v5882, 32
        %v5902 = vpop.permute.xlu0 %5901
        %5903 = vrot.lane.b32.xlu0 %v5883, 32
        %v5904 = vpop.permute.xlu0 %5903
        %5905 = vrot.lane.b32.xlu0 %v5884, 32
        %v5906 = vpop.permute.xlu0 %5905
        %5907 = vrot.lane.b32.xlu0 %v5885, 32
        %v5908 = vpop.permute.xlu0 %5907
        %5909 = vrot.lane.b32.xlu0 %v5886, 32
        %v5910 = vpop.permute.xlu0 %5909
        %5919 = vst.msk [vmem:[#allocation5 + $0x8] sm:$0xff] %vm3128, %v5896
        %5920 = vst.msk [vmem:[#allocation5 + $0x20] sm:$0xff] %vm3128, %v5898
        %5921 = vst.msk [vmem:[#allocation5 + $0x38] sm:$0xff] %vm3128, %v5900
        %5922 = vst.msk [vmem:[#allocation5 + $0x50] sm:$0xff] %vm3128, %v5902
        %5923 = vst.msk [vmem:[#allocation5 + $0x68] sm:$0xff] %vm3128, %v5904
        %5924 = vst.msk [vmem:[#allocation5 + $0x80] sm:$0xff] %vm3128, %v5906
        %5925 = vst.msk [vmem:[#allocation5 + $0x98] sm:$0xff] %vm3128, %v5908
        %5926 = vst.msk [vmem:[#allocation5 + $0xb0] sm:$0xff] %vm3128, %v5910
        %v5927 = vld [vmem:[%s5273] sm:$0xff]
        %v5928 = vld [vmem:[%s5273 + $0x10] sm:$0xff]
        %v5929 = vld [vmem:[%s5273 + $0x20] sm:$0xff]
        %v5930 = vld [vmem:[%s5273 + $0x30] sm:$0xff]
        %v5931 = vld [vmem:[%s5273 + $0x40] sm:$0xff]
        %v5932 = vld [vmem:[%s5273 + $0x50] sm:$0xff]
        %v5933 = vld [vmem:[%s5273 + $0x60] sm:$0xff]
        %v5934 = vld [vmem:[%s5273 + $0x70] sm:$0xff]
        %5943 = vrot.lane.b32.xlu0 %v5927, 64
        %v5944 = vpop.permute.xlu0 %5943
        %5945 = vrot.lane.b32.xlu0 %v5928, 64
        %v5946 = vpop.permute.xlu0 %5945
        %5947 = vrot.lane.b32.xlu0 %v5929, 64
        %v5948 = vpop.permute.xlu0 %5947
        %5949 = vrot.lane.b32.xlu0 %v5930, 64
        %v5950 = vpop.permute.xlu0 %5949
        %5951 = vrot.lane.b32.xlu0 %v5931, 64
        %v5952 = vpop.permute.xlu0 %5951
        %5953 = vrot.lane.b32.xlu0 %v5932, 64
        %v5954 = vpop.permute.xlu0 %5953
        %5955 = vrot.lane.b32.xlu0 %v5933, 64
        %v5956 = vpop.permute.xlu0 %5955
        %5957 = vrot.lane.b32.xlu0 %v5934, 64
        %v5958 = vpop.permute.xlu0 %5957
        %5967 = vst.msk [vmem:[#allocation5 + $0x8] sm:$0xff] %vm3321, %v5944
        %5968 = vst.msk [vmem:[#allocation5 + $0x20] sm:$0xff] %vm3321, %v5946
        %5969 = vst.msk [vmem:[#allocation5 + $0x38] sm:$0xff] %vm3321, %v5948
        %5970 = vst.msk [vmem:[#allocation5 + $0x50] sm:$0xff] %vm3321, %v5950
        %5971 = vst.msk [vmem:[#allocation5 + $0x68] sm:$0xff] %vm3321, %v5952
        %5972 = vst.msk [vmem:[#allocation5 + $0x80] sm:$0xff] %vm3321, %v5954
        %5973 = vst.msk [vmem:[#allocation5 + $0x98] sm:$0xff] %vm3321, %v5956
        %5974 = vst.msk [vmem:[#allocation5 + $0xb0] sm:$0xff] %vm3321, %v5958
        %v5975 = vld [vmem:[%s5273 + $0x1] sm:$0xff]
        %v5976 = vld [vmem:[%s5273 + $0x11] sm:$0xff]
        %v5977 = vld [vmem:[%s5273 + $0x21] sm:$0xff]
        %v5978 = vld [vmem:[%s5273 + $0x31] sm:$0xff]
        %v5979 = vld [vmem:[%s5273 + $0x41] sm:$0xff]
        %v5980 = vld [vmem:[%s5273 + $0x51] sm:$0xff]
        %v5981 = vld [vmem:[%s5273 + $0x61] sm:$0xff]
        %v5982 = vld [vmem:[%s5273 + $0x71] sm:$0xff]
        %5991 = vrot.lane.b32.xlu0 %v5975, 96
        %v5992 = vpop.permute.xlu0 %5991
        %5993 = vrot.lane.b32.xlu0 %v5976, 96
        %v5994 = vpop.permute.xlu0 %5993
        %5995 = vrot.lane.b32.xlu0 %v5977, 96
        %v5996 = vpop.permute.xlu0 %5995
        %5997 = vrot.lane.b32.xlu0 %v5978, 96
        %v5998 = vpop.permute.xlu0 %5997
        %5999 = vrot.lane.b32.xlu0 %v5979, 96
        %v6000 = vpop.permute.xlu0 %5999
        %6001 = vrot.lane.b32.xlu0 %v5980, 96
        %v6002 = vpop.permute.xlu0 %6001
        %6003 = vrot.lane.b32.xlu0 %v5981, 96
        %v6004 = vpop.permute.xlu0 %6003
        %6005 = vrot.lane.b32.xlu0 %v5982, 96
        %v6006 = vpop.permute.xlu0 %6005
        %6015 = vst.msk [vmem:[#allocation5 + $0x8] sm:$0xff] %vm3514, %v5992
        %6016 = vst.msk [vmem:[#allocation5 + $0x20] sm:$0xff] %vm3514, %v5994
        %6017 = vst.msk [vmem:[#allocation5 + $0x38] sm:$0xff] %vm3514, %v5996
        %6018 = vst.msk [vmem:[#allocation5 + $0x50] sm:$0xff] %vm3514, %v5998
        %6019 = vst.msk [vmem:[#allocation5 + $0x68] sm:$0xff] %vm3514, %v6000
        %6020 = vst.msk [vmem:[#allocation5 + $0x80] sm:$0xff] %vm3514, %v6002
        %6021 = vst.msk [vmem:[#allocation5 + $0x98] sm:$0xff] %vm3514, %v6004
        %6022 = vst.msk [vmem:[#allocation5 + $0xb0] sm:$0xff] %vm3514, %v6006
        %v6023 = vld [vmem:[%s5273 + $0x2] sm:$0xff]
        %v6024 = vld [vmem:[%s5273 + $0x12] sm:$0xff]
        %v6025 = vld [vmem:[%s5273 + $0x22] sm:$0xff]
        %v6026 = vld [vmem:[%s5273 + $0x32] sm:$0xff]
        %v6027 = vld [vmem:[%s5273 + $0x42] sm:$0xff]
        %v6028 = vld [vmem:[%s5273 + $0x52] sm:$0xff]
        %v6029 = vld [vmem:[%s5273 + $0x62] sm:$0xff]
        %v6030 = vld [vmem:[%s5273 + $0x72] sm:$0xff]
        %6031 = vst.msk [vmem:[#allocation5 + $0x10] sm:$0xff] %vm384, %v6023
        %6032 = vst.msk [vmem:[#allocation5 + $0x28] sm:$0xff] %vm384, %v6024
        %6033 = vst.msk [vmem:[#allocation5 + $0x40] sm:$0xff] %vm384, %v6025
        %6034 = vst.msk [vmem:[#allocation5 + $0x58] sm:$0xff] %vm384, %v6026
        %6035 = vst.msk [vmem:[#allocation5 + $0x70] sm:$0xff] %vm384, %v6027
        %6036 = vst.msk [vmem:[#allocation5 + $0x88] sm:$0xff] %vm384, %v6028
        %6037 = vst.msk [vmem:[#allocation5 + $0xa0] sm:$0xff] %vm384, %v6029
        %6038 = vst.msk [vmem:[#allocation5 + $0xb8] sm:$0xff] %vm384, %v6030
        %v6039 = vld [vmem:[#allocation5] sm:$0xff]
        %v6040 = vld [vmem:[#allocation5 + $0x8] sm:$0xff]
        %v6041 = vld [vmem:[#allocation5 + $0x10] sm:$0xff]
        %v6042 = vld [vmem:[#allocation5 + $0x18] sm:$0xff]
        %v6043 = vld [vmem:[#allocation5 + $0x20] sm:$0xff]
        %v6044 = vld [vmem:[#allocation5 + $0x28] sm:$0xff]
        %v6045 = vld [vmem:[#allocation5 + $0x30] sm:$0xff]
        %v6046 = vld [vmem:[#allocation5 + $0x38] sm:$0xff]
        %v6047 = vld [vmem:[#allocation5 + $0x40] sm:$0xff]
        %v6048 = vld [vmem:[#allocation5 + $0x48] sm:$0xff]
        %v6049 = vld [vmem:[#allocation5 + $0x50] sm:$0xff]
        %v6050 = vld [vmem:[#allocation5 + $0x58] sm:$0xff]
        %v6051 = vld [vmem:[#allocation5 + $0x60] sm:$0xff]
        %v6052 = vld [vmem:[#allocation5 + $0x68] sm:$0xff]
        %v6053 = vld [vmem:[#allocation5 + $0x70] sm:$0xff]
        %v6054 = vld [vmem:[#allocation5 + $0x78] sm:$0xff]
        %v6055 = vld [vmem:[#allocation5 + $0x80] sm:$0xff]
        %v6056 = vld [vmem:[#allocation5 + $0x88] sm:$0xff]
        %v6057 = vld [vmem:[#allocation5 + $0x90] sm:$0xff]
        %v6058 = vld [vmem:[#allocation5 + $0x98] sm:$0xff]
        %v6059 = vld [vmem:[#allocation5 + $0xa0] sm:$0xff]
        %v6060 = vld [vmem:[#allocation5 + $0xa8] sm:$0xff]
        %v6061 = vld [vmem:[#allocation5 + $0xb0] sm:$0xff]
        %v6062 = vld [vmem:[#allocation5 + $0xb8] sm:$0xff]
        %v6063 = vld [vmem:[%s7] sm:$0xff]
        %v6064 = vld [vmem:[%s7 + $0x8] sm:$0xff]
        %v6065 = vld [vmem:[%s7 + $0x10] sm:$0xff]
        %v6066 = vld [vmem:[%s7 + $0x18] sm:$0xff]
        %v6067 = vld [vmem:[%s7 + $0x20] sm:$0xff]
        %v6068 = vld [vmem:[%s7 + $0x28] sm:$0xff]
        %v6069 = vld [vmem:[%s7 + $0x30] sm:$0xff]
        %v6070 = vld [vmem:[%s7 + $0x38] sm:$0xff]
        %v6071 = vld [vmem:[%s7 + $0x40] sm:$0xff]
        %v6072 = vld [vmem:[%s7 + $0x48] sm:$0xff]
        %v6073 = vld [vmem:[%s7 + $0x50] sm:$0xff]
        %v6074 = vld [vmem:[%s7 + $0x58] sm:$0xff]
        %v6075 = vld [vmem:[%s7 + $0x60] sm:$0xff]
        %v6076 = vld [vmem:[%s7 + $0x68] sm:$0xff]
        %v6077 = vld [vmem:[%s7 + $0x70] sm:$0xff]
        %v6078 = vld [vmem:[%s7 + $0x78] sm:$0xff]
        %v6079 = vld [vmem:[%s7 + $0x80] sm:$0xff]
        %v6080 = vld [vmem:[%s7 + $0x88] sm:$0xff]
        %v6081 = vld [vmem:[%s7 + $0x90] sm:$0xff]
        %v6082 = vld [vmem:[%s7 + $0x98] sm:$0xff]
        %v6083 = vld [vmem:[%s7 + $0xa0] sm:$0xff]
        %v6084 = vld [vmem:[%s7 + $0xa8] sm:$0xff]
        %v6085 = vld [vmem:[%s7 + $0xb0] sm:$0xff]
        %v6086 = vld [vmem:[%s7 + $0xb8] sm:$0xff]
        %v6087 = vld [vmem:[%s7 + $0xc0] sm:$0xff]
        %v6088 = vld [vmem:[%s7 + $0xc8] sm:$0xff]
        %v6089 = vld [vmem:[%s7 + $0xd0] sm:$0xff]
        %v6090 = vld [vmem:[%s7 + $0xd8] sm:$0xff]
        %v6091 = vld [vmem:[%s7 + $0xe0] sm:$0xff]
        %v6092 = vld [vmem:[%s7 + $0xe8] sm:$0xff]
        %v6093 = vld [vmem:[%s7 + $0xf0] sm:$0xff]
        %v6094 = vld [vmem:[%s7 + $0xf8] sm:$0xff]
        %v6095 = vld [vmem:[%s7 + $0x100] sm:$0xff]
        %v6096 = vld [vmem:[%s7 + $0x108] sm:$0xff]
        %v6097 = vld [vmem:[%s7 + $0x110] sm:$0xff]
        %v6098 = vld [vmem:[%s7 + $0x118] sm:$0xff]
        %v6099 = vld [vmem:[%s8] sm:$0x1]
        %v6101 = vlaneseq
        %v6102 = vshrl.u32 %v6101, 7
        %v6103 = vsub.s32 0, %v6102
        %v6104 = vrot.slane %v6099, %v6103
        %v6107 = vsel %vm384, %v6041, 0
        %v6110 = vsel %vm384, %v6044, 0
        %v6113 = vsel %vm384, %v6047, 0
        %v6116 = vsel %vm384, %v6050, 0
        %v6119 = vsel %vm384, %v6053, 0
        %v6122 = vsel %vm384, %v6056, 0
        %v6125 = vsel %vm384, %v6059, 0
        %v6128 = vsel %vm384, %v6062, 0
        %6130 = vmatprep.subr.mxu0 0.0
        %6131 = vmatpush1.msra.mxu0 %v6063
        %6132 = vmatprep.subr.mxu0 0.0
        %6133 = vmatpush1.msra.mxu0 %v6064
        %6134 = vmatprep.subr.mxu0 0.0
        %6135 = vmatpush1.msra.mxu0 %v6065
        %6136 = vmatprep.subr.mxu0 0.0
        %6137 = vmatpush1.msra.mxu0 %v6066
        %6138 = vmatprep.subr.mxu0 0.0
        %6139 = vmatpush1.msra.mxu0 %v6067
        %6140 = vmatprep.subr.mxu0 0.0
        %6141 = vmatpush1.msra.mxu0 %v6068
        %6142 = vmatprep.subr.mxu0 0.0
        %6143 = vmatpush1.msra.mxu0 %v6069
        %6144 = vmatprep.subr.mxu0 0.0
        %6145 = vmatpush1.msra.mxu0 %v6070
        %6146 = vmatprep.subr.mxu0 0.0
        %6147 = vmatpush1.msra.mxu0 %v6071
        %6148 = vmatprep.subr.mxu0 0.0
        %6149 = vmatpush1.msra.mxu0 %v6072
        %6150 = vmatprep.subr.mxu0 0.0
        %6151 = vmatpush1.msra.mxu0 %v6073
        %6152 = vmatprep.subr.mxu0 0.0
        %6153 = vmatpush1.msra.mxu0 %v6074
        %6154 = vmatprep.subr.mxu0 0.0
        %6155 = vmatpush1.msra.mxu0 %v6075
        %6156 = vmatprep.subr.mxu0 0.0
        %6157 = vmatpush1.msra.mxu0 %v6076
        %6158 = vmatprep.subr.mxu0 0.0
        %6159 = vmatpush1.msra.mxu0 %v6077
        %6160 = vmatprep.subr.mxu0 0.0
        %6161 = vmatpush1.msra.mxu0 %v6078
        %6162 = vmatprep.subr.mxu0 0.0
        %6163 = vmatpush1.msra.mxu0 %v6079
        %6164 = vmatprep.subr.mxu0 0.0
        %6165 = vmatpush1.msra.mxu0 %v6080
        %6166 = vmatprep.subr.mxu0 0.0
        %6167 = vmatpush1.msra.mxu0 %v6081
        %6168 = vmatprep.subr.mxu0 0.0
        %6169 = vmatpush1.msra.mxu0 %v6082
        %6170 = vmatprep.subr.mxu0 0.0
        %6171 = vmatpush1.msra.mxu0 %v6083
        %6172 = vmatprep.subr.mxu0 0.0
        %6173 = vmatpush1.msra.mxu0 %v6084
        %6174 = vmatprep.subr.mxu0 0.0
        %6175 = vmatpush1.msra.mxu0 %v6085
        %6176 = vmatprep.subr.mxu0 0.0
        %6177 = vmatpush1.msra.mxu0 %v6086
        %6178 = vmatprep.subr.mxu0 0.0
        %6179 = vmatpush1.msra.mxu0 %v6087
        %6180 = vmatprep.subr.mxu0 0.0
        %6181 = vmatpush1.msra.mxu0 %v6088
        %6182 = vmatprep.subr.mxu0 0.0
        %6183 = vmatpush1.msra.mxu0 %v6089
        %6184 = vmatprep.subr.mxu0 0.0
        %6185 = vmatpush1.msra.mxu0 %v6090
        %6186 = vmatprep.subr.mxu0 0.0
        %6187 = vmatpush1.msra.mxu0 %v6091
        %6188 = vmatprep.subr.mxu0 0.0
        %6189 = vmatpush1.msra.mxu0 %v6092
        %6190 = vmatprep.subr.mxu0 0.0
        %6191 = vmatpush1.msra.mxu0 %v6093
        %6192 = vmatprep.subr.mxu0 0.0
        %6193 = vmatpush1.msra.mxu0 %v6094
        %6194 = vmatprep.mubr.f32.mxu0 %v6040
        %6195 = vmatmul.mubr.f32.gmra.mrb[0].mxu0 %v6039
        %v6196 = vpop.f32.mrb[0].mxu0
        %v6197 = vadd.f32 %v6104, %v6196
        %v6198 = vpop.f32.mrb[0].mxu0
        %6199 = vmatprep.mubr.f32.mxu0 %v6043
        %6200 = vmatmul.mubr.f32.gmra.mrb[0].mxu0 %v6042
        %v6201 = vpop.f32.mrb[0].mxu0
        %v6202 = vadd.f32 %v6104, %v6201
        %v6203 = vpop.f32.mrb[0].mxu0
        %6204 = vmatprep.mubr.f32.mxu0 %v6046
        %6205 = vmatmul.mubr.f32.gmra.mrb[0].mxu0 %v6045
        %v6206 = vpop.f32.mrb[0].mxu0
        %v6207 = vadd.f32 %v6104, %v6206
        %v6208 = vpop.f32.mrb[0].mxu0
        %6209 = vmatprep.mubr.f32.mxu0 %v6049
        %6210 = vmatmul.mubr.f32.gmra.mrb[0].mxu0 %v6048
        %v6211 = vpop.f32.mrb[0].mxu0
        %v6212 = vadd.f32 %v6104, %v6211
        %v6213 = vpop.f32.mrb[0].mxu0
        %6214 = vmatprep.mubr.f32.mxu0 %v6052
        %6215 = vmatmul.mubr.f32.gmra.mrb[0].mxu0 %v6051
        %v6216 = vpop.f32.mrb[0].mxu0
        %v6217 = vadd.f32 %v6104, %v6216
        %v6218 = vpop.f32.mrb[0].mxu0
        %6219 = vmatprep.mubr.f32.mxu0 %v6055
        %6220 = vmatmul.mubr.f32.gmra.mrb[0].mxu0 %v6054
        %v6221 = vpop.f32.mrb[0].mxu0
        %v6222 = vadd.f32 %v6104, %v6221
        %v6223 = vpop.f32.mrb[0].mxu0
        %6224 = vmatprep.mubr.f32.mxu0 %v6058
        %6225 = vmatmul.mubr.f32.gmra.mrb[0].mxu0 %v6057
        %v6226 = vpop.f32.mrb[0].mxu0
        %v6227 = vadd.f32 %v6104, %v6226
        %v6228 = vpop.f32.mrb[0].mxu0
        %6229 = vmatprep.mubr.f32.mxu0 %v6061
        %6230 = vmatmul.mubr.f32.gmra.mrb[0].mxu0 %v6060
        %v6231 = vpop.f32.mrb[0].mxu0
        %v6232 = vadd.f32 %v6104, %v6231
        %v6233 = vpop.f32.mrb[0].mxu0
        %6234 = vdwg.mxu0
        %6235 = vmatprep.subr.mxu0 0.0
        %6236 = vmatpush1.msra.mxu0 %v6095
        %6237 = vmatprep.subr.mxu0 0.0
        %6238 = vmatpush1.msra.mxu0 %v6096
        %6239 = vmatprep.subr.mxu0 0.0
        %6240 = vmatpush1.msra.mxu0 %v6097
        %6241 = vmatprep.subr.mxu0 0.0
        %6242 = vmatpush1.msra.mxu0 %v6098
        %6243 = vmatprep.subr.mxu0 0.0
        %6244 = vmatpush1.msra.mxu0 0.0
        %6245 = vmatprep.subr.mxu0 0.0
        %6246 = vmatpush1.msra.mxu0 0.0
        %6247 = vmatprep.subr.mxu0 0.0
        %6248 = vmatpush1.msra.mxu0 0.0
        %6249 = vmatprep.subr.mxu0 0.0
        %6250 = vmatpush1.msra.mxu0 0.0
        %6251 = vmatprep.subr.mxu0 0.0
        %6252 = vmatpush1.msra.mxu0 0.0
        %6253 = vmatprep.subr.mxu0 0.0
        %6254 = vmatpush1.msra.mxu0 0.0
        %6255 = vmatprep.subr.mxu0 0.0
        %6256 = vmatpush1.msra.mxu0 0.0
        %6257 = vmatprep.subr.mxu0 0.0
        %6258 = vmatpush1.msra.mxu0 0.0
        %6259 = vmatprep.subr.mxu0 0.0
        %6260 = vmatpush1.msra.mxu0 0.0
        %6261 = vmatprep.subr.mxu0 0.0
        %6262 = vmatpush1.msra.mxu0 0.0
        %6263 = vmatprep.subr.mxu0 0.0
        %6264 = vmatpush1.msra.mxu0 0.0
        %6265 = vmatprep.subr.mxu0 0.0
        %6266 = vmatpush1.msra.mxu0 0.0
        %6267 = vmatprep.subr.mxu0 0.0
        %6268 = vmatpush1.msra.mxu0 0.0
        %6269 = vmatprep.subr.mxu0 0.0
        %6270 = vmatpush1.msra.mxu0 0.0
        %6271 = vmatprep.subr.mxu0 0.0
        %6272 = vmatpush1.msra.mxu0 0.0
        %6273 = vmatprep.subr.mxu0 0.0
        %6274 = vmatpush1.msra.mxu0 0.0
        %6275 = vmatprep.subr.mxu0 0.0
        %6276 = vmatpush1.msra.mxu0 0.0
        %6277 = vmatprep.subr.mxu0 0.0
        %6278 = vmatpush1.msra.mxu0 0.0
        %6279 = vmatprep.subr.mxu0 0.0
        %6280 = vmatpush1.msra.mxu0 0.0
        %6281 = vmatprep.subr.mxu0 0.0
        %6282 = vmatpush1.msra.mxu0 0.0
        %6283 = vmatprep.subr.mxu0 0.0
        %6284 = vmatpush1.msra.mxu0 0.0
        %6285 = vmatprep.subr.mxu0 0.0
        %6286 = vmatpush1.msra.mxu0 0.0
        %6287 = vmatprep.subr.mxu0 0.0
        %6288 = vmatpush1.msra.mxu0 0.0
        %6289 = vmatprep.subr.mxu0 0.0
        %6290 = vmatpush1.msra.mxu0 0.0
        %6291 = vmatprep.subr.mxu0 0.0
        %6292 = vmatpush1.msra.mxu0 0.0
        %6293 = vmatprep.subr.mxu0 0.0
        %6294 = vmatpush1.msra.mxu0 0.0
        %6295 = vmatprep.subr.mxu0 0.0
        %6296 = vmatpush1.msra.mxu0 0.0
        %6297 = vmatprep.subr.mxu0 0.0
        %6298 = vmatpush1.msra.mxu0 0.0
        %6299 = vmatprep.mubr.f32.mxu0 0.0
        %6300 = vmatmul.mubr.f32.gmra.mrb[0].mxu0 %v6107
        %v6301 = vpop.f32.mrb[0].mxu0
        %v6302 = vadd.f32 %v6197, %v6301
        %v6303 = vpop.f32.mrb[0].mxu0
        %6304 = vmatprep.mubr.f32.mxu0 0.0
        %6305 = vmatmul.mubr.f32.gmra.mrb[0].mxu0 %v6110
        %v6306 = vpop.f32.mrb[0].mxu0
        %v6307 = vadd.f32 %v6202, %v6306
        %v6308 = vpop.f32.mrb[0].mxu0
        %6309 = vmatprep.mubr.f32.mxu0 0.0
        %6310 = vmatmul.mubr.f32.gmra.mrb[0].mxu0 %v6113
        %v6311 = vpop.f32.mrb[0].mxu0
        %v6312 = vadd.f32 %v6207, %v6311
        %v6313 = vpop.f32.mrb[0].mxu0
        %6314 = vmatprep.mubr.f32.mxu0 0.0
        %6315 = vmatmul.mubr.f32.gmra.mrb[0].mxu0 %v6116
        %v6316 = vpop.f32.mrb[0].mxu0
        %v6317 = vadd.f32 %v6212, %v6316
        %v6318 = vpop.f32.mrb[0].mxu0
        %6319 = vmatprep.mubr.f32.mxu0 0.0
        %6320 = vmatmul.mubr.f32.gmra.mrb[0].mxu0 %v6119
        %v6321 = vpop.f32.mrb[0].mxu0
        %v6322 = vadd.f32 %v6217, %v6321
        %v6323 = vpop.f32.mrb[0].mxu0
        %6324 = vmatprep.mubr.f32.mxu0 0.0
        %6325 = vmatmul.mubr.f32.gmra.mrb[0].mxu0 %v6122
        %v6326 = vpop.f32.mrb[0].mxu0
        %v6327 = vadd.f32 %v6222, %v6326
        %v6328 = vpop.f32.mrb[0].mxu0
        %6329 = vmatprep.mubr.f32.mxu0 0.0
        %6330 = vmatmul.mubr.f32.gmra.mrb[0].mxu0 %v6125
        %v6331 = vpop.f32.mrb[0].mxu0
        %v6332 = vadd.f32 %v6227, %v6331
        %v6333 = vpop.f32.mrb[0].mxu0
        %6334 = vmatprep.mubr.f32.mxu0 0.0
        %6335 = vmatmul.mubr.f32.gmra.mrb[0].mxu0 %v6128
        %v6336 = vpop.f32.mrb[0].mxu0
        %v6337 = vadd.f32 %v6232, %v6336
        %v6338 = vpop.f32.mrb[0].mxu0
        %6339 = vdwg.mxu0
        %v6340 = vmax.f32 %v6302, 0.0
        %v6341 = vmax.f32 %v6307, 0.0
        %v6342 = vmax.f32 %v6312, 0.0
        %v6343 = vmax.f32 %v6317, 0.0
        %v6344 = vmax.f32 %v6322, 0.0
        %v6345 = vmax.f32 %v6327, 0.0
        %v6346 = vmax.f32 %v6332, 0.0
        %v6347 = vmax.f32 %v6337, 0.0
        %v6348 = vsel %vm384, %v6340, -inf
        %v6349 = vsel %vm384, %v6341, -inf
        %v6350 = vsel %vm384, %v6342, -inf
        %v6351 = vsel %vm384, %v6343, -inf
        %v6352 = vsel %vm384, %v6344, -inf
        %v6353 = vmax.f32 %v6348, %v6352
        %v6354 = vsel %vm384, %v6345, -inf
        %v6355 = vmax.f32 %v6349, %v6354
        %v6356 = vsel %vm384, %v6346, -inf
        %v6357 = vmax.f32 %v6350, %v6356
        %v6358 = vsel %vm384, %v6347, -inf
        %v6359 = vmax.f32 %v6351, %v6358
        %v6360 = vmax.f32 %v6353, %v6355
        %v6361 = vmax.f32 %v6357, %v6359
        %v6362 = vmax.f32 %v6360, %v6361
        %v6363 = vrot.slane %v6362, 4
        %v6364 = vmax.f32 %v6362, %v6363
        %v6365 = vrot.slane %v6364, 2
        %v6366 = vmax.f32 %v6364, %v6365
        %v6367 = vrot.slane %v6366, 1
        %v6368 = vmax.f32 %v6366, %v6367
        %v6369 = vld [vmem:[%s9] sm:$0xff]
        %v6370 = vld [vmem:[%s9 + $0x8] sm:$0xff]
        %v6371 = vld [vmem:[%s9 + $0x10] sm:$0xff]
        %v6372 = vld [vmem:[%s9 + $0x18] sm:$0xff]
        %v6373 = vld [vmem:[%s10] sm:$0x1]
        %v6375 = vsel %vm384, %v6368, 0
        %6377 = vmatprep.subr.mxu0 0.0
        %6378 = vmatpush1.msra.mxu0 %v6369
        %6379 = vmatprep.subr.mxu0 0.0
        %6380 = vmatpush1.msra.mxu0 %v6370
        %6381 = vmatprep.subr.mxu0 0.0
        %6382 = vmatpush1.msra.mxu0 %v6371
        %6383 = vmatprep.subr.mxu0 0.0
        %6384 = vmatpush1.msra.mxu0 %v6372
        %6385 = vmatprep.subr.mxu0 0.0
        %6386 = vmatpush1.msra.mxu0 0.0
        %6387 = vmatprep.subr.mxu0 0.0
        %6388 = vmatpush1.msra.mxu0 0.0
        %6389 = vmatprep.subr.mxu0 0.0
        %6390 = vmatpush1.msra.mxu0 0.0
        %6391 = vmatprep.subr.mxu0 0.0
        %6392 = vmatpush1.msra.mxu0 0.0
        %6393 = vmatprep.subr.mxu0 0.0
        %6394 = vmatpush1.msra.mxu0 0.0
        %6395 = vmatprep.subr.mxu0 0.0
        %6396 = vmatpush1.msra.mxu0 0.0
        %6397 = vmatprep.subr.mxu0 0.0
        %6398 = vmatpush1.msra.mxu0 0.0
        %6399 = vmatprep.subr.mxu0 0.0
        %6400 = vmatpush1.msra.mxu0 0.0
        %6401 = vmatprep.subr.mxu0 0.0
        %6402 = vmatpush1.msra.mxu0 0.0
        %6403 = vmatprep.subr.mxu0 0.0
        %6404 = vmatpush1.msra.mxu0 0.0
        %6405 = vmatprep.subr.mxu0 0.0
        %6406 = vmatpush1.msra.mxu0 0.0
        %6407 = vmatprep.subr.mxu0 0.0
        %6408 = vmatpush1.msra.mxu0 0.0
        %6409 = vmatprep.subr.mxu0 0.0
        %6410 = vmatpush1.msra.mxu0 0.0
        %6411 = vmatprep.subr.mxu0 0.0
        %6412 = vmatpush1.msra.mxu0 0.0
        %6413 = vmatprep.subr.mxu0 0.0
        %6414 = vmatpush1.msra.mxu0 0.0
        %6415 = vmatprep.subr.mxu0 0.0
        %6416 = vmatpush1.msra.mxu0 0.0
        %6417 = vmatprep.subr.mxu0 0.0
        %6418 = vmatpush1.msra.mxu0 0.0
        %6419 = vmatprep.subr.mxu0 0.0
        %6420 = vmatpush1.msra.mxu0 0.0
        %6421 = vmatprep.subr.mxu0 0.0
        %6422 = vmatpush1.msra.mxu0 0.0
        %6423 = vmatprep.subr.mxu0 0.0
        %6424 = vmatpush1.msra.mxu0 0.0
        %6425 = vmatprep.subr.mxu0 0.0
        %6426 = vmatpush1.msra.mxu0 0.0
        %6427 = vmatprep.subr.mxu0 0.0
        %6428 = vmatpush1.msra.mxu0 0.0
        %6429 = vmatprep.subr.mxu0 0.0
        %6430 = vmatpush1.msra.mxu0 0.0
        %6431 = vmatprep.subr.mxu0 0.0
        %6432 = vmatpush1.msra.mxu0 0.0
        %6433 = vmatprep.subr.mxu0 0.0
        %6434 = vmatpush1.msra.mxu0 0.0
        %6435 = vmatprep.subr.mxu0 0.0
        %6436 = vmatpush1.msra.mxu0 0.0
        %6437 = vmatprep.subr.mxu0 0.0
        %6438 = vmatpush1.msra.mxu0 0.0
        %6439 = vmatprep.subr.mxu0 0.0
        %6440 = vmatpush1.msra.mxu0 0.0
        %6441 = vmatprep.mubr.f32.mxu0 0.0
        %6442 = vmatmul.mubr.f32.gmra.mrb[0].mxu0 %v6375
        %v6443 = vpop.f32.mrb[0].mxu0
        %v6444 = vadd.f32 %v6373, %v6443
        %v6445 = vpop.f32.mrb[0].mxu0
        %6446 = vdwg.mxu0
        %vm6447 = vcmask 212992
        %v6448 = vsel %vm6447, %v6444, -inf
        %6449 = vmax.xlane.f32.xlu0 %v6448
        %v6450 = vpop.xlane.xlu0 %6449
        %v6451 = vsub.f32 %v6444, %v6450
        %v6452 = vmul.f32 %v6451, 1.442695
        %v6453 = vpow.pop %v6452
        %v6454 = vsel %vm6447, %v6453, 0.0
        %6455 = vadd.xlane.f32.xlu0 %v6454
        %v6456 = vpop.xlane.xlu0 %6455
        %v6457 = vlog2.pop %v6456
        %v6458 = vmul.f32 %v6457, 0.6931472
        %v6459 = vsub.f32 %v6451, %v6458
        %6460 = vst.msk [vmem:[%s378] sm:$0x1] %vm6447, %v6459
        %s6461 = sand.u32 %s269, 1
        %s6462 = scalar_lea.sflag [#allocation7], %s6461
        %s6463 = sand.u32 %s269, 1
        %s6464 = scalar_lea.vmem [#allocation6], %s6463
        // Predicated region
        $region65: #{cnn_net_forward.1} parent=63 // pred_check
          %p6465 = pneg %p279
        $region66: #{cnn_net_forward.1} parent=63 // pred_check_branch
          %6467 = sbr.rel (%p6465) target = $region68
        $region67: #{cnn_net_forward.1} parent=63 // pred_region
          %s6469 = ssub.s32 16, 16
          %6470 = vsyncadd %s6462, %s6469
          %s6471 = smul.addr %s25, 16
          %s6472 = scalar_lea.hbm %s11, %s6471
          %s6474 = sshll.u32 %s6464, 4
          %s6475 = int_to_ptr.vmem [resolvable:$true] %s6474
          %6477 = dma.vmem_to_hbm [thread:$0]  %s6475, 16, %s6472, %s6462
        $region68: #{cnn_net_forward.1} parent=63 // pred_fallthru
          _
      $region64: #{cnn_net_forward.1} parent=5 // pred_fallthru
        _
      %p6478 = scmp.le.s32.totalorder 2, %s20
      // Predicated region
      $region69: #{cnn_net_forward.1} parent=5 // pred_check
        %p6479 = pneg %p6478
      $region70: #{cnn_net_forward.1} parent=5 // pred_check_branch
        %6481 = sbr.rel (%p6479) target = $region72
      $region71: #{cnn_net_forward.1} parent=5 // pred_region
        %s6482 = ssub.s32 %s20, 2
        // Predicated region
        $region73: #{cnn_net_forward.1} parent=71 // pred_check
          %p6483 = pneg %p285
        $region74: #{cnn_net_forward.1} parent=71 // pred_check_branch
          %6485 = sbr.rel (%p6483) target = $region76
        $region75: #{cnn_net_forward.1} parent=71 // pred_region
          %s6486 = sand.u32 %s270, 1
          %s6487 = scalar_lea.sflag [#allocation7], %s6486
          %s6488 = sand.u32 %s270, 1
          %s6489 = scalar_lea.vmem [#allocation6], %s6488
          %6490 = dma.done %s6487, 16
        $region76: #{cnn_net_forward.1} parent=71 // pred_fallthru
          _
      $region72: #{cnn_net_forward.1} parent=5 // pred_fallthru
        _
    $region6: #{cnn_net_forward.1} parent=1 // loop_footer
      %s24 = sadd.s32 1, %s20
    $region7: #{cnn_net_forward.1} parent=1 // loop_footer_branch
      %19 = sbr.rel target = $region3
    $region8: #{cnn_net_forward.1} parent=1 // loop_exit
      _
    %6491 = vsyncpa [#allocation7], 1
    %s6492 = scalar_lea.sflag [#allocation7], 1
    %6493 = vsyncpa %s6492, 1

</llo_original>
